<compile_context>
chip_gen: v6e
topology: v6e:2x2x1
jax: 0.10.0
libtpu: 0.0.40
codegen_flags: <defaults>
</compile_context>

<pallas_src>
import functools

import jax
import jax.numpy as jnp
from jax.experimental import pallas as pl
from jax.experimental.pallas import tpu as pltpu

LANE = 128
BN_EPS = 1e-5
NEG_SLOPE = 0.01


# ----------------------------------------------------------------------------
# Fully fused kernel: num_convs x (conv3x3 + bias + BN(batch stats) + LeakyReLU)
# ----------------------------------------------------------------------------
def _fused_stack_kernel(*refs, num_convs, eps, neg_slope, use_bf16):
    x_ref = refs[0]
    layer_refs = refs[1:1 + 4 * num_convs]
    o_ref = refs[1 + 4 * num_convs]
    pad_ref = refs[2 + 4 * num_convs]          # (N, H+2, W+2, Cpad) VMEM scratch

    N, Hp, Wp, C = pad_ref.shape
    H, W = Hp - 2, Wp - 2
    n_elems = N * H * W

    # Zero the halo once; the interior is overwritten every layer.
    pad_ref[...] = jnp.zeros(pad_ref.shape, pad_ref.dtype)

    cur = x_ref[...].astype(jnp.float32)       # (N, H, W, C)

    for l in range(num_convs):
        w_ref, b_ref, g_ref, bt_ref = layer_refs[4 * l:4 * l + 4]

        # Write the current activation into the interior of the padded scratch.
        pad_ref[:, pl.ds(1, H), pl.ds(1, W), :] = cur

        # im2col: one lane-dense MXU matmul instead of 9 tiny ones.
        cols = []
        for dy in range(3):
            for dx in range(3):
                patch = pad_ref[:, pl.ds(dy, H), pl.ds(dx, W), :]   # (N,H,W,C)
                cols.append(patch.reshape(n_elems, C))
        patches = jnp.concatenate(cols, axis=1)                     # (N*H*W, 9C)

        w = w_ref[...]                                              # (9C, C)
        if use_bf16:
            patches = patches.astype(jnp.bfloat16)
            w = w.astype(jnp.bfloat16)
        y = jnp.dot(patches, w, preferred_element_type=jnp.float32)  # (N*H*W, C)
        y = y + b_ref[...]                                           # + (1, C)

        # Dropout2d: identity (see TODO at top of file).

        # BatchNorm2d, training-mode batch statistics, single pass (sum / sumsq).
        s = jnp.sum(y, axis=0, keepdims=True)
        ss = jnp.sum(y * y, axis=0, keepdims=True)
        mean = s * (1.0 / n_elems)
        var = jnp.maximum(ss * (1.0 / n_elems) - mean * mean, 0.0)
        inv = jax.lax.rsqrt(var + eps)
        out = (y - mean) * (inv * g_ref[...]) + bt_ref[...]

        # LeakyReLU(negative_slope)
        out = jnp.where(out >= 0, out, neg_slope * out)

        cur = out.reshape(N, H, W, C)

    o_ref[...] = cur.astype(o_ref.dtype)


# ----------------------------------------------------------------------------
# Wrapper: NCHW <-> NHWC, channel padding to lane width, single pallas_call.
# ----------------------------------------------------------------------------
def _round_up(x, m):
    return (x + m - 1) // m * m


@functools.partial(jax.jit, static_argnames=("use_bf16_matmul",))
def stacked_conv_layers_forward(x_nchw, params, use_bf16_matmul=False):
    num_convs = len(params)
    N, Cin, H, W = x_nchw.shape
    Cout = params[0]["w"].shape[-1]
    Cpad = _round_up(max(Cin, Cout, LANE), LANE)   # lane-dense channel width

    # NCHW (PyTorch) -> NHWC (kernel layout); zero-pad channels to Cpad.
    x = jnp.transpose(x_nchw, (0, 2, 3, 1))
    x = jnp.pad(x, ((0, 0), (0, 0), (0, 0), (0, Cpad - Cin)))

    flat_params = []
    in_specs = [pl.BlockSpec((N, H, W, Cpad), lambda i: (0, 0, 0, 0))]
    for p in params:
        cin_l = p["w"].shape[2]
        w = jnp.pad(p["w"], ((0, 0), (0, 0), (0, Cpad - cin_l), (0, Cpad - Cout)))
        w = w.reshape(9 * Cpad, Cpad)                    # row = (dy*3+dx)*Cpad + cin
        b = jnp.pad(p["b"], ((0, Cpad - Cout),)).reshape(1, Cpad)
        g = jnp.pad(p["gamma"], ((0, Cpad - Cout),), constant_values=1.0).reshape(1, Cpad)
        bt = jnp.pad(p["beta"], ((0, Cpad - Cout),)).reshape(1, Cpad)
        flat_params += [w, b, g, bt]
        in_specs += [
            pl.BlockSpec((9 * Cpad, Cpad), lambda i: (0, 0)),
            pl.BlockSpec((1, Cpad), lambda i: (0, 0)),
            pl.BlockSpec((1, Cpad), lambda i: (0, 0)),
            pl.BlockSpec((1, Cpad), lambda i: (0, 0)),
        ]

    kern = functools.partial(
        _fused_stack_kernel, num_convs=num_convs, eps=BN_EPS,
        neg_slope=NEG_SLOPE, use_bf16=use_bf16_matmul)

    flops = 2 * num_convs * N * H * W * 9 * Cpad * Cpad
    bytes_accessed = 4 * (x.size + N * H * W * Cpad + sum(a.size for a in flat_params))

    out = pl.pallas_call(
        kern,
        out_shape=jax.ShapeDtypeStruct((N, H, W, Cpad), x_nchw.dtype),
        grid=(1,),
        in_specs=in_specs,
        out_specs=pl.BlockSpec((N, H, W, Cpad), lambda i: (0, 0, 0, 0)),
        scratch_shapes=[pltpu.VMEM((N, H + 2, W + 2, Cpad), jnp.float32)],
        compiler_params=pltpu.CompilerParams(dimension_semantics=("arbitrary",)),
        cost_estimate=pl.CostEstimate(flops=flops,
                                      transcendentals=num_convs * Cpad,
                                      bytes_accessed=bytes_accessed),
    )(x, *flat_params)

    # Drop channel padding, NHWC -> NCHW.
    return jnp.transpose(out[..., :Cout], (0, 3, 1, 2))


# ----------------------------------------------------------------------------
# Parameter init (deterministic). Conv weights stored as (3, 3, Cin, Cout).
# ----------------------------------------------------------------------------
def init_stacked_conv_layers(key, input_channels, output_channels, num_convs):
    params = []
    cin = input_channels
    for _ in range(num_convs):
        key, kw, kb, kg, kbt = jax.random.split(key, 5)
        w = jax.random.normal(kw, (3, 3, cin, output_channels), jnp.float32) * 0.1
        b = jax.random.normal(kb, (output_channels,), jnp.float32) * 0.1
        gamma = 1.0 + 0.1 * jax.random.normal(kg, (output_channels,), jnp.float32)
        beta = 0.1 * jax.random.normal(kbt, (output_channels,), jnp.float32)
        params.append({"w": w, "b": b, "gamma": gamma, "beta": beta})
        cin = output_channels
    return params


# ----------------------------------------------------------------------------
# Pure-JAX reference (conv + BN(batch stats) + LeakyReLU), for a sanity check.
# ----------------------------------------------------------------------------
def _reference_forward(x_nchw, params, eps=BN_EPS, neg_slope=NEG_SLOPE):
    x = jnp.transpose(x_nchw, (0, 2, 3, 1))
    for p in params:
        y = jax.lax.conv_general_dilated(
            x, p["w"], window_strides=(1, 1), padding=((1, 1), (1, 1)),
            dimension_numbers=("NHWC", "HWIO", "NHWC"),
            precision=jax.lax.Precision.HIGHEST) + p["b"]
        mean = jnp.mean(y, axis=(0, 1, 2), keepdims=True)
        var = jnp.mean((y - mean) ** 2, axis=(0, 1, 2), keepdims=True)
        out = (y - mean) * jax.lax.rsqrt(var + eps) * p["gamma"] + p["beta"]
        x = jnp.where(out >= 0, out, neg_slope * out)
    return jnp.transpose(x, (0, 3, 1, 2))


if __name__ == "__main__":
    key = jax.random.PRNGKey(0)
    k_x, k_p = jax.random.split(key)

    # Small shapes consistent with StackedConvLayers(4, 8, num_convs=2)
    N, Cin, H, W = 2, 4, 16, 16
    Cout, num_convs = 8, 2

    x = jax.random.normal(k_x, (N, Cin, H, W), jnp.float32)
    params = init_stacked_conv_layers(k_p, Cin, Cout, num_convs)

    out = stacked_conv_layers_forward(x, params)
    out = jax.block_until_ready(out)

    assert out.shape == (N, Cout, H, W), out.shape
    assert bool(jnp.all(jnp.isfinite(out)))

    ref = _reference_forward(x, params)
    max_diff = float(jnp.max(jnp.abs(out - ref)))
    assert max_diff < 1e-3, f"mismatch vs reference: {max_diff}"

    print("KERNEL_OK")
</pallas_src>

<mosaic_0001>
module attributes {stable_mosaic.version = 11 : i64} {
  func.func @_fused_stack_kernel(%arg0: i32, %arg1: memref<2x16x16x128xf32, #tpu.memory_space<vmem>>, %arg2: memref<1152x128xf32, #tpu.memory_space<vmem>>, %arg3: memref<1x128xf32, #tpu.memory_space<vmem>>, %arg4: memref<1x128xf32, #tpu.memory_space<vmem>>, %arg5: memref<1x128xf32, #tpu.memory_space<vmem>>, %arg6: memref<1152x128xf32, #tpu.memory_space<vmem>>, %arg7: memref<1x128xf32, #tpu.memory_space<vmem>>, %arg8: memref<1x128xf32, #tpu.memory_space<vmem>>, %arg9: memref<1x128xf32, #tpu.memory_space<vmem>>, %arg10: memref<2x16x16x128xf32, #tpu.memory_space<vmem>>, %arg11: memref<2x18x18x128xf32, #tpu.memory_space<vmem>>) attributes {dimension_semantics = [#tpu.dimension_semantics<arbitrary>], iteration_bounds = array<i64: 1>, scalar_prefetch = 0 : i64, scratch_operands = 1 : i64, tpu.core_type = #tpu.core_type<tc>, window_params = [{pipeline_mode = #tpu.pipeline_mode<synchronous>, transform_indices = @transform_0, window_bounds = array<i64: 2, 16, 16, 128>}, {pipeline_mode = #tpu.pipeline_mode<synchronous>, transform_indices = @transform_1, window_bounds = array<i64: 1152, 128>}, {pipeline_mode = #tpu.pipeline_mode<synchronous>, transform_indices = @transform_2, window_bounds = array<i64: 1, 128>}, {pipeline_mode = #tpu.pipeline_mode<synchronous>, transform_indices = @transform_3, window_bounds = array<i64: 1, 128>}, {pipeline_mode = #tpu.pipeline_mode<synchronous>, transform_indices = @transform_4, window_bounds = array<i64: 1, 128>}, {pipeline_mode = #tpu.pipeline_mode<synchronous>, transform_indices = @transform_5, window_bounds = array<i64: 1152, 128>}, {pipeline_mode = #tpu.pipeline_mode<synchronous>, transform_indices = @transform_6, window_bounds = array<i64: 1, 128>}, {pipeline_mode = #tpu.pipeline_mode<synchronous>, transform_indices = @transform_7, window_bounds = array<i64: 1, 128>}, {pipeline_mode = #tpu.pipeline_mode<synchronous>, transform_indices = @transform_8, window_bounds = array<i64: 1, 128>}, {pipeline_mode = #tpu.pipeline_mode<synchronous>, transform_indices = @transform_9, window_bounds = array<i64: 2, 16, 16, 128>}]} {
    %cst = arith.constant 0.000000e+00 : f32
    %0 = vector.broadcast %cst : f32 to vector<2x18x18x128xf32>
    %c0 = arith.constant 0 : index
    %c0_0 = arith.constant 0 : index
    %c0_1 = arith.constant 0 : index
    %c0_2 = arith.constant 0 : index
    %1 = vector.load %arg11[%c0, %c0_0, %c0_1, %c0_2] : memref<2x18x18x128xf32, #tpu.memory_space<vmem>>, vector<2x18x18x128xf32>
    tpu.vector_store %arg11[%c0, %c0_0, %c0_1, %c0_2], %0 {strides = array<i32>} : memref<2x18x18x128xf32, #tpu.memory_space<vmem>>, vector<2x18x18x128xf32>,
    %c0_3 = arith.constant 0 : index
    %c0_4 = arith.constant 0 : index
    %c0_5 = arith.constant 0 : index
    %c0_6 = arith.constant 0 : index
    %2 = vector.load %arg1[%c0_3, %c0_4, %c0_5, %c0_6] : memref<2x16x16x128xf32, #tpu.memory_space<vmem>>, vector<2x16x16x128xf32>
    %c0_7 = arith.constant 0 : index
    %c1 = arith.constant 1 : index
    %c1_8 = arith.constant 1 : index
    %c0_9 = arith.constant 0 : index
    %3 = vector.load %arg11[%c0_7, %c1, %c1_8, %c0_9] : memref<2x18x18x128xf32, #tpu.memory_space<vmem>>, vector<2x16x16x128xf32>
    tpu.vector_store %arg11[%c0_7, %c1, %c1_8, %c0_9], %2 {strides = array<i32>} : memref<2x18x18x128xf32, #tpu.memory_space<vmem>>, vector<2x16x16x128xf32>,
    %c0_10 = arith.constant 0 : index
    %c0_11 = arith.constant 0 : index
    %c0_12 = arith.constant 0 : index
    %c0_13 = arith.constant 0 : index
    %4 = vector.load %arg11[%c0_10, %c0_11, %c0_12, %c0_13] : memref<2x18x18x128xf32, #tpu.memory_space<vmem>>, vector<2x16x16x128xf32>
    %5 = vector.shape_cast %4 : vector<2x16x16x128xf32> to vector<512x128xf32>
    %c0_14 = arith.constant 0 : index
    %c0_15 = arith.constant 0 : index
    %c1_16 = arith.constant 1 : index
    %c0_17 = arith.constant 0 : index
    %6 = vector.load %arg11[%c0_14, %c0_15, %c1_16, %c0_17] : memref<2x18x18x128xf32, #tpu.memory_space<vmem>>, vector<2x16x16x128xf32>
    %7 = vector.shape_cast %6 : vector<2x16x16x128xf32> to vector<512x128xf32>
    %c0_18 = arith.constant 0 : index
    %c0_19 = arith.constant 0 : index
    %c2 = arith.constant 2 : index
    %c0_20 = arith.constant 0 : index
    %8 = vector.load %arg11[%c0_18, %c0_19, %c2, %c0_20] : memref<2x18x18x128xf32, #tpu.memory_space<vmem>>, vector<2x16x16x128xf32>
    %9 = vector.shape_cast %8 : vector<2x16x16x128xf32> to vector<512x128xf32>
    %c0_21 = arith.constant 0 : index
    %c1_22 = arith.constant 1 : index
    %c0_23 = arith.constant 0 : index
    %c0_24 = arith.constant 0 : index
    %10 = vector.load %arg11[%c0_21, %c1_22, %c0_23, %c0_24] : memref<2x18x18x128xf32, #tpu.memory_space<vmem>>, vector<2x16x16x128xf32>
    %11 = vector.shape_cast %10 : vector<2x16x16x128xf32> to vector<512x128xf32>
    %c0_25 = arith.constant 0 : index
    %c1_26 = arith.constant 1 : index
    %c1_27 = arith.constant 1 : index
    %c0_28 = arith.constant 0 : index
    %12 = vector.load %arg11[%c0_25, %c1_26, %c1_27, %c0_28] : memref<2x18x18x128xf32, #tpu.memory_space<vmem>>, vector<2x16x16x128xf32>
    %13 = vector.shape_cast %12 : vector<2x16x16x128xf32> to vector<512x128xf32>
    %c0_29 = arith.constant 0 : index
    %c1_30 = arith.constant 1 : index
    %c2_31 = arith.constant 2 : index
    %c0_32 = arith.constant 0 : index
    %14 = vector.load %arg11[%c0_29, %c1_30, %c2_31, %c0_32] : memref<2x18x18x128xf32, #tpu.memory_space<vmem>>, vector<2x16x16x128xf32>
    %15 = vector.shape_cast %14 : vector<2x16x16x128xf32> to vector<512x128xf32>
    %c0_33 = arith.constant 0 : index
    %c2_34 = arith.constant 2 : index
    %c0_35 = arith.constant 0 : index
    %c0_36 = arith.constant 0 : index
    %16 = vector.load %arg11[%c0_33, %c2_34, %c0_35, %c0_36] : memref<2x18x18x128xf32, #tpu.memory_space<vmem>>, vector<2x16x16x128xf32>
    %17 = vector.shape_cast %16 : vector<2x16x16x128xf32> to vector<512x128xf32>
    %c0_37 = arith.constant 0 : index
    %c2_38 = arith.constant 2 : index
    %c1_39 = arith.constant 1 : index
    %c0_40 = arith.constant 0 : index
    %18 = vector.load %arg11[%c0_37, %c2_38, %c1_39, %c0_40] : memref<2x18x18x128xf32, #tpu.memory_space<vmem>>, vector<2x16x16x128xf32>
    %19 = vector.shape_cast %18 : vector<2x16x16x128xf32> to vector<512x128xf32>
    %c0_41 = arith.constant 0 : index
    %c2_42 = arith.constant 2 : index
    %c2_43 = arith.constant 2 : index
    %c0_44 = arith.constant 0 : index
    %20 = vector.load %arg11[%c0_41, %c2_42, %c2_43, %c0_44] : memref<2x18x18x128xf32, #tpu.memory_space<vmem>>, vector<2x16x16x128xf32>
    %21 = vector.shape_cast %20 : vector<2x16x16x128xf32> to vector<512x128xf32>
    %22 = tpu.concatenate %5, %7, %9, %11, %13, %15, %17, %19, %21 in 1 : vector<512x128xf32>, vector<512x128xf32>, vector<512x128xf32>, vector<512x128xf32>, vector<512x128xf32>, vector<512x128xf32>, vector<512x128xf32>, vector<512x128xf32>, vector<512x128xf32> -> vector<512x1152xf32>
    %c0_45 = arith.constant 0 : index
    %c0_46 = arith.constant 0 : index
    %23 = vector.load %arg2[%c0_45, %c0_46] : memref<1152x128xf32, #tpu.memory_space<vmem>>, vector<1152x128xf32>
    %cst_47 = arith.constant dense<0.000000e+00> : vector<512x128xf32>
    %24 = tpu.matmul %22, %23, %cst_47 {dimension_numbers = #tpu.dot_dimension_numbers<[1], [0], [0], [1], [0, 0, 1, 1], [], []>} : vector<512x1152xf32>, vector<1152x128xf32>, vector<512x128xf32> -> vector<512x128xf32>
    %c0_48 = arith.constant 0 : index
    %c0_49 = arith.constant 0 : index
    %25 = vector.load %arg3[%c0_48, %c0_49] : memref<1x128xf32, #tpu.memory_space<vmem>>, vector<1x128xf32>
    %26 = vector.broadcast %25 : vector<1x128xf32> to vector<512x128xf32>
    %27 = arith.addf %24, %26 : vector<512x128xf32>
    %cst_50 = arith.constant dense<0.000000e+00> : vector<128xf32>
    %28 = vector.multi_reduction <add>, %27, %cst_50 [0] : vector<512x128xf32> to vector<128xf32>
    %29 = vector.shape_cast %28 : vector<128xf32> to vector<1x128xf32>
    %30 = arith.mulf %27, %27 : vector<512x128xf32>
    %cst_51 = arith.constant dense<0.000000e+00> : vector<128xf32>
    %31 = vector.multi_reduction <add>, %30, %cst_51 [0] : vector<512x128xf32> to vector<128xf32>
    %32 = vector.shape_cast %31 : vector<128xf32> to vector<1x128xf32>
    %cst_52 = arith.constant 0.001953125 : f32
    %33 = vector.broadcast %cst_52 : f32 to vector<1x128xf32>
    %34 = arith.mulf %29, %33 : vector<1x128xf32>
    %cst_53 = arith.constant 0.001953125 : f32
    %35 = vector.broadcast %cst_53 : f32 to vector<1x128xf32>
    %36 = arith.mulf %32, %35 : vector<1x128xf32>
    %37 = arith.mulf %34, %34 : vector<1x128xf32>
    %38 = arith.subf %36, %37 : vector<1x128xf32>
    %cst_54 = arith.constant 0.000000e+00 : f32
    %39 = vector.broadcast %cst_54 : f32 to vector<1x128xf32>
    %40 = arith.maximumf %38, %39 : vector<1x128xf32>
    %cst_55 = arith.constant 9.99999974E-6 : f32
    %41 = vector.broadcast %cst_55 : f32 to vector<1x128xf32>
    %42 = arith.addf %40, %41 : vector<1x128xf32>
    %43 = math.rsqrt %42 : vector<1x128xf32>
    %44 = vector.broadcast %34 : vector<1x128xf32> to vector<512x128xf32>
    %45 = arith.subf %27, %44 : vector<512x128xf32>
    %c0_56 = arith.constant 0 : index
    %c0_57 = arith.constant 0 : index
    %46 = vector.load %arg4[%c0_56, %c0_57] : memref<1x128xf32, #tpu.memory_space<vmem>>, vector<1x128xf32>
    %47 = arith.mulf %43, %46 : vector<1x128xf32>
    %48 = vector.broadcast %47 : vector<1x128xf32> to vector<512x128xf32>
    %49 = arith.mulf %45, %48 : vector<512x128xf32>
    %c0_58 = arith.constant 0 : index
    %c0_59 = arith.constant 0 : index
    %50 = vector.load %arg5[%c0_58, %c0_59] : memref<1x128xf32, #tpu.memory_space<vmem>>, vector<1x128xf32>
    %51 = vector.broadcast %50 : vector<1x128xf32> to vector<512x128xf32>
    %52 = arith.addf %49, %51 : vector<512x128xf32>
    %cst_60 = arith.constant 0.000000e+00 : f32
    %53 = vector.broadcast %cst_60 : f32 to vector<512x128xf32>
    %54 = arith.cmpf oge, %52, %53 : vector<512x128xf32>
    %cst_61 = arith.constant 0.00999999977 : f32
    %55 = vector.broadcast %cst_61 : f32 to vector<512x128xf32>
    %56 = arith.mulf %55, %52 : vector<512x128xf32>
    %57 = arith.select %54, %52, %56 : vector<512x128xi1>, vector<512x128xf32>
    %58 = vector.shape_cast %57 : vector<512x128xf32> to vector<2x16x16x128xf32>
    %c0_62 = arith.constant 0 : index
    %c1_63 = arith.constant 1 : index
    %c1_64 = arith.constant 1 : index
    %c0_65 = arith.constant 0 : index
    %59 = vector.load %arg11[%c0_62, %c1_63, %c1_64, %c0_65] : memref<2x18x18x128xf32, #tpu.memory_space<vmem>>, vector<2x16x16x128xf32>
    tpu.vector_store %arg11[%c0_62, %c1_63, %c1_64, %c0_65], %58 {strides = array<i32>} : memref<2x18x18x128xf32, #tpu.memory_space<vmem>>, vector<2x16x16x128xf32>,
    %c0_66 = arith.constant 0 : index
    %c0_67 = arith.constant 0 : index
    %c0_68 = arith.constant 0 : index
    %c0_69 = arith.constant 0 : index
    %60 = vector.load %arg11[%c0_66, %c0_67, %c0_68, %c0_69] : memref<2x18x18x128xf32, #tpu.memory_space<vmem>>, vector<2x16x16x128xf32>
    %61 = vector.shape_cast %60 : vector<2x16x16x128xf32> to vector<512x128xf32>
    %c0_70 = arith.constant 0 : index
    %c0_71 = arith.constant 0 : index
    %c1_72 = arith.constant 1 : index
    %c0_73 = arith.constant 0 : index
    %62 = vector.load %arg11[%c0_70, %c0_71, %c1_72, %c0_73] : memref<2x18x18x128xf32, #tpu.memory_space<vmem>>, vector<2x16x16x128xf32>
    %63 = vector.shape_cast %62 : vector<2x16x16x128xf32> to vector<512x128xf32>
    %c0_74 = arith.constant 0 : index
    %c0_75 = arith.constant 0 : index
    %c2_76 = arith.constant 2 : index
    %c0_77 = arith.constant 0 : index
    %64 = vector.load %arg11[%c0_74, %c0_75, %c2_76, %c0_77] : memref<2x18x18x128xf32, #tpu.memory_space<vmem>>, vector<2x16x16x128xf32>
    %65 = vector.shape_cast %64 : vector<2x16x16x128xf32> to vector<512x128xf32>
    %c0_78 = arith.constant 0 : index
    %c1_79 = arith.constant 1 : index
    %c0_80 = arith.constant 0 : index
    %c0_81 = arith.constant 0 : index
    %66 = vector.load %arg11[%c0_78, %c1_79, %c0_80, %c0_81] : memref<2x18x18x128xf32, #tpu.memory_space<vmem>>, vector<2x16x16x128xf32>
    %67 = vector.shape_cast %66 : vector<2x16x16x128xf32> to vector<512x128xf32>
    %c0_82 = arith.constant 0 : index
    %c1_83 = arith.constant 1 : index
    %c1_84 = arith.constant 1 : index
    %c0_85 = arith.constant 0 : index
    %68 = vector.load %arg11[%c0_82, %c1_83, %c1_84, %c0_85] : memref<2x18x18x128xf32, #tpu.memory_space<vmem>>, vector<2x16x16x128xf32>
    %69 = vector.shape_cast %68 : vector<2x16x16x128xf32> to vector<512x128xf32>
    %c0_86 = arith.constant 0 : index
    %c1_87 = arith.constant 1 : index
    %c2_88 = arith.constant 2 : index
    %c0_89 = arith.constant 0 : index
    %70 = vector.load %arg11[%c0_86, %c1_87, %c2_88, %c0_89] : memref<2x18x18x128xf32, #tpu.memory_space<vmem>>, vector<2x16x16x128xf32>
    %71 = vector.shape_cast %70 : vector<2x16x16x128xf32> to vector<512x128xf32>
    %c0_90 = arith.constant 0 : index
    %c2_91 = arith.constant 2 : index
    %c0_92 = arith.constant 0 : index
    %c0_93 = arith.constant 0 : index
    %72 = vector.load %arg11[%c0_90, %c2_91, %c0_92, %c0_93] : memref<2x18x18x128xf32, #tpu.memory_space<vmem>>, vector<2x16x16x128xf32>
    %73 = vector.shape_cast %72 : vector<2x16x16x128xf32> to vector<512x128xf32>
    %c0_94 = arith.constant 0 : index
    %c2_95 = arith.constant 2 : index
    %c1_96 = arith.constant 1 : index
    %c0_97 = arith.constant 0 : index
    %74 = vector.load %arg11[%c0_94, %c2_95, %c1_96, %c0_97] : memref<2x18x18x128xf32, #tpu.memory_space<vmem>>, vector<2x16x16x128xf32>
    %75 = vector.shape_cast %74 : vector<2x16x16x128xf32> to vector<512x128xf32>
    %c0_98 = arith.constant 0 : index
    %c2_99 = arith.constant 2 : index
    %c2_100 = arith.constant 2 : index
    %c0_101 = arith.constant 0 : index
    %76 = vector.load %arg11[%c0_98, %c2_99, %c2_100, %c0_101] : memref<2x18x18x128xf32, #tpu.memory_space<vmem>>, vector<2x16x16x128xf32>
    %77 = vector.shape_cast %76 : vector<2x16x16x128xf32> to vector<512x128xf32>
    %78 = tpu.concatenate %61, %63, %65, %67, %69, %71, %73, %75, %77 in 1 : vector<512x128xf32>, vector<512x128xf32>, vector<512x128xf32>, vector<512x128xf32>, vector<512x128xf32>, vector<512x128xf32>, vector<512x128xf32>, vector<512x128xf32>, vector<512x128xf32> -> vector<512x1152xf32>
    %c0_102 = arith.constant 0 : index
    %c0_103 = arith.constant 0 : index
    %79 = vector.load %arg6[%c0_102, %c0_103] : memref<1152x128xf32, #tpu.memory_space<vmem>>, vector<1152x128xf32>
    %cst_104 = arith.constant dense<0.000000e+00> : vector<512x128xf32>
    %80 = tpu.matmul %78, %79, %cst_104 {dimension_numbers = #tpu.dot_dimension_numbers<[1], [0], [0], [1], [0, 0, 1, 1], [], []>} : vector<512x1152xf32>, vector<1152x128xf32>, vector<512x128xf32> -> vector<512x128xf32>
    %c0_105 = arith.constant 0 : index
    %c0_106 = arith.constant 0 : index
    %81 = vector.load %arg7[%c0_105, %c0_106] : memref<1x128xf32, #tpu.memory_space<vmem>>, vector<1x128xf32>
    %82 = vector.broadcast %81 : vector<1x128xf32> to vector<512x128xf32>
    %83 = arith.addf %80, %82 : vector<512x128xf32>
    %cst_107 = arith.constant dense<0.000000e+00> : vector<128xf32>
    %84 = vector.multi_reduction <add>, %83, %cst_107 [0] : vector<512x128xf32> to vector<128xf32>
    %85 = vector.shape_cast %84 : vector<128xf32> to vector<1x128xf32>
    %86 = arith.mulf %83, %83 : vector<512x128xf32>
    %cst_108 = arith.constant dense<0.000000e+00> : vector<128xf32>
    %87 = vector.multi_reduction <add>, %86, %cst_108 [0] : vector<512x128xf32> to vector<128xf32>
    %88 = vector.shape_cast %87 : vector<128xf32> to vector<1x128xf32>
    %cst_109 = arith.constant 0.001953125 : f32
    %89 = vector.broadcast %cst_109 : f32 to vector<1x128xf32>
    %90 = arith.mulf %85, %89 : vector<1x128xf32>
    %cst_110 = arith.constant 0.001953125 : f32
    %91 = vector.broadcast %cst_110 : f32 to vector<1x128xf32>
    %92 = arith.mulf %88, %91 : vector<1x128xf32>
    %93 = arith.mulf %90, %90 : vector<1x128xf32>
    %94 = arith.subf %92, %93 : vector<1x128xf32>
    %cst_111 = arith.constant 0.000000e+00 : f32
    %95 = vector.broadcast %cst_111 : f32 to vector<1x128xf32>
    %96 = arith.maximumf %94, %95 : vector<1x128xf32>
    %cst_112 = arith.constant 9.99999974E-6 : f32
    %97 = vector.broadcast %cst_112 : f32 to vector<1x128xf32>
    %98 = arith.addf %96, %97 : vector<1x128xf32>
    %99 = math.rsqrt %98 : vector<1x128xf32>
    %100 = vector.broadcast %90 : vector<1x128xf32> to vector<512x128xf32>
    %101 = arith.subf %83, %100 : vector<512x128xf32>
    %c0_113 = arith.constant 0 : index
    %c0_114 = arith.constant 0 : index
    %102 = vector.load %arg8[%c0_113, %c0_114] : memref<1x128xf32, #tpu.memory_space<vmem>>, vector<1x128xf32>
    %103 = arith.mulf %99, %102 : vector<1x128xf32>
    %104 = vector.broadcast %103 : vector<1x128xf32> to vector<512x128xf32>
    %105 = arith.mulf %101, %104 : vector<512x128xf32>
    %c0_115 = arith.constant 0 : index
    %c0_116 = arith.constant 0 : index
    %106 = vector.load %arg9[%c0_115, %c0_116] : memref<1x128xf32, #tpu.memory_space<vmem>>, vector<1x128xf32>
    %107 = vector.broadcast %106 : vector<1x128xf32> to vector<512x128xf32>
    %108 = arith.addf %105, %107 : vector<512x128xf32>
    %cst_117 = arith.constant 0.000000e+00 : f32
    %109 = vector.broadcast %cst_117 : f32 to vector<512x128xf32>
    %110 = arith.cmpf oge, %108, %109 : vector<512x128xf32>
    %cst_118 = arith.constant 0.00999999977 : f32
    %111 = vector.broadcast %cst_118 : f32 to vector<512x128xf32>
    %112 = arith.mulf %111, %108 : vector<512x128xf32>
    %113 = arith.select %110, %108, %112 : vector<512x128xi1>, vector<512x128xf32>
    %114 = vector.shape_cast %113 : vector<512x128xf32> to vector<2x16x16x128xf32>
    %c0_119 = arith.constant 0 : index
    %c0_120 = arith.constant 0 : index
    %c0_121 = arith.constant 0 : index
    %c0_122 = arith.constant 0 : index
    %115 = vector.load %arg10[%c0_119, %c0_120, %c0_121, %c0_122] : memref<2x16x16x128xf32, #tpu.memory_space<vmem>>, vector<2x16x16x128xf32>
    tpu.vector_store %arg10[%c0_119, %c0_120, %c0_121, %c0_122], %114 {strides = array<i32>} : memref<2x16x16x128xf32, #tpu.memory_space<vmem>>, vector<2x16x16x128xf32>,
    return
  }
  func.func @transform_0(%arg0: i32) -> (i32, i32, i32, i32) {
    %c0_i32 = arith.constant 0 : i32
    %c0_i32_0 = arith.constant 0 : i32
    %c0_i32_1 = arith.constant 0 : i32
    %c0_i32_2 = arith.constant 0 : i32
    %c0_i32_3 = arith.constant 0 : i32
    return %c0_i32, %c0_i32_0, %c0_i32_1, %c0_i32_2 : i32, i32, i32, i32
  }
  func.func @transform_1(%arg0: i32) -> (i32, i32) {
    %c0_i32 = arith.constant 0 : i32
    %c0_i32_0 = arith.constant 0 : i32
    %c0_i32_1 = arith.constant 0 : i32
    return %c0_i32, %c0_i32_0 : i32, i32
  }
  func.func @transform_2(%arg0: i32) -> (i32, i32) {
    %c0_i32 = arith.constant 0 : i32
    %c0_i32_0 = arith.constant 0 : i32
    %c0_i32_1 = arith.constant 0 : i32
    return %c0_i32, %c0_i32_0 : i32, i32
  }
  func.func @transform_3(%arg0: i32) -> (i32, i32) {
    %c0_i32 = arith.constant 0 : i32
    %c0_i32_0 = arith.constant 0 : i32
    %c0_i32_1 = arith.constant 0 : i32
    return %c0_i32, %c0_i32_0 : i32, i32
  }
  func.func @transform_4(%arg0: i32) -> (i32, i32) {
    %c0_i32 = arith.constant 0 : i32
    %c0_i32_0 = arith.constant 0 : i32
    %c0_i32_1 = arith.constant 0 : i32
    return %c0_i32, %c0_i32_0 : i32, i32
  }
  func.func @transform_5(%arg0: i32) -> (i32, i32) {
    %c0_i32 = arith.constant 0 : i32
    %c0_i32_0 = arith.constant 0 : i32
    %c0_i32_1 = arith.constant 0 : i32
    return %c0_i32, %c0_i32_0 : i32, i32
  }
  func.func @transform_6(%arg0: i32) -> (i32, i32) {
    %c0_i32 = arith.constant 0 : i32
    %c0_i32_0 = arith.constant 0 : i32
    %c0_i32_1 = arith.constant 0 : i32
    return %c0_i32, %c0_i32_0 : i32, i32
  }
  func.func @transform_7(%arg0: i32) -> (i32, i32) {
    %c0_i32 = arith.constant 0 : i32
    %c0_i32_0 = arith.constant 0 : i32
    %c0_i32_1 = arith.constant 0 : i32
    return %c0_i32, %c0_i32_0 : i32, i32
  }
  func.func @transform_8(%arg0: i32) -> (i32, i32) {
    %c0_i32 = arith.constant 0 : i32
    %c0_i32_0 = arith.constant 0 : i32
    %c0_i32_1 = arith.constant 0 : i32
    return %c0_i32, %c0_i32_0 : i32, i32
  }
  func.func @transform_9(%arg0: i32) -> (i32, i32, i32, i32) {
    %c0_i32 = arith.constant 0 : i32
    %c0_i32_0 = arith.constant 0 : i32
    %c0_i32_1 = arith.constant 0 : i32
    %c0_i32_2 = arith.constant 0 : i32
    %c0_i32_3 = arith.constant 0 : i32
    return %c0_i32, %c0_i32_0, %c0_i32_1, %c0_i32_2 : i32, i32, i32, i32
  }
}

</mosaic_0001>

<llo_original>
// kernel: stacked_conv_layers_forward.1
$region0: #{stacked_conv_layers_forward.1}
  #allocation0 [shape = 'u32[]', space=smem, size = 0x4, offset = 0x4, fixed_abs, tag = 'smem constant byte address 0x4 - core index']
  #allocation1 [shape = 'u32[144,128]{1,0:T(1,128)}', space=vmem, size = 0x12000, scoped, tag = 'internal scratch']
  #allocation2 [shape = 'f32[2,18,18,128]{3,2,1,0:T(8,128)}', space=vmem, size = 0x6c000, scoped, tag = 'scratch operand']
  %s0 = inlined_call_operand.vmem [shape: f32[2,16,16,128], index: 0, kind: input, shape index: {}]
  %s1 = inlined_call_operand.vmem [shape: f32[1152,128], index: 1, kind: input, shape index: {}]
  %s2 = inlined_call_operand.vmem [shape: f32[1,128], index: 2, kind: input, shape index: {}]
  %s3 = inlined_call_operand.vmem [shape: f32[1,128], index: 3, kind: input, shape index: {}]
  %s4 = inlined_call_operand.vmem [shape: f32[1,128], index: 4, kind: input, shape index: {}]
  %s5 = inlined_call_operand.vmem [shape: f32[1152,128], index: 5, kind: input, shape index: {}]
  %s6 = inlined_call_operand.vmem [shape: f32[1,128], index: 6, kind: input, shape index: {}]
  %s7 = inlined_call_operand.vmem [shape: f32[1,128], index: 7, kind: input, shape index: {}]
  %s8 = inlined_call_operand.vmem [shape: f32[1,128], index: 8, kind: input, shape index: {}]
  %s9 = inlined_call_operand.vmem [shape: f32[2,16,16,128], index: 9, kind: output, shape index: {}]
  %s10 = sld [smem:[#allocation0]]
  $region46: #{stacked_conv_layers_forward.1} parent=0
    _
  %s12 = ssub.s32 1, %s10
  %s13 = scalar_select 0, %s12, %s10
  // Predicated region
  $region2: #{stacked_conv_layers_forward.1} parent=0 // pred_check
    _
  $region3: #{stacked_conv_layers_forward.1} parent=0 // pred_check_branch
    %15 = sbr.rel (0) target = $region5
  $region4: #{stacked_conv_layers_forward.1} parent=0 // pred_region
    _
  $region5: #{stacked_conv_layers_forward.1} parent=0 // pred_fallthru
    _
  // Predicated region
  $region6: #{stacked_conv_layers_forward.1} parent=0 // pred_check
    _
  $region7: #{stacked_conv_layers_forward.1} parent=0 // pred_check_branch
    %17 = sbr.rel (0) target = $region9
  $region8: #{stacked_conv_layers_forward.1} parent=0 // pred_region
    _
  $region9: #{stacked_conv_layers_forward.1} parent=0 // pred_fallthru
    _
  // Predicated region
  $region10: #{stacked_conv_layers_forward.1} parent=0 // pred_check
    _
  $region11: #{stacked_conv_layers_forward.1} parent=0 // pred_check_branch
    %19 = sbr.rel (0) target = $region13
  $region12: #{stacked_conv_layers_forward.1} parent=0 // pred_region
    _
  $region13: #{stacked_conv_layers_forward.1} parent=0 // pred_fallthru
    _
  // Predicated region
  $region14: #{stacked_conv_layers_forward.1} parent=0 // pred_check
    _
  $region15: #{stacked_conv_layers_forward.1} parent=0 // pred_check_branch
    %21 = sbr.rel (0) target = $region17
  $region16: #{stacked_conv_layers_forward.1} parent=0 // pred_region
    _
  $region17: #{stacked_conv_layers_forward.1} parent=0 // pred_fallthru
    _
  // Predicated region
  $region18: #{stacked_conv_layers_forward.1} parent=0 // pred_check
    _
  $region19: #{stacked_conv_layers_forward.1} parent=0 // pred_check_branch
    %23 = sbr.rel (0) target = $region21
  $region20: #{stacked_conv_layers_forward.1} parent=0 // pred_region
    _
  $region21: #{stacked_conv_layers_forward.1} parent=0 // pred_fallthru
    _
  // Predicated region
  $region22: #{stacked_conv_layers_forward.1} parent=0 // pred_check
    _
  $region23: #{stacked_conv_layers_forward.1} parent=0 // pred_check_branch
    %25 = sbr.rel (0) target = $region25
  $region24: #{stacked_conv_layers_forward.1} parent=0 // pred_region
    _
  $region25: #{stacked_conv_layers_forward.1} parent=0 // pred_fallthru
    _
  // Predicated region
  $region26: #{stacked_conv_layers_forward.1} parent=0 // pred_check
    _
  $region27: #{stacked_conv_layers_forward.1} parent=0 // pred_check_branch
    %27 = sbr.rel (0) target = $region29
  $region28: #{stacked_conv_layers_forward.1} parent=0 // pred_region
    _
  $region29: #{stacked_conv_layers_forward.1} parent=0 // pred_fallthru
    _
  // Predicated region
  $region30: #{stacked_conv_layers_forward.1} parent=0 // pred_check
    _
  $region31: #{stacked_conv_layers_forward.1} parent=0 // pred_check_branch
    %29 = sbr.rel (0) target = $region33
  $region32: #{stacked_conv_layers_forward.1} parent=0 // pred_region
    _
  $region33: #{stacked_conv_layers_forward.1} parent=0 // pred_fallthru
    _
  // Predicated region
  $region34: #{stacked_conv_layers_forward.1} parent=0 // pred_check
    _
  $region35: #{stacked_conv_layers_forward.1} parent=0 // pred_check_branch
    %31 = sbr.rel (0) target = $region37
  $region36: #{stacked_conv_layers_forward.1} parent=0 // pred_region
    _
  $region37: #{stacked_conv_layers_forward.1} parent=0 // pred_fallthru
    _
  %32 = vst [vmem:[#allocation2] sm:$0xff] 0.0
  %33 = vst [vmem:[#allocation2 + $0x8] sm:$0xff] 0.0
  %34 = vst [vmem:[#allocation2 + $0x10] sm:$0x3] 0.0
  %35 = vst [vmem:[#allocation2 + $0x18] sm:$0xff] 0.0
  %36 = vst [vmem:[#allocation2 + $0x20] sm:$0xff] 0.0
  %37 = vst [vmem:[#allocation2 + $0x28] sm:$0x3] 0.0
  %38 = vst [vmem:[#allocation2 + $0x30] sm:$0xff] 0.0
  %39 = vst [vmem:[#allocation2 + $0x38] sm:$0xff] 0.0
  %40 = vst [vmem:[#allocation2 + $0x40] sm:$0x3] 0.0
  %41 = vst [vmem:[#allocation2 + $0x48] sm:$0xff] 0.0
  %42 = vst [vmem:[#allocation2 + $0x50] sm:$0xff] 0.0
  %43 = vst [vmem:[#allocation2 + $0x58] sm:$0x3] 0.0
  %44 = vst [vmem:[#allocation2 + $0x60] sm:$0xff] 0.0
  %45 = vst [vmem:[#allocation2 + $0x68] sm:$0xff] 0.0
  %46 = vst [vmem:[#allocation2 + $0x70] sm:$0x3] 0.0
  %47 = vst [vmem:[#allocation2 + $0x78] sm:$0xff] 0.0
  %48 = vst [vmem:[#allocation2 + $0x80] sm:$0xff] 0.0
  %49 = vst [vmem:[#allocation2 + $0x88] sm:$0x3] 0.0
  %50 = vst [vmem:[#allocation2 + $0x90] sm:$0xff] 0.0
  %51 = vst [vmem:[#allocation2 + $0x98] sm:$0xff] 0.0
  %52 = vst [vmem:[#allocation2 + $0xa0] sm:$0x3] 0.0
  %53 = vst [vmem:[#allocation2 + $0xa8] sm:$0xff] 0.0
  %54 = vst [vmem:[#allocation2 + $0xb0] sm:$0xff] 0.0
  %55 = vst [vmem:[#allocation2 + $0xb8] sm:$0x3] 0.0
  %56 = vst [vmem:[#allocation2 + $0xc0] sm:$0xff] 0.0
  %57 = vst [vmem:[#allocation2 + $0xc8] sm:$0xff] 0.0
  %58 = vst [vmem:[#allocation2 + $0xd0] sm:$0x3] 0.0
  %59 = vst [vmem:[#allocation2 + $0xd8] sm:$0xff] 0.0
  %60 = vst [vmem:[#allocation2 + $0xe0] sm:$0xff] 0.0
  %61 = vst [vmem:[#allocation2 + $0xe8] sm:$0x3] 0.0
  %62 = vst [vmem:[#allocation2 + $0xf0] sm:$0xff] 0.0
  %63 = vst [vmem:[#allocation2 + $0xf8] sm:$0xff] 0.0
  %64 = vst [vmem:[#allocation2 + $0x100] sm:$0x3] 0.0
  %65 = vst [vmem:[#allocation2 + $0x108] sm:$0xff] 0.0
  %66 = vst [vmem:[#allocation2 + $0x110] sm:$0xff] 0.0
  %67 = vst [vmem:[#allocation2 + $0x118] sm:$0x3] 0.0
  %68 = vst [vmem:[#allocation2 + $0x120] sm:$0xff] 0.0
  %69 = vst [vmem:[#allocation2 + $0x128] sm:$0xff] 0.0
  %70 = vst [vmem:[#allocation2 + $0x130] sm:$0x3] 0.0
  %71 = vst [vmem:[#allocation2 + $0x138] sm:$0xff] 0.0
  %72 = vst [vmem:[#allocation2 + $0x140] sm:$0xff] 0.0
  %73 = vst [vmem:[#allocation2 + $0x148] sm:$0x3] 0.0
  %74 = vst [vmem:[#allocation2 + $0x150] sm:$0xff] 0.0
  %75 = vst [vmem:[#allocation2 + $0x158] sm:$0xff] 0.0
  %76 = vst [vmem:[#allocation2 + $0x160] sm:$0x3] 0.0
  %77 = vst [vmem:[#allocation2 + $0x168] sm:$0xff] 0.0
  %78 = vst [vmem:[#allocation2 + $0x170] sm:$0xff] 0.0
  %79 = vst [vmem:[#allocation2 + $0x178] sm:$0x3] 0.0
  %80 = vst [vmem:[#allocation2 + $0x180] sm:$0xff] 0.0
  %81 = vst [vmem:[#allocation2 + $0x188] sm:$0xff] 0.0
  %82 = vst [vmem:[#allocation2 + $0x190] sm:$0x3] 0.0
  %83 = vst [vmem:[#allocation2 + $0x198] sm:$0xff] 0.0
  %84 = vst [vmem:[#allocation2 + $0x1a0] sm:$0xff] 0.0
  %85 = vst [vmem:[#allocation2 + $0x1a8] sm:$0x3] 0.0
  %86 = vst [vmem:[#allocation2 + $0x1b0] sm:$0xff] 0.0
  %87 = vst [vmem:[#allocation2 + $0x1b8] sm:$0xff] 0.0
  %88 = vst [vmem:[#allocation2 + $0x1c0] sm:$0x3] 0.0
  %89 = vst [vmem:[#allocation2 + $0x1c8] sm:$0xff] 0.0
  %90 = vst [vmem:[#allocation2 + $0x1d0] sm:$0xff] 0.0
  %91 = vst [vmem:[#allocation2 + $0x1d8] sm:$0x3] 0.0
  %92 = vst [vmem:[#allocation2 + $0x1e0] sm:$0xff] 0.0
  %93 = vst [vmem:[#allocation2 + $0x1e8] sm:$0xff] 0.0
  %94 = vst [vmem:[#allocation2 + $0x1f0] sm:$0x3] 0.0
  %95 = vst [vmem:[#allocation2 + $0x1f8] sm:$0xff] 0.0
  %96 = vst [vmem:[#allocation2 + $0x200] sm:$0xff] 0.0
  %97 = vst [vmem:[#allocation2 + $0x208] sm:$0x3] 0.0
  %98 = vst [vmem:[#allocation2 + $0x210] sm:$0xff] 0.0
  %99 = vst [vmem:[#allocation2 + $0x218] sm:$0xff] 0.0
  %100 = vst [vmem:[#allocation2 + $0x220] sm:$0x3] 0.0
  %101 = vst [vmem:[#allocation2 + $0x228] sm:$0xff] 0.0
  %102 = vst [vmem:[#allocation2 + $0x230] sm:$0xff] 0.0
  %103 = vst [vmem:[#allocation2 + $0x238] sm:$0x3] 0.0
  %104 = vst [vmem:[#allocation2 + $0x240] sm:$0xff] 0.0
  %105 = vst [vmem:[#allocation2 + $0x248] sm:$0xff] 0.0
  %106 = vst [vmem:[#allocation2 + $0x250] sm:$0x3] 0.0
  %107 = vst [vmem:[#allocation2 + $0x258] sm:$0xff] 0.0
  %108 = vst [vmem:[#allocation2 + $0x260] sm:$0xff] 0.0
  %109 = vst [vmem:[#allocation2 + $0x268] sm:$0x3] 0.0
  %110 = vst [vmem:[#allocation2 + $0x270] sm:$0xff] 0.0
  %111 = vst [vmem:[#allocation2 + $0x278] sm:$0xff] 0.0
  %112 = vst [vmem:[#allocation2 + $0x280] sm:$0x3] 0.0
  %113 = vst [vmem:[#allocation2 + $0x288] sm:$0xff] 0.0
  %114 = vst [vmem:[#allocation2 + $0x290] sm:$0xff] 0.0
  %115 = vst [vmem:[#allocation2 + $0x298] sm:$0x3] 0.0
  %116 = vst [vmem:[#allocation2 + $0x2a0] sm:$0xff] 0.0
  %117 = vst [vmem:[#allocation2 + $0x2a8] sm:$0xff] 0.0
  %118 = vst [vmem:[#allocation2 + $0x2b0] sm:$0x3] 0.0
  %119 = vst [vmem:[#allocation2 + $0x2b8] sm:$0xff] 0.0
  %120 = vst [vmem:[#allocation2 + $0x2c0] sm:$0xff] 0.0
  %121 = vst [vmem:[#allocation2 + $0x2c8] sm:$0x3] 0.0
  %122 = vst [vmem:[#allocation2 + $0x2d0] sm:$0xff] 0.0
  %123 = vst [vmem:[#allocation2 + $0x2d8] sm:$0xff] 0.0
  %124 = vst [vmem:[#allocation2 + $0x2e0] sm:$0x3] 0.0
  %125 = vst [vmem:[#allocation2 + $0x2e8] sm:$0xff] 0.0
  %126 = vst [vmem:[#allocation2 + $0x2f0] sm:$0xff] 0.0
  %127 = vst [vmem:[#allocation2 + $0x2f8] sm:$0x3] 0.0
  %128 = vst [vmem:[#allocation2 + $0x300] sm:$0xff] 0.0
  %129 = vst [vmem:[#allocation2 + $0x308] sm:$0xff] 0.0
  %130 = vst [vmem:[#allocation2 + $0x310] sm:$0x3] 0.0
  %131 = vst [vmem:[#allocation2 + $0x318] sm:$0xff] 0.0
  %132 = vst [vmem:[#allocation2 + $0x320] sm:$0xff] 0.0
  %133 = vst [vmem:[#allocation2 + $0x328] sm:$0x3] 0.0
  %134 = vst [vmem:[#allocation2 + $0x330] sm:$0xff] 0.0
  %135 = vst [vmem:[#allocation2 + $0x338] sm:$0xff] 0.0
  %136 = vst [vmem:[#allocation2 + $0x340] sm:$0x3] 0.0
  %137 = vst [vmem:[#allocation2 + $0x348] sm:$0xff] 0.0
  %138 = vst [vmem:[#allocation2 + $0x350] sm:$0xff] 0.0
  %139 = vst [vmem:[#allocation2 + $0x358] sm:$0x3] 0.0
  %v140 = vld [vmem:[%s0] sm:$0xff]
  %v141 = vld [vmem:[%s0 + $0x8] sm:$0xff]
  %v142 = vld [vmem:[%s0 + $0x10] sm:$0xff]
  %v143 = vld [vmem:[%s0 + $0x18] sm:$0xff]
  %v144 = vld [vmem:[%s0 + $0x20] sm:$0xff]
  %v145 = vld [vmem:[%s0 + $0x28] sm:$0xff]
  %v146 = vld [vmem:[%s0 + $0x30] sm:$0xff]
  %v147 = vld [vmem:[%s0 + $0x38] sm:$0xff]
  %v148 = vld [vmem:[%s0 + $0x40] sm:$0xff]
  %v149 = vld [vmem:[%s0 + $0x48] sm:$0xff]
  %v150 = vld [vmem:[%s0 + $0x50] sm:$0xff]
  %v151 = vld [vmem:[%s0 + $0x58] sm:$0xff]
  %v152 = vld [vmem:[%s0 + $0x60] sm:$0xff]
  %v153 = vld [vmem:[%s0 + $0x68] sm:$0xff]
  %v154 = vld [vmem:[%s0 + $0x70] sm:$0xff]
  %v155 = vld [vmem:[%s0 + $0x78] sm:$0xff]
  %v156 = vld [vmem:[%s0 + $0x80] sm:$0xff]
  %v157 = vld [vmem:[%s0 + $0x88] sm:$0xff]
  %v158 = vld [vmem:[%s0 + $0x90] sm:$0xff]
  %v159 = vld [vmem:[%s0 + $0x98] sm:$0xff]
  %v160 = vld [vmem:[%s0 + $0xa0] sm:$0xff]
  %v161 = vld [vmem:[%s0 + $0xa8] sm:$0xff]
  %v162 = vld [vmem:[%s0 + $0xb0] sm:$0xff]
  %v163 = vld [vmem:[%s0 + $0xb8] sm:$0xff]
  %v164 = vld [vmem:[%s0 + $0xc0] sm:$0xff]
  %v165 = vld [vmem:[%s0 + $0xc8] sm:$0xff]
  %v166 = vld [vmem:[%s0 + $0xd0] sm:$0xff]
  %v167 = vld [vmem:[%s0 + $0xd8] sm:$0xff]
  %v168 = vld [vmem:[%s0 + $0xe0] sm:$0xff]
  %v169 = vld [vmem:[%s0 + $0xe8] sm:$0xff]
  %v170 = vld [vmem:[%s0 + $0xf0] sm:$0xff]
  %v171 = vld [vmem:[%s0 + $0xf8] sm:$0xff]
  %v172 = vld [vmem:[%s0 + $0x100] sm:$0xff]
  %v173 = vld [vmem:[%s0 + $0x108] sm:$0xff]
  %v174 = vld [vmem:[%s0 + $0x110] sm:$0xff]
  %v175 = vld [vmem:[%s0 + $0x118] sm:$0xff]
  %v176 = vld [vmem:[%s0 + $0x120] sm:$0xff]
  %v177 = vld [vmem:[%s0 + $0x128] sm:$0xff]
  %v178 = vld [vmem:[%s0 + $0x130] sm:$0xff]
  %v179 = vld [vmem:[%s0 + $0x138] sm:$0xff]
  %v180 = vld [vmem:[%s0 + $0x140] sm:$0xff]
  %v181 = vld [vmem:[%s0 + $0x148] sm:$0xff]
  %v182 = vld [vmem:[%s0 + $0x150] sm:$0xff]
  %v183 = vld [vmem:[%s0 + $0x158] sm:$0xff]
  %v184 = vld [vmem:[%s0 + $0x160] sm:$0xff]
  %v185 = vld [vmem:[%s0 + $0x168] sm:$0xff]
  %v186 = vld [vmem:[%s0 + $0x170] sm:$0xff]
  %v187 = vld [vmem:[%s0 + $0x178] sm:$0xff]
  %v188 = vld [vmem:[%s0 + $0x180] sm:$0xff]
  %v189 = vld [vmem:[%s0 + $0x188] sm:$0xff]
  %v190 = vld [vmem:[%s0 + $0x190] sm:$0xff]
  %v191 = vld [vmem:[%s0 + $0x198] sm:$0xff]
  %v192 = vld [vmem:[%s0 + $0x1a0] sm:$0xff]
  %v193 = vld [vmem:[%s0 + $0x1a8] sm:$0xff]
  %v194 = vld [vmem:[%s0 + $0x1b0] sm:$0xff]
  %v195 = vld [vmem:[%s0 + $0x1b8] sm:$0xff]
  %v196 = vld [vmem:[%s0 + $0x1c0] sm:$0xff]
  %v197 = vld [vmem:[%s0 + $0x1c8] sm:$0xff]
  %v198 = vld [vmem:[%s0 + $0x1d0] sm:$0xff]
  %v199 = vld [vmem:[%s0 + $0x1d8] sm:$0xff]
  %v200 = vld [vmem:[%s0 + $0x1e0] sm:$0xff]
  %v201 = vld [vmem:[%s0 + $0x1e8] sm:$0xff]
  %v202 = vld [vmem:[%s0 + $0x1f0] sm:$0xff]
  %v203 = vld [vmem:[%s0 + $0x1f8] sm:$0xff]
  %s204 = scalar_lea.vmem [#allocation2], 24
  %205 = vst [vmem:[%s204 + $0x1] sm:$0xff] %v140
  %206 = vst [vmem:[%s204 + $0x9] sm:$0xff] %v141
  %207 = vst [vmem:[%s204 + $0x19] sm:$0xff] %v142
  %208 = vst [vmem:[%s204 + $0x21] sm:$0xff] %v143
  %209 = vst [vmem:[%s204 + $0x31] sm:$0xff] %v144
  %210 = vst [vmem:[%s204 + $0x39] sm:$0xff] %v145
  %211 = vst [vmem:[%s204 + $0x49] sm:$0xff] %v146
  %212 = vst [vmem:[%s204 + $0x51] sm:$0xff] %v147
  %213 = vst [vmem:[%s204 + $0x61] sm:$0xff] %v148
  %214 = vst [vmem:[%s204 + $0x69] sm:$0xff] %v149
  %215 = vst [vmem:[%s204 + $0x79] sm:$0xff] %v150
  %216 = vst [vmem:[%s204 + $0x81] sm:$0xff] %v151
  %217 = vst [vmem:[%s204 + $0x91] sm:$0xff] %v152
  %218 = vst [vmem:[%s204 + $0x99] sm:$0xff] %v153
  %219 = vst [vmem:[%s204 + $0xa9] sm:$0xff] %v154
  %220 = vst [vmem:[%s204 + $0xb1] sm:$0xff] %v155
  %221 = vst [vmem:[%s204 + $0xc1] sm:$0xff] %v156
  %222 = vst [vmem:[%s204 + $0xc9] sm:$0xff] %v157
  %223 = vst [vmem:[%s204 + $0xd9] sm:$0xff] %v158
  %224 = vst [vmem:[%s204 + $0xe1] sm:$0xff] %v159
  %225 = vst [vmem:[%s204 + $0xf1] sm:$0xff] %v160
  %226 = vst [vmem:[%s204 + $0xf9] sm:$0xff] %v161
  %227 = vst [vmem:[%s204 + $0x109] sm:$0xff] %v162
  %228 = vst [vmem:[%s204 + $0x111] sm:$0xff] %v163
  %229 = vst [vmem:[%s204 + $0x121] sm:$0xff] %v164
  %230 = vst [vmem:[%s204 + $0x129] sm:$0xff] %v165
  %231 = vst [vmem:[%s204 + $0x139] sm:$0xff] %v166
  %232 = vst [vmem:[%s204 + $0x141] sm:$0xff] %v167
  %233 = vst [vmem:[%s204 + $0x151] sm:$0xff] %v168
  %234 = vst [vmem:[%s204 + $0x159] sm:$0xff] %v169
  %235 = vst [vmem:[%s204 + $0x169] sm:$0xff] %v170
  %236 = vst [vmem:[%s204 + $0x171] sm:$0xff] %v171
  %237 = vst [vmem:[%s204 + $0x1b1] sm:$0xff] %v172
  %238 = vst [vmem:[%s204 + $0x1b9] sm:$0xff] %v173
  %239 = vst [vmem:[%s204 + $0x1c9] sm:$0xff] %v174
  %240 = vst [vmem:[%s204 + $0x1d1] sm:$0xff] %v175
  %241 = vst [vmem:[%s204 + $0x1e1] sm:$0xff] %v176
  %242 = vst [vmem:[%s204 + $0x1e9] sm:$0xff] %v177
  %243 = vst [vmem:[%s204 + $0x1f9] sm:$0xff] %v178
  %244 = vst [vmem:[%s204 + $0x201] sm:$0xff] %v179
  %245 = vst [vmem:[%s204 + $0x211] sm:$0xff] %v180
  %246 = vst [vmem:[%s204 + $0x219] sm:$0xff] %v181
  %247 = vst [vmem:[%s204 + $0x229] sm:$0xff] %v182
  %248 = vst [vmem:[%s204 + $0x231] sm:$0xff] %v183
  %249 = vst [vmem:[%s204 + $0x241] sm:$0xff] %v184
  %250 = vst [vmem:[%s204 + $0x249] sm:$0xff] %v185
  %251 = vst [vmem:[%s204 + $0x259] sm:$0xff] %v186
  %252 = vst [vmem:[%s204 + $0x261] sm:$0xff] %v187
  %253 = vst [vmem:[%s204 + $0x271] sm:$0xff] %v188
  %254 = vst [vmem:[%s204 + $0x279] sm:$0xff] %v189
  %255 = vst [vmem:[%s204 + $0x289] sm:$0xff] %v190
  %256 = vst [vmem:[%s204 + $0x291] sm:$0xff] %v191
  %257 = vst [vmem:[%s204 + $0x2a1] sm:$0xff] %v192
  %258 = vst [vmem:[%s204 + $0x2a9] sm:$0xff] %v193
  %259 = vst [vmem:[%s204 + $0x2b9] sm:$0xff] %v194
  %260 = vst [vmem:[%s204 + $0x2c1] sm:$0xff] %v195
  %261 = vst [vmem:[%s204 + $0x2d1] sm:$0xff] %v196
  %262 = vst [vmem:[%s204 + $0x2d9] sm:$0xff] %v197
  %263 = vst [vmem:[%s204 + $0x2e9] sm:$0xff] %v198
  %264 = vst [vmem:[%s204 + $0x2f1] sm:$0xff] %v199
  %265 = vst [vmem:[%s204 + $0x301] sm:$0xff] %v200
  %266 = vst [vmem:[%s204 + $0x309] sm:$0xff] %v201
  %267 = vst [vmem:[%s204 + $0x319] sm:$0xff] %v202
  %268 = vst [vmem:[%s204 + $0x321] sm:$0xff] %v203
  %v269 = vld [vmem:[#allocation2] sm:$0xff]
  %v270 = vld [vmem:[#allocation2 + $0x8] sm:$0xff]
  %v271 = vld [vmem:[#allocation2 + $0x18] sm:$0xff]
  %v272 = vld [vmem:[#allocation2 + $0x20] sm:$0xff]
  %v273 = vld [vmem:[#allocation2 + $0x30] sm:$0xff]
  %v274 = vld [vmem:[#allocation2 + $0x38] sm:$0xff]
  %v275 = vld [vmem:[#allocation2 + $0x48] sm:$0xff]
  %v276 = vld [vmem:[#allocation2 + $0x50] sm:$0xff]
  %v277 = vld [vmem:[#allocation2 + $0x60] sm:$0xff]
  %v278 = vld [vmem:[#allocation2 + $0x68] sm:$0xff]
  %v279 = vld [vmem:[#allocation2 + $0x78] sm:$0xff]
  %v280 = vld [vmem:[#allocation2 + $0x80] sm:$0xff]
  %v281 = vld [vmem:[#allocation2 + $0x90] sm:$0xff]
  %v282 = vld [vmem:[#allocation2 + $0x98] sm:$0xff]
  %v283 = vld [vmem:[#allocation2 + $0xa8] sm:$0xff]
  %v284 = vld [vmem:[#allocation2 + $0xb0] sm:$0xff]
  %v285 = vld [vmem:[#allocation2 + $0xc0] sm:$0xff]
  %v286 = vld [vmem:[#allocation2 + $0xc8] sm:$0xff]
  %v287 = vld [vmem:[#allocation2 + $0xd8] sm:$0xff]
  %v288 = vld [vmem:[#allocation2 + $0xe0] sm:$0xff]
  %v289 = vld [vmem:[#allocation2 + $0xf0] sm:$0xff]
  %v290 = vld [vmem:[#allocation2 + $0xf8] sm:$0xff]
  %v291 = vld [vmem:[#allocation2 + $0x108] sm:$0xff]
  %v292 = vld [vmem:[#allocation2 + $0x110] sm:$0xff]
  %v293 = vld [vmem:[#allocation2 + $0x120] sm:$0xff]
  %v294 = vld [vmem:[#allocation2 + $0x128] sm:$0xff]
  %v295 = vld [vmem:[#allocation2 + $0x138] sm:$0xff]
  %v296 = vld [vmem:[#allocation2 + $0x140] sm:$0xff]
  %v297 = vld [vmem:[#allocation2 + $0x150] sm:$0xff]
  %v298 = vld [vmem:[#allocation2 + $0x158] sm:$0xff]
  %v299 = vld [vmem:[#allocation2 + $0x168] sm:$0xff]
  %v300 = vld [vmem:[#allocation2 + $0x170] sm:$0xff]
  %v301 = vld [vmem:[#allocation2 + $0x1b0] sm:$0xff]
  %v302 = vld [vmem:[#allocation2 + $0x1b8] sm:$0xff]
  %v303 = vld [vmem:[#allocation2 + $0x1c8] sm:$0xff]
  %v304 = vld [vmem:[#allocation2 + $0x1d0] sm:$0xff]
  %v305 = vld [vmem:[#allocation2 + $0x1e0] sm:$0xff]
  %v306 = vld [vmem:[#allocation2 + $0x1e8] sm:$0xff]
  %v307 = vld [vmem:[#allocation2 + $0x1f8] sm:$0xff]
  %v308 = vld [vmem:[#allocation2 + $0x200] sm:$0xff]
  %v309 = vld [vmem:[#allocation2 + $0x210] sm:$0xff]
  %v310 = vld [vmem:[#allocation2 + $0x218] sm:$0xff]
  %v311 = vld [vmem:[#allocation2 + $0x228] sm:$0xff]
  %v312 = vld [vmem:[#allocation2 + $0x230] sm:$0xff]
  %v313 = vld [vmem:[#allocation2 + $0x240] sm:$0xff]
  %v314 = vld [vmem:[#allocation2 + $0x248] sm:$0xff]
  %v315 = vld [vmem:[#allocation2 + $0x258] sm:$0xff]
  %v316 = vld [vmem:[#allocation2 + $0x260] sm:$0xff]
  %v317 = vld [vmem:[#allocation2 + $0x270] sm:$0xff]
  %v318 = vld [vmem:[#allocation2 + $0x278] sm:$0xff]
  %v319 = vld [vmem:[#allocation2 + $0x288] sm:$0xff]
  %v320 = vld [vmem:[#allocation2 + $0x290] sm:$0xff]
  %v321 = vld [vmem:[#allocation2 + $0x2a0] sm:$0xff]
  %v322 = vld [vmem:[#allocation2 + $0x2a8] sm:$0xff]
  %v323 = vld [vmem:[#allocation2 + $0x2b8] sm:$0xff]
  %v324 = vld [vmem:[#allocation2 + $0x2c0] sm:$0xff]
  %v325 = vld [vmem:[#allocation2 + $0x2d0] sm:$0xff]
  %v326 = vld [vmem:[#allocation2 + $0x2d8] sm:$0xff]
  %v327 = vld [vmem:[#allocation2 + $0x2e8] sm:$0xff]
  %v328 = vld [vmem:[#allocation2 + $0x2f0] sm:$0xff]
  %v329 = vld [vmem:[#allocation2 + $0x300] sm:$0xff]
  %v330 = vld [vmem:[#allocation2 + $0x308] sm:$0xff]
  %v331 = vld [vmem:[#allocation2 + $0x318] sm:$0xff]
  %v332 = vld [vmem:[#allocation2 + $0x320] sm:$0xff]
  %v333 = vld [vmem:[#allocation2 + $0x1] sm:$0xff]
  %v334 = vld [vmem:[#allocation2 + $0x9] sm:$0xff]
  %v335 = vld [vmem:[#allocation2 + $0x19] sm:$0xff]
  %v336 = vld [vmem:[#allocation2 + $0x21] sm:$0xff]
  %v337 = vld [vmem:[#allocation2 + $0x31] sm:$0xff]
  %v338 = vld [vmem:[#allocation2 + $0x39] sm:$0xff]
  %v339 = vld [vmem:[#allocation2 + $0x49] sm:$0xff]
  %v340 = vld [vmem:[#allocation2 + $0x51] sm:$0xff]
  %v341 = vld [vmem:[#allocation2 + $0x61] sm:$0xff]
  %v342 = vld [vmem:[#allocation2 + $0x69] sm:$0xff]
  %v343 = vld [vmem:[#allocation2 + $0x79] sm:$0xff]
  %v344 = vld [vmem:[#allocation2 + $0x81] sm:$0xff]
  %v345 = vld [vmem:[#allocation2 + $0x91] sm:$0xff]
  %v346 = vld [vmem:[#allocation2 + $0x99] sm:$0xff]
  %v347 = vld [vmem:[#allocation2 + $0xa9] sm:$0xff]
  %v348 = vld [vmem:[#allocation2 + $0xb1] sm:$0xff]
  %v349 = vld [vmem:[#allocation2 + $0xc1] sm:$0xff]
  %v350 = vld [vmem:[#allocation2 + $0xc9] sm:$0xff]
  %v351 = vld [vmem:[#allocation2 + $0xd9] sm:$0xff]
  %v352 = vld [vmem:[#allocation2 + $0xe1] sm:$0xff]
  %v353 = vld [vmem:[#allocation2 + $0xf1] sm:$0xff]
  %v354 = vld [vmem:[#allocation2 + $0xf9] sm:$0xff]
  %v355 = vld [vmem:[#allocation2 + $0x109] sm:$0xff]
  %v356 = vld [vmem:[#allocation2 + $0x111] sm:$0xff]
  %v357 = vld [vmem:[#allocation2 + $0x121] sm:$0xff]
  %v358 = vld [vmem:[#allocation2 + $0x129] sm:$0xff]
  %v359 = vld [vmem:[#allocation2 + $0x139] sm:$0xff]
  %v360 = vld [vmem:[#allocation2 + $0x141] sm:$0xff]
  %v361 = vld [vmem:[#allocation2 + $0x151] sm:$0xff]
  %v362 = vld [vmem:[#allocation2 + $0x159] sm:$0xff]
  %v363 = vld [vmem:[#allocation2 + $0x169] sm:$0xff]
  %v364 = vld [vmem:[#allocation2 + $0x171] sm:$0xff]
  %v365 = vld [vmem:[#allocation2 + $0x1b1] sm:$0xff]
  %v366 = vld [vmem:[#allocation2 + $0x1b9] sm:$0xff]
  %v367 = vld [vmem:[#allocation2 + $0x1c9] sm:$0xff]
  %v368 = vld [vmem:[#allocation2 + $0x1d1] sm:$0xff]
  %v369 = vld [vmem:[#allocation2 + $0x1e1] sm:$0xff]
  %v370 = vld [vmem:[#allocation2 + $0x1e9] sm:$0xff]
  %v371 = vld [vmem:[#allocation2 + $0x1f9] sm:$0xff]
  %v372 = vld [vmem:[#allocation2 + $0x201] sm:$0xff]
  %v373 = vld [vmem:[#allocation2 + $0x211] sm:$0xff]
  %v374 = vld [vmem:[#allocation2 + $0x219] sm:$0xff]
  %v375 = vld [vmem:[#allocation2 + $0x229] sm:$0xff]
  %v376 = vld [vmem:[#allocation2 + $0x231] sm:$0xff]
  %v377 = vld [vmem:[#allocation2 + $0x241] sm:$0xff]
  %v378 = vld [vmem:[#allocation2 + $0x249] sm:$0xff]
  %v379 = vld [vmem:[#allocation2 + $0x259] sm:$0xff]
  %v380 = vld [vmem:[#allocation2 + $0x261] sm:$0xff]
  %v381 = vld [vmem:[#allocation2 + $0x271] sm:$0xff]
  %v382 = vld [vmem:[#allocation2 + $0x279] sm:$0xff]
  %v383 = vld [vmem:[#allocation2 + $0x289] sm:$0xff]
  %v384 = vld [vmem:[#allocation2 + $0x291] sm:$0xff]
  %v385 = vld [vmem:[#allocation2 + $0x2a1] sm:$0xff]
  %v386 = vld [vmem:[#allocation2 + $0x2a9] sm:$0xff]
  %v387 = vld [vmem:[#allocation2 + $0x2b9] sm:$0xff]
  %v388 = vld [vmem:[#allocation2 + $0x2c1] sm:$0xff]
  %v389 = vld [vmem:[#allocation2 + $0x2d1] sm:$0xff]
  %v390 = vld [vmem:[#allocation2 + $0x2d9] sm:$0xff]
  %v391 = vld [vmem:[#allocation2 + $0x2e9] sm:$0xff]
  %v392 = vld [vmem:[#allocation2 + $0x2f1] sm:$0xff]
  %v393 = vld [vmem:[#allocation2 + $0x301] sm:$0xff]
  %v394 = vld [vmem:[#allocation2 + $0x309] sm:$0xff]
  %v395 = vld [vmem:[#allocation2 + $0x319] sm:$0xff]
  %v396 = vld [vmem:[#allocation2 + $0x321] sm:$0xff]
  %v397 = vld [vmem:[#allocation2 + $0x2] sm:$0xff]
  %v398 = vld [vmem:[#allocation2 + $0xa] sm:$0xff]
  %v399 = vld [vmem:[#allocation2 + $0x1a] sm:$0xff]
  %v400 = vld [vmem:[#allocation2 + $0x22] sm:$0xff]
  %v401 = vld [vmem:[#allocation2 + $0x32] sm:$0xff]
  %v402 = vld [vmem:[#allocation2 + $0x3a] sm:$0xff]
  %v403 = vld [vmem:[#allocation2 + $0x4a] sm:$0xff]
  %v404 = vld [vmem:[#allocation2 + $0x52] sm:$0xff]
  %v405 = vld [vmem:[#allocation2 + $0x62] sm:$0xff]
  %v406 = vld [vmem:[#allocation2 + $0x6a] sm:$0xff]
  %v407 = vld [vmem:[#allocation2 + $0x7a] sm:$0xff]
  %v408 = vld [vmem:[#allocation2 + $0x82] sm:$0xff]
  %v409 = vld [vmem:[#allocation2 + $0x92] sm:$0xff]
  %v410 = vld [vmem:[#allocation2 + $0x9a] sm:$0xff]
  %v411 = vld [vmem:[#allocation2 + $0xaa] sm:$0xff]
  %v412 = vld [vmem:[#allocation2 + $0xb2] sm:$0xff]
  %v413 = vld [vmem:[#allocation2 + $0xc2] sm:$0xff]
  %v414 = vld [vmem:[#allocation2 + $0xca] sm:$0xff]
  %v415 = vld [vmem:[#allocation2 + $0xda] sm:$0xff]
  %v416 = vld [vmem:[#allocation2 + $0xe2] sm:$0xff]
  %v417 = vld [vmem:[#allocation2 + $0xf2] sm:$0xff]
  %v418 = vld [vmem:[#allocation2 + $0xfa] sm:$0xff]
  %v419 = vld [vmem:[#allocation2 + $0x10a] sm:$0xff]
  %v420 = vld [vmem:[#allocation2 + $0x112] sm:$0xff]
  %v421 = vld [vmem:[#allocation2 + $0x122] sm:$0xff]
  %v422 = vld [vmem:[#allocation2 + $0x12a] sm:$0xff]
  %v423 = vld [vmem:[#allocation2 + $0x13a] sm:$0xff]
  %v424 = vld [vmem:[#allocation2 + $0x142] sm:$0xff]
  %v425 = vld [vmem:[#allocation2 + $0x152] sm:$0xff]
  %v426 = vld [vmem:[#allocation2 + $0x15a] sm:$0xff]
  %v427 = vld [vmem:[#allocation2 + $0x16a] sm:$0xff]
  %v428 = vld [vmem:[#allocation2 + $0x172] sm:$0xff]
  %v429 = vld [vmem:[#allocation2 + $0x1b2] sm:$0xff]
  %v430 = vld [vmem:[#allocation2 + $0x1ba] sm:$0xff]
  %v431 = vld [vmem:[#allocation2 + $0x1ca] sm:$0xff]
  %v432 = vld [vmem:[#allocation2 + $0x1d2] sm:$0xff]
  %v433 = vld [vmem:[#allocation2 + $0x1e2] sm:$0xff]
  %v434 = vld [vmem:[#allocation2 + $0x1ea] sm:$0xff]
  %v435 = vld [vmem:[#allocation2 + $0x1fa] sm:$0xff]
  %v436 = vld [vmem:[#allocation2 + $0x202] sm:$0xff]
  %v437 = vld [vmem:[#allocation2 + $0x212] sm:$0xff]
  %v438 = vld [vmem:[#allocation2 + $0x21a] sm:$0xff]
  %v439 = vld [vmem:[#allocation2 + $0x22a] sm:$0xff]
  %v440 = vld [vmem:[#allocation2 + $0x232] sm:$0xff]
  %v441 = vld [vmem:[#allocation2 + $0x242] sm:$0xff]
  %v442 = vld [vmem:[#allocation2 + $0x24a] sm:$0xff]
  %v443 = vld [vmem:[#allocation2 + $0x25a] sm:$0xff]
  %v444 = vld [vmem:[#allocation2 + $0x262] sm:$0xff]
  %v445 = vld [vmem:[#allocation2 + $0x272] sm:$0xff]
  %v446 = vld [vmem:[#allocation2 + $0x27a] sm:$0xff]
  %v447 = vld [vmem:[#allocation2 + $0x28a] sm:$0xff]
  %v448 = vld [vmem:[#allocation2 + $0x292] sm:$0xff]
  %v449 = vld [vmem:[#allocation2 + $0x2a2] sm:$0xff]
  %v450 = vld [vmem:[#allocation2 + $0x2aa] sm:$0xff]
  %v451 = vld [vmem:[#allocation2 + $0x2ba] sm:$0xff]
  %v452 = vld [vmem:[#allocation2 + $0x2c2] sm:$0xff]
  %v453 = vld [vmem:[#allocation2 + $0x2d2] sm:$0xff]
  %v454 = vld [vmem:[#allocation2 + $0x2da] sm:$0xff]
  %v455 = vld [vmem:[#allocation2 + $0x2ea] sm:$0xff]
  %v456 = vld [vmem:[#allocation2 + $0x2f2] sm:$0xff]
  %v457 = vld [vmem:[#allocation2 + $0x302] sm:$0xff]
  %v458 = vld [vmem:[#allocation2 + $0x30a] sm:$0xff]
  %v459 = vld [vmem:[#allocation2 + $0x31a] sm:$0xff]
  %v460 = vld [vmem:[#allocation2 + $0x322] sm:$0xff]
  %v461 = vld [vmem:[%s204] sm:$0xff]
  %v462 = vld [vmem:[%s204 + $0x8] sm:$0xff]
  %v463 = vld [vmem:[%s204 + $0x18] sm:$0xff]
  %v464 = vld [vmem:[%s204 + $0x20] sm:$0xff]
  %v465 = vld [vmem:[%s204 + $0x30] sm:$0xff]
  %v466 = vld [vmem:[%s204 + $0x38] sm:$0xff]
  %v467 = vld [vmem:[%s204 + $0x48] sm:$0xff]
  %v468 = vld [vmem:[%s204 + $0x50] sm:$0xff]
  %v469 = vld [vmem:[%s204 + $0x60] sm:$0xff]
  %v470 = vld [vmem:[%s204 + $0x68] sm:$0xff]
  %v471 = vld [vmem:[%s204 + $0x78] sm:$0xff]
  %v472 = vld [vmem:[%s204 + $0x80] sm:$0xff]
  %v473 = vld [vmem:[%s204 + $0x90] sm:$0xff]
  %v474 = vld [vmem:[%s204 + $0x98] sm:$0xff]
  %v475 = vld [vmem:[%s204 + $0xa8] sm:$0xff]
  %v476 = vld [vmem:[%s204 + $0xb0] sm:$0xff]
  %v477 = vld [vmem:[%s204 + $0xc0] sm:$0xff]
  %v478 = vld [vmem:[%s204 + $0xc8] sm:$0xff]
  %v479 = vld [vmem:[%s204 + $0xd8] sm:$0xff]
  %v480 = vld [vmem:[%s204 + $0xe0] sm:$0xff]
  %v481 = vld [vmem:[%s204 + $0xf0] sm:$0xff]
  %v482 = vld [vmem:[%s204 + $0xf8] sm:$0xff]
  %v483 = vld [vmem:[%s204 + $0x108] sm:$0xff]
  %v484 = vld [vmem:[%s204 + $0x110] sm:$0xff]
  %v485 = vld [vmem:[%s204 + $0x120] sm:$0xff]
  %v486 = vld [vmem:[%s204 + $0x128] sm:$0xff]
  %v487 = vld [vmem:[%s204 + $0x138] sm:$0xff]
  %v488 = vld [vmem:[%s204 + $0x140] sm:$0xff]
  %v489 = vld [vmem:[%s204 + $0x150] sm:$0xff]
  %v490 = vld [vmem:[%s204 + $0x158] sm:$0xff]
  %v491 = vld [vmem:[%s204 + $0x168] sm:$0xff]
  %v492 = vld [vmem:[%s204 + $0x170] sm:$0xff]
  %v493 = vld [vmem:[%s204 + $0x1b0] sm:$0xff]
  %v494 = vld [vmem:[%s204 + $0x1b8] sm:$0xff]
  %v495 = vld [vmem:[%s204 + $0x1c8] sm:$0xff]
  %v496 = vld [vmem:[%s204 + $0x1d0] sm:$0xff]
  %v497 = vld [vmem:[%s204 + $0x1e0] sm:$0xff]
  %v498 = vld [vmem:[%s204 + $0x1e8] sm:$0xff]
  %v499 = vld [vmem:[%s204 + $0x1f8] sm:$0xff]
  %v500 = vld [vmem:[%s204 + $0x200] sm:$0xff]
  %v501 = vld [vmem:[%s204 + $0x210] sm:$0xff]
  %v502 = vld [vmem:[%s204 + $0x218] sm:$0xff]
  %v503 = vld [vmem:[%s204 + $0x228] sm:$0xff]
  %v504 = vld [vmem:[%s204 + $0x230] sm:$0xff]
  %v505 = vld [vmem:[%s204 + $0x240] sm:$0xff]
  %v506 = vld [vmem:[%s204 + $0x248] sm:$0xff]
  %v507 = vld [vmem:[%s204 + $0x258] sm:$0xff]
  %v508 = vld [vmem:[%s204 + $0x260] sm:$0xff]
  %v509 = vld [vmem:[%s204 + $0x270] sm:$0xff]
  %v510 = vld [vmem:[%s204 + $0x278] sm:$0xff]
  %v511 = vld [vmem:[%s204 + $0x288] sm:$0xff]
  %v512 = vld [vmem:[%s204 + $0x290] sm:$0xff]
  %v513 = vld [vmem:[%s204 + $0x2a0] sm:$0xff]
  %v514 = vld [vmem:[%s204 + $0x2a8] sm:$0xff]
  %v515 = vld [vmem:[%s204 + $0x2b8] sm:$0xff]
  %v516 = vld [vmem:[%s204 + $0x2c0] sm:$0xff]
  %v517 = vld [vmem:[%s204 + $0x2d0] sm:$0xff]
  %v518 = vld [vmem:[%s204 + $0x2d8] sm:$0xff]
  %v519 = vld [vmem:[%s204 + $0x2e8] sm:$0xff]
  %v520 = vld [vmem:[%s204 + $0x2f0] sm:$0xff]
  %v521 = vld [vmem:[%s204 + $0x300] sm:$0xff]
  %v522 = vld [vmem:[%s204 + $0x308] sm:$0xff]
  %v523 = vld [vmem:[%s204 + $0x318] sm:$0xff]
  %v524 = vld [vmem:[%s204 + $0x320] sm:$0xff]
  %v525 = vld [vmem:[%s204 + $0x1] sm:$0xff]
  %v526 = vld [vmem:[%s204 + $0x9] sm:$0xff]
  %v527 = vld [vmem:[%s204 + $0x19] sm:$0xff]
  %v528 = vld [vmem:[%s204 + $0x21] sm:$0xff]
  %v529 = vld [vmem:[%s204 + $0x31] sm:$0xff]
  %v530 = vld [vmem:[%s204 + $0x39] sm:$0xff]
  %v531 = vld [vmem:[%s204 + $0x49] sm:$0xff]
  %v532 = vld [vmem:[%s204 + $0x51] sm:$0xff]
  %v533 = vld [vmem:[%s204 + $0x61] sm:$0xff]
  %v534 = vld [vmem:[%s204 + $0x69] sm:$0xff]
  %v535 = vld [vmem:[%s204 + $0x79] sm:$0xff]
  %v536 = vld [vmem:[%s204 + $0x81] sm:$0xff]
  %v537 = vld [vmem:[%s204 + $0x91] sm:$0xff]
  %v538 = vld [vmem:[%s204 + $0x99] sm:$0xff]
  %v539 = vld [vmem:[%s204 + $0xa9] sm:$0xff]
  %v540 = vld [vmem:[%s204 + $0xb1] sm:$0xff]
  %v541 = vld [vmem:[%s204 + $0xc1] sm:$0xff]
  %v542 = vld [vmem:[%s204 + $0xc9] sm:$0xff]
  %v543 = vld [vmem:[%s204 + $0xd9] sm:$0xff]
  %v544 = vld [vmem:[%s204 + $0xe1] sm:$0xff]
  %v545 = vld [vmem:[%s204 + $0xf1] sm:$0xff]
  %v546 = vld [vmem:[%s204 + $0xf9] sm:$0xff]
  %v547 = vld [vmem:[%s204 + $0x109] sm:$0xff]
  %v548 = vld [vmem:[%s204 + $0x111] sm:$0xff]
  %v549 = vld [vmem:[%s204 + $0x121] sm:$0xff]
  %v550 = vld [vmem:[%s204 + $0x129] sm:$0xff]
  %v551 = vld [vmem:[%s204 + $0x139] sm:$0xff]
  %v552 = vld [vmem:[%s204 + $0x141] sm:$0xff]
  %v553 = vld [vmem:[%s204 + $0x151] sm:$0xff]
  %v554 = vld [vmem:[%s204 + $0x159] sm:$0xff]
  %v555 = vld [vmem:[%s204 + $0x169] sm:$0xff]
  %v556 = vld [vmem:[%s204 + $0x171] sm:$0xff]
  %v557 = vld [vmem:[%s204 + $0x1b1] sm:$0xff]
  %v558 = vld [vmem:[%s204 + $0x1b9] sm:$0xff]
  %v559 = vld [vmem:[%s204 + $0x1c9] sm:$0xff]
  %v560 = vld [vmem:[%s204 + $0x1d1] sm:$0xff]
  %v561 = vld [vmem:[%s204 + $0x1e1] sm:$0xff]
  %v562 = vld [vmem:[%s204 + $0x1e9] sm:$0xff]
  %v563 = vld [vmem:[%s204 + $0x1f9] sm:$0xff]
  %v564 = vld [vmem:[%s204 + $0x201] sm:$0xff]
  %v565 = vld [vmem:[%s204 + $0x211] sm:$0xff]
  %v566 = vld [vmem:[%s204 + $0x219] sm:$0xff]
  %v567 = vld [vmem:[%s204 + $0x229] sm:$0xff]
  %v568 = vld [vmem:[%s204 + $0x231] sm:$0xff]
  %v569 = vld [vmem:[%s204 + $0x241] sm:$0xff]
  %v570 = vld [vmem:[%s204 + $0x249] sm:$0xff]
  %v571 = vld [vmem:[%s204 + $0x259] sm:$0xff]
  %v572 = vld [vmem:[%s204 + $0x261] sm:$0xff]
  %v573 = vld [vmem:[%s204 + $0x271] sm:$0xff]
  %v574 = vld [vmem:[%s204 + $0x279] sm:$0xff]
  %v575 = vld [vmem:[%s204 + $0x289] sm:$0xff]
  %v576 = vld [vmem:[%s204 + $0x291] sm:$0xff]
  %v577 = vld [vmem:[%s204 + $0x2a1] sm:$0xff]
  %v578 = vld [vmem:[%s204 + $0x2a9] sm:$0xff]
  %v579 = vld [vmem:[%s204 + $0x2b9] sm:$0xff]
  %v580 = vld [vmem:[%s204 + $0x2c1] sm:$0xff]
  %v581 = vld [vmem:[%s204 + $0x2d1] sm:$0xff]
  %v582 = vld [vmem:[%s204 + $0x2d9] sm:$0xff]
  %v583 = vld [vmem:[%s204 + $0x2e9] sm:$0xff]
  %v584 = vld [vmem:[%s204 + $0x2f1] sm:$0xff]
  %v585 = vld [vmem:[%s204 + $0x301] sm:$0xff]
  %v586 = vld [vmem:[%s204 + $0x309] sm:$0xff]
  %v587 = vld [vmem:[%s204 + $0x319] sm:$0xff]
  %v588 = vld [vmem:[%s204 + $0x321] sm:$0xff]
  %v589 = vld [vmem:[%s204 + $0x2] sm:$0xff]
  %v590 = vld [vmem:[%s204 + $0xa] sm:$0xff]
  %v591 = vld [vmem:[%s204 + $0x1a] sm:$0xff]
  %v592 = vld [vmem:[%s204 + $0x22] sm:$0xff]
  %v593 = vld [vmem:[%s204 + $0x32] sm:$0xff]
  %v594 = vld [vmem:[%s204 + $0x3a] sm:$0xff]
  %v595 = vld [vmem:[%s204 + $0x4a] sm:$0xff]
  %v596 = vld [vmem:[%s204 + $0x52] sm:$0xff]
  %v597 = vld [vmem:[%s204 + $0x62] sm:$0xff]
  %v598 = vld [vmem:[%s204 + $0x6a] sm:$0xff]
  %v599 = vld [vmem:[%s204 + $0x7a] sm:$0xff]
  %v600 = vld [vmem:[%s204 + $0x82] sm:$0xff]
  %v601 = vld [vmem:[%s204 + $0x92] sm:$0xff]
  %v602 = vld [vmem:[%s204 + $0x9a] sm:$0xff]
  %v603 = vld [vmem:[%s204 + $0xaa] sm:$0xff]
  %v604 = vld [vmem:[%s204 + $0xb2] sm:$0xff]
  %v605 = vld [vmem:[%s204 + $0xc2] sm:$0xff]
  %v606 = vld [vmem:[%s204 + $0xca] sm:$0xff]
  %v607 = vld [vmem:[%s204 + $0xda] sm:$0xff]
  %v608 = vld [vmem:[%s204 + $0xe2] sm:$0xff]
  %v609 = vld [vmem:[%s204 + $0xf2] sm:$0xff]
  %v610 = vld [vmem:[%s204 + $0xfa] sm:$0xff]
  %v611 = vld [vmem:[%s204 + $0x10a] sm:$0xff]
  %v612 = vld [vmem:[%s204 + $0x112] sm:$0xff]
  %v613 = vld [vmem:[%s204 + $0x122] sm:$0xff]
  %v614 = vld [vmem:[%s204 + $0x12a] sm:$0xff]
  %v615 = vld [vmem:[%s204 + $0x13a] sm:$0xff]
  %v616 = vld [vmem:[%s204 + $0x142] sm:$0xff]
  %v617 = vld [vmem:[%s204 + $0x152] sm:$0xff]
  %v618 = vld [vmem:[%s204 + $0x15a] sm:$0xff]
  %v619 = vld [vmem:[%s204 + $0x16a] sm:$0xff]
  %v620 = vld [vmem:[%s204 + $0x172] sm:$0xff]
  %v621 = vld [vmem:[%s204 + $0x1b2] sm:$0xff]
  %v622 = vld [vmem:[%s204 + $0x1ba] sm:$0xff]
  %v623 = vld [vmem:[%s204 + $0x1ca] sm:$0xff]
  %v624 = vld [vmem:[%s204 + $0x1d2] sm:$0xff]
  %v625 = vld [vmem:[%s204 + $0x1e2] sm:$0xff]
  %v626 = vld [vmem:[%s204 + $0x1ea] sm:$0xff]
  %v627 = vld [vmem:[%s204 + $0x1fa] sm:$0xff]
  %v628 = vld [vmem:[%s204 + $0x202] sm:$0xff]
  %v629 = vld [vmem:[%s204 + $0x212] sm:$0xff]
  %v630 = vld [vmem:[%s204 + $0x21a] sm:$0xff]
  %v631 = vld [vmem:[%s204 + $0x22a] sm:$0xff]
  %v632 = vld [vmem:[%s204 + $0x232] sm:$0xff]
  %v633 = vld [vmem:[%s204 + $0x242] sm:$0xff]
  %v634 = vld [vmem:[%s204 + $0x24a] sm:$0xff]
  %v635 = vld [vmem:[%s204 + $0x25a] sm:$0xff]
  %v636 = vld [vmem:[%s204 + $0x262] sm:$0xff]
  %v637 = vld [vmem:[%s204 + $0x272] sm:$0xff]
  %v638 = vld [vmem:[%s204 + $0x27a] sm:$0xff]
  %v639 = vld [vmem:[%s204 + $0x28a] sm:$0xff]
  %v640 = vld [vmem:[%s204 + $0x292] sm:$0xff]
  %v641 = vld [vmem:[%s204 + $0x2a2] sm:$0xff]
  %v642 = vld [vmem:[%s204 + $0x2aa] sm:$0xff]
  %v643 = vld [vmem:[%s204 + $0x2ba] sm:$0xff]
  %v644 = vld [vmem:[%s204 + $0x2c2] sm:$0xff]
  %v645 = vld [vmem:[%s204 + $0x2d2] sm:$0xff]
  %v646 = vld [vmem:[%s204 + $0x2da] sm:$0xff]
  %v647 = vld [vmem:[%s204 + $0x2ea] sm:$0xff]
  %v648 = vld [vmem:[%s204 + $0x2f2] sm:$0xff]
  %v649 = vld [vmem:[%s204 + $0x302] sm:$0xff]
  %v650 = vld [vmem:[%s204 + $0x30a] sm:$0xff]
  %v651 = vld [vmem:[%s204 + $0x31a] sm:$0xff]
  %v652 = vld [vmem:[%s204 + $0x322] sm:$0xff]
  %s653 = scalar_lea.vmem [#allocation2], 48
  %v654 = vld [vmem:[%s653] sm:$0xff]
  %v655 = vld [vmem:[%s653 + $0x8] sm:$0xff]
  %v656 = vld [vmem:[%s653 + $0x18] sm:$0xff]
  %v657 = vld [vmem:[%s653 + $0x20] sm:$0xff]
  %v658 = vld [vmem:[%s653 + $0x30] sm:$0xff]
  %v659 = vld [vmem:[%s653 + $0x38] sm:$0xff]
  %v660 = vld [vmem:[%s653 + $0x48] sm:$0xff]
  %v661 = vld [vmem:[%s653 + $0x50] sm:$0xff]
  %v662 = vld [vmem:[%s653 + $0x60] sm:$0xff]
  %v663 = vld [vmem:[%s653 + $0x68] sm:$0xff]
  %v664 = vld [vmem:[%s653 + $0x78] sm:$0xff]
  %v665 = vld [vmem:[%s653 + $0x80] sm:$0xff]
  %v666 = vld [vmem:[%s653 + $0x90] sm:$0xff]
  %v667 = vld [vmem:[%s653 + $0x98] sm:$0xff]
  %v668 = vld [vmem:[%s653 + $0xa8] sm:$0xff]
  %v669 = vld [vmem:[%s653 + $0xb0] sm:$0xff]
  %v670 = vld [vmem:[%s653 + $0xc0] sm:$0xff]
  %v671 = vld [vmem:[%s653 + $0xc8] sm:$0xff]
  %v672 = vld [vmem:[%s653 + $0xd8] sm:$0xff]
  %v673 = vld [vmem:[%s653 + $0xe0] sm:$0xff]
  %v674 = vld [vmem:[%s653 + $0xf0] sm:$0xff]
  %v675 = vld [vmem:[%s653 + $0xf8] sm:$0xff]
  %v676 = vld [vmem:[%s653 + $0x108] sm:$0xff]
  %v677 = vld [vmem:[%s653 + $0x110] sm:$0xff]
  %v678 = vld [vmem:[%s653 + $0x120] sm:$0xff]
  %v679 = vld [vmem:[%s653 + $0x128] sm:$0xff]
  %v680 = vld [vmem:[%s653 + $0x138] sm:$0xff]
  %v681 = vld [vmem:[%s653 + $0x140] sm:$0xff]
  %v682 = vld [vmem:[%s653 + $0x150] sm:$0xff]
  %v683 = vld [vmem:[%s653 + $0x158] sm:$0xff]
  %v684 = vld [vmem:[%s653 + $0x168] sm:$0xff]
  %v685 = vld [vmem:[%s653 + $0x170] sm:$0xff]
  %v686 = vld [vmem:[%s653 + $0x1b0] sm:$0xff]
  %v687 = vld [vmem:[%s653 + $0x1b8] sm:$0xff]
  %v688 = vld [vmem:[%s653 + $0x1c8] sm:$0xff]
  %v689 = vld [vmem:[%s653 + $0x1d0] sm:$0xff]
  %v690 = vld [vmem:[%s653 + $0x1e0] sm:$0xff]
  %v691 = vld [vmem:[%s653 + $0x1e8] sm:$0xff]
  %v692 = vld [vmem:[%s653 + $0x1f8] sm:$0xff]
  %v693 = vld [vmem:[%s653 + $0x200] sm:$0xff]
  %v694 = vld [vmem:[%s653 + $0x210] sm:$0xff]
  %v695 = vld [vmem:[%s653 + $0x218] sm:$0xff]
  %v696 = vld [vmem:[%s653 + $0x228] sm:$0xff]
  %v697 = vld [vmem:[%s653 + $0x230] sm:$0xff]
  %v698 = vld [vmem:[%s653 + $0x240] sm:$0xff]
  %v699 = vld [vmem:[%s653 + $0x248] sm:$0xff]
  %v700 = vld [vmem:[%s653 + $0x258] sm:$0xff]
  %v701 = vld [vmem:[%s653 + $0x260] sm:$0xff]
  %v702 = vld [vmem:[%s653 + $0x270] sm:$0xff]
  %v703 = vld [vmem:[%s653 + $0x278] sm:$0xff]
  %v704 = vld [vmem:[%s653 + $0x288] sm:$0xff]
  %v705 = vld [vmem:[%s653 + $0x290] sm:$0xff]
  %v706 = vld [vmem:[%s653 + $0x2a0] sm:$0xff]
  %v707 = vld [vmem:[%s653 + $0x2a8] sm:$0xff]
  %v708 = vld [vmem:[%s653 + $0x2b8] sm:$0xff]
  %v709 = vld [vmem:[%s653 + $0x2c0] sm:$0xff]
  %v710 = vld [vmem:[%s653 + $0x2d0] sm:$0xff]
  %v711 = vld [vmem:[%s653 + $0x2d8] sm:$0xff]
  %v712 = vld [vmem:[%s653 + $0x2e8] sm:$0xff]
  %v713 = vld [vmem:[%s653 + $0x2f0] sm:$0xff]
  %v714 = vld [vmem:[%s653 + $0x300] sm:$0xff]
  %v715 = vld [vmem:[%s653 + $0x308] sm:$0xff]
  %v716 = vld [vmem:[%s653 + $0x318] sm:$0xff]
  %v717 = vld [vmem:[%s653 + $0x320] sm:$0xff]
  %v718 = vld [vmem:[%s653 + $0x1] sm:$0xff]
  %v719 = vld [vmem:[%s653 + $0x9] sm:$0xff]
  %v720 = vld [vmem:[%s653 + $0x19] sm:$0xff]
  %v721 = vld [vmem:[%s653 + $0x21] sm:$0xff]
  %v722 = vld [vmem:[%s653 + $0x31] sm:$0xff]
  %v723 = vld [vmem:[%s653 + $0x39] sm:$0xff]
  %v724 = vld [vmem:[%s653 + $0x49] sm:$0xff]
  %v725 = vld [vmem:[%s653 + $0x51] sm:$0xff]
  %v726 = vld [vmem:[%s653 + $0x61] sm:$0xff]
  %v727 = vld [vmem:[%s653 + $0x69] sm:$0xff]
  %v728 = vld [vmem:[%s653 + $0x79] sm:$0xff]
  %v729 = vld [vmem:[%s653 + $0x81] sm:$0xff]
  %v730 = vld [vmem:[%s653 + $0x91] sm:$0xff]
  %v731 = vld [vmem:[%s653 + $0x99] sm:$0xff]
  %v732 = vld [vmem:[%s653 + $0xa9] sm:$0xff]
  %v733 = vld [vmem:[%s653 + $0xb1] sm:$0xff]
  %v734 = vld [vmem:[%s653 + $0xc1] sm:$0xff]
  %v735 = vld [vmem:[%s653 + $0xc9] sm:$0xff]
  %v736 = vld [vmem:[%s653 + $0xd9] sm:$0xff]
  %v737 = vld [vmem:[%s653 + $0xe1] sm:$0xff]
  %v738 = vld [vmem:[%s653 + $0xf1] sm:$0xff]
  %v739 = vld [vmem:[%s653 + $0xf9] sm:$0xff]
  %v740 = vld [vmem:[%s653 + $0x109] sm:$0xff]
  %v741 = vld [vmem:[%s653 + $0x111] sm:$0xff]
  %v742 = vld [vmem:[%s653 + $0x121] sm:$0xff]
  %v743 = vld [vmem:[%s653 + $0x129] sm:$0xff]
  %v744 = vld [vmem:[%s653 + $0x139] sm:$0xff]
  %v745 = vld [vmem:[%s653 + $0x141] sm:$0xff]
  %v746 = vld [vmem:[%s653 + $0x151] sm:$0xff]
  %v747 = vld [vmem:[%s653 + $0x159] sm:$0xff]
  %v748 = vld [vmem:[%s653 + $0x169] sm:$0xff]
  %v749 = vld [vmem:[%s653 + $0x171] sm:$0xff]
  %v750 = vld [vmem:[%s653 + $0x1b1] sm:$0xff]
  %v751 = vld [vmem:[%s653 + $0x1b9] sm:$0xff]
  %v752 = vld [vmem:[%s653 + $0x1c9] sm:$0xff]
  %v753 = vld [vmem:[%s653 + $0x1d1] sm:$0xff]
  %v754 = vld [vmem:[%s653 + $0x1e1] sm:$0xff]
  %v755 = vld [vmem:[%s653 + $0x1e9] sm:$0xff]
  %v756 = vld [vmem:[%s653 + $0x1f9] sm:$0xff]
  %v757 = vld [vmem:[%s653 + $0x201] sm:$0xff]
  %v758 = vld [vmem:[%s653 + $0x211] sm:$0xff]
  %v759 = vld [vmem:[%s653 + $0x219] sm:$0xff]
  %v760 = vld [vmem:[%s653 + $0x229] sm:$0xff]
  %v761 = vld [vmem:[%s653 + $0x231] sm:$0xff]
  %v762 = vld [vmem:[%s653 + $0x241] sm:$0xff]
  %v763 = vld [vmem:[%s653 + $0x249] sm:$0xff]
  %v764 = vld [vmem:[%s653 + $0x259] sm:$0xff]
  %v765 = vld [vmem:[%s653 + $0x261] sm:$0xff]
  %v766 = vld [vmem:[%s653 + $0x271] sm:$0xff]
  %v767 = vld [vmem:[%s653 + $0x279] sm:$0xff]
  %v768 = vld [vmem:[%s653 + $0x289] sm:$0xff]
  %v769 = vld [vmem:[%s653 + $0x291] sm:$0xff]
  %v770 = vld [vmem:[%s653 + $0x2a1] sm:$0xff]
  %v771 = vld [vmem:[%s653 + $0x2a9] sm:$0xff]
  %v772 = vld [vmem:[%s653 + $0x2b9] sm:$0xff]
  %v773 = vld [vmem:[%s653 + $0x2c1] sm:$0xff]
  %v774 = vld [vmem:[%s653 + $0x2d1] sm:$0xff]
  %v775 = vld [vmem:[%s653 + $0x2d9] sm:$0xff]
  %v776 = vld [vmem:[%s653 + $0x2e9] sm:$0xff]
  %v777 = vld [vmem:[%s653 + $0x2f1] sm:$0xff]
  %v778 = vld [vmem:[%s653 + $0x301] sm:$0xff]
  %v779 = vld [vmem:[%s653 + $0x309] sm:$0xff]
  %v780 = vld [vmem:[%s653 + $0x319] sm:$0xff]
  %v781 = vld [vmem:[%s653 + $0x321] sm:$0xff]
  %v782 = vld [vmem:[%s653 + $0x2] sm:$0xff]
  %v783 = vld [vmem:[%s653 + $0xa] sm:$0xff]
  %v784 = vld [vmem:[%s653 + $0x1a] sm:$0xff]
  %v785 = vld [vmem:[%s653 + $0x22] sm:$0xff]
  %v786 = vld [vmem:[%s653 + $0x32] sm:$0xff]
  %v787 = vld [vmem:[%s653 + $0x3a] sm:$0xff]
  %v788 = vld [vmem:[%s653 + $0x4a] sm:$0xff]
  %v789 = vld [vmem:[%s653 + $0x52] sm:$0xff]
  %v790 = vld [vmem:[%s653 + $0x62] sm:$0xff]
  %v791 = vld [vmem:[%s653 + $0x6a] sm:$0xff]
  %v792 = vld [vmem:[%s653 + $0x7a] sm:$0xff]
  %v793 = vld [vmem:[%s653 + $0x82] sm:$0xff]
  %v794 = vld [vmem:[%s653 + $0x92] sm:$0xff]
  %v795 = vld [vmem:[%s653 + $0x9a] sm:$0xff]
  %v796 = vld [vmem:[%s653 + $0xaa] sm:$0xff]
  %v797 = vld [vmem:[%s653 + $0xb2] sm:$0xff]
  %v798 = vld [vmem:[%s653 + $0xc2] sm:$0xff]
  %v799 = vld [vmem:[%s653 + $0xca] sm:$0xff]
  %v800 = vld [vmem:[%s653 + $0xda] sm:$0xff]
  %v801 = vld [vmem:[%s653 + $0xe2] sm:$0xff]
  %v802 = vld [vmem:[%s653 + $0xf2] sm:$0xff]
  %v803 = vld [vmem:[%s653 + $0xfa] sm:$0xff]
  %v804 = vld [vmem:[%s653 + $0x10a] sm:$0xff]
  %v805 = vld [vmem:[%s653 + $0x112] sm:$0xff]
  %v806 = vld [vmem:[%s653 + $0x122] sm:$0xff]
  %v807 = vld [vmem:[%s653 + $0x12a] sm:$0xff]
  %v808 = vld [vmem:[%s653 + $0x13a] sm:$0xff]
  %v809 = vld [vmem:[%s653 + $0x142] sm:$0xff]
  %v810 = vld [vmem:[%s653 + $0x152] sm:$0xff]
  %v811 = vld [vmem:[%s653 + $0x15a] sm:$0xff]
  %v812 = vld [vmem:[%s653 + $0x16a] sm:$0xff]
  %v813 = vld [vmem:[%s653 + $0x172] sm:$0xff]
  %v814 = vld [vmem:[%s653 + $0x1b2] sm:$0xff]
  %v815 = vld [vmem:[%s653 + $0x1ba] sm:$0xff]
  %v816 = vld [vmem:[%s653 + $0x1ca] sm:$0xff]
  %v817 = vld [vmem:[%s653 + $0x1d2] sm:$0xff]
  %v818 = vld [vmem:[%s653 + $0x1e2] sm:$0xff]
  %v819 = vld [vmem:[%s653 + $0x1ea] sm:$0xff]
  %v820 = vld [vmem:[%s653 + $0x1fa] sm:$0xff]
  %v821 = vld [vmem:[%s653 + $0x202] sm:$0xff]
  %v822 = vld [vmem:[%s653 + $0x212] sm:$0xff]
  %v823 = vld [vmem:[%s653 + $0x21a] sm:$0xff]
  %v824 = vld [vmem:[%s653 + $0x22a] sm:$0xff]
  %v825 = vld [vmem:[%s653 + $0x232] sm:$0xff]
  %v826 = vld [vmem:[%s653 + $0x242] sm:$0xff]
  %v827 = vld [vmem:[%s653 + $0x24a] sm:$0xff]
  %v828 = vld [vmem:[%s653 + $0x25a] sm:$0xff]
  %v829 = vld [vmem:[%s653 + $0x262] sm:$0xff]
  %v830 = vld [vmem:[%s653 + $0x272] sm:$0xff]
  %v831 = vld [vmem:[%s653 + $0x27a] sm:$0xff]
  %v832 = vld [vmem:[%s653 + $0x28a] sm:$0xff]
  %v833 = vld [vmem:[%s653 + $0x292] sm:$0xff]
  %v834 = vld [vmem:[%s653 + $0x2a2] sm:$0xff]
  %v835 = vld [vmem:[%s653 + $0x2aa] sm:$0xff]
  %v836 = vld [vmem:[%s653 + $0x2ba] sm:$0xff]
  %v837 = vld [vmem:[%s653 + $0x2c2] sm:$0xff]
  %v838 = vld [vmem:[%s653 + $0x2d2] sm:$0xff]
  %v839 = vld [vmem:[%s653 + $0x2da] sm:$0xff]
  %v840 = vld [vmem:[%s653 + $0x2ea] sm:$0xff]
  %v841 = vld [vmem:[%s653 + $0x2f2] sm:$0xff]
  %v842 = vld [vmem:[%s653 + $0x302] sm:$0xff]
  %v843 = vld [vmem:[%s653 + $0x30a] sm:$0xff]
  %v844 = vld [vmem:[%s653 + $0x31a] sm:$0xff]
  %v845 = vld [vmem:[%s653 + $0x322] sm:$0xff]
  %v846 = vld [vmem:[%s1] sm:$0xff]
  %v847 = vld [vmem:[%s1 + $0x8] sm:$0xff]
  %v848 = vld [vmem:[%s1 + $0x10] sm:$0xff]
  %v849 = vld [vmem:[%s1 + $0x18] sm:$0xff]
  %v850 = vld [vmem:[%s1 + $0x20] sm:$0xff]
  %v851 = vld [vmem:[%s1 + $0x28] sm:$0xff]
  %v852 = vld [vmem:[%s1 + $0x30] sm:$0xff]
  %v853 = vld [vmem:[%s1 + $0x38] sm:$0xff]
  %v854 = vld [vmem:[%s1 + $0x40] sm:$0xff]
  %v855 = vld [vmem:[%s1 + $0x48] sm:$0xff]
  %v856 = vld [vmem:[%s1 + $0x50] sm:$0xff]
  %v857 = vld [vmem:[%s1 + $0x58] sm:$0xff]
  %v858 = vld [vmem:[%s1 + $0x60] sm:$0xff]
  %v859 = vld [vmem:[%s1 + $0x68] sm:$0xff]
  %v860 = vld [vmem:[%s1 + $0x70] sm:$0xff]
  %v861 = vld [vmem:[%s1 + $0x78] sm:$0xff]
  %v862 = vld [vmem:[%s1 + $0x80] sm:$0xff]
  %v863 = vld [vmem:[%s1 + $0x88] sm:$0xff]
  %v864 = vld [vmem:[%s1 + $0x90] sm:$0xff]
  %v865 = vld [vmem:[%s1 + $0x98] sm:$0xff]
  %v866 = vld [vmem:[%s1 + $0xa0] sm:$0xff]
  %v867 = vld [vmem:[%s1 + $0xa8] sm:$0xff]
  %v868 = vld [vmem:[%s1 + $0xb0] sm:$0xff]
  %v869 = vld [vmem:[%s1 + $0xb8] sm:$0xff]
  %v870 = vld [vmem:[%s1 + $0xc0] sm:$0xff]
  %v871 = vld [vmem:[%s1 + $0xc8] sm:$0xff]
  %v872 = vld [vmem:[%s1 + $0xd0] sm:$0xff]
  %v873 = vld [vmem:[%s1 + $0xd8] sm:$0xff]
  %v874 = vld [vmem:[%s1 + $0xe0] sm:$0xff]
  %v875 = vld [vmem:[%s1 + $0xe8] sm:$0xff]
  %v876 = vld [vmem:[%s1 + $0xf0] sm:$0xff]
  %v877 = vld [vmem:[%s1 + $0xf8] sm:$0xff]
  %v878 = vld [vmem:[%s1 + $0x100] sm:$0xff]
  %v879 = vld [vmem:[%s1 + $0x108] sm:$0xff]
  %v880 = vld [vmem:[%s1 + $0x110] sm:$0xff]
  %v881 = vld [vmem:[%s1 + $0x118] sm:$0xff]
  %v882 = vld [vmem:[%s1 + $0x120] sm:$0xff]
  %v883 = vld [vmem:[%s1 + $0x128] sm:$0xff]
  %v884 = vld [vmem:[%s1 + $0x130] sm:$0xff]
  %v885 = vld [vmem:[%s1 + $0x138] sm:$0xff]
  %v886 = vld [vmem:[%s1 + $0x140] sm:$0xff]
  %v887 = vld [vmem:[%s1 + $0x148] sm:$0xff]
  %v888 = vld [vmem:[%s1 + $0x150] sm:$0xff]
  %v889 = vld [vmem:[%s1 + $0x158] sm:$0xff]
  %v890 = vld [vmem:[%s1 + $0x160] sm:$0xff]
  %v891 = vld [vmem:[%s1 + $0x168] sm:$0xff]
  %v892 = vld [vmem:[%s1 + $0x170] sm:$0xff]
  %v893 = vld [vmem:[%s1 + $0x178] sm:$0xff]
  %v894 = vld [vmem:[%s1 + $0x180] sm:$0xff]
  %v895 = vld [vmem:[%s1 + $0x188] sm:$0xff]
  %v896 = vld [vmem:[%s1 + $0x190] sm:$0xff]
  %v897 = vld [vmem:[%s1 + $0x198] sm:$0xff]
  %v898 = vld [vmem:[%s1 + $0x1a0] sm:$0xff]
  %v899 = vld [vmem:[%s1 + $0x1a8] sm:$0xff]
  %v900 = vld [vmem:[%s1 + $0x1b0] sm:$0xff]
  %v901 = vld [vmem:[%s1 + $0x1b8] sm:$0xff]
  %v902 = vld [vmem:[%s1 + $0x1c0] sm:$0xff]
  %v903 = vld [vmem:[%s1 + $0x1c8] sm:$0xff]
  %v904 = vld [vmem:[%s1 + $0x1d0] sm:$0xff]
  %v905 = vld [vmem:[%s1 + $0x1d8] sm:$0xff]
  %v906 = vld [vmem:[%s1 + $0x1e0] sm:$0xff]
  %v907 = vld [vmem:[%s1 + $0x1e8] sm:$0xff]
  %v908 = vld [vmem:[%s1 + $0x1f0] sm:$0xff]
  %v909 = vld [vmem:[%s1 + $0x1f8] sm:$0xff]
  %v910 = vld [vmem:[%s1 + $0x200] sm:$0xff]
  %v911 = vld [vmem:[%s1 + $0x208] sm:$0xff]
  %v912 = vld [vmem:[%s1 + $0x210] sm:$0xff]
  %v913 = vld [vmem:[%s1 + $0x218] sm:$0xff]
  %v914 = vld [vmem:[%s1 + $0x220] sm:$0xff]
  %v915 = vld [vmem:[%s1 + $0x228] sm:$0xff]
  %v916 = vld [vmem:[%s1 + $0x230] sm:$0xff]
  %v917 = vld [vmem:[%s1 + $0x238] sm:$0xff]
  %v918 = vld [vmem:[%s1 + $0x240] sm:$0xff]
  %v919 = vld [vmem:[%s1 + $0x248] sm:$0xff]
  %v920 = vld [vmem:[%s1 + $0x250] sm:$0xff]
  %v921 = vld [vmem:[%s1 + $0x258] sm:$0xff]
  %v922 = vld [vmem:[%s1 + $0x260] sm:$0xff]
  %v923 = vld [vmem:[%s1 + $0x268] sm:$0xff]
  %v924 = vld [vmem:[%s1 + $0x270] sm:$0xff]
  %v925 = vld [vmem:[%s1 + $0x278] sm:$0xff]
  %v926 = vld [vmem:[%s1 + $0x280] sm:$0xff]
  %v927 = vld [vmem:[%s1 + $0x288] sm:$0xff]
  %v928 = vld [vmem:[%s1 + $0x290] sm:$0xff]
  %v929 = vld [vmem:[%s1 + $0x298] sm:$0xff]
  %v930 = vld [vmem:[%s1 + $0x2a0] sm:$0xff]
  %v931 = vld [vmem:[%s1 + $0x2a8] sm:$0xff]
  %v932 = vld [vmem:[%s1 + $0x2b0] sm:$0xff]
  %v933 = vld [vmem:[%s1 + $0x2b8] sm:$0xff]
  %v934 = vld [vmem:[%s1 + $0x2c0] sm:$0xff]
  %v935 = vld [vmem:[%s1 + $0x2c8] sm:$0xff]
  %v936 = vld [vmem:[%s1 + $0x2d0] sm:$0xff]
  %v937 = vld [vmem:[%s1 + $0x2d8] sm:$0xff]
  %v938 = vld [vmem:[%s1 + $0x2e0] sm:$0xff]
  %v939 = vld [vmem:[%s1 + $0x2e8] sm:$0xff]
  %v940 = vld [vmem:[%s1 + $0x2f0] sm:$0xff]
  %v941 = vld [vmem:[%s1 + $0x2f8] sm:$0xff]
  %v942 = vld [vmem:[%s1 + $0x300] sm:$0xff]
  %v943 = vld [vmem:[%s1 + $0x308] sm:$0xff]
  %v944 = vld [vmem:[%s1 + $0x310] sm:$0xff]
  %v945 = vld [vmem:[%s1 + $0x318] sm:$0xff]
  %v946 = vld [vmem:[%s1 + $0x320] sm:$0xff]
  %v947 = vld [vmem:[%s1 + $0x328] sm:$0xff]
  %v948 = vld [vmem:[%s1 + $0x330] sm:$0xff]
  %v949 = vld [vmem:[%s1 + $0x338] sm:$0xff]
  %v950 = vld [vmem:[%s1 + $0x340] sm:$0xff]
  %v951 = vld [vmem:[%s1 + $0x348] sm:$0xff]
  %v952 = vld [vmem:[%s1 + $0x350] sm:$0xff]
  %v953 = vld [vmem:[%s1 + $0x358] sm:$0xff]
  %v954 = vld [vmem:[%s1 + $0x360] sm:$0xff]
  %v955 = vld [vmem:[%s1 + $0x368] sm:$0xff]
  %v956 = vld [vmem:[%s1 + $0x370] sm:$0xff]
  %v957 = vld [vmem:[%s1 + $0x378] sm:$0xff]
  %v958 = vld [vmem:[%s1 + $0x380] sm:$0xff]
  %v959 = vld [vmem:[%s1 + $0x388] sm:$0xff]
  %v960 = vld [vmem:[%s1 + $0x390] sm:$0xff]
  %v961 = vld [vmem:[%s1 + $0x398] sm:$0xff]
  %v962 = vld [vmem:[%s1 + $0x3a0] sm:$0xff]
  %v963 = vld [vmem:[%s1 + $0x3a8] sm:$0xff]
  %v964 = vld [vmem:[%s1 + $0x3b0] sm:$0xff]
  %v965 = vld [vmem:[%s1 + $0x3b8] sm:$0xff]
  %v966 = vld [vmem:[%s1 + $0x3c0] sm:$0xff]
  %v967 = vld [vmem:[%s1 + $0x3c8] sm:$0xff]
  %v968 = vld [vmem:[%s1 + $0x3d0] sm:$0xff]
  %v969 = vld [vmem:[%s1 + $0x3d8] sm:$0xff]
  %v970 = vld [vmem:[%s1 + $0x3e0] sm:$0xff]
  %v971 = vld [vmem:[%s1 + $0x3e8] sm:$0xff]
  %v972 = vld [vmem:[%s1 + $0x3f0] sm:$0xff]
  %v973 = vld [vmem:[%s1 + $0x3f8] sm:$0xff]
  %v974 = vld [vmem:[%s1 + $0x400] sm:$0xff]
  %v975 = vld [vmem:[%s1 + $0x408] sm:$0xff]
  %v976 = vld [vmem:[%s1 + $0x410] sm:$0xff]
  %v977 = vld [vmem:[%s1 + $0x418] sm:$0xff]
  %v978 = vld [vmem:[%s1 + $0x420] sm:$0xff]
  %v979 = vld [vmem:[%s1 + $0x428] sm:$0xff]
  %v980 = vld [vmem:[%s1 + $0x430] sm:$0xff]
  %v981 = vld [vmem:[%s1 + $0x438] sm:$0xff]
  %v982 = vld [vmem:[%s1 + $0x440] sm:$0xff]
  %v983 = vld [vmem:[%s1 + $0x448] sm:$0xff]
  %v984 = vld [vmem:[%s1 + $0x450] sm:$0xff]
  %v985 = vld [vmem:[%s1 + $0x458] sm:$0xff]
  %v986 = vld [vmem:[%s1 + $0x460] sm:$0xff]
  %v987 = vld [vmem:[%s1 + $0x468] sm:$0xff]
  %v988 = vld [vmem:[%s1 + $0x470] sm:$0xff]
  %v989 = vld [vmem:[%s1 + $0x478] sm:$0xff]
  %v990 = vld [vmem:[%s2] sm:$0x1]
  %v992 = vlaneseq
  %v993 = vshrl.u32 %v992, 7
  %v994 = vsub.s32 0, %v993
  %v995 = vrot.slane %v990, %v994
  %997 = vmatprep.subr.mxu0 0.0
  %998 = vmatpush1.msra.mxu0 %v861
  %999 = vmatprep.subr.mxu0 0.0
  %1000 = vmatpush1.msra.mxu0 %v860
  %1001 = vmatprep.subr.mxu0 0.0
  %1002 = vmatpush1.msra.mxu0 %v859
  %1003 = vmatprep.subr.mxu0 0.0
  %1004 = vmatpush1.msra.mxu0 %v858
  %1005 = vmatprep.subr.mxu0 0.0
  %1006 = vmatpush1.msra.mxu0 %v857
  %1007 = vmatprep.subr.mxu0 0.0
  %1008 = vmatpush1.msra.mxu0 %v856
  %1009 = vmatprep.subr.mxu0 0.0
  %1010 = vmatpush1.msra.mxu0 %v855
  %1011 = vmatprep.subr.mxu0 0.0
  %1012 = vmatpush1.msra.mxu0 %v854
  %1013 = vmatprep.subr.mxu0 0.0
  %1014 = vmatpush1.msra.mxu0 %v853
  %1015 = vmatprep.subr.mxu0 0.0
  %1016 = vmatpush1.msra.mxu0 %v852
  %1017 = vmatprep.subr.mxu0 0.0
  %1018 = vmatpush1.msra.mxu0 %v851
  %1019 = vmatprep.subr.mxu0 0.0
  %1020 = vmatpush1.msra.mxu0 %v850
  %1021 = vmatprep.subr.mxu0 0.0
  %1022 = vmatpush1.msra.mxu0 %v849
  %1023 = vmatprep.subr.mxu0 0.0
  %1024 = vmatpush1.msra.mxu0 %v848
  %1025 = vmatprep.subr.mxu0 0.0
  %1026 = vmatpush1.msra.mxu0 %v847
  %1027 = vmatprep.subr.mxu0 0.0
  %1028 = vmatpush1.msra.mxu0 %v846
  %1029 = vmatprep.subr.mxu0 0.0
  %1030 = vmatpush2.msra.mxu0 %v877
  %1031 = vmatprep.subr.mxu0 0.0
  %1032 = vmatpush2.msra.mxu0 %v876
  %1033 = vmatprep.subr.mxu0 0.0
  %1034 = vmatpush2.msra.mxu0 %v875
  %1035 = vmatprep.subr.mxu0 0.0
  %1036 = vmatpush2.msra.mxu0 %v874
  %1037 = vmatprep.subr.mxu0 0.0
  %1038 = vmatpush2.msra.mxu0 %v873
  %1039 = vmatprep.subr.mxu0 0.0
  %1040 = vmatpush2.msra.mxu0 %v872
  %1041 = vmatprep.subr.mxu0 0.0
  %1042 = vmatpush2.msra.mxu0 %v871
  %1043 = vmatprep.subr.mxu0 0.0
  %1044 = vmatpush2.msra.mxu0 %v870
  %1045 = vmatprep.subr.mxu0 0.0
  %1046 = vmatpush2.msra.mxu0 %v869
  %1047 = vmatprep.subr.mxu0 0.0
  %1048 = vmatpush2.msra.mxu0 %v868
  %1049 = vmatprep.subr.mxu0 0.0
  %1050 = vmatpush2.msra.mxu0 %v867
  %1051 = vmatprep.subr.mxu0 0.0
  %1052 = vmatpush2.msra.mxu0 %v866
  %1053 = vmatprep.subr.mxu0 0.0
  %1054 = vmatpush2.msra.mxu0 %v865
  %1055 = vmatprep.subr.mxu0 0.0
  %1056 = vmatpush2.msra.mxu0 %v864
  %1057 = vmatprep.subr.mxu0 0.0
  %1058 = vmatpush2.msra.mxu0 %v863
  %1059 = vmatprep.subr.mxu0 0.0
  %1060 = vmatpush2.msra.mxu0 %v862
  %1061 = vmatprep.mubr.f32.mxu0 %v333
  %1062 = vmatmul.mubr.f32.gmra.mxu0 %v269
  %v1063 = vpop.f32.mrf.mxu0
  %v1064 = vadd.f32 %v995, %v1063
  %v1065 = vpop.f32.mrf.mxu0
  %1066 = vmatprep.mubr.f32.mxu0 %v334
  %1067 = vmatmul.mubr.f32.gmra.mxu0 %v270
  %v1068 = vpop.f32.mrf.mxu0
  %v1069 = vadd.f32 %v995, %v1068
  %v1070 = vpop.f32.mrf.mxu0
  %1071 = vmatprep.mubr.f32.mxu0 %v335
  %1072 = vmatmul.mubr.f32.gmra.mxu0 %v271
  %v1073 = vpop.f32.mrf.mxu0
  %v1074 = vadd.f32 %v995, %v1073
  %v1075 = vpop.f32.mrf.mxu0
  %1076 = vmatprep.mubr.f32.mxu0 %v336
  %1077 = vmatmul.mubr.f32.gmra.mxu0 %v272
  %v1078 = vpop.f32.mrf.mxu0
  %v1079 = vadd.f32 %v995, %v1078
  %v1080 = vpop.f32.mrf.mxu0
  %1081 = vmatprep.mubr.f32.mxu0 %v337
  %1082 = vmatmul.mubr.f32.gmra.mxu0 %v273
  %v1083 = vpop.f32.mrf.mxu0
  %v1084 = vadd.f32 %v995, %v1083
  %v1085 = vpop.f32.mrf.mxu0
  %1086 = vmatprep.mubr.f32.mxu0 %v338
  %1087 = vmatmul.mubr.f32.gmra.mxu0 %v274
  %v1088 = vpop.f32.mrf.mxu0
  %v1089 = vadd.f32 %v995, %v1088
  %v1090 = vpop.f32.mrf.mxu0
  %1091 = vmatprep.mubr.f32.mxu0 %v339
  %1092 = vmatmul.mubr.f32.gmra.mxu0 %v275
  %v1093 = vpop.f32.mrf.mxu0
  %v1094 = vadd.f32 %v995, %v1093
  %v1095 = vpop.f32.mrf.mxu0
  %1096 = vmatprep.mubr.f32.mxu0 %v340
  %1097 = vmatmul.mubr.f32.gmra.mxu0 %v276
  %v1098 = vpop.f32.mrf.mxu0
  %v1099 = vadd.f32 %v995, %v1098
  %v1100 = vpop.f32.mrf.mxu0
  %1101 = vmatprep.mubr.f32.mxu0 %v341
  %1102 = vmatmul.mubr.f32.gmra.mxu0 %v277
  %v1103 = vpop.f32.mrf.mxu0
  %v1104 = vadd.f32 %v995, %v1103
  %v1105 = vpop.f32.mrf.mxu0
  %1106 = vmatprep.mubr.f32.mxu0 %v342
  %1107 = vmatmul.mubr.f32.gmra.mxu0 %v278
  %v1108 = vpop.f32.mrf.mxu0
  %v1109 = vadd.f32 %v995, %v1108
  %v1110 = vpop.f32.mrf.mxu0
  %1111 = vmatprep.mubr.f32.mxu0 %v343
  %1112 = vmatmul.mubr.f32.gmra.mxu0 %v279
  %v1113 = vpop.f32.mrf.mxu0
  %v1114 = vadd.f32 %v995, %v1113
  %v1115 = vpop.f32.mrf.mxu0
  %1116 = vmatprep.mubr.f32.mxu0 %v344
  %1117 = vmatmul.mubr.f32.gmra.mxu0 %v280
  %v1118 = vpop.f32.mrf.mxu0
  %v1119 = vadd.f32 %v995, %v1118
  %v1120 = vpop.f32.mrf.mxu0
  %1121 = vmatprep.mubr.f32.mxu0 %v345
  %1122 = vmatmul.mubr.f32.gmra.mxu0 %v281
  %v1123 = vpop.f32.mrf.mxu0
  %v1124 = vadd.f32 %v995, %v1123
  %v1125 = vpop.f32.mrf.mxu0
  %1126 = vmatprep.mubr.f32.mxu0 %v346
  %1127 = vmatmul.mubr.f32.gmra.mxu0 %v282
  %v1128 = vpop.f32.mrf.mxu0
  %v1129 = vadd.f32 %v995, %v1128
  %v1130 = vpop.f32.mrf.mxu0
  %1131 = vmatprep.mubr.f32.mxu0 %v347
  %1132 = vmatmul.mubr.f32.gmra.mxu0 %v283
  %v1133 = vpop.f32.mrf.mxu0
  %v1134 = vadd.f32 %v995, %v1133
  %v1135 = vpop.f32.mrf.mxu0
  %1136 = vmatprep.mubr.f32.mxu0 %v348
  %1137 = vmatmul.mubr.f32.gmra.mxu0 %v284
  %v1138 = vpop.f32.mrf.mxu0
  %v1139 = vadd.f32 %v995, %v1138
  %v1140 = vpop.f32.mrf.mxu0
  %1141 = vmatprep.mubr.f32.mxu0 %v349
  %1142 = vmatmul.mubr.f32.gmra.mxu0 %v285
  %v1143 = vpop.f32.mrf.mxu0
  %v1144 = vadd.f32 %v995, %v1143
  %v1145 = vpop.f32.mrf.mxu0
  %1146 = vmatprep.mubr.f32.mxu0 %v350
  %1147 = vmatmul.mubr.f32.gmra.mxu0 %v286
  %v1148 = vpop.f32.mrf.mxu0
  %v1149 = vadd.f32 %v995, %v1148
  %v1150 = vpop.f32.mrf.mxu0
  %1151 = vmatprep.mubr.f32.mxu0 %v351
  %1152 = vmatmul.mubr.f32.gmra.mxu0 %v287
  %v1153 = vpop.f32.mrf.mxu0
  %v1154 = vadd.f32 %v995, %v1153
  %v1155 = vpop.f32.mrf.mxu0
  %1156 = vmatprep.mubr.f32.mxu0 %v352
  %1157 = vmatmul.mubr.f32.gmra.mxu0 %v288
  %v1158 = vpop.f32.mrf.mxu0
  %v1159 = vadd.f32 %v995, %v1158
  %v1160 = vpop.f32.mrf.mxu0
  %1161 = vmatprep.mubr.f32.mxu0 %v353
  %1162 = vmatmul.mubr.f32.gmra.mxu0 %v289
  %v1163 = vpop.f32.mrf.mxu0
  %v1164 = vadd.f32 %v995, %v1163
  %v1165 = vpop.f32.mrf.mxu0
  %1166 = vmatprep.mubr.f32.mxu0 %v354
  %1167 = vmatmul.mubr.f32.gmra.mxu0 %v290
  %v1168 = vpop.f32.mrf.mxu0
  %v1169 = vadd.f32 %v995, %v1168
  %v1170 = vpop.f32.mrf.mxu0
  %1171 = vmatprep.mubr.f32.mxu0 %v355
  %1172 = vmatmul.mubr.f32.gmra.mxu0 %v291
  %v1173 = vpop.f32.mrf.mxu0
  %v1174 = vadd.f32 %v995, %v1173
  %v1175 = vpop.f32.mrf.mxu0
  %1176 = vmatprep.mubr.f32.mxu0 %v356
  %1177 = vmatmul.mubr.f32.gmra.mxu0 %v292
  %v1178 = vpop.f32.mrf.mxu0
  %v1179 = vadd.f32 %v995, %v1178
  %v1180 = vpop.f32.mrf.mxu0
  %1181 = vmatprep.mubr.f32.mxu0 %v357
  %1182 = vmatmul.mubr.f32.gmra.mxu0 %v293
  %v1183 = vpop.f32.mrf.mxu0
  %v1184 = vadd.f32 %v995, %v1183
  %v1185 = vpop.f32.mrf.mxu0
  %1186 = vmatprep.mubr.f32.mxu0 %v358
  %1187 = vmatmul.mubr.f32.gmra.mxu0 %v294
  %v1188 = vpop.f32.mrf.mxu0
  %v1189 = vadd.f32 %v995, %v1188
  %v1190 = vpop.f32.mrf.mxu0
  %1191 = vmatprep.mubr.f32.mxu0 %v359
  %1192 = vmatmul.mubr.f32.gmra.mxu0 %v295
  %v1193 = vpop.f32.mrf.mxu0
  %v1194 = vadd.f32 %v995, %v1193
  %v1195 = vpop.f32.mrf.mxu0
  %1196 = vmatprep.mubr.f32.mxu0 %v360
  %1197 = vmatmul.mubr.f32.gmra.mxu0 %v296
  %v1198 = vpop.f32.mrf.mxu0
  %v1199 = vadd.f32 %v995, %v1198
  %v1200 = vpop.f32.mrf.mxu0
  %1201 = vmatprep.mubr.f32.mxu0 %v361
  %1202 = vmatmul.mubr.f32.gmra.mxu0 %v297
  %v1203 = vpop.f32.mrf.mxu0
  %v1204 = vadd.f32 %v995, %v1203
  %v1205 = vpop.f32.mrf.mxu0
  %1206 = vmatprep.mubr.f32.mxu0 %v362
  %1207 = vmatmul.mubr.f32.gmra.mxu0 %v298
  %v1208 = vpop.f32.mrf.mxu0
  %v1209 = vadd.f32 %v995, %v1208
  %v1210 = vpop.f32.mrf.mxu0
  %1211 = vmatprep.mubr.f32.mxu0 %v363
  %1212 = vmatmul.mubr.f32.gmra.mxu0 %v299
  %v1213 = vpop.f32.mrf.mxu0
  %v1214 = vadd.f32 %v995, %v1213
  %v1215 = vpop.f32.mrf.mxu0
  %1216 = vmatprep.mubr.f32.mxu0 %v364
  %1217 = vmatmul.mubr.f32.gmra.mxu0 %v300
  %v1218 = vpop.f32.mrf.mxu0
  %v1219 = vadd.f32 %v995, %v1218
  %v1220 = vpop.f32.mrf.mxu0
  %1221 = vmatprep.mubr.f32.mxu0 %v365
  %1222 = vmatmul.mubr.f32.gmra.mxu0 %v301
  %v1223 = vpop.f32.mrf.mxu0
  %v1224 = vadd.f32 %v995, %v1223
  %v1225 = vpop.f32.mrf.mxu0
  %1226 = vmatprep.mubr.f32.mxu0 %v366
  %1227 = vmatmul.mubr.f32.gmra.mxu0 %v302
  %v1228 = vpop.f32.mrf.mxu0
  %v1229 = vadd.f32 %v995, %v1228
  %v1230 = vpop.f32.mrf.mxu0
  %1231 = vmatprep.mubr.f32.mxu0 %v367
  %1232 = vmatmul.mubr.f32.gmra.mxu0 %v303
  %v1233 = vpop.f32.mrf.mxu0
  %v1234 = vadd.f32 %v995, %v1233
  %v1235 = vpop.f32.mrf.mxu0
  %1236 = vmatprep.mubr.f32.mxu0 %v368
  %1237 = vmatmul.mubr.f32.gmra.mxu0 %v304
  %v1238 = vpop.f32.mrf.mxu0
  %v1239 = vadd.f32 %v995, %v1238
  %v1240 = vpop.f32.mrf.mxu0
  %1241 = vmatprep.mubr.f32.mxu0 %v369
  %1242 = vmatmul.mubr.f32.gmra.mxu0 %v305
  %v1243 = vpop.f32.mrf.mxu0
  %v1244 = vadd.f32 %v995, %v1243
  %v1245 = vpop.f32.mrf.mxu0
  %1246 = vmatprep.mubr.f32.mxu0 %v370
  %1247 = vmatmul.mubr.f32.gmra.mxu0 %v306
  %v1248 = vpop.f32.mrf.mxu0
  %v1249 = vadd.f32 %v995, %v1248
  %v1250 = vpop.f32.mrf.mxu0
  %1251 = vmatprep.mubr.f32.mxu0 %v371
  %1252 = vmatmul.mubr.f32.gmra.mxu0 %v307
  %v1253 = vpop.f32.mrf.mxu0
  %v1254 = vadd.f32 %v995, %v1253
  %v1255 = vpop.f32.mrf.mxu0
  %1256 = vmatprep.mubr.f32.mxu0 %v372
  %1257 = vmatmul.mubr.f32.gmra.mxu0 %v308
  %v1258 = vpop.f32.mrf.mxu0
  %v1259 = vadd.f32 %v995, %v1258
  %v1260 = vpop.f32.mrf.mxu0
  %1261 = vmatprep.mubr.f32.mxu0 %v373
  %1262 = vmatmul.mubr.f32.gmra.mxu0 %v309
  %v1263 = vpop.f32.mrf.mxu0
  %v1264 = vadd.f32 %v995, %v1263
  %v1265 = vpop.f32.mrf.mxu0
  %1266 = vmatprep.mubr.f32.mxu0 %v374
  %1267 = vmatmul.mubr.f32.gmra.mxu0 %v310
  %v1268 = vpop.f32.mrf.mxu0
  %v1269 = vadd.f32 %v995, %v1268
  %v1270 = vpop.f32.mrf.mxu0
  %1271 = vmatprep.mubr.f32.mxu0 %v375
  %1272 = vmatmul.mubr.f32.gmra.mxu0 %v311
  %v1273 = vpop.f32.mrf.mxu0
  %v1274 = vadd.f32 %v995, %v1273
  %v1275 = vpop.f32.mrf.mxu0
  %1276 = vmatprep.mubr.f32.mxu0 %v376
  %1277 = vmatmul.mubr.f32.gmra.mxu0 %v312
  %v1278 = vpop.f32.mrf.mxu0
  %v1279 = vadd.f32 %v995, %v1278
  %v1280 = vpop.f32.mrf.mxu0
  %1281 = vmatprep.mubr.f32.mxu0 %v377
  %1282 = vmatmul.mubr.f32.gmra.mxu0 %v313
  %v1283 = vpop.f32.mrf.mxu0
  %v1284 = vadd.f32 %v995, %v1283
  %v1285 = vpop.f32.mrf.mxu0
  %1286 = vmatprep.mubr.f32.mxu0 %v378
  %1287 = vmatmul.mubr.f32.gmra.mxu0 %v314
  %v1288 = vpop.f32.mrf.mxu0
  %v1289 = vadd.f32 %v995, %v1288
  %v1290 = vpop.f32.mrf.mxu0
  %1291 = vmatprep.mubr.f32.mxu0 %v379
  %1292 = vmatmul.mubr.f32.gmra.mxu0 %v315
  %v1293 = vpop.f32.mrf.mxu0
  %v1294 = vadd.f32 %v995, %v1293
  %v1295 = vpop.f32.mrf.mxu0
  %1296 = vmatprep.mubr.f32.mxu0 %v380
  %1297 = vmatmul.mubr.f32.gmra.mxu0 %v316
  %v1298 = vpop.f32.mrf.mxu0
  %v1299 = vadd.f32 %v995, %v1298
  %v1300 = vpop.f32.mrf.mxu0
  %1301 = vmatprep.mubr.f32.mxu0 %v381
  %1302 = vmatmul.mubr.f32.gmra.mxu0 %v317
  %v1303 = vpop.f32.mrf.mxu0
  %v1304 = vadd.f32 %v995, %v1303
  %v1305 = vpop.f32.mrf.mxu0
  %1306 = vmatprep.mubr.f32.mxu0 %v382
  %1307 = vmatmul.mubr.f32.gmra.mxu0 %v318
  %v1308 = vpop.f32.mrf.mxu0
  %v1309 = vadd.f32 %v995, %v1308
  %v1310 = vpop.f32.mrf.mxu0
  %1311 = vmatprep.mubr.f32.mxu0 %v383
  %1312 = vmatmul.mubr.f32.gmra.mxu0 %v319
  %v1313 = vpop.f32.mrf.mxu0
  %v1314 = vadd.f32 %v995, %v1313
  %v1315 = vpop.f32.mrf.mxu0
  %1316 = vmatprep.mubr.f32.mxu0 %v384
  %1317 = vmatmul.mubr.f32.gmra.mxu0 %v320
  %v1318 = vpop.f32.mrf.mxu0
  %v1319 = vadd.f32 %v995, %v1318
  %v1320 = vpop.f32.mrf.mxu0
  %1321 = vmatprep.mubr.f32.mxu0 %v385
  %1322 = vmatmul.mubr.f32.gmra.mxu0 %v321
  %v1323 = vpop.f32.mrf.mxu0
  %v1324 = vadd.f32 %v995, %v1323
  %v1325 = vpop.f32.mrf.mxu0
  %1326 = vmatprep.mubr.f32.mxu0 %v386
  %1327 = vmatmul.mubr.f32.gmra.mxu0 %v322
  %v1328 = vpop.f32.mrf.mxu0
  %v1329 = vadd.f32 %v995, %v1328
  %v1330 = vpop.f32.mrf.mxu0
  %1331 = vmatprep.mubr.f32.mxu0 %v387
  %1332 = vmatmul.mubr.f32.gmra.mxu0 %v323
  %v1333 = vpop.f32.mrf.mxu0
  %v1334 = vadd.f32 %v995, %v1333
  %v1335 = vpop.f32.mrf.mxu0
  %1336 = vmatprep.mubr.f32.mxu0 %v388
  %1337 = vmatmul.mubr.f32.gmra.mxu0 %v324
  %v1338 = vpop.f32.mrf.mxu0
  %v1339 = vadd.f32 %v995, %v1338
  %v1340 = vpop.f32.mrf.mxu0
  %1341 = vmatprep.mubr.f32.mxu0 %v389
  %1342 = vmatmul.mubr.f32.gmra.mxu0 %v325
  %v1343 = vpop.f32.mrf.mxu0
  %v1344 = vadd.f32 %v995, %v1343
  %v1345 = vpop.f32.mrf.mxu0
  %1346 = vmatprep.mubr.f32.mxu0 %v390
  %1347 = vmatmul.mubr.f32.gmra.mxu0 %v326
  %v1348 = vpop.f32.mrf.mxu0
  %v1349 = vadd.f32 %v995, %v1348
  %v1350 = vpop.f32.mrf.mxu0
  %1351 = vmatprep.mubr.f32.mxu0 %v391
  %1352 = vmatmul.mubr.f32.gmra.mxu0 %v327
  %v1353 = vpop.f32.mrf.mxu0
  %v1354 = vadd.f32 %v995, %v1353
  %v1355 = vpop.f32.mrf.mxu0
  %1356 = vmatprep.mubr.f32.mxu0 %v392
  %1357 = vmatmul.mubr.f32.gmra.mxu0 %v328
  %v1358 = vpop.f32.mrf.mxu0
  %v1359 = vadd.f32 %v995, %v1358
  %v1360 = vpop.f32.mrf.mxu0
  %1361 = vmatprep.mubr.f32.mxu0 %v393
  %1362 = vmatmul.mubr.f32.gmra.mxu0 %v329
  %v1363 = vpop.f32.mrf.mxu0
  %v1364 = vadd.f32 %v995, %v1363
  %v1365 = vpop.f32.mrf.mxu0
  %1366 = vmatprep.mubr.f32.mxu0 %v394
  %1367 = vmatmul.mubr.f32.gmra.mxu0 %v330
  %v1368 = vpop.f32.mrf.mxu0
  %v1369 = vadd.f32 %v995, %v1368
  %v1370 = vpop.f32.mrf.mxu0
  %1371 = vmatprep.mubr.f32.mxu0 %v395
  %1372 = vmatmul.mubr.f32.gmra.mxu0 %v331
  %v1373 = vpop.f32.mrf.mxu0
  %v1374 = vadd.f32 %v995, %v1373
  %v1375 = vpop.f32.mrf.mxu0
  %1376 = vmatprep.mubr.f32.mxu0 %v396
  %1377 = vmatmul.mubr.f32.gmra.mxu0 %v332
  %v1378 = vpop.f32.mrf.mxu0
  %v1379 = vadd.f32 %v995, %v1378
  %v1380 = vpop.f32.mrf.mxu0
  %1381 = vdwg.mxu0
  %1382 = vmatprep.subr.mxu0 0.0
  %1383 = vmatpush1.msra.mxu0 %v893
  %1384 = vmatprep.subr.mxu0 0.0
  %1385 = vmatpush1.msra.mxu0 %v892
  %1386 = vmatprep.subr.mxu0 0.0
  %1387 = vmatpush1.msra.mxu0 %v891
  %1388 = vmatprep.subr.mxu0 0.0
  %1389 = vmatpush1.msra.mxu0 %v890
  %1390 = vmatprep.subr.mxu0 0.0
  %1391 = vmatpush1.msra.mxu0 %v889
  %1392 = vmatprep.subr.mxu0 0.0
  %1393 = vmatpush1.msra.mxu0 %v888
  %1394 = vmatprep.subr.mxu0 0.0
  %1395 = vmatpush1.msra.mxu0 %v887
  %1396 = vmatprep.subr.mxu0 0.0
  %1397 = vmatpush1.msra.mxu0 %v886
  %1398 = vmatprep.subr.mxu0 0.0
  %1399 = vmatpush1.msra.mxu0 %v885
  %1400 = vmatprep.subr.mxu0 0.0
  %1401 = vmatpush1.msra.mxu0 %v884
  %1402 = vmatprep.subr.mxu0 0.0
  %1403 = vmatpush1.msra.mxu0 %v883
  %1404 = vmatprep.subr.mxu0 0.0
  %1405 = vmatpush1.msra.mxu0 %v882
  %1406 = vmatprep.subr.mxu0 0.0
  %1407 = vmatpush1.msra.mxu0 %v881
  %1408 = vmatprep.subr.mxu0 0.0
  %1409 = vmatpush1.msra.mxu0 %v880
  %1410 = vmatprep.subr.mxu0 0.0
  %1411 = vmatpush1.msra.mxu0 %v879
  %1412 = vmatprep.subr.mxu0 0.0
  %1413 = vmatpush1.msra.mxu0 %v878
  %1414 = vmatprep.subr.mxu0 0.0
  %1415 = vmatpush2.msra.mxu0 %v909
  %1416 = vmatprep.subr.mxu0 0.0
  %1417 = vmatpush2.msra.mxu0 %v908
  %1418 = vmatprep.subr.mxu0 0.0
  %1419 = vmatpush2.msra.mxu0 %v907
  %1420 = vmatprep.subr.mxu0 0.0
  %1421 = vmatpush2.msra.mxu0 %v906
  %1422 = vmatprep.subr.mxu0 0.0
  %1423 = vmatpush2.msra.mxu0 %v905
  %1424 = vmatprep.subr.mxu0 0.0
  %1425 = vmatpush2.msra.mxu0 %v904
  %1426 = vmatprep.subr.mxu0 0.0
  %1427 = vmatpush2.msra.mxu0 %v903
  %1428 = vmatprep.subr.mxu0 0.0
  %1429 = vmatpush2.msra.mxu0 %v902
  %1430 = vmatprep.subr.mxu0 0.0
  %1431 = vmatpush2.msra.mxu0 %v901
  %1432 = vmatprep.subr.mxu0 0.0
  %1433 = vmatpush2.msra.mxu0 %v900
  %1434 = vmatprep.subr.mxu0 0.0
  %1435 = vmatpush2.msra.mxu0 %v899
  %1436 = vmatprep.subr.mxu0 0.0
  %1437 = vmatpush2.msra.mxu0 %v898
  %1438 = vmatprep.subr.mxu0 0.0
  %1439 = vmatpush2.msra.mxu0 %v897
  %1440 = vmatprep.subr.mxu0 0.0
  %1441 = vmatpush2.msra.mxu0 %v896
  %1442 = vmatprep.subr.mxu0 0.0
  %1443 = vmatpush2.msra.mxu0 %v895
  %1444 = vmatprep.subr.mxu0 0.0
  %1445 = vmatpush2.msra.mxu0 %v894
  %1446 = vmatprep.mubr.f32.mxu0 %v461
  %1447 = vmatmul.mubr.f32.gmra.mxu0 %v397
  %v1448 = vpop.f32.mrf.mxu0
  %v1449 = vadd.f32 %v1064, %v1448
  %v1450 = vpop.f32.mrf.mxu0
  %1451 = vmatprep.mubr.f32.mxu0 %v462
  %1452 = vmatmul.mubr.f32.gmra.mxu0 %v398
  %v1453 = vpop.f32.mrf.mxu0
  %v1454 = vadd.f32 %v1069, %v1453
  %v1455 = vpop.f32.mrf.mxu0
  %1456 = vmatprep.mubr.f32.mxu0 %v463
  %1457 = vmatmul.mubr.f32.gmra.mxu0 %v399
  %v1458 = vpop.f32.mrf.mxu0
  %v1459 = vadd.f32 %v1074, %v1458
  %v1460 = vpop.f32.mrf.mxu0
  %1461 = vmatprep.mubr.f32.mxu0 %v464
  %1462 = vmatmul.mubr.f32.gmra.mxu0 %v400
  %v1463 = vpop.f32.mrf.mxu0
  %v1464 = vadd.f32 %v1079, %v1463
  %v1465 = vpop.f32.mrf.mxu0
  %1466 = vmatprep.mubr.f32.mxu0 %v465
  %1467 = vmatmul.mubr.f32.gmra.mxu0 %v401
  %v1468 = vpop.f32.mrf.mxu0
  %v1469 = vadd.f32 %v1084, %v1468
  %v1470 = vpop.f32.mrf.mxu0
  %1471 = vmatprep.mubr.f32.mxu0 %v466
  %1472 = vmatmul.mubr.f32.gmra.mxu0 %v402
  %v1473 = vpop.f32.mrf.mxu0
  %v1474 = vadd.f32 %v1089, %v1473
  %v1475 = vpop.f32.mrf.mxu0
  %1476 = vmatprep.mubr.f32.mxu0 %v467
  %1477 = vmatmul.mubr.f32.gmra.mxu0 %v403
  %v1478 = vpop.f32.mrf.mxu0
  %v1479 = vadd.f32 %v1094, %v1478
  %v1480 = vpop.f32.mrf.mxu0
  %1481 = vmatprep.mubr.f32.mxu0 %v468
  %1482 = vmatmul.mubr.f32.gmra.mxu0 %v404
  %v1483 = vpop.f32.mrf.mxu0
  %v1484 = vadd.f32 %v1099, %v1483
  %v1485 = vpop.f32.mrf.mxu0
  %1486 = vmatprep.mubr.f32.mxu0 %v469
  %1487 = vmatmul.mubr.f32.gmra.mxu0 %v405
  %v1488 = vpop.f32.mrf.mxu0
  %v1489 = vadd.f32 %v1104, %v1488
  %v1490 = vpop.f32.mrf.mxu0
  %1491 = vmatprep.mubr.f32.mxu0 %v470
  %1492 = vmatmul.mubr.f32.gmra.mxu0 %v406
  %v1493 = vpop.f32.mrf.mxu0
  %v1494 = vadd.f32 %v1109, %v1493
  %v1495 = vpop.f32.mrf.mxu0
  %1496 = vmatprep.mubr.f32.mxu0 %v471
  %1497 = vmatmul.mubr.f32.gmra.mxu0 %v407
  %v1498 = vpop.f32.mrf.mxu0
  %v1499 = vadd.f32 %v1114, %v1498
  %v1500 = vpop.f32.mrf.mxu0
  %1501 = vmatprep.mubr.f32.mxu0 %v472
  %1502 = vmatmul.mubr.f32.gmra.mxu0 %v408
  %v1503 = vpop.f32.mrf.mxu0
  %v1504 = vadd.f32 %v1119, %v1503
  %v1505 = vpop.f32.mrf.mxu0
  %1506 = vmatprep.mubr.f32.mxu0 %v473
  %1507 = vmatmul.mubr.f32.gmra.mxu0 %v409
  %v1508 = vpop.f32.mrf.mxu0
  %v1509 = vadd.f32 %v1124, %v1508
  %v1510 = vpop.f32.mrf.mxu0
  %1511 = vmatprep.mubr.f32.mxu0 %v474
  %1512 = vmatmul.mubr.f32.gmra.mxu0 %v410
  %v1513 = vpop.f32.mrf.mxu0
  %v1514 = vadd.f32 %v1129, %v1513
  %v1515 = vpop.f32.mrf.mxu0
  %1516 = vmatprep.mubr.f32.mxu0 %v475
  %1517 = vmatmul.mubr.f32.gmra.mxu0 %v411
  %v1518 = vpop.f32.mrf.mxu0
  %v1519 = vadd.f32 %v1134, %v1518
  %v1520 = vpop.f32.mrf.mxu0
  %1521 = vmatprep.mubr.f32.mxu0 %v476
  %1522 = vmatmul.mubr.f32.gmra.mxu0 %v412
  %v1523 = vpop.f32.mrf.mxu0
  %v1524 = vadd.f32 %v1139, %v1523
  %v1525 = vpop.f32.mrf.mxu0
  %1526 = vmatprep.mubr.f32.mxu0 %v477
  %1527 = vmatmul.mubr.f32.gmra.mxu0 %v413
  %v1528 = vpop.f32.mrf.mxu0
  %v1529 = vadd.f32 %v1144, %v1528
  %v1530 = vpop.f32.mrf.mxu0
  %1531 = vmatprep.mubr.f32.mxu0 %v478
  %1532 = vmatmul.mubr.f32.gmra.mxu0 %v414
  %v1533 = vpop.f32.mrf.mxu0
  %v1534 = vadd.f32 %v1149, %v1533
  %v1535 = vpop.f32.mrf.mxu0
  %1536 = vmatprep.mubr.f32.mxu0 %v479
  %1537 = vmatmul.mubr.f32.gmra.mxu0 %v415
  %v1538 = vpop.f32.mrf.mxu0
  %v1539 = vadd.f32 %v1154, %v1538
  %v1540 = vpop.f32.mrf.mxu0
  %1541 = vmatprep.mubr.f32.mxu0 %v480
  %1542 = vmatmul.mubr.f32.gmra.mxu0 %v416
  %v1543 = vpop.f32.mrf.mxu0
  %v1544 = vadd.f32 %v1159, %v1543
  %v1545 = vpop.f32.mrf.mxu0
  %1546 = vmatprep.mubr.f32.mxu0 %v481
  %1547 = vmatmul.mubr.f32.gmra.mxu0 %v417
  %v1548 = vpop.f32.mrf.mxu0
  %v1549 = vadd.f32 %v1164, %v1548
  %v1550 = vpop.f32.mrf.mxu0
  %1551 = vmatprep.mubr.f32.mxu0 %v482
  %1552 = vmatmul.mubr.f32.gmra.mxu0 %v418
  %v1553 = vpop.f32.mrf.mxu0
  %v1554 = vadd.f32 %v1169, %v1553
  %v1555 = vpop.f32.mrf.mxu0
  %1556 = vmatprep.mubr.f32.mxu0 %v483
  %1557 = vmatmul.mubr.f32.gmra.mxu0 %v419
  %v1558 = vpop.f32.mrf.mxu0
  %v1559 = vadd.f32 %v1174, %v1558
  %v1560 = vpop.f32.mrf.mxu0
  %1561 = vmatprep.mubr.f32.mxu0 %v484
  %1562 = vmatmul.mubr.f32.gmra.mxu0 %v420
  %v1563 = vpop.f32.mrf.mxu0
  %v1564 = vadd.f32 %v1179, %v1563
  %v1565 = vpop.f32.mrf.mxu0
  %1566 = vmatprep.mubr.f32.mxu0 %v485
  %1567 = vmatmul.mubr.f32.gmra.mxu0 %v421
  %v1568 = vpop.f32.mrf.mxu0
  %v1569 = vadd.f32 %v1184, %v1568
  %v1570 = vpop.f32.mrf.mxu0
  %1571 = vmatprep.mubr.f32.mxu0 %v486
  %1572 = vmatmul.mubr.f32.gmra.mxu0 %v422
  %v1573 = vpop.f32.mrf.mxu0
  %v1574 = vadd.f32 %v1189, %v1573
  %v1575 = vpop.f32.mrf.mxu0
  %1576 = vmatprep.mubr.f32.mxu0 %v487
  %1577 = vmatmul.mubr.f32.gmra.mxu0 %v423
  %v1578 = vpop.f32.mrf.mxu0
  %v1579 = vadd.f32 %v1194, %v1578
  %v1580 = vpop.f32.mrf.mxu0
  %1581 = vmatprep.mubr.f32.mxu0 %v488
  %1582 = vmatmul.mubr.f32.gmra.mxu0 %v424
  %v1583 = vpop.f32.mrf.mxu0
  %v1584 = vadd.f32 %v1199, %v1583
  %v1585 = vpop.f32.mrf.mxu0
  %1586 = vmatprep.mubr.f32.mxu0 %v489
  %1587 = vmatmul.mubr.f32.gmra.mxu0 %v425
  %v1588 = vpop.f32.mrf.mxu0
  %v1589 = vadd.f32 %v1204, %v1588
  %v1590 = vpop.f32.mrf.mxu0
  %1591 = vmatprep.mubr.f32.mxu0 %v490
  %1592 = vmatmul.mubr.f32.gmra.mxu0 %v426
  %v1593 = vpop.f32.mrf.mxu0
  %v1594 = vadd.f32 %v1209, %v1593
  %v1595 = vpop.f32.mrf.mxu0
  %1596 = vmatprep.mubr.f32.mxu0 %v491
  %1597 = vmatmul.mubr.f32.gmra.mxu0 %v427
  %v1598 = vpop.f32.mrf.mxu0
  %v1599 = vadd.f32 %v1214, %v1598
  %v1600 = vpop.f32.mrf.mxu0
  %1601 = vmatprep.mubr.f32.mxu0 %v492
  %1602 = vmatmul.mubr.f32.gmra.mxu0 %v428
  %v1603 = vpop.f32.mrf.mxu0
  %v1604 = vadd.f32 %v1219, %v1603
  %v1605 = vpop.f32.mrf.mxu0
  %1606 = vmatprep.mubr.f32.mxu0 %v493
  %1607 = vmatmul.mubr.f32.gmra.mxu0 %v429
  %v1608 = vpop.f32.mrf.mxu0
  %v1609 = vadd.f32 %v1224, %v1608
  %v1610 = vpop.f32.mrf.mxu0
  %1611 = vmatprep.mubr.f32.mxu0 %v494
  %1612 = vmatmul.mubr.f32.gmra.mxu0 %v430
  %v1613 = vpop.f32.mrf.mxu0
  %v1614 = vadd.f32 %v1229, %v1613
  %v1615 = vpop.f32.mrf.mxu0
  %1616 = vmatprep.mubr.f32.mxu0 %v495
  %1617 = vmatmul.mubr.f32.gmra.mxu0 %v431
  %v1618 = vpop.f32.mrf.mxu0
  %v1619 = vadd.f32 %v1234, %v1618
  %v1620 = vpop.f32.mrf.mxu0
  %1621 = vmatprep.mubr.f32.mxu0 %v496
  %1622 = vmatmul.mubr.f32.gmra.mxu0 %v432
  %v1623 = vpop.f32.mrf.mxu0
  %v1624 = vadd.f32 %v1239, %v1623
  %v1625 = vpop.f32.mrf.mxu0
  %1626 = vmatprep.mubr.f32.mxu0 %v497
  %1627 = vmatmul.mubr.f32.gmra.mxu0 %v433
  %v1628 = vpop.f32.mrf.mxu0
  %v1629 = vadd.f32 %v1244, %v1628
  %v1630 = vpop.f32.mrf.mxu0
  %1631 = vmatprep.mubr.f32.mxu0 %v498
  %1632 = vmatmul.mubr.f32.gmra.mxu0 %v434
  %v1633 = vpop.f32.mrf.mxu0
  %v1634 = vadd.f32 %v1249, %v1633
  %v1635 = vpop.f32.mrf.mxu0
  %1636 = vmatprep.mubr.f32.mxu0 %v499
  %1637 = vmatmul.mubr.f32.gmra.mxu0 %v435
  %v1638 = vpop.f32.mrf.mxu0
  %v1639 = vadd.f32 %v1254, %v1638
  %v1640 = vpop.f32.mrf.mxu0
  %1641 = vmatprep.mubr.f32.mxu0 %v500
  %1642 = vmatmul.mubr.f32.gmra.mxu0 %v436
  %v1643 = vpop.f32.mrf.mxu0
  %v1644 = vadd.f32 %v1259, %v1643
  %v1645 = vpop.f32.mrf.mxu0
  %1646 = vmatprep.mubr.f32.mxu0 %v501
  %1647 = vmatmul.mubr.f32.gmra.mxu0 %v437
  %v1648 = vpop.f32.mrf.mxu0
  %v1649 = vadd.f32 %v1264, %v1648
  %v1650 = vpop.f32.mrf.mxu0
  %1651 = vmatprep.mubr.f32.mxu0 %v502
  %1652 = vmatmul.mubr.f32.gmra.mxu0 %v438
  %v1653 = vpop.f32.mrf.mxu0
  %v1654 = vadd.f32 %v1269, %v1653
  %v1655 = vpop.f32.mrf.mxu0
  %1656 = vmatprep.mubr.f32.mxu0 %v503
  %1657 = vmatmul.mubr.f32.gmra.mxu0 %v439
  %v1658 = vpop.f32.mrf.mxu0
  %v1659 = vadd.f32 %v1274, %v1658
  %v1660 = vpop.f32.mrf.mxu0
  %1661 = vmatprep.mubr.f32.mxu0 %v504
  %1662 = vmatmul.mubr.f32.gmra.mxu0 %v440
  %v1663 = vpop.f32.mrf.mxu0
  %v1664 = vadd.f32 %v1279, %v1663
  %v1665 = vpop.f32.mrf.mxu0
  %1666 = vmatprep.mubr.f32.mxu0 %v505
  %1667 = vmatmul.mubr.f32.gmra.mxu0 %v441
  %v1668 = vpop.f32.mrf.mxu0
  %v1669 = vadd.f32 %v1284, %v1668
  %v1670 = vpop.f32.mrf.mxu0
  %1671 = vmatprep.mubr.f32.mxu0 %v506
  %1672 = vmatmul.mubr.f32.gmra.mxu0 %v442
  %v1673 = vpop.f32.mrf.mxu0
  %v1674 = vadd.f32 %v1289, %v1673
  %v1675 = vpop.f32.mrf.mxu0
  %1676 = vmatprep.mubr.f32.mxu0 %v507
  %1677 = vmatmul.mubr.f32.gmra.mxu0 %v443
  %v1678 = vpop.f32.mrf.mxu0
  %v1679 = vadd.f32 %v1294, %v1678
  %v1680 = vpop.f32.mrf.mxu0
  %1681 = vmatprep.mubr.f32.mxu0 %v508
  %1682 = vmatmul.mubr.f32.gmra.mxu0 %v444
  %v1683 = vpop.f32.mrf.mxu0
  %v1684 = vadd.f32 %v1299, %v1683
  %v1685 = vpop.f32.mrf.mxu0
  %1686 = vmatprep.mubr.f32.mxu0 %v509
  %1687 = vmatmul.mubr.f32.gmra.mxu0 %v445
  %v1688 = vpop.f32.mrf.mxu0
  %v1689 = vadd.f32 %v1304, %v1688
  %v1690 = vpop.f32.mrf.mxu0
  %1691 = vmatprep.mubr.f32.mxu0 %v510
  %1692 = vmatmul.mubr.f32.gmra.mxu0 %v446
  %v1693 = vpop.f32.mrf.mxu0
  %v1694 = vadd.f32 %v1309, %v1693
  %v1695 = vpop.f32.mrf.mxu0
  %1696 = vmatprep.mubr.f32.mxu0 %v511
  %1697 = vmatmul.mubr.f32.gmra.mxu0 %v447
  %v1698 = vpop.f32.mrf.mxu0
  %v1699 = vadd.f32 %v1314, %v1698
  %v1700 = vpop.f32.mrf.mxu0
  %1701 = vmatprep.mubr.f32.mxu0 %v512
  %1702 = vmatmul.mubr.f32.gmra.mxu0 %v448
  %v1703 = vpop.f32.mrf.mxu0
  %v1704 = vadd.f32 %v1319, %v1703
  %v1705 = vpop.f32.mrf.mxu0
  %1706 = vmatprep.mubr.f32.mxu0 %v513
  %1707 = vmatmul.mubr.f32.gmra.mxu0 %v449
  %v1708 = vpop.f32.mrf.mxu0
  %v1709 = vadd.f32 %v1324, %v1708
  %v1710 = vpop.f32.mrf.mxu0
  %1711 = vmatprep.mubr.f32.mxu0 %v514
  %1712 = vmatmul.mubr.f32.gmra.mxu0 %v450
  %v1713 = vpop.f32.mrf.mxu0
  %v1714 = vadd.f32 %v1329, %v1713
  %v1715 = vpop.f32.mrf.mxu0
  %1716 = vmatprep.mubr.f32.mxu0 %v515
  %1717 = vmatmul.mubr.f32.gmra.mxu0 %v451
  %v1718 = vpop.f32.mrf.mxu0
  %v1719 = vadd.f32 %v1334, %v1718
  %v1720 = vpop.f32.mrf.mxu0
  %1721 = vmatprep.mubr.f32.mxu0 %v516
  %1722 = vmatmul.mubr.f32.gmra.mxu0 %v452
  %v1723 = vpop.f32.mrf.mxu0
  %v1724 = vadd.f32 %v1339, %v1723
  %v1725 = vpop.f32.mrf.mxu0
  %1726 = vmatprep.mubr.f32.mxu0 %v517
  %1727 = vmatmul.mubr.f32.gmra.mxu0 %v453
  %v1728 = vpop.f32.mrf.mxu0
  %v1729 = vadd.f32 %v1344, %v1728
  %v1730 = vpop.f32.mrf.mxu0
  %1731 = vmatprep.mubr.f32.mxu0 %v518
  %1732 = vmatmul.mubr.f32.gmra.mxu0 %v454
  %v1733 = vpop.f32.mrf.mxu0
  %v1734 = vadd.f32 %v1349, %v1733
  %v1735 = vpop.f32.mrf.mxu0
  %1736 = vmatprep.mubr.f32.mxu0 %v519
  %1737 = vmatmul.mubr.f32.gmra.mxu0 %v455
  %v1738 = vpop.f32.mrf.mxu0
  %v1739 = vadd.f32 %v1354, %v1738
  %v1740 = vpop.f32.mrf.mxu0
  %1741 = vmatprep.mubr.f32.mxu0 %v520
  %1742 = vmatmul.mubr.f32.gmra.mxu0 %v456
  %v1743 = vpop.f32.mrf.mxu0
  %v1744 = vadd.f32 %v1359, %v1743
  %v1745 = vpop.f32.mrf.mxu0
  %1746 = vmatprep.mubr.f32.mxu0 %v521
  %1747 = vmatmul.mubr.f32.gmra.mxu0 %v457
  %v1748 = vpop.f32.mrf.mxu0
  %v1749 = vadd.f32 %v1364, %v1748
  %v1750 = vpop.f32.mrf.mxu0
  %1751 = vmatprep.mubr.f32.mxu0 %v522
  %1752 = vmatmul.mubr.f32.gmra.mxu0 %v458
  %v1753 = vpop.f32.mrf.mxu0
  %v1754 = vadd.f32 %v1369, %v1753
  %v1755 = vpop.f32.mrf.mxu0
  %1756 = vmatprep.mubr.f32.mxu0 %v523
  %1757 = vmatmul.mubr.f32.gmra.mxu0 %v459
  %v1758 = vpop.f32.mrf.mxu0
  %v1759 = vadd.f32 %v1374, %v1758
  %v1760 = vpop.f32.mrf.mxu0
  %1761 = vmatprep.mubr.f32.mxu0 %v524
  %1762 = vmatmul.mubr.f32.gmra.mxu0 %v460
  %v1763 = vpop.f32.mrf.mxu0
  %v1764 = vadd.f32 %v1379, %v1763
  %v1765 = vpop.f32.mrf.mxu0
  %1766 = vdwg.mxu0
  %1767 = vmatprep.subr.mxu0 0.0
  %1768 = vmatpush1.msra.mxu0 %v925
  %1769 = vmatprep.subr.mxu0 0.0
  %1770 = vmatpush1.msra.mxu0 %v924
  %1771 = vmatprep.subr.mxu0 0.0
  %1772 = vmatpush1.msra.mxu0 %v923
  %1773 = vmatprep.subr.mxu0 0.0
  %1774 = vmatpush1.msra.mxu0 %v922
  %1775 = vmatprep.subr.mxu0 0.0
  %1776 = vmatpush1.msra.mxu0 %v921
  %1777 = vmatprep.subr.mxu0 0.0
  %1778 = vmatpush1.msra.mxu0 %v920
  %1779 = vmatprep.subr.mxu0 0.0
  %1780 = vmatpush1.msra.mxu0 %v919
  %1781 = vmatprep.subr.mxu0 0.0
  %1782 = vmatpush1.msra.mxu0 %v918
  %1783 = vmatprep.subr.mxu0 0.0
  %1784 = vmatpush1.msra.mxu0 %v917
  %1785 = vmatprep.subr.mxu0 0.0
  %1786 = vmatpush1.msra.mxu0 %v916
  %1787 = vmatprep.subr.mxu0 0.0
  %1788 = vmatpush1.msra.mxu0 %v915
  %1789 = vmatprep.subr.mxu0 0.0
  %1790 = vmatpush1.msra.mxu0 %v914
  %1791 = vmatprep.subr.mxu0 0.0
  %1792 = vmatpush1.msra.mxu0 %v913
  %1793 = vmatprep.subr.mxu0 0.0
  %1794 = vmatpush1.msra.mxu0 %v912
  %1795 = vmatprep.subr.mxu0 0.0
  %1796 = vmatpush1.msra.mxu0 %v911
  %1797 = vmatprep.subr.mxu0 0.0
  %1798 = vmatpush1.msra.mxu0 %v910
  %1799 = vmatprep.subr.mxu0 0.0
  %1800 = vmatpush2.msra.mxu0 %v941
  %1801 = vmatprep.subr.mxu0 0.0
  %1802 = vmatpush2.msra.mxu0 %v940
  %1803 = vmatprep.subr.mxu0 0.0
  %1804 = vmatpush2.msra.mxu0 %v939
  %1805 = vmatprep.subr.mxu0 0.0
  %1806 = vmatpush2.msra.mxu0 %v938
  %1807 = vmatprep.subr.mxu0 0.0
  %1808 = vmatpush2.msra.mxu0 %v937
  %1809 = vmatprep.subr.mxu0 0.0
  %1810 = vmatpush2.msra.mxu0 %v936
  %1811 = vmatprep.subr.mxu0 0.0
  %1812 = vmatpush2.msra.mxu0 %v935
  %1813 = vmatprep.subr.mxu0 0.0
  %1814 = vmatpush2.msra.mxu0 %v934
  %1815 = vmatprep.subr.mxu0 0.0
  %1816 = vmatpush2.msra.mxu0 %v933
  %1817 = vmatprep.subr.mxu0 0.0
  %1818 = vmatpush2.msra.mxu0 %v932
  %1819 = vmatprep.subr.mxu0 0.0
  %1820 = vmatpush2.msra.mxu0 %v931
  %1821 = vmatprep.subr.mxu0 0.0
  %1822 = vmatpush2.msra.mxu0 %v930
  %1823 = vmatprep.subr.mxu0 0.0
  %1824 = vmatpush2.msra.mxu0 %v929
  %1825 = vmatprep.subr.mxu0 0.0
  %1826 = vmatpush2.msra.mxu0 %v928
  %1827 = vmatprep.subr.mxu0 0.0
  %1828 = vmatpush2.msra.mxu0 %v927
  %1829 = vmatprep.subr.mxu0 0.0
  %1830 = vmatpush2.msra.mxu0 %v926
  %1831 = vmatprep.mubr.f32.mxu0 %v589
  %1832 = vmatmul.mubr.f32.gmra.mxu0 %v525
  %v1833 = vpop.f32.mrf.mxu0
  %v1834 = vadd.f32 %v1449, %v1833
  %v1835 = vpop.f32.mrf.mxu0
  %1836 = vmatprep.mubr.f32.mxu0 %v590
  %1837 = vmatmul.mubr.f32.gmra.mxu0 %v526
  %v1838 = vpop.f32.mrf.mxu0
  %v1839 = vadd.f32 %v1454, %v1838
  %v1840 = vpop.f32.mrf.mxu0
  %1841 = vmatprep.mubr.f32.mxu0 %v591
  %1842 = vmatmul.mubr.f32.gmra.mxu0 %v527
  %v1843 = vpop.f32.mrf.mxu0
  %v1844 = vadd.f32 %v1459, %v1843
  %v1845 = vpop.f32.mrf.mxu0
  %1846 = vmatprep.mubr.f32.mxu0 %v592
  %1847 = vmatmul.mubr.f32.gmra.mxu0 %v528
  %v1848 = vpop.f32.mrf.mxu0
  %v1849 = vadd.f32 %v1464, %v1848
  %v1850 = vpop.f32.mrf.mxu0
  %1851 = vmatprep.mubr.f32.mxu0 %v593
  %1852 = vmatmul.mubr.f32.gmra.mxu0 %v529
  %v1853 = vpop.f32.mrf.mxu0
  %v1854 = vadd.f32 %v1469, %v1853
  %v1855 = vpop.f32.mrf.mxu0
  %1856 = vmatprep.mubr.f32.mxu0 %v594
  %1857 = vmatmul.mubr.f32.gmra.mxu0 %v530
  %v1858 = vpop.f32.mrf.mxu0
  %v1859 = vadd.f32 %v1474, %v1858
  %v1860 = vpop.f32.mrf.mxu0
  %1861 = vmatprep.mubr.f32.mxu0 %v595
  %1862 = vmatmul.mubr.f32.gmra.mxu0 %v531
  %v1863 = vpop.f32.mrf.mxu0
  %v1864 = vadd.f32 %v1479, %v1863
  %v1865 = vpop.f32.mrf.mxu0
  %1866 = vmatprep.mubr.f32.mxu0 %v596
  %1867 = vmatmul.mubr.f32.gmra.mxu0 %v532
  %v1868 = vpop.f32.mrf.mxu0
  %v1869 = vadd.f32 %v1484, %v1868
  %v1870 = vpop.f32.mrf.mxu0
  %1871 = vmatprep.mubr.f32.mxu0 %v597
  %1872 = vmatmul.mubr.f32.gmra.mxu0 %v533
  %v1873 = vpop.f32.mrf.mxu0
  %v1874 = vadd.f32 %v1489, %v1873
  %v1875 = vpop.f32.mrf.mxu0
  %1876 = vmatprep.mubr.f32.mxu0 %v598
  %1877 = vmatmul.mubr.f32.gmra.mxu0 %v534
  %v1878 = vpop.f32.mrf.mxu0
  %v1879 = vadd.f32 %v1494, %v1878
  %v1880 = vpop.f32.mrf.mxu0
  %1881 = vmatprep.mubr.f32.mxu0 %v599
  %1882 = vmatmul.mubr.f32.gmra.mxu0 %v535
  %v1883 = vpop.f32.mrf.mxu0
  %v1884 = vadd.f32 %v1499, %v1883
  %v1885 = vpop.f32.mrf.mxu0
  %1886 = vmatprep.mubr.f32.mxu0 %v600
  %1887 = vmatmul.mubr.f32.gmra.mxu0 %v536
  %v1888 = vpop.f32.mrf.mxu0
  %v1889 = vadd.f32 %v1504, %v1888
  %v1890 = vpop.f32.mrf.mxu0
  %1891 = vmatprep.mubr.f32.mxu0 %v601
  %1892 = vmatmul.mubr.f32.gmra.mxu0 %v537
  %v1893 = vpop.f32.mrf.mxu0
  %v1894 = vadd.f32 %v1509, %v1893
  %v1895 = vpop.f32.mrf.mxu0
  %1896 = vmatprep.mubr.f32.mxu0 %v602
  %1897 = vmatmul.mubr.f32.gmra.mxu0 %v538
  %v1898 = vpop.f32.mrf.mxu0
  %v1899 = vadd.f32 %v1514, %v1898
  %v1900 = vpop.f32.mrf.mxu0
  %1901 = vmatprep.mubr.f32.mxu0 %v603
  %1902 = vmatmul.mubr.f32.gmra.mxu0 %v539
  %v1903 = vpop.f32.mrf.mxu0
  %v1904 = vadd.f32 %v1519, %v1903
  %v1905 = vpop.f32.mrf.mxu0
  %1906 = vmatprep.mubr.f32.mxu0 %v604
  %1907 = vmatmul.mubr.f32.gmra.mxu0 %v540
  %v1908 = vpop.f32.mrf.mxu0
  %v1909 = vadd.f32 %v1524, %v1908
  %v1910 = vpop.f32.mrf.mxu0
  %1911 = vmatprep.mubr.f32.mxu0 %v605
  %1912 = vmatmul.mubr.f32.gmra.mxu0 %v541
  %v1913 = vpop.f32.mrf.mxu0
  %v1914 = vadd.f32 %v1529, %v1913
  %v1915 = vpop.f32.mrf.mxu0
  %1916 = vmatprep.mubr.f32.mxu0 %v606
  %1917 = vmatmul.mubr.f32.gmra.mxu0 %v542
  %v1918 = vpop.f32.mrf.mxu0
  %v1919 = vadd.f32 %v1534, %v1918
  %v1920 = vpop.f32.mrf.mxu0
  %1921 = vmatprep.mubr.f32.mxu0 %v607
  %1922 = vmatmul.mubr.f32.gmra.mxu0 %v543
  %v1923 = vpop.f32.mrf.mxu0
  %v1924 = vadd.f32 %v1539, %v1923
  %v1925 = vpop.f32.mrf.mxu0
  %1926 = vmatprep.mubr.f32.mxu0 %v608
  %1927 = vmatmul.mubr.f32.gmra.mxu0 %v544
  %v1928 = vpop.f32.mrf.mxu0
  %v1929 = vadd.f32 %v1544, %v1928
  %v1930 = vpop.f32.mrf.mxu0
  %1931 = vmatprep.mubr.f32.mxu0 %v609
  %1932 = vmatmul.mubr.f32.gmra.mxu0 %v545
  %v1933 = vpop.f32.mrf.mxu0
  %v1934 = vadd.f32 %v1549, %v1933
  %v1935 = vpop.f32.mrf.mxu0
  %1936 = vmatprep.mubr.f32.mxu0 %v610
  %1937 = vmatmul.mubr.f32.gmra.mxu0 %v546
  %v1938 = vpop.f32.mrf.mxu0
  %v1939 = vadd.f32 %v1554, %v1938
  %v1940 = vpop.f32.mrf.mxu0
  %1941 = vmatprep.mubr.f32.mxu0 %v611
  %1942 = vmatmul.mubr.f32.gmra.mxu0 %v547
  %v1943 = vpop.f32.mrf.mxu0
  %v1944 = vadd.f32 %v1559, %v1943
  %v1945 = vpop.f32.mrf.mxu0
  %1946 = vmatprep.mubr.f32.mxu0 %v612
  %1947 = vmatmul.mubr.f32.gmra.mxu0 %v548
  %v1948 = vpop.f32.mrf.mxu0
  %v1949 = vadd.f32 %v1564, %v1948
  %v1950 = vpop.f32.mrf.mxu0
  %1951 = vmatprep.mubr.f32.mxu0 %v613
  %1952 = vmatmul.mubr.f32.gmra.mxu0 %v549
  %v1953 = vpop.f32.mrf.mxu0
  %v1954 = vadd.f32 %v1569, %v1953
  %v1955 = vpop.f32.mrf.mxu0
  %1956 = vmatprep.mubr.f32.mxu0 %v614
  %1957 = vmatmul.mubr.f32.gmra.mxu0 %v550
  %v1958 = vpop.f32.mrf.mxu0
  %v1959 = vadd.f32 %v1574, %v1958
  %v1960 = vpop.f32.mrf.mxu0
  %1961 = vmatprep.mubr.f32.mxu0 %v615
  %1962 = vmatmul.mubr.f32.gmra.mxu0 %v551
  %v1963 = vpop.f32.mrf.mxu0
  %v1964 = vadd.f32 %v1579, %v1963
  %v1965 = vpop.f32.mrf.mxu0
  %1966 = vmatprep.mubr.f32.mxu0 %v616
  %1967 = vmatmul.mubr.f32.gmra.mxu0 %v552
  %v1968 = vpop.f32.mrf.mxu0
  %v1969 = vadd.f32 %v1584, %v1968
  %v1970 = vpop.f32.mrf.mxu0
  %1971 = vmatprep.mubr.f32.mxu0 %v617
  %1972 = vmatmul.mubr.f32.gmra.mxu0 %v553
  %v1973 = vpop.f32.mrf.mxu0
  %v1974 = vadd.f32 %v1589, %v1973
  %v1975 = vpop.f32.mrf.mxu0
  %1976 = vmatprep.mubr.f32.mxu0 %v618
  %1977 = vmatmul.mubr.f32.gmra.mxu0 %v554
  %v1978 = vpop.f32.mrf.mxu0
  %v1979 = vadd.f32 %v1594, %v1978
  %v1980 = vpop.f32.mrf.mxu0
  %1981 = vmatprep.mubr.f32.mxu0 %v619
  %1982 = vmatmul.mubr.f32.gmra.mxu0 %v555
  %v1983 = vpop.f32.mrf.mxu0
  %v1984 = vadd.f32 %v1599, %v1983
  %v1985 = vpop.f32.mrf.mxu0
  %1986 = vmatprep.mubr.f32.mxu0 %v620
  %1987 = vmatmul.mubr.f32.gmra.mxu0 %v556
  %v1988 = vpop.f32.mrf.mxu0
  %v1989 = vadd.f32 %v1604, %v1988
  %v1990 = vpop.f32.mrf.mxu0
  %1991 = vmatprep.mubr.f32.mxu0 %v621
  %1992 = vmatmul.mubr.f32.gmra.mxu0 %v557
  %v1993 = vpop.f32.mrf.mxu0
  %v1994 = vadd.f32 %v1609, %v1993
  %v1995 = vpop.f32.mrf.mxu0
  %1996 = vmatprep.mubr.f32.mxu0 %v622
  %1997 = vmatmul.mubr.f32.gmra.mxu0 %v558
  %v1998 = vpop.f32.mrf.mxu0
  %v1999 = vadd.f32 %v1614, %v1998
  %v2000 = vpop.f32.mrf.mxu0
  %2001 = vmatprep.mubr.f32.mxu0 %v623
  %2002 = vmatmul.mubr.f32.gmra.mxu0 %v559
  %v2003 = vpop.f32.mrf.mxu0
  %v2004 = vadd.f32 %v1619, %v2003
  %v2005 = vpop.f32.mrf.mxu0
  %2006 = vmatprep.mubr.f32.mxu0 %v624
  %2007 = vmatmul.mubr.f32.gmra.mxu0 %v560
  %v2008 = vpop.f32.mrf.mxu0
  %v2009 = vadd.f32 %v1624, %v2008
  %v2010 = vpop.f32.mrf.mxu0
  %2011 = vmatprep.mubr.f32.mxu0 %v625
  %2012 = vmatmul.mubr.f32.gmra.mxu0 %v561
  %v2013 = vpop.f32.mrf.mxu0
  %v2014 = vadd.f32 %v1629, %v2013
  %v2015 = vpop.f32.mrf.mxu0
  %2016 = vmatprep.mubr.f32.mxu0 %v626
  %2017 = vmatmul.mubr.f32.gmra.mxu0 %v562
  %v2018 = vpop.f32.mrf.mxu0
  %v2019 = vadd.f32 %v1634, %v2018
  %v2020 = vpop.f32.mrf.mxu0
  %2021 = vmatprep.mubr.f32.mxu0 %v627
  %2022 = vmatmul.mubr.f32.gmra.mxu0 %v563
  %v2023 = vpop.f32.mrf.mxu0
  %v2024 = vadd.f32 %v1639, %v2023
  %v2025 = vpop.f32.mrf.mxu0
  %2026 = vmatprep.mubr.f32.mxu0 %v628
  %2027 = vmatmul.mubr.f32.gmra.mxu0 %v564
  %v2028 = vpop.f32.mrf.mxu0
  %v2029 = vadd.f32 %v1644, %v2028
  %v2030 = vpop.f32.mrf.mxu0
  %2031 = vmatprep.mubr.f32.mxu0 %v629
  %2032 = vmatmul.mubr.f32.gmra.mxu0 %v565
  %v2033 = vpop.f32.mrf.mxu0
  %v2034 = vadd.f32 %v1649, %v2033
  %v2035 = vpop.f32.mrf.mxu0
  %2036 = vmatprep.mubr.f32.mxu0 %v630
  %2037 = vmatmul.mubr.f32.gmra.mxu0 %v566
  %v2038 = vpop.f32.mrf.mxu0
  %v2039 = vadd.f32 %v1654, %v2038
  %v2040 = vpop.f32.mrf.mxu0
  %2041 = vmatprep.mubr.f32.mxu0 %v631
  %2042 = vmatmul.mubr.f32.gmra.mxu0 %v567
  %v2043 = vpop.f32.mrf.mxu0
  %v2044 = vadd.f32 %v1659, %v2043
  %v2045 = vpop.f32.mrf.mxu0
  %2046 = vmatprep.mubr.f32.mxu0 %v632
  %2047 = vmatmul.mubr.f32.gmra.mxu0 %v568
  %v2048 = vpop.f32.mrf.mxu0
  %v2049 = vadd.f32 %v1664, %v2048
  %v2050 = vpop.f32.mrf.mxu0
  %2051 = vmatprep.mubr.f32.mxu0 %v633
  %2052 = vmatmul.mubr.f32.gmra.mxu0 %v569
  %v2053 = vpop.f32.mrf.mxu0
  %v2054 = vadd.f32 %v1669, %v2053
  %v2055 = vpop.f32.mrf.mxu0
  %2056 = vmatprep.mubr.f32.mxu0 %v634
  %2057 = vmatmul.mubr.f32.gmra.mxu0 %v570
  %v2058 = vpop.f32.mrf.mxu0
  %v2059 = vadd.f32 %v1674, %v2058
  %v2060 = vpop.f32.mrf.mxu0
  %2061 = vmatprep.mubr.f32.mxu0 %v635
  %2062 = vmatmul.mubr.f32.gmra.mxu0 %v571
  %v2063 = vpop.f32.mrf.mxu0
  %v2064 = vadd.f32 %v1679, %v2063
  %v2065 = vpop.f32.mrf.mxu0
  %2066 = vmatprep.mubr.f32.mxu0 %v636
  %2067 = vmatmul.mubr.f32.gmra.mxu0 %v572
  %v2068 = vpop.f32.mrf.mxu0
  %v2069 = vadd.f32 %v1684, %v2068
  %v2070 = vpop.f32.mrf.mxu0
  %2071 = vmatprep.mubr.f32.mxu0 %v637
  %2072 = vmatmul.mubr.f32.gmra.mxu0 %v573
  %v2073 = vpop.f32.mrf.mxu0
  %v2074 = vadd.f32 %v1689, %v2073
  %v2075 = vpop.f32.mrf.mxu0
  %2076 = vmatprep.mubr.f32.mxu0 %v638
  %2077 = vmatmul.mubr.f32.gmra.mxu0 %v574
  %v2078 = vpop.f32.mrf.mxu0
  %v2079 = vadd.f32 %v1694, %v2078
  %v2080 = vpop.f32.mrf.mxu0
  %2081 = vmatprep.mubr.f32.mxu0 %v639
  %2082 = vmatmul.mubr.f32.gmra.mxu0 %v575
  %v2083 = vpop.f32.mrf.mxu0
  %v2084 = vadd.f32 %v1699, %v2083
  %v2085 = vpop.f32.mrf.mxu0
  %2086 = vmatprep.mubr.f32.mxu0 %v640
  %2087 = vmatmul.mubr.f32.gmra.mxu0 %v576
  %v2088 = vpop.f32.mrf.mxu0
  %v2089 = vadd.f32 %v1704, %v2088
  %v2090 = vpop.f32.mrf.mxu0
  %2091 = vmatprep.mubr.f32.mxu0 %v641
  %2092 = vmatmul.mubr.f32.gmra.mxu0 %v577
  %v2093 = vpop.f32.mrf.mxu0
  %v2094 = vadd.f32 %v1709, %v2093
  %v2095 = vpop.f32.mrf.mxu0
  %2096 = vmatprep.mubr.f32.mxu0 %v642
  %2097 = vmatmul.mubr.f32.gmra.mxu0 %v578
  %v2098 = vpop.f32.mrf.mxu0
  %v2099 = vadd.f32 %v1714, %v2098
  %v2100 = vpop.f32.mrf.mxu0
  %2101 = vmatprep.mubr.f32.mxu0 %v643
  %2102 = vmatmul.mubr.f32.gmra.mxu0 %v579
  %v2103 = vpop.f32.mrf.mxu0
  %v2104 = vadd.f32 %v1719, %v2103
  %v2105 = vpop.f32.mrf.mxu0
  %2106 = vmatprep.mubr.f32.mxu0 %v644
  %2107 = vmatmul.mubr.f32.gmra.mxu0 %v580
  %v2108 = vpop.f32.mrf.mxu0
  %v2109 = vadd.f32 %v1724, %v2108
  %v2110 = vpop.f32.mrf.mxu0
  %2111 = vmatprep.mubr.f32.mxu0 %v645
  %2112 = vmatmul.mubr.f32.gmra.mxu0 %v581
  %v2113 = vpop.f32.mrf.mxu0
  %v2114 = vadd.f32 %v1729, %v2113
  %v2115 = vpop.f32.mrf.mxu0
  %2116 = vmatprep.mubr.f32.mxu0 %v646
  %2117 = vmatmul.mubr.f32.gmra.mxu0 %v582
  %v2118 = vpop.f32.mrf.mxu0
  %v2119 = vadd.f32 %v1734, %v2118
  %v2120 = vpop.f32.mrf.mxu0
  %2121 = vmatprep.mubr.f32.mxu0 %v647
  %2122 = vmatmul.mubr.f32.gmra.mxu0 %v583
  %v2123 = vpop.f32.mrf.mxu0
  %v2124 = vadd.f32 %v1739, %v2123
  %v2125 = vpop.f32.mrf.mxu0
  %2126 = vmatprep.mubr.f32.mxu0 %v648
  %2127 = vmatmul.mubr.f32.gmra.mxu0 %v584
  %v2128 = vpop.f32.mrf.mxu0
  %v2129 = vadd.f32 %v1744, %v2128
  %v2130 = vpop.f32.mrf.mxu0
  %2131 = vmatprep.mubr.f32.mxu0 %v649
  %2132 = vmatmul.mubr.f32.gmra.mxu0 %v585
  %v2133 = vpop.f32.mrf.mxu0
  %v2134 = vadd.f32 %v1749, %v2133
  %v2135 = vpop.f32.mrf.mxu0
  %2136 = vmatprep.mubr.f32.mxu0 %v650
  %2137 = vmatmul.mubr.f32.gmra.mxu0 %v586
  %v2138 = vpop.f32.mrf.mxu0
  %v2139 = vadd.f32 %v1754, %v2138
  %v2140 = vpop.f32.mrf.mxu0
  %2141 = vmatprep.mubr.f32.mxu0 %v651
  %2142 = vmatmul.mubr.f32.gmra.mxu0 %v587
  %v2143 = vpop.f32.mrf.mxu0
  %v2144 = vadd.f32 %v1759, %v2143
  %v2145 = vpop.f32.mrf.mxu0
  %2146 = vmatprep.mubr.f32.mxu0 %v652
  %2147 = vmatmul.mubr.f32.gmra.mxu0 %v588
  %v2148 = vpop.f32.mrf.mxu0
  %v2149 = vadd.f32 %v1764, %v2148
  %v2150 = vpop.f32.mrf.mxu0
  %2151 = vdwg.mxu0
  %2152 = vmatprep.subr.mxu0 0.0
  %2153 = vmatpush1.msra.mxu0 %v957
  %2154 = vmatprep.subr.mxu0 0.0
  %2155 = vmatpush1.msra.mxu0 %v956
  %2156 = vmatprep.subr.mxu0 0.0
  %2157 = vmatpush1.msra.mxu0 %v955
  %2158 = vmatprep.subr.mxu0 0.0
  %2159 = vmatpush1.msra.mxu0 %v954
  %2160 = vmatprep.subr.mxu0 0.0
  %2161 = vmatpush1.msra.mxu0 %v953
  %2162 = vmatprep.subr.mxu0 0.0
  %2163 = vmatpush1.msra.mxu0 %v952
  %2164 = vmatprep.subr.mxu0 0.0
  %2165 = vmatpush1.msra.mxu0 %v951
  %2166 = vmatprep.subr.mxu0 0.0
  %2167 = vmatpush1.msra.mxu0 %v950
  %2168 = vmatprep.subr.mxu0 0.0
  %2169 = vmatpush1.msra.mxu0 %v949
  %2170 = vmatprep.subr.mxu0 0.0
  %2171 = vmatpush1.msra.mxu0 %v948
  %2172 = vmatprep.subr.mxu0 0.0
  %2173 = vmatpush1.msra.mxu0 %v947
  %2174 = vmatprep.subr.mxu0 0.0
  %2175 = vmatpush1.msra.mxu0 %v946
  %2176 = vmatprep.subr.mxu0 0.0
  %2177 = vmatpush1.msra.mxu0 %v945
  %2178 = vmatprep.subr.mxu0 0.0
  %2179 = vmatpush1.msra.mxu0 %v944
  %2180 = vmatprep.subr.mxu0 0.0
  %2181 = vmatpush1.msra.mxu0 %v943
  %2182 = vmatprep.subr.mxu0 0.0
  %2183 = vmatpush1.msra.mxu0 %v942
  %2184 = vmatprep.subr.mxu0 0.0
  %2185 = vmatpush2.msra.mxu0 %v973
  %2186 = vmatprep.subr.mxu0 0.0
  %2187 = vmatpush2.msra.mxu0 %v972
  %2188 = vmatprep.subr.mxu0 0.0
  %2189 = vmatpush2.msra.mxu0 %v971
  %2190 = vmatprep.subr.mxu0 0.0
  %2191 = vmatpush2.msra.mxu0 %v970
  %2192 = vmatprep.subr.mxu0 0.0
  %2193 = vmatpush2.msra.mxu0 %v969
  %2194 = vmatprep.subr.mxu0 0.0
  %2195 = vmatpush2.msra.mxu0 %v968
  %2196 = vmatprep.subr.mxu0 0.0
  %2197 = vmatpush2.msra.mxu0 %v967
  %2198 = vmatprep.subr.mxu0 0.0
  %2199 = vmatpush2.msra.mxu0 %v966
  %2200 = vmatprep.subr.mxu0 0.0
  %2201 = vmatpush2.msra.mxu0 %v965
  %2202 = vmatprep.subr.mxu0 0.0
  %2203 = vmatpush2.msra.mxu0 %v964
  %2204 = vmatprep.subr.mxu0 0.0
  %2205 = vmatpush2.msra.mxu0 %v963
  %2206 = vmatprep.subr.mxu0 0.0
  %2207 = vmatpush2.msra.mxu0 %v962
  %2208 = vmatprep.subr.mxu0 0.0
  %2209 = vmatpush2.msra.mxu0 %v961
  %2210 = vmatprep.subr.mxu0 0.0
  %2211 = vmatpush2.msra.mxu0 %v960
  %2212 = vmatprep.subr.mxu0 0.0
  %2213 = vmatpush2.msra.mxu0 %v959
  %2214 = vmatprep.subr.mxu0 0.0
  %2215 = vmatpush2.msra.mxu0 %v958
  %2216 = vmatprep.mubr.f32.mxu0 %v718
  %2217 = vmatmul.mubr.f32.gmra.mxu0 %v654
  %v2218 = vpop.f32.mrf.mxu0
  %v2219 = vadd.f32 %v1834, %v2218
  %v2220 = vpop.f32.mrf.mxu0
  %2221 = vmatprep.mubr.f32.mxu0 %v719
  %2222 = vmatmul.mubr.f32.gmra.mxu0 %v655
  %v2223 = vpop.f32.mrf.mxu0
  %v2224 = vadd.f32 %v1839, %v2223
  %v2225 = vpop.f32.mrf.mxu0
  %2226 = vmatprep.mubr.f32.mxu0 %v720
  %2227 = vmatmul.mubr.f32.gmra.mxu0 %v656
  %v2228 = vpop.f32.mrf.mxu0
  %v2229 = vadd.f32 %v1844, %v2228
  %v2230 = vpop.f32.mrf.mxu0
  %2231 = vmatprep.mubr.f32.mxu0 %v721
  %2232 = vmatmul.mubr.f32.gmra.mxu0 %v657
  %v2233 = vpop.f32.mrf.mxu0
  %v2234 = vadd.f32 %v1849, %v2233
  %v2235 = vpop.f32.mrf.mxu0
  %2236 = vmatprep.mubr.f32.mxu0 %v722
  %2237 = vmatmul.mubr.f32.gmra.mxu0 %v658
  %v2238 = vpop.f32.mrf.mxu0
  %v2239 = vadd.f32 %v1854, %v2238
  %v2240 = vpop.f32.mrf.mxu0
  %2241 = vmatprep.mubr.f32.mxu0 %v723
  %2242 = vmatmul.mubr.f32.gmra.mxu0 %v659
  %v2243 = vpop.f32.mrf.mxu0
  %v2244 = vadd.f32 %v1859, %v2243
  %v2245 = vpop.f32.mrf.mxu0
  %2246 = vmatprep.mubr.f32.mxu0 %v724
  %2247 = vmatmul.mubr.f32.gmra.mxu0 %v660
  %v2248 = vpop.f32.mrf.mxu0
  %v2249 = vadd.f32 %v1864, %v2248
  %v2250 = vpop.f32.mrf.mxu0
  %2251 = vmatprep.mubr.f32.mxu0 %v725
  %2252 = vmatmul.mubr.f32.gmra.mxu0 %v661
  %v2253 = vpop.f32.mrf.mxu0
  %v2254 = vadd.f32 %v1869, %v2253
  %v2255 = vpop.f32.mrf.mxu0
  %2256 = vmatprep.mubr.f32.mxu0 %v726
  %2257 = vmatmul.mubr.f32.gmra.mxu0 %v662
  %v2258 = vpop.f32.mrf.mxu0
  %v2259 = vadd.f32 %v1874, %v2258
  %v2260 = vpop.f32.mrf.mxu0
  %2261 = vmatprep.mubr.f32.mxu0 %v727
  %2262 = vmatmul.mubr.f32.gmra.mxu0 %v663
  %v2263 = vpop.f32.mrf.mxu0
  %v2264 = vadd.f32 %v1879, %v2263
  %v2265 = vpop.f32.mrf.mxu0
  %2266 = vmatprep.mubr.f32.mxu0 %v728
  %2267 = vmatmul.mubr.f32.gmra.mxu0 %v664
  %v2268 = vpop.f32.mrf.mxu0
  %v2269 = vadd.f32 %v1884, %v2268
  %v2270 = vpop.f32.mrf.mxu0
  %2271 = vmatprep.mubr.f32.mxu0 %v729
  %2272 = vmatmul.mubr.f32.gmra.mxu0 %v665
  %v2273 = vpop.f32.mrf.mxu0
  %v2274 = vadd.f32 %v1889, %v2273
  %v2275 = vpop.f32.mrf.mxu0
  %2276 = vmatprep.mubr.f32.mxu0 %v730
  %2277 = vmatmul.mubr.f32.gmra.mxu0 %v666
  %v2278 = vpop.f32.mrf.mxu0
  %v2279 = vadd.f32 %v1894, %v2278
  %v2280 = vpop.f32.mrf.mxu0
  %2281 = vmatprep.mubr.f32.mxu0 %v731
  %2282 = vmatmul.mubr.f32.gmra.mxu0 %v667
  %v2283 = vpop.f32.mrf.mxu0
  %v2284 = vadd.f32 %v1899, %v2283
  %v2285 = vpop.f32.mrf.mxu0
  %2286 = vmatprep.mubr.f32.mxu0 %v732
  %2287 = vmatmul.mubr.f32.gmra.mxu0 %v668
  %v2288 = vpop.f32.mrf.mxu0
  %v2289 = vadd.f32 %v1904, %v2288
  %v2290 = vpop.f32.mrf.mxu0
  %2291 = vmatprep.mubr.f32.mxu0 %v733
  %2292 = vmatmul.mubr.f32.gmra.mxu0 %v669
  %v2293 = vpop.f32.mrf.mxu0
  %v2294 = vadd.f32 %v1909, %v2293
  %v2295 = vpop.f32.mrf.mxu0
  %2296 = vmatprep.mubr.f32.mxu0 %v734
  %2297 = vmatmul.mubr.f32.gmra.mxu0 %v670
  %v2298 = vpop.f32.mrf.mxu0
  %v2299 = vadd.f32 %v1914, %v2298
  %v2300 = vpop.f32.mrf.mxu0
  %2301 = vmatprep.mubr.f32.mxu0 %v735
  %2302 = vmatmul.mubr.f32.gmra.mxu0 %v671
  %v2303 = vpop.f32.mrf.mxu0
  %v2304 = vadd.f32 %v1919, %v2303
  %v2305 = vpop.f32.mrf.mxu0
  %2306 = vmatprep.mubr.f32.mxu0 %v736
  %2307 = vmatmul.mubr.f32.gmra.mxu0 %v672
  %v2308 = vpop.f32.mrf.mxu0
  %v2309 = vadd.f32 %v1924, %v2308
  %v2310 = vpop.f32.mrf.mxu0
  %2311 = vmatprep.mubr.f32.mxu0 %v737
  %2312 = vmatmul.mubr.f32.gmra.mxu0 %v673
  %v2313 = vpop.f32.mrf.mxu0
  %v2314 = vadd.f32 %v1929, %v2313
  %v2315 = vpop.f32.mrf.mxu0
  %2316 = vmatprep.mubr.f32.mxu0 %v738
  %2317 = vmatmul.mubr.f32.gmra.mxu0 %v674
  %v2318 = vpop.f32.mrf.mxu0
  %v2319 = vadd.f32 %v1934, %v2318
  %v2320 = vpop.f32.mrf.mxu0
  %2321 = vmatprep.mubr.f32.mxu0 %v739
  %2322 = vmatmul.mubr.f32.gmra.mxu0 %v675
  %v2323 = vpop.f32.mrf.mxu0
  %v2324 = vadd.f32 %v1939, %v2323
  %v2325 = vpop.f32.mrf.mxu0
  %2326 = vmatprep.mubr.f32.mxu0 %v740
  %2327 = vmatmul.mubr.f32.gmra.mxu0 %v676
  %v2328 = vpop.f32.mrf.mxu0
  %v2329 = vadd.f32 %v1944, %v2328
  %v2330 = vpop.f32.mrf.mxu0
  %2331 = vmatprep.mubr.f32.mxu0 %v741
  %2332 = vmatmul.mubr.f32.gmra.mxu0 %v677
  %v2333 = vpop.f32.mrf.mxu0
  %v2334 = vadd.f32 %v1949, %v2333
  %v2335 = vpop.f32.mrf.mxu0
  %2336 = vmatprep.mubr.f32.mxu0 %v742
  %2337 = vmatmul.mubr.f32.gmra.mxu0 %v678
  %v2338 = vpop.f32.mrf.mxu0
  %v2339 = vadd.f32 %v1954, %v2338
  %v2340 = vpop.f32.mrf.mxu0
  %2341 = vmatprep.mubr.f32.mxu0 %v743
  %2342 = vmatmul.mubr.f32.gmra.mxu0 %v679
  %v2343 = vpop.f32.mrf.mxu0
  %v2344 = vadd.f32 %v1959, %v2343
  %v2345 = vpop.f32.mrf.mxu0
  %2346 = vmatprep.mubr.f32.mxu0 %v744
  %2347 = vmatmul.mubr.f32.gmra.mxu0 %v680
  %v2348 = vpop.f32.mrf.mxu0
  %v2349 = vadd.f32 %v1964, %v2348
  %v2350 = vpop.f32.mrf.mxu0
  %2351 = vmatprep.mubr.f32.mxu0 %v745
  %2352 = vmatmul.mubr.f32.gmra.mxu0 %v681
  %v2353 = vpop.f32.mrf.mxu0
  %v2354 = vadd.f32 %v1969, %v2353
  %v2355 = vpop.f32.mrf.mxu0
  %2356 = vmatprep.mubr.f32.mxu0 %v746
  %2357 = vmatmul.mubr.f32.gmra.mxu0 %v682
  %v2358 = vpop.f32.mrf.mxu0
  %v2359 = vadd.f32 %v1974, %v2358
  %v2360 = vpop.f32.mrf.mxu0
  %2361 = vmatprep.mubr.f32.mxu0 %v747
  %2362 = vmatmul.mubr.f32.gmra.mxu0 %v683
  %v2363 = vpop.f32.mrf.mxu0
  %v2364 = vadd.f32 %v1979, %v2363
  %v2365 = vpop.f32.mrf.mxu0
  %2366 = vmatprep.mubr.f32.mxu0 %v748
  %2367 = vmatmul.mubr.f32.gmra.mxu0 %v684
  %v2368 = vpop.f32.mrf.mxu0
  %v2369 = vadd.f32 %v1984, %v2368
  %v2370 = vpop.f32.mrf.mxu0
  %2371 = vmatprep.mubr.f32.mxu0 %v749
  %2372 = vmatmul.mubr.f32.gmra.mxu0 %v685
  %v2373 = vpop.f32.mrf.mxu0
  %v2374 = vadd.f32 %v1989, %v2373
  %v2375 = vpop.f32.mrf.mxu0
  %2376 = vmatprep.mubr.f32.mxu0 %v750
  %2377 = vmatmul.mubr.f32.gmra.mxu0 %v686
  %v2378 = vpop.f32.mrf.mxu0
  %v2379 = vadd.f32 %v1994, %v2378
  %v2380 = vpop.f32.mrf.mxu0
  %2381 = vmatprep.mubr.f32.mxu0 %v751
  %2382 = vmatmul.mubr.f32.gmra.mxu0 %v687
  %v2383 = vpop.f32.mrf.mxu0
  %v2384 = vadd.f32 %v1999, %v2383
  %v2385 = vpop.f32.mrf.mxu0
  %2386 = vmatprep.mubr.f32.mxu0 %v752
  %2387 = vmatmul.mubr.f32.gmra.mxu0 %v688
  %v2388 = vpop.f32.mrf.mxu0
  %v2389 = vadd.f32 %v2004, %v2388
  %v2390 = vpop.f32.mrf.mxu0
  %2391 = vmatprep.mubr.f32.mxu0 %v753
  %2392 = vmatmul.mubr.f32.gmra.mxu0 %v689
  %v2393 = vpop.f32.mrf.mxu0
  %v2394 = vadd.f32 %v2009, %v2393
  %v2395 = vpop.f32.mrf.mxu0
  %2396 = vmatprep.mubr.f32.mxu0 %v754
  %2397 = vmatmul.mubr.f32.gmra.mxu0 %v690
  %v2398 = vpop.f32.mrf.mxu0
  %v2399 = vadd.f32 %v2014, %v2398
  %v2400 = vpop.f32.mrf.mxu0
  %2401 = vmatprep.mubr.f32.mxu0 %v755
  %2402 = vmatmul.mubr.f32.gmra.mxu0 %v691
  %v2403 = vpop.f32.mrf.mxu0
  %v2404 = vadd.f32 %v2019, %v2403
  %v2405 = vpop.f32.mrf.mxu0
  %2406 = vmatprep.mubr.f32.mxu0 %v756
  %2407 = vmatmul.mubr.f32.gmra.mxu0 %v692
  %v2408 = vpop.f32.mrf.mxu0
  %v2409 = vadd.f32 %v2024, %v2408
  %v2410 = vpop.f32.mrf.mxu0
  %2411 = vmatprep.mubr.f32.mxu0 %v757
  %2412 = vmatmul.mubr.f32.gmra.mxu0 %v693
  %v2413 = vpop.f32.mrf.mxu0
  %v2414 = vadd.f32 %v2029, %v2413
  %v2415 = vpop.f32.mrf.mxu0
  %2416 = vmatprep.mubr.f32.mxu0 %v758
  %2417 = vmatmul.mubr.f32.gmra.mxu0 %v694
  %v2418 = vpop.f32.mrf.mxu0
  %v2419 = vadd.f32 %v2034, %v2418
  %v2420 = vpop.f32.mrf.mxu0
  %2421 = vmatprep.mubr.f32.mxu0 %v759
  %2422 = vmatmul.mubr.f32.gmra.mxu0 %v695
  %v2423 = vpop.f32.mrf.mxu0
  %v2424 = vadd.f32 %v2039, %v2423
  %v2425 = vpop.f32.mrf.mxu0
  %2426 = vmatprep.mubr.f32.mxu0 %v760
  %2427 = vmatmul.mubr.f32.gmra.mxu0 %v696
  %v2428 = vpop.f32.mrf.mxu0
  %v2429 = vadd.f32 %v2044, %v2428
  %v2430 = vpop.f32.mrf.mxu0
  %2431 = vmatprep.mubr.f32.mxu0 %v761
  %2432 = vmatmul.mubr.f32.gmra.mxu0 %v697
  %v2433 = vpop.f32.mrf.mxu0
  %v2434 = vadd.f32 %v2049, %v2433
  %v2435 = vpop.f32.mrf.mxu0
  %2436 = vmatprep.mubr.f32.mxu0 %v762
  %2437 = vmatmul.mubr.f32.gmra.mxu0 %v698
  %v2438 = vpop.f32.mrf.mxu0
  %v2439 = vadd.f32 %v2054, %v2438
  %v2440 = vpop.f32.mrf.mxu0
  %2441 = vmatprep.mubr.f32.mxu0 %v763
  %2442 = vmatmul.mubr.f32.gmra.mxu0 %v699
  %v2443 = vpop.f32.mrf.mxu0
  %v2444 = vadd.f32 %v2059, %v2443
  %v2445 = vpop.f32.mrf.mxu0
  %2446 = vmatprep.mubr.f32.mxu0 %v764
  %2447 = vmatmul.mubr.f32.gmra.mxu0 %v700
  %v2448 = vpop.f32.mrf.mxu0
  %v2449 = vadd.f32 %v2064, %v2448
  %v2450 = vpop.f32.mrf.mxu0
  %2451 = vmatprep.mubr.f32.mxu0 %v765
  %2452 = vmatmul.mubr.f32.gmra.mxu0 %v701
  %v2453 = vpop.f32.mrf.mxu0
  %v2454 = vadd.f32 %v2069, %v2453
  %v2455 = vpop.f32.mrf.mxu0
  %2456 = vmatprep.mubr.f32.mxu0 %v766
  %2457 = vmatmul.mubr.f32.gmra.mxu0 %v702
  %v2458 = vpop.f32.mrf.mxu0
  %v2459 = vadd.f32 %v2074, %v2458
  %v2460 = vpop.f32.mrf.mxu0
  %2461 = vmatprep.mubr.f32.mxu0 %v767
  %2462 = vmatmul.mubr.f32.gmra.mxu0 %v703
  %v2463 = vpop.f32.mrf.mxu0
  %v2464 = vadd.f32 %v2079, %v2463
  %v2465 = vpop.f32.mrf.mxu0
  %2466 = vmatprep.mubr.f32.mxu0 %v768
  %2467 = vmatmul.mubr.f32.gmra.mxu0 %v704
  %v2468 = vpop.f32.mrf.mxu0
  %v2469 = vadd.f32 %v2084, %v2468
  %v2470 = vpop.f32.mrf.mxu0
  %2471 = vmatprep.mubr.f32.mxu0 %v769
  %2472 = vmatmul.mubr.f32.gmra.mxu0 %v705
  %v2473 = vpop.f32.mrf.mxu0
  %v2474 = vadd.f32 %v2089, %v2473
  %v2475 = vpop.f32.mrf.mxu0
  %2476 = vmatprep.mubr.f32.mxu0 %v770
  %2477 = vmatmul.mubr.f32.gmra.mxu0 %v706
  %v2478 = vpop.f32.mrf.mxu0
  %v2479 = vadd.f32 %v2094, %v2478
  %v2480 = vpop.f32.mrf.mxu0
  %2481 = vmatprep.mubr.f32.mxu0 %v771
  %2482 = vmatmul.mubr.f32.gmra.mxu0 %v707
  %v2483 = vpop.f32.mrf.mxu0
  %v2484 = vadd.f32 %v2099, %v2483
  %v2485 = vpop.f32.mrf.mxu0
  %2486 = vmatprep.mubr.f32.mxu0 %v772
  %2487 = vmatmul.mubr.f32.gmra.mxu0 %v708
  %v2488 = vpop.f32.mrf.mxu0
  %v2489 = vadd.f32 %v2104, %v2488
  %v2490 = vpop.f32.mrf.mxu0
  %2491 = vmatprep.mubr.f32.mxu0 %v773
  %2492 = vmatmul.mubr.f32.gmra.mxu0 %v709
  %v2493 = vpop.f32.mrf.mxu0
  %v2494 = vadd.f32 %v2109, %v2493
  %v2495 = vpop.f32.mrf.mxu0
  %2496 = vmatprep.mubr.f32.mxu0 %v774
  %2497 = vmatmul.mubr.f32.gmra.mxu0 %v710
  %v2498 = vpop.f32.mrf.mxu0
  %v2499 = vadd.f32 %v2114, %v2498
  %v2500 = vpop.f32.mrf.mxu0
  %2501 = vmatprep.mubr.f32.mxu0 %v775
  %2502 = vmatmul.mubr.f32.gmra.mxu0 %v711
  %v2503 = vpop.f32.mrf.mxu0
  %v2504 = vadd.f32 %v2119, %v2503
  %v2505 = vpop.f32.mrf.mxu0
  %2506 = vmatprep.mubr.f32.mxu0 %v776
  %2507 = vmatmul.mubr.f32.gmra.mxu0 %v712
  %v2508 = vpop.f32.mrf.mxu0
  %v2509 = vadd.f32 %v2124, %v2508
  %v2510 = vpop.f32.mrf.mxu0
  %2511 = vmatprep.mubr.f32.mxu0 %v777
  %2512 = vmatmul.mubr.f32.gmra.mxu0 %v713
  %v2513 = vpop.f32.mrf.mxu0
  %v2514 = vadd.f32 %v2129, %v2513
  %v2515 = vpop.f32.mrf.mxu0
  %2516 = vmatprep.mubr.f32.mxu0 %v778
  %2517 = vmatmul.mubr.f32.gmra.mxu0 %v714
  %v2518 = vpop.f32.mrf.mxu0
  %v2519 = vadd.f32 %v2134, %v2518
  %v2520 = vpop.f32.mrf.mxu0
  %2521 = vmatprep.mubr.f32.mxu0 %v779
  %2522 = vmatmul.mubr.f32.gmra.mxu0 %v715
  %v2523 = vpop.f32.mrf.mxu0
  %v2524 = vadd.f32 %v2139, %v2523
  %v2525 = vpop.f32.mrf.mxu0
  %2526 = vmatprep.mubr.f32.mxu0 %v780
  %2527 = vmatmul.mubr.f32.gmra.mxu0 %v716
  %v2528 = vpop.f32.mrf.mxu0
  %v2529 = vadd.f32 %v2144, %v2528
  %v2530 = vpop.f32.mrf.mxu0
  %2531 = vmatprep.mubr.f32.mxu0 %v781
  %2532 = vmatmul.mubr.f32.gmra.mxu0 %v717
  %v2533 = vpop.f32.mrf.mxu0
  %v2534 = vadd.f32 %v2149, %v2533
  %v2535 = vpop.f32.mrf.mxu0
  %2536 = vdwg.mxu0
  %2537 = vmatprep.subr.mxu0 0.0
  %2538 = vmatpush1.msra.mxu0 %v989
  %2539 = vmatprep.subr.mxu0 0.0
  %2540 = vmatpush1.msra.mxu0 %v988
  %2541 = vmatprep.subr.mxu0 0.0
  %2542 = vmatpush1.msra.mxu0 %v987
  %2543 = vmatprep.subr.mxu0 0.0
  %2544 = vmatpush1.msra.mxu0 %v986
  %2545 = vmatprep.subr.mxu0 0.0
  %2546 = vmatpush1.msra.mxu0 %v985
  %2547 = vmatprep.subr.mxu0 0.0
  %2548 = vmatpush1.msra.mxu0 %v984
  %2549 = vmatprep.subr.mxu0 0.0
  %2550 = vmatpush1.msra.mxu0 %v983
  %2551 = vmatprep.subr.mxu0 0.0
  %2552 = vmatpush1.msra.mxu0 %v982
  %2553 = vmatprep.subr.mxu0 0.0
  %2554 = vmatpush1.msra.mxu0 %v981
  %2555 = vmatprep.subr.mxu0 0.0
  %2556 = vmatpush1.msra.mxu0 %v980
  %2557 = vmatprep.subr.mxu0 0.0
  %2558 = vmatpush1.msra.mxu0 %v979
  %2559 = vmatprep.subr.mxu0 0.0
  %2560 = vmatpush1.msra.mxu0 %v978
  %2561 = vmatprep.subr.mxu0 0.0
  %2562 = vmatpush1.msra.mxu0 %v977
  %2563 = vmatprep.subr.mxu0 0.0
  %2564 = vmatpush1.msra.mxu0 %v976
  %2565 = vmatprep.subr.mxu0 0.0
  %2566 = vmatpush1.msra.mxu0 %v975
  %2567 = vmatprep.subr.mxu0 0.0
  %2568 = vmatpush1.msra.mxu0 %v974
  %2569 = vmatprep.subr.mxu0 0.0
  %2570 = vmatpush2.msra.mxu0 0.0
  %2571 = vmatprep.subr.mxu0 0.0
  %2572 = vmatpush2.msra.mxu0 0.0
  %2573 = vmatprep.subr.mxu0 0.0
  %2574 = vmatpush2.msra.mxu0 0.0
  %2575 = vmatprep.subr.mxu0 0.0
  %2576 = vmatpush2.msra.mxu0 0.0
  %2577 = vmatprep.subr.mxu0 0.0
  %2578 = vmatpush2.msra.mxu0 0.0
  %2579 = vmatprep.subr.mxu0 0.0
  %2580 = vmatpush2.msra.mxu0 0.0
  %2581 = vmatprep.subr.mxu0 0.0
  %2582 = vmatpush2.msra.mxu0 0.0
  %2583 = vmatprep.subr.mxu0 0.0
  %2584 = vmatpush2.msra.mxu0 0.0
  %2585 = vmatprep.subr.mxu0 0.0
  %2586 = vmatpush2.msra.mxu0 0.0
  %2587 = vmatprep.subr.mxu0 0.0
  %2588 = vmatpush2.msra.mxu0 0.0
  %2589 = vmatprep.subr.mxu0 0.0
  %2590 = vmatpush2.msra.mxu0 0.0
  %2591 = vmatprep.subr.mxu0 0.0
  %2592 = vmatpush2.msra.mxu0 0.0
  %2593 = vmatprep.subr.mxu0 0.0
  %2594 = vmatpush2.msra.mxu0 0.0
  %2595 = vmatprep.subr.mxu0 0.0
  %2596 = vmatpush2.msra.mxu0 0.0
  %2597 = vmatprep.subr.mxu0 0.0
  %2598 = vmatpush2.msra.mxu0 0.0
  %2599 = vmatprep.subr.mxu0 0.0
  %2600 = vmatpush2.msra.mxu0 0.0
  %2601 = vmatprep.mubr.f32.mxu0 0.0
  %2602 = vmatmul.mubr.f32.gmra.mxu0 %v782
  %v2603 = vpop.f32.mrf.mxu0
  %v2604 = vadd.f32 %v2219, %v2603
  %v2605 = vpop.f32.mrf.mxu0
  %2606 = vmatprep.mubr.f32.mxu0 0.0
  %2607 = vmatmul.mubr.f32.gmra.mxu0 %v783
  %v2608 = vpop.f32.mrf.mxu0
  %v2609 = vadd.f32 %v2224, %v2608
  %v2610 = vpop.f32.mrf.mxu0
  %2611 = vmatprep.mubr.f32.mxu0 0.0
  %2612 = vmatmul.mubr.f32.gmra.mxu0 %v784
  %v2613 = vpop.f32.mrf.mxu0
  %v2614 = vadd.f32 %v2229, %v2613
  %v2615 = vpop.f32.mrf.mxu0
  %2616 = vmatprep.mubr.f32.mxu0 0.0
  %2617 = vmatmul.mubr.f32.gmra.mxu0 %v785
  %v2618 = vpop.f32.mrf.mxu0
  %v2619 = vadd.f32 %v2234, %v2618
  %v2620 = vpop.f32.mrf.mxu0
  %2621 = vmatprep.mubr.f32.mxu0 0.0
  %2622 = vmatmul.mubr.f32.gmra.mxu0 %v786
  %v2623 = vpop.f32.mrf.mxu0
  %v2624 = vadd.f32 %v2239, %v2623
  %v2625 = vpop.f32.mrf.mxu0
  %2626 = vmatprep.mubr.f32.mxu0 0.0
  %2627 = vmatmul.mubr.f32.gmra.mxu0 %v787
  %v2628 = vpop.f32.mrf.mxu0
  %v2629 = vadd.f32 %v2244, %v2628
  %v2630 = vpop.f32.mrf.mxu0
  %2631 = vmatprep.mubr.f32.mxu0 0.0
  %2632 = vmatmul.mubr.f32.gmra.mxu0 %v788
  %v2633 = vpop.f32.mrf.mxu0
  %v2634 = vadd.f32 %v2249, %v2633
  %v2635 = vpop.f32.mrf.mxu0
  %2636 = vmatprep.mubr.f32.mxu0 0.0
  %2637 = vmatmul.mubr.f32.gmra.mxu0 %v789
  %v2638 = vpop.f32.mrf.mxu0
  %v2639 = vadd.f32 %v2254, %v2638
  %v2640 = vpop.f32.mrf.mxu0
  %2641 = vmatprep.mubr.f32.mxu0 0.0
  %2642 = vmatmul.mubr.f32.gmra.mxu0 %v790
  %v2643 = vpop.f32.mrf.mxu0
  %v2644 = vadd.f32 %v2259, %v2643
  %v2645 = vpop.f32.mrf.mxu0
  %2646 = vmatprep.mubr.f32.mxu0 0.0
  %2647 = vmatmul.mubr.f32.gmra.mxu0 %v791
  %v2648 = vpop.f32.mrf.mxu0
  %v2649 = vadd.f32 %v2264, %v2648
  %v2650 = vpop.f32.mrf.mxu0
  %2651 = vmatprep.mubr.f32.mxu0 0.0
  %2652 = vmatmul.mubr.f32.gmra.mxu0 %v792
  %v2653 = vpop.f32.mrf.mxu0
  %v2654 = vadd.f32 %v2269, %v2653
  %v2655 = vpop.f32.mrf.mxu0
  %2656 = vmatprep.mubr.f32.mxu0 0.0
  %2657 = vmatmul.mubr.f32.gmra.mxu0 %v793
  %v2658 = vpop.f32.mrf.mxu0
  %v2659 = vadd.f32 %v2274, %v2658
  %v2660 = vpop.f32.mrf.mxu0
  %2661 = vmatprep.mubr.f32.mxu0 0.0
  %2662 = vmatmul.mubr.f32.gmra.mxu0 %v794
  %v2663 = vpop.f32.mrf.mxu0
  %v2664 = vadd.f32 %v2279, %v2663
  %v2665 = vpop.f32.mrf.mxu0
  %2666 = vmatprep.mubr.f32.mxu0 0.0
  %2667 = vmatmul.mubr.f32.gmra.mxu0 %v795
  %v2668 = vpop.f32.mrf.mxu0
  %v2669 = vadd.f32 %v2284, %v2668
  %v2670 = vpop.f32.mrf.mxu0
  %2671 = vmatprep.mubr.f32.mxu0 0.0
  %2672 = vmatmul.mubr.f32.gmra.mxu0 %v796
  %v2673 = vpop.f32.mrf.mxu0
  %v2674 = vadd.f32 %v2289, %v2673
  %v2675 = vpop.f32.mrf.mxu0
  %2676 = vmatprep.mubr.f32.mxu0 0.0
  %2677 = vmatmul.mubr.f32.gmra.mxu0 %v797
  %v2678 = vpop.f32.mrf.mxu0
  %v2679 = vadd.f32 %v2294, %v2678
  %v2680 = vpop.f32.mrf.mxu0
  %2681 = vmatprep.mubr.f32.mxu0 0.0
  %2682 = vmatmul.mubr.f32.gmra.mxu0 %v798
  %v2683 = vpop.f32.mrf.mxu0
  %v2684 = vadd.f32 %v2299, %v2683
  %v2685 = vpop.f32.mrf.mxu0
  %2686 = vmatprep.mubr.f32.mxu0 0.0
  %2687 = vmatmul.mubr.f32.gmra.mxu0 %v799
  %v2688 = vpop.f32.mrf.mxu0
  %v2689 = vadd.f32 %v2304, %v2688
  %v2690 = vpop.f32.mrf.mxu0
  %2691 = vmatprep.mubr.f32.mxu0 0.0
  %2692 = vmatmul.mubr.f32.gmra.mxu0 %v800
  %v2693 = vpop.f32.mrf.mxu0
  %v2694 = vadd.f32 %v2309, %v2693
  %v2695 = vpop.f32.mrf.mxu0
  %2696 = vmatprep.mubr.f32.mxu0 0.0
  %2697 = vmatmul.mubr.f32.gmra.mxu0 %v801
  %v2698 = vpop.f32.mrf.mxu0
  %v2699 = vadd.f32 %v2314, %v2698
  %v2700 = vpop.f32.mrf.mxu0
  %2701 = vmatprep.mubr.f32.mxu0 0.0
  %2702 = vmatmul.mubr.f32.gmra.mxu0 %v802
  %v2703 = vpop.f32.mrf.mxu0
  %v2704 = vadd.f32 %v2319, %v2703
  %v2705 = vpop.f32.mrf.mxu0
  %2706 = vmatprep.mubr.f32.mxu0 0.0
  %2707 = vmatmul.mubr.f32.gmra.mxu0 %v803
  %v2708 = vpop.f32.mrf.mxu0
  %v2709 = vadd.f32 %v2324, %v2708
  %v2710 = vpop.f32.mrf.mxu0
  %2711 = vmatprep.mubr.f32.mxu0 0.0
  %2712 = vmatmul.mubr.f32.gmra.mxu0 %v804
  %v2713 = vpop.f32.mrf.mxu0
  %v2714 = vadd.f32 %v2329, %v2713
  %v2715 = vpop.f32.mrf.mxu0
  %2716 = vmatprep.mubr.f32.mxu0 0.0
  %2717 = vmatmul.mubr.f32.gmra.mxu0 %v805
  %v2718 = vpop.f32.mrf.mxu0
  %v2719 = vadd.f32 %v2334, %v2718
  %v2720 = vpop.f32.mrf.mxu0
  %2721 = vmatprep.mubr.f32.mxu0 0.0
  %2722 = vmatmul.mubr.f32.gmra.mxu0 %v806
  %v2723 = vpop.f32.mrf.mxu0
  %v2724 = vadd.f32 %v2339, %v2723
  %v2725 = vpop.f32.mrf.mxu0
  %2726 = vmatprep.mubr.f32.mxu0 0.0
  %2727 = vmatmul.mubr.f32.gmra.mxu0 %v807
  %v2728 = vpop.f32.mrf.mxu0
  %v2729 = vadd.f32 %v2344, %v2728
  %v2730 = vpop.f32.mrf.mxu0
  %2731 = vmatprep.mubr.f32.mxu0 0.0
  %2732 = vmatmul.mubr.f32.gmra.mxu0 %v808
  %v2733 = vpop.f32.mrf.mxu0
  %v2734 = vadd.f32 %v2349, %v2733
  %v2735 = vpop.f32.mrf.mxu0
  %2736 = vmatprep.mubr.f32.mxu0 0.0
  %2737 = vmatmul.mubr.f32.gmra.mxu0 %v809
  %v2738 = vpop.f32.mrf.mxu0
  %v2739 = vadd.f32 %v2354, %v2738
  %v2740 = vpop.f32.mrf.mxu0
  %2741 = vmatprep.mubr.f32.mxu0 0.0
  %2742 = vmatmul.mubr.f32.gmra.mxu0 %v810
  %v2743 = vpop.f32.mrf.mxu0
  %v2744 = vadd.f32 %v2359, %v2743
  %v2745 = vpop.f32.mrf.mxu0
  %2746 = vmatprep.mubr.f32.mxu0 0.0
  %2747 = vmatmul.mubr.f32.gmra.mxu0 %v811
  %v2748 = vpop.f32.mrf.mxu0
  %v2749 = vadd.f32 %v2364, %v2748
  %v2750 = vpop.f32.mrf.mxu0
  %2751 = vmatprep.mubr.f32.mxu0 0.0
  %2752 = vmatmul.mubr.f32.gmra.mxu0 %v812
  %v2753 = vpop.f32.mrf.mxu0
  %v2754 = vadd.f32 %v2369, %v2753
  %v2755 = vpop.f32.mrf.mxu0
  %2756 = vmatprep.mubr.f32.mxu0 0.0
  %2757 = vmatmul.mubr.f32.gmra.mxu0 %v813
  %v2758 = vpop.f32.mrf.mxu0
  %v2759 = vadd.f32 %v2374, %v2758
  %v2760 = vpop.f32.mrf.mxu0
  %2761 = vmatprep.mubr.f32.mxu0 0.0
  %2762 = vmatmul.mubr.f32.gmra.mxu0 %v814
  %v2763 = vpop.f32.mrf.mxu0
  %v2764 = vadd.f32 %v2379, %v2763
  %v2765 = vpop.f32.mrf.mxu0
  %2766 = vmatprep.mubr.f32.mxu0 0.0
  %2767 = vmatmul.mubr.f32.gmra.mxu0 %v815
  %v2768 = vpop.f32.mrf.mxu0
  %v2769 = vadd.f32 %v2384, %v2768
  %v2770 = vpop.f32.mrf.mxu0
  %2771 = vmatprep.mubr.f32.mxu0 0.0
  %2772 = vmatmul.mubr.f32.gmra.mxu0 %v816
  %v2773 = vpop.f32.mrf.mxu0
  %v2774 = vadd.f32 %v2389, %v2773
  %v2775 = vpop.f32.mrf.mxu0
  %2776 = vmatprep.mubr.f32.mxu0 0.0
  %2777 = vmatmul.mubr.f32.gmra.mxu0 %v817
  %v2778 = vpop.f32.mrf.mxu0
  %v2779 = vadd.f32 %v2394, %v2778
  %v2780 = vpop.f32.mrf.mxu0
  %2781 = vmatprep.mubr.f32.mxu0 0.0
  %2782 = vmatmul.mubr.f32.gmra.mxu0 %v818
  %v2783 = vpop.f32.mrf.mxu0
  %v2784 = vadd.f32 %v2399, %v2783
  %v2785 = vpop.f32.mrf.mxu0
  %2786 = vmatprep.mubr.f32.mxu0 0.0
  %2787 = vmatmul.mubr.f32.gmra.mxu0 %v819
  %v2788 = vpop.f32.mrf.mxu0
  %v2789 = vadd.f32 %v2404, %v2788
  %v2790 = vpop.f32.mrf.mxu0
  %2791 = vmatprep.mubr.f32.mxu0 0.0
  %2792 = vmatmul.mubr.f32.gmra.mxu0 %v820
  %v2793 = vpop.f32.mrf.mxu0
  %v2794 = vadd.f32 %v2409, %v2793
  %v2795 = vpop.f32.mrf.mxu0
  %2796 = vmatprep.mubr.f32.mxu0 0.0
  %2797 = vmatmul.mubr.f32.gmra.mxu0 %v821
  %v2798 = vpop.f32.mrf.mxu0
  %v2799 = vadd.f32 %v2414, %v2798
  %v2800 = vpop.f32.mrf.mxu0
  %2801 = vmatprep.mubr.f32.mxu0 0.0
  %2802 = vmatmul.mubr.f32.gmra.mxu0 %v822
  %v2803 = vpop.f32.mrf.mxu0
  %v2804 = vadd.f32 %v2419, %v2803
  %v2805 = vpop.f32.mrf.mxu0
  %2806 = vmatprep.mubr.f32.mxu0 0.0
  %2807 = vmatmul.mubr.f32.gmra.mxu0 %v823
  %v2808 = vpop.f32.mrf.mxu0
  %v2809 = vadd.f32 %v2424, %v2808
  %v2810 = vpop.f32.mrf.mxu0
  %2811 = vmatprep.mubr.f32.mxu0 0.0
  %2812 = vmatmul.mubr.f32.gmra.mxu0 %v824
  %v2813 = vpop.f32.mrf.mxu0
  %v2814 = vadd.f32 %v2429, %v2813
  %v2815 = vpop.f32.mrf.mxu0
  %2816 = vmatprep.mubr.f32.mxu0 0.0
  %2817 = vmatmul.mubr.f32.gmra.mxu0 %v825
  %v2818 = vpop.f32.mrf.mxu0
  %v2819 = vadd.f32 %v2434, %v2818
  %v2820 = vpop.f32.mrf.mxu0
  %2821 = vmatprep.mubr.f32.mxu0 0.0
  %2822 = vmatmul.mubr.f32.gmra.mxu0 %v826
  %v2823 = vpop.f32.mrf.mxu0
  %v2824 = vadd.f32 %v2439, %v2823
  %v2825 = vpop.f32.mrf.mxu0
  %2826 = vmatprep.mubr.f32.mxu0 0.0
  %2827 = vmatmul.mubr.f32.gmra.mxu0 %v827
  %v2828 = vpop.f32.mrf.mxu0
  %v2829 = vadd.f32 %v2444, %v2828
  %v2830 = vpop.f32.mrf.mxu0
  %2831 = vmatprep.mubr.f32.mxu0 0.0
  %2832 = vmatmul.mubr.f32.gmra.mxu0 %v828
  %v2833 = vpop.f32.mrf.mxu0
  %v2834 = vadd.f32 %v2449, %v2833
  %v2835 = vpop.f32.mrf.mxu0
  %2836 = vmatprep.mubr.f32.mxu0 0.0
  %2837 = vmatmul.mubr.f32.gmra.mxu0 %v829
  %v2838 = vpop.f32.mrf.mxu0
  %v2839 = vadd.f32 %v2454, %v2838
  %v2840 = vpop.f32.mrf.mxu0
  %2841 = vmatprep.mubr.f32.mxu0 0.0
  %2842 = vmatmul.mubr.f32.gmra.mxu0 %v830
  %v2843 = vpop.f32.mrf.mxu0
  %v2844 = vadd.f32 %v2459, %v2843
  %v2845 = vpop.f32.mrf.mxu0
  %2846 = vmatprep.mubr.f32.mxu0 0.0
  %2847 = vmatmul.mubr.f32.gmra.mxu0 %v831
  %v2848 = vpop.f32.mrf.mxu0
  %v2849 = vadd.f32 %v2464, %v2848
  %v2850 = vpop.f32.mrf.mxu0
  %2851 = vmatprep.mubr.f32.mxu0 0.0
  %2852 = vmatmul.mubr.f32.gmra.mxu0 %v832
  %v2853 = vpop.f32.mrf.mxu0
  %v2854 = vadd.f32 %v2469, %v2853
  %v2855 = vpop.f32.mrf.mxu0
  %2856 = vmatprep.mubr.f32.mxu0 0.0
  %2857 = vmatmul.mubr.f32.gmra.mxu0 %v833
  %v2858 = vpop.f32.mrf.mxu0
  %v2859 = vadd.f32 %v2474, %v2858
  %v2860 = vpop.f32.mrf.mxu0
  %2861 = vmatprep.mubr.f32.mxu0 0.0
  %2862 = vmatmul.mubr.f32.gmra.mxu0 %v834
  %v2863 = vpop.f32.mrf.mxu0
  %v2864 = vadd.f32 %v2479, %v2863
  %v2865 = vpop.f32.mrf.mxu0
  %2866 = vmatprep.mubr.f32.mxu0 0.0
  %2867 = vmatmul.mubr.f32.gmra.mxu0 %v835
  %v2868 = vpop.f32.mrf.mxu0
  %v2869 = vadd.f32 %v2484, %v2868
  %v2870 = vpop.f32.mrf.mxu0
  %2871 = vmatprep.mubr.f32.mxu0 0.0
  %2872 = vmatmul.mubr.f32.gmra.mxu0 %v836
  %v2873 = vpop.f32.mrf.mxu0
  %v2874 = vadd.f32 %v2489, %v2873
  %v2875 = vpop.f32.mrf.mxu0
  %2876 = vmatprep.mubr.f32.mxu0 0.0
  %2877 = vmatmul.mubr.f32.gmra.mxu0 %v837
  %v2878 = vpop.f32.mrf.mxu0
  %v2879 = vadd.f32 %v2494, %v2878
  %v2880 = vpop.f32.mrf.mxu0
  %2881 = vmatprep.mubr.f32.mxu0 0.0
  %2882 = vmatmul.mubr.f32.gmra.mxu0 %v838
  %v2883 = vpop.f32.mrf.mxu0
  %v2884 = vadd.f32 %v2499, %v2883
  %v2885 = vpop.f32.mrf.mxu0
  %2886 = vmatprep.mubr.f32.mxu0 0.0
  %2887 = vmatmul.mubr.f32.gmra.mxu0 %v839
  %v2888 = vpop.f32.mrf.mxu0
  %v2889 = vadd.f32 %v2504, %v2888
  %v2890 = vpop.f32.mrf.mxu0
  %2891 = vmatprep.mubr.f32.mxu0 0.0
  %2892 = vmatmul.mubr.f32.gmra.mxu0 %v840
  %v2893 = vpop.f32.mrf.mxu0
  %v2894 = vadd.f32 %v2509, %v2893
  %v2895 = vpop.f32.mrf.mxu0
  %2896 = vmatprep.mubr.f32.mxu0 0.0
  %2897 = vmatmul.mubr.f32.gmra.mxu0 %v841
  %v2898 = vpop.f32.mrf.mxu0
  %v2899 = vadd.f32 %v2514, %v2898
  %v2900 = vpop.f32.mrf.mxu0
  %2901 = vmatprep.mubr.f32.mxu0 0.0
  %2902 = vmatmul.mubr.f32.gmra.mxu0 %v842
  %v2903 = vpop.f32.mrf.mxu0
  %v2904 = vadd.f32 %v2519, %v2903
  %v2905 = vpop.f32.mrf.mxu0
  %2906 = vmatprep.mubr.f32.mxu0 0.0
  %2907 = vmatmul.mubr.f32.gmra.mxu0 %v843
  %v2908 = vpop.f32.mrf.mxu0
  %v2909 = vadd.f32 %v2524, %v2908
  %v2910 = vpop.f32.mrf.mxu0
  %2911 = vmatprep.mubr.f32.mxu0 0.0
  %2912 = vmatmul.mubr.f32.gmra.mxu0 %v844
  %v2913 = vpop.f32.mrf.mxu0
  %v2914 = vadd.f32 %v2529, %v2913
  %v2915 = vpop.f32.mrf.mxu0
  %2916 = vmatprep.mubr.f32.mxu0 0.0
  %2917 = vmatmul.mubr.f32.gmra.mxu0 %v845
  %v2918 = vpop.f32.mrf.mxu0
  %v2919 = vadd.f32 %v2534, %v2918
  %v2920 = vpop.f32.mrf.mxu0
  %2921 = vdwg.mxu0
  %v2922 = vadd.f32 %v2604, %v2609
  %v2923 = vadd.f32 %v2922, %v2614
  %v2924 = vadd.f32 %v2923, %v2619
  %v2925 = vadd.f32 %v2924, %v2624
  %v2926 = vadd.f32 %v2925, %v2629
  %v2927 = vadd.f32 %v2926, %v2634
  %v2928 = vadd.f32 %v2927, %v2639
  %v2929 = vadd.f32 %v2928, %v2644
  %v2930 = vadd.f32 %v2929, %v2649
  %v2931 = vadd.f32 %v2930, %v2654
  %v2932 = vadd.f32 %v2931, %v2659
  %v2933 = vadd.f32 %v2932, %v2664
  %v2934 = vadd.f32 %v2933, %v2669
  %v2935 = vadd.f32 %v2934, %v2674
  %v2936 = vadd.f32 %v2935, %v2679
  %v2937 = vadd.f32 %v2936, %v2684
  %v2938 = vadd.f32 %v2937, %v2689
  %v2939 = vadd.f32 %v2938, %v2694
  %v2940 = vadd.f32 %v2939, %v2699
  %v2941 = vadd.f32 %v2940, %v2704
  %v2942 = vadd.f32 %v2941, %v2709
  %v2943 = vadd.f32 %v2942, %v2714
  %v2944 = vadd.f32 %v2943, %v2719
  %v2945 = vadd.f32 %v2944, %v2724
  %v2946 = vadd.f32 %v2945, %v2729
  %v2947 = vadd.f32 %v2946, %v2734
  %v2948 = vadd.f32 %v2947, %v2739
  %v2949 = vadd.f32 %v2948, %v2744
  %v2950 = vadd.f32 %v2949, %v2749
  %v2951 = vadd.f32 %v2950, %v2754
  %v2952 = vadd.f32 %v2951, %v2759
  %v2953 = vadd.f32 %v2952, %v2764
  %v2954 = vadd.f32 %v2953, %v2769
  %v2955 = vadd.f32 %v2954, %v2774
  %v2956 = vadd.f32 %v2955, %v2779
  %v2957 = vadd.f32 %v2956, %v2784
  %v2958 = vadd.f32 %v2957, %v2789
  %v2959 = vadd.f32 %v2958, %v2794
  %v2960 = vadd.f32 %v2959, %v2799
  %v2961 = vadd.f32 %v2960, %v2804
  %v2962 = vadd.f32 %v2961, %v2809
  %v2963 = vadd.f32 %v2962, %v2814
  %v2964 = vadd.f32 %v2963, %v2819
  %v2965 = vadd.f32 %v2964, %v2824
  %v2966 = vadd.f32 %v2965, %v2829
  %v2967 = vadd.f32 %v2966, %v2834
  %v2968 = vadd.f32 %v2967, %v2839
  %v2969 = vadd.f32 %v2968, %v2844
  %v2970 = vadd.f32 %v2969, %v2849
  %v2971 = vadd.f32 %v2970, %v2854
  %v2972 = vadd.f32 %v2971, %v2859
  %v2973 = vadd.f32 %v2972, %v2864
  %v2974 = vadd.f32 %v2973, %v2869
  %v2975 = vadd.f32 %v2974, %v2874
  %v2976 = vadd.f32 %v2975, %v2879
  %v2977 = vadd.f32 %v2976, %v2884
  %v2978 = vadd.f32 %v2977, %v2889
  %v2979 = vadd.f32 %v2978, %v2894
  %v2980 = vadd.f32 %v2979, %v2899
  %v2981 = vadd.f32 %v2980, %v2904
  %v2982 = vadd.f32 %v2981, %v2909
  %v2983 = vadd.f32 %v2982, %v2914
  %v2984 = vadd.f32 %v2983, %v2919
  %v2985 = vrot.slane %v2984, 4
  %v2986 = vadd.f32 %v2984, %v2985
  %v2987 = vrot.slane %v2986, 2
  %v2988 = vadd.f32 %v2986, %v2987
  %v2989 = vrot.slane %v2988, 1
  %v2990 = vadd.f32 %v2988, %v2989
  %v2991 = vmul.f32 %v2604, %v2604
  %v2992 = vmul.f32 %v2609, %v2609
  %v2993 = vmul.f32 %v2614, %v2614
  %v2994 = vmul.f32 %v2619, %v2619
  %v2995 = vmul.f32 %v2624, %v2624
  %v2996 = vmul.f32 %v2629, %v2629
  %v2997 = vmul.f32 %v2634, %v2634
  %v2998 = vmul.f32 %v2639, %v2639
  %v2999 = vmul.f32 %v2644, %v2644
  %v3000 = vmul.f32 %v2649, %v2649
  %v3001 = vmul.f32 %v2654, %v2654
  %v3002 = vmul.f32 %v2659, %v2659
  %v3003 = vmul.f32 %v2664, %v2664
  %v3004 = vmul.f32 %v2669, %v2669
  %v3005 = vmul.f32 %v2674, %v2674
  %v3006 = vmul.f32 %v2679, %v2679
  %v3007 = vmul.f32 %v2684, %v2684
  %v3008 = vmul.f32 %v2689, %v2689
  %v3009 = vmul.f32 %v2694, %v2694
  %v3010 = vmul.f32 %v2699, %v2699
  %v3011 = vmul.f32 %v2704, %v2704
  %v3012 = vmul.f32 %v2709, %v2709
  %v3013 = vmul.f32 %v2714, %v2714
  %v3014 = vmul.f32 %v2719, %v2719
  %v3015 = vmul.f32 %v2724, %v2724
  %v3016 = vmul.f32 %v2729, %v2729
  %v3017 = vmul.f32 %v2734, %v2734
  %v3018 = vmul.f32 %v2739, %v2739
  %v3019 = vmul.f32 %v2744, %v2744
  %v3020 = vmul.f32 %v2749, %v2749
  %v3021 = vmul.f32 %v2754, %v2754
  %v3022 = vmul.f32 %v2759, %v2759
  %v3023 = vmul.f32 %v2764, %v2764
  %v3024 = vmul.f32 %v2769, %v2769
  %v3025 = vmul.f32 %v2774, %v2774
  %v3026 = vmul.f32 %v2779, %v2779
  %v3027 = vmul.f32 %v2784, %v2784
  %v3028 = vmul.f32 %v2789, %v2789
  %v3029 = vmul.f32 %v2794, %v2794
  %v3030 = vmul.f32 %v2799, %v2799
  %v3031 = vmul.f32 %v2804, %v2804
  %v3032 = vmul.f32 %v2809, %v2809
  %v3033 = vmul.f32 %v2814, %v2814
  %v3034 = vmul.f32 %v2819, %v2819
  %v3035 = vmul.f32 %v2824, %v2824
  %v3036 = vmul.f32 %v2829, %v2829
  %v3037 = vmul.f32 %v2834, %v2834
  %v3038 = vmul.f32 %v2839, %v2839
  %v3039 = vmul.f32 %v2844, %v2844
  %v3040 = vmul.f32 %v2849, %v2849
  %v3041 = vmul.f32 %v2854, %v2854
  %v3042 = vmul.f32 %v2859, %v2859
  %v3043 = vmul.f32 %v2864, %v2864
  %v3044 = vmul.f32 %v2869, %v2869
  %v3045 = vmul.f32 %v2874, %v2874
  %v3046 = vmul.f32 %v2879, %v2879
  %v3047 = vmul.f32 %v2884, %v2884
  %v3048 = vmul.f32 %v2889, %v2889
  %v3049 = vmul.f32 %v2894, %v2894
  %v3050 = vmul.f32 %v2899, %v2899
  %v3051 = vmul.f32 %v2904, %v2904
  %v3052 = vmul.f32 %v2909, %v2909
  %v3053 = vmul.f32 %v2914, %v2914
  %v3054 = vmul.f32 %v2919, %v2919
  %v3055 = vadd.f32 %v2991, %v2992
  %v3056 = vadd.f32 %v3055, %v2993
  %v3057 = vadd.f32 %v3056, %v2994
  %v3058 = vadd.f32 %v3057, %v2995
  %v3059 = vadd.f32 %v3058, %v2996
  %v3060 = vadd.f32 %v3059, %v2997
  %v3061 = vadd.f32 %v3060, %v2998
  %v3062 = vadd.f32 %v3061, %v2999
  %v3063 = vadd.f32 %v3062, %v3000
  %v3064 = vadd.f32 %v3063, %v3001
  %v3065 = vadd.f32 %v3064, %v3002
  %v3066 = vadd.f32 %v3065, %v3003
  %v3067 = vadd.f32 %v3066, %v3004
  %v3068 = vadd.f32 %v3067, %v3005
  %v3069 = vadd.f32 %v3068, %v3006
  %v3070 = vadd.f32 %v3069, %v3007
  %v3071 = vadd.f32 %v3070, %v3008
  %v3072 = vadd.f32 %v3071, %v3009
  %v3073 = vadd.f32 %v3072, %v3010
  %v3074 = vadd.f32 %v3073, %v3011
  %v3075 = vadd.f32 %v3074, %v3012
  %v3076 = vadd.f32 %v3075, %v3013
  %v3077 = vadd.f32 %v3076, %v3014
  %v3078 = vadd.f32 %v3077, %v3015
  %v3079 = vadd.f32 %v3078, %v3016
  %v3080 = vadd.f32 %v3079, %v3017
  %v3081 = vadd.f32 %v3080, %v3018
  %v3082 = vadd.f32 %v3081, %v3019
  %v3083 = vadd.f32 %v3082, %v3020
  %v3084 = vadd.f32 %v3083, %v3021
  %v3085 = vadd.f32 %v3084, %v3022
  %v3086 = vadd.f32 %v3085, %v3023
  %v3087 = vadd.f32 %v3086, %v3024
  %v3088 = vadd.f32 %v3087, %v3025
  %v3089 = vadd.f32 %v3088, %v3026
  %v3090 = vadd.f32 %v3089, %v3027
  %v3091 = vadd.f32 %v3090, %v3028
  %v3092 = vadd.f32 %v3091, %v3029
  %v3093 = vadd.f32 %v3092, %v3030
  %v3094 = vadd.f32 %v3093, %v3031
  %v3095 = vadd.f32 %v3094, %v3032
  %v3096 = vadd.f32 %v3095, %v3033
  %v3097 = vadd.f32 %v3096, %v3034
  %v3098 = vadd.f32 %v3097, %v3035
  %v3099 = vadd.f32 %v3098, %v3036
  %v3100 = vadd.f32 %v3099, %v3037
  %v3101 = vadd.f32 %v3100, %v3038
  %v3102 = vadd.f32 %v3101, %v3039
  %v3103 = vadd.f32 %v3102, %v3040
  %v3104 = vadd.f32 %v3103, %v3041
  %v3105 = vadd.f32 %v3104, %v3042
  %v3106 = vadd.f32 %v3105, %v3043
  %v3107 = vadd.f32 %v3106, %v3044
  %v3108 = vadd.f32 %v3107, %v3045
  %v3109 = vadd.f32 %v3108, %v3046
  %v3110 = vadd.f32 %v3109, %v3047
  %v3111 = vadd.f32 %v3110, %v3048
  %v3112 = vadd.f32 %v3111, %v3049
  %v3113 = vadd.f32 %v3112, %v3050
  %v3114 = vadd.f32 %v3113, %v3051
  %v3115 = vadd.f32 %v3114, %v3052
  %v3116 = vadd.f32 %v3115, %v3053
  %v3117 = vadd.f32 %v3116, %v3054
  %v3118 = vrot.slane %v3117, 4
  %v3119 = vadd.f32 %v3117, %v3118
  %v3120 = vrot.slane %v3119, 2
  %v3121 = vadd.f32 %v3119, %v3120
  %v3122 = vrot.slane %v3121, 1
  %v3123 = vadd.f32 %v3121, %v3122
  %v3124 = vmul.f32 %v2990, 0.001953125
  %v3125 = vmul.f32 %v3123, 0.001953125
  %v3126 = vmul.f32 %v3124, %v3124
  %v3127 = vsub.f32 %v3125, %v3126
  %v3128 = vmax.f32 %v3127, 0.0
  %v3129 = vadd.f32 %v3128, 1e-05
  %v3130 = vrsqrt.pop %v3129
  %v3131 = vsub.f32 %v2604, %v3124
  %v3132 = vsub.f32 %v2609, %v3124
  %v3133 = vsub.f32 %v2614, %v3124
  %v3134 = vsub.f32 %v2619, %v3124
  %v3135 = vsub.f32 %v2624, %v3124
  %v3136 = vsub.f32 %v2629, %v3124
  %v3137 = vsub.f32 %v2634, %v3124
  %v3138 = vsub.f32 %v2639, %v3124
  %v3139 = vsub.f32 %v2644, %v3124
  %v3140 = vsub.f32 %v2649, %v3124
  %v3141 = vsub.f32 %v2654, %v3124
  %v3142 = vsub.f32 %v2659, %v3124
  %v3143 = vsub.f32 %v2664, %v3124
  %v3144 = vsub.f32 %v2669, %v3124
  %v3145 = vsub.f32 %v2674, %v3124
  %v3146 = vsub.f32 %v2679, %v3124
  %v3147 = vsub.f32 %v2684, %v3124
  %v3148 = vsub.f32 %v2689, %v3124
  %v3149 = vsub.f32 %v2694, %v3124
  %v3150 = vsub.f32 %v2699, %v3124
  %v3151 = vsub.f32 %v2704, %v3124
  %v3152 = vsub.f32 %v2709, %v3124
  %v3153 = vsub.f32 %v2714, %v3124
  %v3154 = vsub.f32 %v2719, %v3124
  %v3155 = vsub.f32 %v2724, %v3124
  %v3156 = vsub.f32 %v2729, %v3124
  %v3157 = vsub.f32 %v2734, %v3124
  %v3158 = vsub.f32 %v2739, %v3124
  %v3159 = vsub.f32 %v2744, %v3124
  %v3160 = vsub.f32 %v2749, %v3124
  %v3161 = vsub.f32 %v2754, %v3124
  %v3162 = vsub.f32 %v2759, %v3124
  %v3163 = vsub.f32 %v2764, %v3124
  %v3164 = vsub.f32 %v2769, %v3124
  %v3165 = vsub.f32 %v2774, %v3124
  %v3166 = vsub.f32 %v2779, %v3124
  %v3167 = vsub.f32 %v2784, %v3124
  %v3168 = vsub.f32 %v2789, %v3124
  %v3169 = vsub.f32 %v2794, %v3124
  %v3170 = vsub.f32 %v2799, %v3124
  %v3171 = vsub.f32 %v2804, %v3124
  %v3172 = vsub.f32 %v2809, %v3124
  %v3173 = vsub.f32 %v2814, %v3124
  %v3174 = vsub.f32 %v2819, %v3124
  %v3175 = vsub.f32 %v2824, %v3124
  %v3176 = vsub.f32 %v2829, %v3124
  %v3177 = vsub.f32 %v2834, %v3124
  %v3178 = vsub.f32 %v2839, %v3124
  %v3179 = vsub.f32 %v2844, %v3124
  %v3180 = vsub.f32 %v2849, %v3124
  %v3181 = vsub.f32 %v2854, %v3124
  %v3182 = vsub.f32 %v2859, %v3124
  %v3183 = vsub.f32 %v2864, %v3124
  %v3184 = vsub.f32 %v2869, %v3124
  %v3185 = vsub.f32 %v2874, %v3124
  %v3186 = vsub.f32 %v2879, %v3124
  %v3187 = vsub.f32 %v2884, %v3124
  %v3188 = vsub.f32 %v2889, %v3124
  %v3189 = vsub.f32 %v2894, %v3124
  %v3190 = vsub.f32 %v2899, %v3124
  %v3191 = vsub.f32 %v2904, %v3124
  %v3192 = vsub.f32 %v2909, %v3124
  %v3193 = vsub.f32 %v2914, %v3124
  %v3194 = vsub.f32 %v2919, %v3124
  %v3195 = vld [vmem:[%s3] sm:$0x1]
  %v3196 = vmul.f32 %v3130, %v3195
  %v3197 = vlaneseq
  %v3198 = vshrl.u32 %v3197, 7
  %v3199 = vsub.s32 0, %v3198
  %v3200 = vrot.slane %v3196, %v3199
  %v3201 = vmul.f32 %v3131, %v3200
  %v3202 = vmul.f32 %v3132, %v3200
  %v3203 = vmul.f32 %v3133, %v3200
  %v3204 = vmul.f32 %v3134, %v3200
  %v3205 = vmul.f32 %v3135, %v3200
  %v3206 = vmul.f32 %v3136, %v3200
  %v3207 = vmul.f32 %v3137, %v3200
  %v3208 = vmul.f32 %v3138, %v3200
  %v3209 = vmul.f32 %v3139, %v3200
  %v3210 = vmul.f32 %v3140, %v3200
  %v3211 = vmul.f32 %v3141, %v3200
  %v3212 = vmul.f32 %v3142, %v3200
  %v3213 = vmul.f32 %v3143, %v3200
  %v3214 = vmul.f32 %v3144, %v3200
  %v3215 = vmul.f32 %v3145, %v3200
  %v3216 = vmul.f32 %v3146, %v3200
  %v3217 = vmul.f32 %v3147, %v3200
  %v3218 = vmul.f32 %v3148, %v3200
  %v3219 = vmul.f32 %v3149, %v3200
  %v3220 = vmul.f32 %v3150, %v3200
  %v3221 = vmul.f32 %v3151, %v3200
  %v3222 = vmul.f32 %v3152, %v3200
  %v3223 = vmul.f32 %v3153, %v3200
  %v3224 = vmul.f32 %v3154, %v3200
  %v3225 = vmul.f32 %v3155, %v3200
  %v3226 = vmul.f32 %v3156, %v3200
  %v3227 = vmul.f32 %v3157, %v3200
  %v3228 = vmul.f32 %v3158, %v3200
  %v3229 = vmul.f32 %v3159, %v3200
  %v3230 = vmul.f32 %v3160, %v3200
  %v3231 = vmul.f32 %v3161, %v3200
  %v3232 = vmul.f32 %v3162, %v3200
  %v3233 = vmul.f32 %v3163, %v3200
  %v3234 = vmul.f32 %v3164, %v3200
  %v3235 = vmul.f32 %v3165, %v3200
  %v3236 = vmul.f32 %v3166, %v3200
  %v3237 = vmul.f32 %v3167, %v3200
  %v3238 = vmul.f32 %v3168, %v3200
  %v3239 = vmul.f32 %v3169, %v3200
  %v3240 = vmul.f32 %v3170, %v3200
  %v3241 = vmul.f32 %v3171, %v3200
  %v3242 = vmul.f32 %v3172, %v3200
  %v3243 = vmul.f32 %v3173, %v3200
  %v3244 = vmul.f32 %v3174, %v3200
  %v3245 = vmul.f32 %v3175, %v3200
  %v3246 = vmul.f32 %v3176, %v3200
  %v3247 = vmul.f32 %v3177, %v3200
  %v3248 = vmul.f32 %v3178, %v3200
  %v3249 = vmul.f32 %v3179, %v3200
  %v3250 = vmul.f32 %v3180, %v3200
  %v3251 = vmul.f32 %v3181, %v3200
  %v3252 = vmul.f32 %v3182, %v3200
  %v3253 = vmul.f32 %v3183, %v3200
  %v3254 = vmul.f32 %v3184, %v3200
  %v3255 = vmul.f32 %v3185, %v3200
  %v3256 = vmul.f32 %v3186, %v3200
  %v3257 = vmul.f32 %v3187, %v3200
  %v3258 = vmul.f32 %v3188, %v3200
  %v3259 = vmul.f32 %v3189, %v3200
  %v3260 = vmul.f32 %v3190, %v3200
  %v3261 = vmul.f32 %v3191, %v3200
  %v3262 = vmul.f32 %v3192, %v3200
  %v3263 = vmul.f32 %v3193, %v3200
  %v3264 = vmul.f32 %v3194, %v3200
  %v3265 = vld [vmem:[%s4] sm:$0x1]
  %v3267 = vlaneseq
  %v3268 = vshrl.u32 %v3267, 7
  %v3269 = vsub.s32 0, %v3268
  %v3270 = vrot.slane %v3265, %v3269
  %v3272 = vadd.f32 %v3201, %v3270
  %v3273 = vadd.f32 %v3202, %v3270
  %v3274 = vadd.f32 %v3203, %v3270
  %v3275 = vadd.f32 %v3204, %v3270
  %v3276 = vadd.f32 %v3205, %v3270
  %v3277 = vadd.f32 %v3206, %v3270
  %v3278 = vadd.f32 %v3207, %v3270
  %v3279 = vadd.f32 %v3208, %v3270
  %v3280 = vadd.f32 %v3209, %v3270
  %v3281 = vadd.f32 %v3210, %v3270
  %v3282 = vadd.f32 %v3211, %v3270
  %v3283 = vadd.f32 %v3212, %v3270
  %v3284 = vadd.f32 %v3213, %v3270
  %v3285 = vadd.f32 %v3214, %v3270
  %v3286 = vadd.f32 %v3215, %v3270
  %v3287 = vadd.f32 %v3216, %v3270
  %v3288 = vadd.f32 %v3217, %v3270
  %v3289 = vadd.f32 %v3218, %v3270
  %v3290 = vadd.f32 %v3219, %v3270
  %v3291 = vadd.f32 %v3220, %v3270
  %v3292 = vadd.f32 %v3221, %v3270
  %v3293 = vadd.f32 %v3222, %v3270
  %v3294 = vadd.f32 %v3223, %v3270
  %v3295 = vadd.f32 %v3224, %v3270
  %v3296 = vadd.f32 %v3225, %v3270
  %v3297 = vadd.f32 %v3226, %v3270
  %v3298 = vadd.f32 %v3227, %v3270
  %v3299 = vadd.f32 %v3228, %v3270
  %v3300 = vadd.f32 %v3229, %v3270
  %v3301 = vadd.f32 %v3230, %v3270
  %v3302 = vadd.f32 %v3231, %v3270
  %v3303 = vadd.f32 %v3232, %v3270
  %v3304 = vadd.f32 %v3233, %v3270
  %v3305 = vadd.f32 %v3234, %v3270
  %v3306 = vadd.f32 %v3235, %v3270
  %v3307 = vadd.f32 %v3236, %v3270
  %v3308 = vadd.f32 %v3237, %v3270
  %v3309 = vadd.f32 %v3238, %v3270
  %v3310 = vadd.f32 %v3239, %v3270
  %v3311 = vadd.f32 %v3240, %v3270
  %v3312 = vadd.f32 %v3241, %v3270
  %v3313 = vadd.f32 %v3242, %v3270
  %v3314 = vadd.f32 %v3243, %v3270
  %v3315 = vadd.f32 %v3244, %v3270
  %v3316 = vadd.f32 %v3245, %v3270
  %v3317 = vadd.f32 %v3246, %v3270
  %v3318 = vadd.f32 %v3247, %v3270
  %v3319 = vadd.f32 %v3248, %v3270
  %v3320 = vadd.f32 %v3249, %v3270
  %v3321 = vadd.f32 %v3250, %v3270
  %v3322 = vadd.f32 %v3251, %v3270
  %v3323 = vadd.f32 %v3252, %v3270
  %v3324 = vadd.f32 %v3253, %v3270
  %v3325 = vadd.f32 %v3254, %v3270
  %v3326 = vadd.f32 %v3255, %v3270
  %v3327 = vadd.f32 %v3256, %v3270
  %v3328 = vadd.f32 %v3257, %v3270
  %v3329 = vadd.f32 %v3258, %v3270
  %v3330 = vadd.f32 %v3259, %v3270
  %v3331 = vadd.f32 %v3260, %v3270
  %v3332 = vadd.f32 %v3261, %v3270
  %v3333 = vadd.f32 %v3262, %v3270
  %v3334 = vadd.f32 %v3263, %v3270
  %v3335 = vadd.f32 %v3264, %v3270
  %vm3336 = vcmp.ge.f32.partialorder %v3272, 0.0
  %vm3337 = vcmp.ge.f32.partialorder %v3273, 0.0
  %vm3338 = vcmp.ge.f32.partialorder %v3274, 0.0
  %vm3339 = vcmp.ge.f32.partialorder %v3275, 0.0
  %vm3340 = vcmp.ge.f32.partialorder %v3276, 0.0
  %vm3341 = vcmp.ge.f32.partialorder %v3277, 0.0
  %vm3342 = vcmp.ge.f32.partialorder %v3278, 0.0
  %vm3343 = vcmp.ge.f32.partialorder %v3279, 0.0
  %vm3344 = vcmp.ge.f32.partialorder %v3280, 0.0
  %vm3345 = vcmp.ge.f32.partialorder %v3281, 0.0
  %vm3346 = vcmp.ge.f32.partialorder %v3282, 0.0
  %vm3347 = vcmp.ge.f32.partialorder %v3283, 0.0
  %vm3348 = vcmp.ge.f32.partialorder %v3284, 0.0
  %vm3349 = vcmp.ge.f32.partialorder %v3285, 0.0
  %vm3350 = vcmp.ge.f32.partialorder %v3286, 0.0
  %vm3351 = vcmp.ge.f32.partialorder %v3287, 0.0
  %vm3352 = vcmp.ge.f32.partialorder %v3288, 0.0
  %vm3353 = vcmp.ge.f32.partialorder %v3289, 0.0
  %vm3354 = vcmp.ge.f32.partialorder %v3290, 0.0
  %vm3355 = vcmp.ge.f32.partialorder %v3291, 0.0
  %vm3356 = vcmp.ge.f32.partialorder %v3292, 0.0
  %vm3357 = vcmp.ge.f32.partialorder %v3293, 0.0
  %vm3358 = vcmp.ge.f32.partialorder %v3294, 0.0
  %vm3359 = vcmp.ge.f32.partialorder %v3295, 0.0
  %vm3360 = vcmp.ge.f32.partialorder %v3296, 0.0
  %vm3361 = vcmp.ge.f32.partialorder %v3297, 0.0
  %vm3362 = vcmp.ge.f32.partialorder %v3298, 0.0
  %vm3363 = vcmp.ge.f32.partialorder %v3299, 0.0
  %vm3364 = vcmp.ge.f32.partialorder %v3300, 0.0
  %vm3365 = vcmp.ge.f32.partialorder %v3301, 0.0
  %vm3366 = vcmp.ge.f32.partialorder %v3302, 0.0
  %vm3367 = vcmp.ge.f32.partialorder %v3303, 0.0
  %vm3368 = vcmp.ge.f32.partialorder %v3304, 0.0
  %vm3369 = vcmp.ge.f32.partialorder %v3305, 0.0
  %vm3370 = vcmp.ge.f32.partialorder %v3306, 0.0
  %vm3371 = vcmp.ge.f32.partialorder %v3307, 0.0
  %vm3372 = vcmp.ge.f32.partialorder %v3308, 0.0
  %vm3373 = vcmp.ge.f32.partialorder %v3309, 0.0
  %vm3374 = vcmp.ge.f32.partialorder %v3310, 0.0
  %vm3375 = vcmp.ge.f32.partialorder %v3311, 0.0
  %vm3376 = vcmp.ge.f32.partialorder %v3312, 0.0
  %vm3377 = vcmp.ge.f32.partialorder %v3313, 0.0
  %vm3378 = vcmp.ge.f32.partialorder %v3314, 0.0
  %vm3379 = vcmp.ge.f32.partialorder %v3315, 0.0
  %vm3380 = vcmp.ge.f32.partialorder %v3316, 0.0
  %vm3381 = vcmp.ge.f32.partialorder %v3317, 0.0
  %vm3382 = vcmp.ge.f32.partialorder %v3318, 0.0
  %vm3383 = vcmp.ge.f32.partialorder %v3319, 0.0
  %vm3384 = vcmp.ge.f32.partialorder %v3320, 0.0
  %vm3385 = vcmp.ge.f32.partialorder %v3321, 0.0
  %vm3386 = vcmp.ge.f32.partialorder %v3322, 0.0
  %vm3387 = vcmp.ge.f32.partialorder %v3323, 0.0
  %vm3388 = vcmp.ge.f32.partialorder %v3324, 0.0
  %vm3389 = vcmp.ge.f32.partialorder %v3325, 0.0
  %vm3390 = vcmp.ge.f32.partialorder %v3326, 0.0
  %vm3391 = vcmp.ge.f32.partialorder %v3327, 0.0
  %vm3392 = vcmp.ge.f32.partialorder %v3328, 0.0
  %vm3393 = vcmp.ge.f32.partialorder %v3329, 0.0
  %vm3394 = vcmp.ge.f32.partialorder %v3330, 0.0
  %vm3395 = vcmp.ge.f32.partialorder %v3331, 0.0
  %vm3396 = vcmp.ge.f32.partialorder %v3332, 0.0
  %vm3397 = vcmp.ge.f32.partialorder %v3333, 0.0
  %vm3398 = vcmp.ge.f32.partialorder %v3334, 0.0
  %vm3399 = vcmp.ge.f32.partialorder %v3335, 0.0
  %v3400 = vmul.f32 %v3272, 0.01
  %v3401 = vmul.f32 %v3273, 0.01
  %v3402 = vmul.f32 %v3274, 0.01
  %v3403 = vmul.f32 %v3275, 0.01
  %v3404 = vmul.f32 %v3276, 0.01
  %v3405 = vmul.f32 %v3277, 0.01
  %v3406 = vmul.f32 %v3278, 0.01
  %v3407 = vmul.f32 %v3279, 0.01
  %v3408 = vmul.f32 %v3280, 0.01
  %v3409 = vmul.f32 %v3281, 0.01
  %v3410 = vmul.f32 %v3282, 0.01
  %v3411 = vmul.f32 %v3283, 0.01
  %v3412 = vmul.f32 %v3284, 0.01
  %v3413 = vmul.f32 %v3285, 0.01
  %v3414 = vmul.f32 %v3286, 0.01
  %v3415 = vmul.f32 %v3287, 0.01
  %v3416 = vmul.f32 %v3288, 0.01
  %v3417 = vmul.f32 %v3289, 0.01
  %v3418 = vmul.f32 %v3290, 0.01
  %v3419 = vmul.f32 %v3291, 0.01
  %v3420 = vmul.f32 %v3292, 0.01
  %v3421 = vmul.f32 %v3293, 0.01
  %v3422 = vmul.f32 %v3294, 0.01
  %v3423 = vmul.f32 %v3295, 0.01
  %v3424 = vmul.f32 %v3296, 0.01
  %v3425 = vmul.f32 %v3297, 0.01
  %v3426 = vmul.f32 %v3298, 0.01
  %v3427 = vmul.f32 %v3299, 0.01
  %v3428 = vmul.f32 %v3300, 0.01
  %v3429 = vmul.f32 %v3301, 0.01
  %v3430 = vmul.f32 %v3302, 0.01
  %v3431 = vmul.f32 %v3303, 0.01
  %v3432 = vmul.f32 %v3304, 0.01
  %v3433 = vmul.f32 %v3305, 0.01
  %v3434 = vmul.f32 %v3306, 0.01
  %v3435 = vmul.f32 %v3307, 0.01
  %v3436 = vmul.f32 %v3308, 0.01
  %v3437 = vmul.f32 %v3309, 0.01
  %v3438 = vmul.f32 %v3310, 0.01
  %v3439 = vmul.f32 %v3311, 0.01
  %v3440 = vmul.f32 %v3312, 0.01
  %v3441 = vmul.f32 %v3313, 0.01
  %v3442 = vmul.f32 %v3314, 0.01
  %v3443 = vmul.f32 %v3315, 0.01
  %v3444 = vmul.f32 %v3316, 0.01
  %v3445 = vmul.f32 %v3317, 0.01
  %v3446 = vmul.f32 %v3318, 0.01
  %v3447 = vmul.f32 %v3319, 0.01
  %v3448 = vmul.f32 %v3320, 0.01
  %v3449 = vmul.f32 %v3321, 0.01
  %v3450 = vmul.f32 %v3322, 0.01
  %v3451 = vmul.f32 %v3323, 0.01
  %v3452 = vmul.f32 %v3324, 0.01
  %v3453 = vmul.f32 %v3325, 0.01
  %v3454 = vmul.f32 %v3326, 0.01
  %v3455 = vmul.f32 %v3327, 0.01
  %v3456 = vmul.f32 %v3328, 0.01
  %v3457 = vmul.f32 %v3329, 0.01
  %v3458 = vmul.f32 %v3330, 0.01
  %v3459 = vmul.f32 %v3331, 0.01
  %v3460 = vmul.f32 %v3332, 0.01
  %v3461 = vmul.f32 %v3333, 0.01
  %v3462 = vmul.f32 %v3334, 0.01
  %v3463 = vmul.f32 %v3335, 0.01
  %v3464 = vsel %vm3336, %v3272, %v3400
  %v3465 = vsel %vm3337, %v3273, %v3401
  %v3466 = vsel %vm3338, %v3274, %v3402
  %v3467 = vsel %vm3339, %v3275, %v3403
  %v3468 = vsel %vm3340, %v3276, %v3404
  %v3469 = vsel %vm3341, %v3277, %v3405
  %v3470 = vsel %vm3342, %v3278, %v3406
  %v3471 = vsel %vm3343, %v3279, %v3407
  %v3472 = vsel %vm3344, %v3280, %v3408
  %v3473 = vsel %vm3345, %v3281, %v3409
  %v3474 = vsel %vm3346, %v3282, %v3410
  %v3475 = vsel %vm3347, %v3283, %v3411
  %v3476 = vsel %vm3348, %v3284, %v3412
  %v3477 = vsel %vm3349, %v3285, %v3413
  %v3478 = vsel %vm3350, %v3286, %v3414
  %v3479 = vsel %vm3351, %v3287, %v3415
  %v3480 = vsel %vm3352, %v3288, %v3416
  %v3481 = vsel %vm3353, %v3289, %v3417
  %v3482 = vsel %vm3354, %v3290, %v3418
  %v3483 = vsel %vm3355, %v3291, %v3419
  %v3484 = vsel %vm3356, %v3292, %v3420
  %v3485 = vsel %vm3357, %v3293, %v3421
  %v3486 = vsel %vm3358, %v3294, %v3422
  %v3487 = vsel %vm3359, %v3295, %v3423
  %v3488 = vsel %vm3360, %v3296, %v3424
  %v3489 = vsel %vm3361, %v3297, %v3425
  %v3490 = vsel %vm3362, %v3298, %v3426
  %v3491 = vsel %vm3363, %v3299, %v3427
  %v3492 = vsel %vm3364, %v3300, %v3428
  %v3493 = vsel %vm3365, %v3301, %v3429
  %v3494 = vsel %vm3366, %v3302, %v3430
  %v3495 = vsel %vm3367, %v3303, %v3431
  %v3496 = vsel %vm3368, %v3304, %v3432
  %v3497 = vsel %vm3369, %v3305, %v3433
  %v3498 = vsel %vm3370, %v3306, %v3434
  %v3499 = vsel %vm3371, %v3307, %v3435
  %v3500 = vsel %vm3372, %v3308, %v3436
  %v3501 = vsel %vm3373, %v3309, %v3437
  %v3502 = vsel %vm3374, %v3310, %v3438
  %v3503 = vsel %vm3375, %v3311, %v3439
  %v3504 = vsel %vm3376, %v3312, %v3440
  %v3505 = vsel %vm3377, %v3313, %v3441
  %v3506 = vsel %vm3378, %v3314, %v3442
  %v3507 = vsel %vm3379, %v3315, %v3443
  %v3508 = vsel %vm3380, %v3316, %v3444
  %v3509 = vsel %vm3381, %v3317, %v3445
  %v3510 = vsel %vm3382, %v3318, %v3446
  %v3511 = vsel %vm3383, %v3319, %v3447
  %v3512 = vsel %vm3384, %v3320, %v3448
  %v3513 = vsel %vm3385, %v3321, %v3449
  %v3514 = vsel %vm3386, %v3322, %v3450
  %v3515 = vsel %vm3387, %v3323, %v3451
  %v3516 = vsel %vm3388, %v3324, %v3452
  %v3517 = vsel %vm3389, %v3325, %v3453
  %v3518 = vsel %vm3390, %v3326, %v3454
  %v3519 = vsel %vm3391, %v3327, %v3455
  %v3520 = vsel %vm3392, %v3328, %v3456
  %v3521 = vsel %vm3393, %v3329, %v3457
  %v3522 = vsel %vm3394, %v3330, %v3458
  %v3523 = vsel %vm3395, %v3331, %v3459
  %v3524 = vsel %vm3396, %v3332, %v3460
  %v3525 = vsel %vm3397, %v3333, %v3461
  %v3526 = vsel %vm3398, %v3334, %v3462
  %v3527 = vsel %vm3399, %v3335, %v3463
  %3528 = vst [vmem:[%s204 + $0x1] sm:$0xff] %v3464
  %3529 = vst [vmem:[%s204 + $0x9] sm:$0xff] %v3465
  %3530 = vst [vmem:[%s204 + $0x19] sm:$0xff] %v3466
  %3531 = vst [vmem:[%s204 + $0x21] sm:$0xff] %v3467
  %3532 = vst [vmem:[%s204 + $0x31] sm:$0xff] %v3468
  %3533 = vst [vmem:[%s204 + $0x39] sm:$0xff] %v3469
  %3534 = vst [vmem:[%s204 + $0x49] sm:$0xff] %v3470
  %3535 = vst [vmem:[%s204 + $0x51] sm:$0xff] %v3471
  %3536 = vst [vmem:[%s204 + $0x61] sm:$0xff] %v3472
  %3537 = vst [vmem:[%s204 + $0x69] sm:$0xff] %v3473
  %3538 = vst [vmem:[%s204 + $0x79] sm:$0xff] %v3474
  %3539 = vst [vmem:[%s204 + $0x81] sm:$0xff] %v3475
  %3540 = vst [vmem:[%s204 + $0x91] sm:$0xff] %v3476
  %3541 = vst [vmem:[%s204 + $0x99] sm:$0xff] %v3477
  %3542 = vst [vmem:[%s204 + $0xa9] sm:$0xff] %v3478
  %3543 = vst [vmem:[%s204 + $0xb1] sm:$0xff] %v3479
  %3544 = vst [vmem:[%s204 + $0xc1] sm:$0xff] %v3480
  %3545 = vst [vmem:[%s204 + $0xc9] sm:$0xff] %v3481
  %3546 = vst [vmem:[%s204 + $0xd9] sm:$0xff] %v3482
  %3547 = vst [vmem:[%s204 + $0xe1] sm:$0xff] %v3483
  %3548 = vst [vmem:[%s204 + $0xf1] sm:$0xff] %v3484
  %3549 = vst [vmem:[%s204 + $0xf9] sm:$0xff] %v3485
  %3550 = vst [vmem:[%s204 + $0x109] sm:$0xff] %v3486
  %3551 = vst [vmem:[%s204 + $0x111] sm:$0xff] %v3487
  %3552 = vst [vmem:[%s204 + $0x121] sm:$0xff] %v3488
  %3553 = vst [vmem:[%s204 + $0x129] sm:$0xff] %v3489
  %3554 = vst [vmem:[%s204 + $0x139] sm:$0xff] %v3490
  %3555 = vst [vmem:[%s204 + $0x141] sm:$0xff] %v3491
  %3556 = vst [vmem:[%s204 + $0x151] sm:$0xff] %v3492
  %3557 = vst [vmem:[%s204 + $0x159] sm:$0xff] %v3493
  %3558 = vst [vmem:[%s204 + $0x169] sm:$0xff] %v3494
  %3559 = vst [vmem:[%s204 + $0x171] sm:$0xff] %v3495
  %3560 = vst [vmem:[%s204 + $0x1b1] sm:$0xff] %v3496
  %3561 = vst [vmem:[%s204 + $0x1b9] sm:$0xff] %v3497
  %3562 = vst [vmem:[%s204 + $0x1c9] sm:$0xff] %v3498
  %3563 = vst [vmem:[%s204 + $0x1d1] sm:$0xff] %v3499
  %3564 = vst [vmem:[%s204 + $0x1e1] sm:$0xff] %v3500
  %3565 = vst [vmem:[%s204 + $0x1e9] sm:$0xff] %v3501
  %3566 = vst [vmem:[%s204 + $0x1f9] sm:$0xff] %v3502
  %3567 = vst [vmem:[%s204 + $0x201] sm:$0xff] %v3503
  %3568 = vst [vmem:[%s204 + $0x211] sm:$0xff] %v3504
  %3569 = vst [vmem:[%s204 + $0x219] sm:$0xff] %v3505
  %3570 = vst [vmem:[%s204 + $0x229] sm:$0xff] %v3506
  %3571 = vst [vmem:[%s204 + $0x231] sm:$0xff] %v3507
  %3572 = vst [vmem:[%s204 + $0x241] sm:$0xff] %v3508
  %3573 = vst [vmem:[%s204 + $0x249] sm:$0xff] %v3509
  %3574 = vst [vmem:[%s204 + $0x259] sm:$0xff] %v3510
  %3575 = vst [vmem:[%s204 + $0x261] sm:$0xff] %v3511
  %3576 = vst [vmem:[%s204 + $0x271] sm:$0xff] %v3512
  %3577 = vst [vmem:[%s204 + $0x279] sm:$0xff] %v3513
  %3578 = vst [vmem:[%s204 + $0x289] sm:$0xff] %v3514
  %3579 = vst [vmem:[%s204 + $0x291] sm:$0xff] %v3515
  %3580 = vst [vmem:[%s204 + $0x2a1] sm:$0xff] %v3516
  %3581 = vst [vmem:[%s204 + $0x2a9] sm:$0xff] %v3517
  %3582 = vst [vmem:[%s204 + $0x2b9] sm:$0xff] %v3518
  %3583 = vst [vmem:[%s204 + $0x2c1] sm:$0xff] %v3519
  %3584 = vst [vmem:[%s204 + $0x2d1] sm:$0xff] %v3520
  %3585 = vst [vmem:[%s204 + $0x2d9] sm:$0xff] %v3521
  %3586 = vst [vmem:[%s204 + $0x2e9] sm:$0xff] %v3522
  %3587 = vst [vmem:[%s204 + $0x2f1] sm:$0xff] %v3523
  %3588 = vst [vmem:[%s204 + $0x301] sm:$0xff] %v3524
  %3589 = vst [vmem:[%s204 + $0x309] sm:$0xff] %v3525
  %3590 = vst [vmem:[%s204 + $0x319] sm:$0xff] %v3526
  %3591 = vst [vmem:[%s204 + $0x321] sm:$0xff] %v3527
  %v3592 = vld [vmem:[#allocation2] sm:$0xff]
  %v3593 = vld [vmem:[#allocation2 + $0x8] sm:$0xff]
  %v3594 = vld [vmem:[#allocation2 + $0x18] sm:$0xff]
  %v3595 = vld [vmem:[#allocation2 + $0x20] sm:$0xff]
  %v3596 = vld [vmem:[#allocation2 + $0x30] sm:$0xff]
  %v3597 = vld [vmem:[#allocation2 + $0x38] sm:$0xff]
  %v3598 = vld [vmem:[#allocation2 + $0x48] sm:$0xff]
  %v3599 = vld [vmem:[#allocation2 + $0x50] sm:$0xff]
  %v3600 = vld [vmem:[#allocation2 + $0x60] sm:$0xff]
  %v3601 = vld [vmem:[#allocation2 + $0x68] sm:$0xff]
  %v3602 = vld [vmem:[#allocation2 + $0x78] sm:$0xff]
  %v3603 = vld [vmem:[#allocation2 + $0x80] sm:$0xff]
  %v3604 = vld [vmem:[#allocation2 + $0x90] sm:$0xff]
  %v3605 = vld [vmem:[#allocation2 + $0x98] sm:$0xff]
  %v3606 = vld [vmem:[#allocation2 + $0xa8] sm:$0xff]
  %v3607 = vld [vmem:[#allocation2 + $0xb0] sm:$0xff]
  %v3608 = vld [vmem:[#allocation2 + $0xc0] sm:$0xff]
  %v3609 = vld [vmem:[#allocation2 + $0xc8] sm:$0xff]
  %v3610 = vld [vmem:[#allocation2 + $0xd8] sm:$0xff]
  %v3611 = vld [vmem:[#allocation2 + $0xe0] sm:$0xff]
  %v3612 = vld [vmem:[#allocation2 + $0xf0] sm:$0xff]
  %v3613 = vld [vmem:[#allocation2 + $0xf8] sm:$0xff]
  %v3614 = vld [vmem:[#allocation2 + $0x108] sm:$0xff]
  %v3615 = vld [vmem:[#allocation2 + $0x110] sm:$0xff]
  %v3616 = vld [vmem:[#allocation2 + $0x120] sm:$0xff]
  %v3617 = vld [vmem:[#allocation2 + $0x128] sm:$0xff]
  %v3618 = vld [vmem:[#allocation2 + $0x138] sm:$0xff]
  %v3619 = vld [vmem:[#allocation2 + $0x140] sm:$0xff]
  %v3620 = vld [vmem:[#allocation2 + $0x150] sm:$0xff]
  %v3621 = vld [vmem:[#allocation2 + $0x158] sm:$0xff]
  %v3622 = vld [vmem:[#allocation2 + $0x168] sm:$0xff]
  %v3623 = vld [vmem:[#allocation2 + $0x170] sm:$0xff]
  %v3624 = vld [vmem:[#allocation2 + $0x1b0] sm:$0xff]
  %v3625 = vld [vmem:[#allocation2 + $0x1b8] sm:$0xff]
  %v3626 = vld [vmem:[#allocation2 + $0x1c8] sm:$0xff]
  %v3627 = vld [vmem:[#allocation2 + $0x1d0] sm:$0xff]
  %v3628 = vld [vmem:[#allocation2 + $0x1e0] sm:$0xff]
  %v3629 = vld [vmem:[#allocation2 + $0x1e8] sm:$0xff]
  %v3630 = vld [vmem:[#allocation2 + $0x1f8] sm:$0xff]
  %v3631 = vld [vmem:[#allocation2 + $0x200] sm:$0xff]
  %v3632 = vld [vmem:[#allocation2 + $0x210] sm:$0xff]
  %v3633 = vld [vmem:[#allocation2 + $0x218] sm:$0xff]
  %v3634 = vld [vmem:[#allocation2 + $0x228] sm:$0xff]
  %v3635 = vld [vmem:[#allocation2 + $0x230] sm:$0xff]
  %v3636 = vld [vmem:[#allocation2 + $0x240] sm:$0xff]
  %v3637 = vld [vmem:[#allocation2 + $0x248] sm:$0xff]
  %v3638 = vld [vmem:[#allocation2 + $0x258] sm:$0xff]
  %v3639 = vld [vmem:[#allocation2 + $0x260] sm:$0xff]
  %v3640 = vld [vmem:[#allocation2 + $0x270] sm:$0xff]
  %v3641 = vld [vmem:[#allocation2 + $0x278] sm:$0xff]
  %v3642 = vld [vmem:[#allocation2 + $0x288] sm:$0xff]
  %v3643 = vld [vmem:[#allocation2 + $0x290] sm:$0xff]
  %v3644 = vld [vmem:[#allocation2 + $0x2a0] sm:$0xff]
  %v3645 = vld [vmem:[#allocation2 + $0x2a8] sm:$0xff]
  %v3646 = vld [vmem:[#allocation2 + $0x2b8] sm:$0xff]
  %v3647 = vld [vmem:[#allocation2 + $0x2c0] sm:$0xff]
  %v3648 = vld [vmem:[#allocation2 + $0x2d0] sm:$0xff]
  %v3649 = vld [vmem:[#allocation2 + $0x2d8] sm:$0xff]
  %v3650 = vld [vmem:[#allocation2 + $0x2e8] sm:$0xff]
  %v3651 = vld [vmem:[#allocation2 + $0x2f0] sm:$0xff]
  %v3652 = vld [vmem:[#allocation2 + $0x300] sm:$0xff]
  %v3653 = vld [vmem:[#allocation2 + $0x308] sm:$0xff]
  %v3654 = vld [vmem:[#allocation2 + $0x318] sm:$0xff]
  %v3655 = vld [vmem:[#allocation2 + $0x320] sm:$0xff]
  %v3656 = vld [vmem:[#allocation2 + $0x1] sm:$0xff]
  %v3657 = vld [vmem:[#allocation2 + $0x9] sm:$0xff]
  %v3658 = vld [vmem:[#allocation2 + $0x19] sm:$0xff]
  %v3659 = vld [vmem:[#allocation2 + $0x21] sm:$0xff]
  %v3660 = vld [vmem:[#allocation2 + $0x31] sm:$0xff]
  %v3661 = vld [vmem:[#allocation2 + $0x39] sm:$0xff]
  %v3662 = vld [vmem:[#allocation2 + $0x49] sm:$0xff]
  %v3663 = vld [vmem:[#allocation2 + $0x51] sm:$0xff]
  %v3664 = vld [vmem:[#allocation2 + $0x61] sm:$0xff]
  %v3665 = vld [vmem:[#allocation2 + $0x69] sm:$0xff]
  %v3666 = vld [vmem:[#allocation2 + $0x79] sm:$0xff]
  %v3667 = vld [vmem:[#allocation2 + $0x81] sm:$0xff]
  %v3668 = vld [vmem:[#allocation2 + $0x91] sm:$0xff]
  %v3669 = vld [vmem:[#allocation2 + $0x99] sm:$0xff]
  %v3670 = vld [vmem:[#allocation2 + $0xa9] sm:$0xff]
  %v3671 = vld [vmem:[#allocation2 + $0xb1] sm:$0xff]
  %v3672 = vld [vmem:[#allocation2 + $0xc1] sm:$0xff]
  %v3673 = vld [vmem:[#allocation2 + $0xc9] sm:$0xff]
  %v3674 = vld [vmem:[#allocation2 + $0xd9] sm:$0xff]
  %v3675 = vld [vmem:[#allocation2 + $0xe1] sm:$0xff]
  %v3676 = vld [vmem:[#allocation2 + $0xf1] sm:$0xff]
  %v3677 = vld [vmem:[#allocation2 + $0xf9] sm:$0xff]
  %v3678 = vld [vmem:[#allocation2 + $0x109] sm:$0xff]
  %v3679 = vld [vmem:[#allocation2 + $0x111] sm:$0xff]
  %v3680 = vld [vmem:[#allocation2 + $0x121] sm:$0xff]
  %v3681 = vld [vmem:[#allocation2 + $0x129] sm:$0xff]
  %v3682 = vld [vmem:[#allocation2 + $0x139] sm:$0xff]
  %v3683 = vld [vmem:[#allocation2 + $0x141] sm:$0xff]
  %v3684 = vld [vmem:[#allocation2 + $0x151] sm:$0xff]
  %v3685 = vld [vmem:[#allocation2 + $0x159] sm:$0xff]
  %v3686 = vld [vmem:[#allocation2 + $0x169] sm:$0xff]
  %v3687 = vld [vmem:[#allocation2 + $0x171] sm:$0xff]
  %v3688 = vld [vmem:[#allocation2 + $0x1b1] sm:$0xff]
  %v3689 = vld [vmem:[#allocation2 + $0x1b9] sm:$0xff]
  %v3690 = vld [vmem:[#allocation2 + $0x1c9] sm:$0xff]
  %v3691 = vld [vmem:[#allocation2 + $0x1d1] sm:$0xff]
  %v3692 = vld [vmem:[#allocation2 + $0x1e1] sm:$0xff]
  %v3693 = vld [vmem:[#allocation2 + $0x1e9] sm:$0xff]
  %v3694 = vld [vmem:[#allocation2 + $0x1f9] sm:$0xff]
  %v3695 = vld [vmem:[#allocation2 + $0x201] sm:$0xff]
  %v3696 = vld [vmem:[#allocation2 + $0x211] sm:$0xff]
  %v3697 = vld [vmem:[#allocation2 + $0x219] sm:$0xff]
  %v3698 = vld [vmem:[#allocation2 + $0x229] sm:$0xff]
  %v3699 = vld [vmem:[#allocation2 + $0x231] sm:$0xff]
  %v3700 = vld [vmem:[#allocation2 + $0x241] sm:$0xff]
  %v3701 = vld [vmem:[#allocation2 + $0x249] sm:$0xff]
  %v3702 = vld [vmem:[#allocation2 + $0x259] sm:$0xff]
  %v3703 = vld [vmem:[#allocation2 + $0x261] sm:$0xff]
  %v3704 = vld [vmem:[#allocation2 + $0x271] sm:$0xff]
  %v3705 = vld [vmem:[#allocation2 + $0x279] sm:$0xff]
  %v3706 = vld [vmem:[#allocation2 + $0x289] sm:$0xff]
  %v3707 = vld [vmem:[#allocation2 + $0x291] sm:$0xff]
  %v3708 = vld [vmem:[#allocation2 + $0x2a1] sm:$0xff]
  %v3709 = vld [vmem:[#allocation2 + $0x2a9] sm:$0xff]
  %v3710 = vld [vmem:[#allocation2 + $0x2b9] sm:$0xff]
  %v3711 = vld [vmem:[#allocation2 + $0x2c1] sm:$0xff]
  %v3712 = vld [vmem:[#allocation2 + $0x2d1] sm:$0xff]
  %v3713 = vld [vmem:[#allocation2 + $0x2d9] sm:$0xff]
  %v3714 = vld [vmem:[#allocation2 + $0x2e9] sm:$0xff]
  %v3715 = vld [vmem:[#allocation2 + $0x2f1] sm:$0xff]
  %v3716 = vld [vmem:[#allocation2 + $0x301] sm:$0xff]
  %v3717 = vld [vmem:[#allocation2 + $0x309] sm:$0xff]
  %v3718 = vld [vmem:[#allocation2 + $0x319] sm:$0xff]
  %v3719 = vld [vmem:[#allocation2 + $0x321] sm:$0xff]
  %v3720 = vld [vmem:[#allocation2 + $0x2] sm:$0xff]
  %v3721 = vld [vmem:[#allocation2 + $0xa] sm:$0xff]
  %v3722 = vld [vmem:[#allocation2 + $0x1a] sm:$0xff]
  %v3723 = vld [vmem:[#allocation2 + $0x22] sm:$0xff]
  %v3724 = vld [vmem:[#allocation2 + $0x32] sm:$0xff]
  %v3725 = vld [vmem:[#allocation2 + $0x3a] sm:$0xff]
  %v3726 = vld [vmem:[#allocation2 + $0x4a] sm:$0xff]
  %v3727 = vld [vmem:[#allocation2 + $0x52] sm:$0xff]
  %v3728 = vld [vmem:[#allocation2 + $0x62] sm:$0xff]
  %v3729 = vld [vmem:[#allocation2 + $0x6a] sm:$0xff]
  %v3730 = vld [vmem:[#allocation2 + $0x7a] sm:$0xff]
  %v3731 = vld [vmem:[#allocation2 + $0x82] sm:$0xff]
  %v3732 = vld [vmem:[#allocation2 + $0x92] sm:$0xff]
  %v3733 = vld [vmem:[#allocation2 + $0x9a] sm:$0xff]
  %v3734 = vld [vmem:[#allocation2 + $0xaa] sm:$0xff]
  %v3735 = vld [vmem:[#allocation2 + $0xb2] sm:$0xff]
  %v3736 = vld [vmem:[#allocation2 + $0xc2] sm:$0xff]
  %v3737 = vld [vmem:[#allocation2 + $0xca] sm:$0xff]
  %v3738 = vld [vmem:[#allocation2 + $0xda] sm:$0xff]
  %v3739 = vld [vmem:[#allocation2 + $0xe2] sm:$0xff]
  %v3740 = vld [vmem:[#allocation2 + $0xf2] sm:$0xff]
  %v3741 = vld [vmem:[#allocation2 + $0xfa] sm:$0xff]
  %v3742 = vld [vmem:[#allocation2 + $0x10a] sm:$0xff]
  %v3743 = vld [vmem:[#allocation2 + $0x112] sm:$0xff]
  %v3744 = vld [vmem:[#allocation2 + $0x122] sm:$0xff]
  %v3745 = vld [vmem:[#allocation2 + $0x12a] sm:$0xff]
  %v3746 = vld [vmem:[#allocation2 + $0x13a] sm:$0xff]
  %v3747 = vld [vmem:[#allocation2 + $0x142] sm:$0xff]
  %v3748 = vld [vmem:[#allocation2 + $0x152] sm:$0xff]
  %v3749 = vld [vmem:[#allocation2 + $0x15a] sm:$0xff]
  %v3750 = vld [vmem:[#allocation2 + $0x16a] sm:$0xff]
  %v3751 = vld [vmem:[#allocation2 + $0x172] sm:$0xff]
  %v3752 = vld [vmem:[#allocation2 + $0x1b2] sm:$0xff]
  %v3753 = vld [vmem:[#allocation2 + $0x1ba] sm:$0xff]
  %v3754 = vld [vmem:[#allocation2 + $0x1ca] sm:$0xff]
  %v3755 = vld [vmem:[#allocation2 + $0x1d2] sm:$0xff]
  %v3756 = vld [vmem:[#allocation2 + $0x1e2] sm:$0xff]
  %v3757 = vld [vmem:[#allocation2 + $0x1ea] sm:$0xff]
  %v3758 = vld [vmem:[#allocation2 + $0x1fa] sm:$0xff]
  %v3759 = vld [vmem:[#allocation2 + $0x202] sm:$0xff]
  %v3760 = vld [vmem:[#allocation2 + $0x212] sm:$0xff]
  %v3761 = vld [vmem:[#allocation2 + $0x21a] sm:$0xff]
  %v3762 = vld [vmem:[#allocation2 + $0x22a] sm:$0xff]
  %v3763 = vld [vmem:[#allocation2 + $0x232] sm:$0xff]
  %v3764 = vld [vmem:[#allocation2 + $0x242] sm:$0xff]
  %v3765 = vld [vmem:[#allocation2 + $0x24a] sm:$0xff]
  %v3766 = vld [vmem:[#allocation2 + $0x25a] sm:$0xff]
  %v3767 = vld [vmem:[#allocation2 + $0x262] sm:$0xff]
  %v3768 = vld [vmem:[#allocation2 + $0x272] sm:$0xff]
  %v3769 = vld [vmem:[#allocation2 + $0x27a] sm:$0xff]
  %v3770 = vld [vmem:[#allocation2 + $0x28a] sm:$0xff]
  %v3771 = vld [vmem:[#allocation2 + $0x292] sm:$0xff]
  %v3772 = vld [vmem:[#allocation2 + $0x2a2] sm:$0xff]
  %v3773 = vld [vmem:[#allocation2 + $0x2aa] sm:$0xff]
  %v3774 = vld [vmem:[#allocation2 + $0x2ba] sm:$0xff]
  %v3775 = vld [vmem:[#allocation2 + $0x2c2] sm:$0xff]
  %v3776 = vld [vmem:[#allocation2 + $0x2d2] sm:$0xff]
  %v3777 = vld [vmem:[#allocation2 + $0x2da] sm:$0xff]
  %v3778 = vld [vmem:[#allocation2 + $0x2ea] sm:$0xff]
  %v3779 = vld [vmem:[#allocation2 + $0x2f2] sm:$0xff]
  %v3780 = vld [vmem:[#allocation2 + $0x302] sm:$0xff]
  %v3781 = vld [vmem:[#allocation2 + $0x30a] sm:$0xff]
  %v3782 = vld [vmem:[#allocation2 + $0x31a] sm:$0xff]
  %v3783 = vld [vmem:[#allocation2 + $0x322] sm:$0xff]
  %v3784 = vld [vmem:[%s204] sm:$0xff]
  %v3785 = vld [vmem:[%s204 + $0x8] sm:$0xff]
  %v3786 = vld [vmem:[%s204 + $0x18] sm:$0xff]
  %v3787 = vld [vmem:[%s204 + $0x20] sm:$0xff]
  %v3788 = vld [vmem:[%s204 + $0x30] sm:$0xff]
  %v3789 = vld [vmem:[%s204 + $0x38] sm:$0xff]
  %v3790 = vld [vmem:[%s204 + $0x48] sm:$0xff]
  %v3791 = vld [vmem:[%s204 + $0x50] sm:$0xff]
  %v3792 = vld [vmem:[%s204 + $0x60] sm:$0xff]
  %v3793 = vld [vmem:[%s204 + $0x68] sm:$0xff]
  %v3794 = vld [vmem:[%s204 + $0x78] sm:$0xff]
  %v3795 = vld [vmem:[%s204 + $0x80] sm:$0xff]
  %v3796 = vld [vmem:[%s204 + $0x90] sm:$0xff]
  %v3797 = vld [vmem:[%s204 + $0x98] sm:$0xff]
  %v3798 = vld [vmem:[%s204 + $0xa8] sm:$0xff]
  %v3799 = vld [vmem:[%s204 + $0xb0] sm:$0xff]
  %v3800 = vld [vmem:[%s204 + $0xc0] sm:$0xff]
  %v3801 = vld [vmem:[%s204 + $0xc8] sm:$0xff]
  %v3802 = vld [vmem:[%s204 + $0xd8] sm:$0xff]
  %v3803 = vld [vmem:[%s204 + $0xe0] sm:$0xff]
  %v3804 = vld [vmem:[%s204 + $0xf0] sm:$0xff]
  %v3805 = vld [vmem:[%s204 + $0xf8] sm:$0xff]
  %v3806 = vld [vmem:[%s204 + $0x108] sm:$0xff]
  %v3807 = vld [vmem:[%s204 + $0x110] sm:$0xff]
  %v3808 = vld [vmem:[%s204 + $0x120] sm:$0xff]
  %v3809 = vld [vmem:[%s204 + $0x128] sm:$0xff]
  %v3810 = vld [vmem:[%s204 + $0x138] sm:$0xff]
  %v3811 = vld [vmem:[%s204 + $0x140] sm:$0xff]
  %v3812 = vld [vmem:[%s204 + $0x150] sm:$0xff]
  %v3813 = vld [vmem:[%s204 + $0x158] sm:$0xff]
  %v3814 = vld [vmem:[%s204 + $0x168] sm:$0xff]
  %v3815 = vld [vmem:[%s204 + $0x170] sm:$0xff]
  %v3816 = vld [vmem:[%s204 + $0x1b0] sm:$0xff]
  %v3817 = vld [vmem:[%s204 + $0x1b8] sm:$0xff]
  %v3818 = vld [vmem:[%s204 + $0x1c8] sm:$0xff]
  %v3819 = vld [vmem:[%s204 + $0x1d0] sm:$0xff]
  %v3820 = vld [vmem:[%s204 + $0x1e0] sm:$0xff]
  %v3821 = vld [vmem:[%s204 + $0x1e8] sm:$0xff]
  %v3822 = vld [vmem:[%s204 + $0x1f8] sm:$0xff]
  %v3823 = vld [vmem:[%s204 + $0x200] sm:$0xff]
  %v3824 = vld [vmem:[%s204 + $0x210] sm:$0xff]
  %v3825 = vld [vmem:[%s204 + $0x218] sm:$0xff]
  %v3826 = vld [vmem:[%s204 + $0x228] sm:$0xff]
  %v3827 = vld [vmem:[%s204 + $0x230] sm:$0xff]
  %v3828 = vld [vmem:[%s204 + $0x240] sm:$0xff]
  %v3829 = vld [vmem:[%s204 + $0x248] sm:$0xff]
  %v3830 = vld [vmem:[%s204 + $0x258] sm:$0xff]
  %v3831 = vld [vmem:[%s204 + $0x260] sm:$0xff]
  %v3832 = vld [vmem:[%s204 + $0x270] sm:$0xff]
  %v3833 = vld [vmem:[%s204 + $0x278] sm:$0xff]
  %v3834 = vld [vmem:[%s204 + $0x288] sm:$0xff]
  %v3835 = vld [vmem:[%s204 + $0x290] sm:$0xff]
  %v3836 = vld [vmem:[%s204 + $0x2a0] sm:$0xff]
  %v3837 = vld [vmem:[%s204 + $0x2a8] sm:$0xff]
  %v3838 = vld [vmem:[%s204 + $0x2b8] sm:$0xff]
  %v3839 = vld [vmem:[%s204 + $0x2c0] sm:$0xff]
  %v3840 = vld [vmem:[%s204 + $0x2d0] sm:$0xff]
  %v3841 = vld [vmem:[%s204 + $0x2d8] sm:$0xff]
  %v3842 = vld [vmem:[%s204 + $0x2e8] sm:$0xff]
  %v3843 = vld [vmem:[%s204 + $0x2f0] sm:$0xff]
  %v3844 = vld [vmem:[%s204 + $0x300] sm:$0xff]
  %v3845 = vld [vmem:[%s204 + $0x308] sm:$0xff]
  %v3846 = vld [vmem:[%s204 + $0x318] sm:$0xff]
  %v3847 = vld [vmem:[%s204 + $0x320] sm:$0xff]
  %v3848 = vld [vmem:[%s204 + $0x1] sm:$0xff]
  %v3849 = vld [vmem:[%s204 + $0x9] sm:$0xff]
  %v3850 = vld [vmem:[%s204 + $0x19] sm:$0xff]
  %v3851 = vld [vmem:[%s204 + $0x21] sm:$0xff]
  %v3852 = vld [vmem:[%s204 + $0x31] sm:$0xff]
  %v3853 = vld [vmem:[%s204 + $0x39] sm:$0xff]
  %v3854 = vld [vmem:[%s204 + $0x49] sm:$0xff]
  %v3855 = vld [vmem:[%s204 + $0x51] sm:$0xff]
  %v3856 = vld [vmem:[%s204 + $0x61] sm:$0xff]
  %v3857 = vld [vmem:[%s204 + $0x69] sm:$0xff]
  %v3858 = vld [vmem:[%s204 + $0x79] sm:$0xff]
  %v3859 = vld [vmem:[%s204 + $0x81] sm:$0xff]
  %v3860 = vld [vmem:[%s204 + $0x91] sm:$0xff]
  %v3861 = vld [vmem:[%s204 + $0x99] sm:$0xff]
  %v3862 = vld [vmem:[%s204 + $0xa9] sm:$0xff]
  %v3863 = vld [vmem:[%s204 + $0xb1] sm:$0xff]
  %v3864 = vld [vmem:[%s204 + $0xc1] sm:$0xff]
  %v3865 = vld [vmem:[%s204 + $0xc9] sm:$0xff]
  %v3866 = vld [vmem:[%s204 + $0xd9] sm:$0xff]
  %v3867 = vld [vmem:[%s204 + $0xe1] sm:$0xff]
  %v3868 = vld [vmem:[%s204 + $0xf1] sm:$0xff]
  %v3869 = vld [vmem:[%s204 + $0xf9] sm:$0xff]
  %v3870 = vld [vmem:[%s204 + $0x109] sm:$0xff]
  %v3871 = vld [vmem:[%s204 + $0x111] sm:$0xff]
  %v3872 = vld [vmem:[%s204 + $0x121] sm:$0xff]
  %v3873 = vld [vmem:[%s204 + $0x129] sm:$0xff]
  %v3874 = vld [vmem:[%s204 + $0x139] sm:$0xff]
  %v3875 = vld [vmem:[%s204 + $0x141] sm:$0xff]
  %v3876 = vld [vmem:[%s204 + $0x151] sm:$0xff]
  %v3877 = vld [vmem:[%s204 + $0x159] sm:$0xff]
  %v3878 = vld [vmem:[%s204 + $0x169] sm:$0xff]
  %v3879 = vld [vmem:[%s204 + $0x171] sm:$0xff]
  %v3880 = vld [vmem:[%s204 + $0x1b1] sm:$0xff]
  %v3881 = vld [vmem:[%s204 + $0x1b9] sm:$0xff]
  %v3882 = vld [vmem:[%s204 + $0x1c9] sm:$0xff]
  %v3883 = vld [vmem:[%s204 + $0x1d1] sm:$0xff]
  %v3884 = vld [vmem:[%s204 + $0x1e1] sm:$0xff]
  %v3885 = vld [vmem:[%s204 + $0x1e9] sm:$0xff]
  %v3886 = vld [vmem:[%s204 + $0x1f9] sm:$0xff]
  %v3887 = vld [vmem:[%s204 + $0x201] sm:$0xff]
  %v3888 = vld [vmem:[%s204 + $0x211] sm:$0xff]
  %v3889 = vld [vmem:[%s204 + $0x219] sm:$0xff]
  %v3890 = vld [vmem:[%s204 + $0x229] sm:$0xff]
  %v3891 = vld [vmem:[%s204 + $0x231] sm:$0xff]
  %v3892 = vld [vmem:[%s204 + $0x241] sm:$0xff]
  %v3893 = vld [vmem:[%s204 + $0x249] sm:$0xff]
  %v3894 = vld [vmem:[%s204 + $0x259] sm:$0xff]
  %v3895 = vld [vmem:[%s204 + $0x261] sm:$0xff]
  %v3896 = vld [vmem:[%s204 + $0x271] sm:$0xff]
  %v3897 = vld [vmem:[%s204 + $0x279] sm:$0xff]
  %v3898 = vld [vmem:[%s204 + $0x289] sm:$0xff]
  %v3899 = vld [vmem:[%s204 + $0x291] sm:$0xff]
  %v3900 = vld [vmem:[%s204 + $0x2a1] sm:$0xff]
  %v3901 = vld [vmem:[%s204 + $0x2a9] sm:$0xff]
  %v3902 = vld [vmem:[%s204 + $0x2b9] sm:$0xff]
  %v3903 = vld [vmem:[%s204 + $0x2c1] sm:$0xff]
  %v3904 = vld [vmem:[%s204 + $0x2d1] sm:$0xff]
  %v3905 = vld [vmem:[%s204 + $0x2d9] sm:$0xff]
  %v3906 = vld [vmem:[%s204 + $0x2e9] sm:$0xff]
  %v3907 = vld [vmem:[%s204 + $0x2f1] sm:$0xff]
  %v3908 = vld [vmem:[%s204 + $0x301] sm:$0xff]
  %v3909 = vld [vmem:[%s204 + $0x309] sm:$0xff]
  %v3910 = vld [vmem:[%s204 + $0x319] sm:$0xff]
  %v3911 = vld [vmem:[%s204 + $0x321] sm:$0xff]
  %v3912 = vld [vmem:[%s204 + $0x2] sm:$0xff]
  %v3913 = vld [vmem:[%s204 + $0xa] sm:$0xff]
  %v3914 = vld [vmem:[%s204 + $0x1a] sm:$0xff]
  %v3915 = vld [vmem:[%s204 + $0x22] sm:$0xff]
  %v3916 = vld [vmem:[%s204 + $0x32] sm:$0xff]
  %v3917 = vld [vmem:[%s204 + $0x3a] sm:$0xff]
  %v3918 = vld [vmem:[%s204 + $0x4a] sm:$0xff]
  %v3919 = vld [vmem:[%s204 + $0x52] sm:$0xff]
  %v3920 = vld [vmem:[%s204 + $0x62] sm:$0xff]
  %v3921 = vld [vmem:[%s204 + $0x6a] sm:$0xff]
  %v3922 = vld [vmem:[%s204 + $0x7a] sm:$0xff]
  %v3923 = vld [vmem:[%s204 + $0x82] sm:$0xff]
  %v3924 = vld [vmem:[%s204 + $0x92] sm:$0xff]
  %v3925 = vld [vmem:[%s204 + $0x9a] sm:$0xff]
  %v3926 = vld [vmem:[%s204 + $0xaa] sm:$0xff]
  %v3927 = vld [vmem:[%s204 + $0xb2] sm:$0xff]
  %v3928 = vld [vmem:[%s204 + $0xc2] sm:$0xff]
  %v3929 = vld [vmem:[%s204 + $0xca] sm:$0xff]
  %v3930 = vld [vmem:[%s204 + $0xda] sm:$0xff]
  %v3931 = vld [vmem:[%s204 + $0xe2] sm:$0xff]
  %v3932 = vld [vmem:[%s204 + $0xf2] sm:$0xff]
  %v3933 = vld [vmem:[%s204 + $0xfa] sm:$0xff]
  %v3934 = vld [vmem:[%s204 + $0x10a] sm:$0xff]
  %v3935 = vld [vmem:[%s204 + $0x112] sm:$0xff]
  %v3936 = vld [vmem:[%s204 + $0x122] sm:$0xff]
  %v3937 = vld [vmem:[%s204 + $0x12a] sm:$0xff]
  %v3938 = vld [vmem:[%s204 + $0x13a] sm:$0xff]
  %v3939 = vld [vmem:[%s204 + $0x142] sm:$0xff]
  %v3940 = vld [vmem:[%s204 + $0x152] sm:$0xff]
  %v3941 = vld [vmem:[%s204 + $0x15a] sm:$0xff]
  %v3942 = vld [vmem:[%s204 + $0x16a] sm:$0xff]
  %v3943 = vld [vmem:[%s204 + $0x172] sm:$0xff]
  %v3944 = vld [vmem:[%s204 + $0x1b2] sm:$0xff]
  %v3945 = vld [vmem:[%s204 + $0x1ba] sm:$0xff]
  %v3946 = vld [vmem:[%s204 + $0x1ca] sm:$0xff]
  %v3947 = vld [vmem:[%s204 + $0x1d2] sm:$0xff]
  %v3948 = vld [vmem:[%s204 + $0x1e2] sm:$0xff]
  %v3949 = vld [vmem:[%s204 + $0x1ea] sm:$0xff]
  %v3950 = vld [vmem:[%s204 + $0x1fa] sm:$0xff]
  %v3951 = vld [vmem:[%s204 + $0x202] sm:$0xff]
  %v3952 = vld [vmem:[%s204 + $0x212] sm:$0xff]
  %v3953 = vld [vmem:[%s204 + $0x21a] sm:$0xff]
  %v3954 = vld [vmem:[%s204 + $0x22a] sm:$0xff]
  %v3955 = vld [vmem:[%s204 + $0x232] sm:$0xff]
  %v3956 = vld [vmem:[%s204 + $0x242] sm:$0xff]
  %v3957 = vld [vmem:[%s204 + $0x24a] sm:$0xff]
  %v3958 = vld [vmem:[%s204 + $0x25a] sm:$0xff]
  %v3959 = vld [vmem:[%s204 + $0x262] sm:$0xff]
  %v3960 = vld [vmem:[%s204 + $0x272] sm:$0xff]
  %v3961 = vld [vmem:[%s204 + $0x27a] sm:$0xff]
  %v3962 = vld [vmem:[%s204 + $0x28a] sm:$0xff]
  %v3963 = vld [vmem:[%s204 + $0x292] sm:$0xff]
  %v3964 = vld [vmem:[%s204 + $0x2a2] sm:$0xff]
  %v3965 = vld [vmem:[%s204 + $0x2aa] sm:$0xff]
  %v3966 = vld [vmem:[%s204 + $0x2ba] sm:$0xff]
  %v3967 = vld [vmem:[%s204 + $0x2c2] sm:$0xff]
  %v3968 = vld [vmem:[%s204 + $0x2d2] sm:$0xff]
  %v3969 = vld [vmem:[%s204 + $0x2da] sm:$0xff]
  %v3970 = vld [vmem:[%s204 + $0x2ea] sm:$0xff]
  %v3971 = vld [vmem:[%s204 + $0x2f2] sm:$0xff]
  %v3972 = vld [vmem:[%s204 + $0x302] sm:$0xff]
  %v3973 = vld [vmem:[%s204 + $0x30a] sm:$0xff]
  %v3974 = vld [vmem:[%s204 + $0x31a] sm:$0xff]
  %v3975 = vld [vmem:[%s204 + $0x322] sm:$0xff]
  %v3976 = vld [vmem:[%s653] sm:$0xff]
  %v3977 = vld [vmem:[%s653 + $0x8] sm:$0xff]
  %v3978 = vld [vmem:[%s653 + $0x18] sm:$0xff]
  %v3979 = vld [vmem:[%s653 + $0x20] sm:$0xff]
  %v3980 = vld [vmem:[%s653 + $0x30] sm:$0xff]
  %v3981 = vld [vmem:[%s653 + $0x38] sm:$0xff]
  %v3982 = vld [vmem:[%s653 + $0x48] sm:$0xff]
  %v3983 = vld [vmem:[%s653 + $0x50] sm:$0xff]
  %v3984 = vld [vmem:[%s653 + $0x60] sm:$0xff]
  %v3985 = vld [vmem:[%s653 + $0x68] sm:$0xff]
  %v3986 = vld [vmem:[%s653 + $0x78] sm:$0xff]
  %v3987 = vld [vmem:[%s653 + $0x80] sm:$0xff]
  %v3988 = vld [vmem:[%s653 + $0x90] sm:$0xff]
  %v3989 = vld [vmem:[%s653 + $0x98] sm:$0xff]
  %v3990 = vld [vmem:[%s653 + $0xa8] sm:$0xff]
  %v3991 = vld [vmem:[%s653 + $0xb0] sm:$0xff]
  %v3992 = vld [vmem:[%s653 + $0xc0] sm:$0xff]
  %v3993 = vld [vmem:[%s653 + $0xc8] sm:$0xff]
  %v3994 = vld [vmem:[%s653 + $0xd8] sm:$0xff]
  %v3995 = vld [vmem:[%s653 + $0xe0] sm:$0xff]
  %v3996 = vld [vmem:[%s653 + $0xf0] sm:$0xff]
  %v3997 = vld [vmem:[%s653 + $0xf8] sm:$0xff]
  %v3998 = vld [vmem:[%s653 + $0x108] sm:$0xff]
  %v3999 = vld [vmem:[%s653 + $0x110] sm:$0xff]
  %v4000 = vld [vmem:[%s653 + $0x120] sm:$0xff]
  %v4001 = vld [vmem:[%s653 + $0x128] sm:$0xff]
  %v4002 = vld [vmem:[%s653 + $0x138] sm:$0xff]
  %v4003 = vld [vmem:[%s653 + $0x140] sm:$0xff]
  %v4004 = vld [vmem:[%s653 + $0x150] sm:$0xff]
  %v4005 = vld [vmem:[%s653 + $0x158] sm:$0xff]
  %v4006 = vld [vmem:[%s653 + $0x168] sm:$0xff]
  %v4007 = vld [vmem:[%s653 + $0x170] sm:$0xff]
  %v4008 = vld [vmem:[%s653 + $0x1b0] sm:$0xff]
  %v4009 = vld [vmem:[%s653 + $0x1b8] sm:$0xff]
  %v4010 = vld [vmem:[%s653 + $0x1c8] sm:$0xff]
  %v4011 = vld [vmem:[%s653 + $0x1d0] sm:$0xff]
  %v4012 = vld [vmem:[%s653 + $0x1e0] sm:$0xff]
  %v4013 = vld [vmem:[%s653 + $0x1e8] sm:$0xff]
  %v4014 = vld [vmem:[%s653 + $0x1f8] sm:$0xff]
  %v4015 = vld [vmem:[%s653 + $0x200] sm:$0xff]
  %v4016 = vld [vmem:[%s653 + $0x210] sm:$0xff]
  %v4017 = vld [vmem:[%s653 + $0x218] sm:$0xff]
  %v4018 = vld [vmem:[%s653 + $0x228] sm:$0xff]
  %v4019 = vld [vmem:[%s653 + $0x230] sm:$0xff]
  %v4020 = vld [vmem:[%s653 + $0x240] sm:$0xff]
  %v4021 = vld [vmem:[%s653 + $0x248] sm:$0xff]
  %v4022 = vld [vmem:[%s653 + $0x258] sm:$0xff]
  %v4023 = vld [vmem:[%s653 + $0x260] sm:$0xff]
  %v4024 = vld [vmem:[%s653 + $0x270] sm:$0xff]
  %v4025 = vld [vmem:[%s653 + $0x278] sm:$0xff]
  %v4026 = vld [vmem:[%s653 + $0x288] sm:$0xff]
  %v4027 = vld [vmem:[%s653 + $0x290] sm:$0xff]
  %v4028 = vld [vmem:[%s653 + $0x2a0] sm:$0xff]
  %v4029 = vld [vmem:[%s653 + $0x2a8] sm:$0xff]
  %v4030 = vld [vmem:[%s653 + $0x2b8] sm:$0xff]
  %v4031 = vld [vmem:[%s653 + $0x2c0] sm:$0xff]
  %v4032 = vld [vmem:[%s653 + $0x2d0] sm:$0xff]
  %v4033 = vld [vmem:[%s653 + $0x2d8] sm:$0xff]
  %v4034 = vld [vmem:[%s653 + $0x2e8] sm:$0xff]
  %v4035 = vld [vmem:[%s653 + $0x2f0] sm:$0xff]
  %v4036 = vld [vmem:[%s653 + $0x300] sm:$0xff]
  %v4037 = vld [vmem:[%s653 + $0x308] sm:$0xff]
  %v4038 = vld [vmem:[%s653 + $0x318] sm:$0xff]
  %v4039 = vld [vmem:[%s653 + $0x320] sm:$0xff]
  %v4040 = vld [vmem:[%s653 + $0x1] sm:$0xff]
  %v4041 = vld [vmem:[%s653 + $0x9] sm:$0xff]
  %v4042 = vld [vmem:[%s653 + $0x19] sm:$0xff]
  %v4043 = vld [vmem:[%s653 + $0x21] sm:$0xff]
  %v4044 = vld [vmem:[%s653 + $0x31] sm:$0xff]
  %v4045 = vld [vmem:[%s653 + $0x39] sm:$0xff]
  %v4046 = vld [vmem:[%s653 + $0x49] sm:$0xff]
  %v4047 = vld [vmem:[%s653 + $0x51] sm:$0xff]
  %v4048 = vld [vmem:[%s653 + $0x61] sm:$0xff]
  %v4049 = vld [vmem:[%s653 + $0x69] sm:$0xff]
  %v4050 = vld [vmem:[%s653 + $0x79] sm:$0xff]
  %v4051 = vld [vmem:[%s653 + $0x81] sm:$0xff]
  %v4052 = vld [vmem:[%s653 + $0x91] sm:$0xff]
  %v4053 = vld [vmem:[%s653 + $0x99] sm:$0xff]
  %v4054 = vld [vmem:[%s653 + $0xa9] sm:$0xff]
  %v4055 = vld [vmem:[%s653 + $0xb1] sm:$0xff]
  %v4056 = vld [vmem:[%s653 + $0xc1] sm:$0xff]
  %v4057 = vld [vmem:[%s653 + $0xc9] sm:$0xff]
  %v4058 = vld [vmem:[%s653 + $0xd9] sm:$0xff]
  %v4059 = vld [vmem:[%s653 + $0xe1] sm:$0xff]
  %v4060 = vld [vmem:[%s653 + $0xf1] sm:$0xff]
  %v4061 = vld [vmem:[%s653 + $0xf9] sm:$0xff]
  %v4062 = vld [vmem:[%s653 + $0x109] sm:$0xff]
  %v4063 = vld [vmem:[%s653 + $0x111] sm:$0xff]
  %v4064 = vld [vmem:[%s653 + $0x121] sm:$0xff]
  %v4065 = vld [vmem:[%s653 + $0x129] sm:$0xff]
  %v4066 = vld [vmem:[%s653 + $0x139] sm:$0xff]
  %v4067 = vld [vmem:[%s653 + $0x141] sm:$0xff]
  %v4068 = vld [vmem:[%s653 + $0x151] sm:$0xff]
  %v4069 = vld [vmem:[%s653 + $0x159] sm:$0xff]
  %v4070 = vld [vmem:[%s653 + $0x169] sm:$0xff]
  %v4071 = vld [vmem:[%s653 + $0x171] sm:$0xff]
  %v4072 = vld [vmem:[%s653 + $0x1b1] sm:$0xff]
  %v4073 = vld [vmem:[%s653 + $0x1b9] sm:$0xff]
  %v4074 = vld [vmem:[%s653 + $0x1c9] sm:$0xff]
  %v4075 = vld [vmem:[%s653 + $0x1d1] sm:$0xff]
  %v4076 = vld [vmem:[%s653 + $0x1e1] sm:$0xff]
  %v4077 = vld [vmem:[%s653 + $0x1e9] sm:$0xff]
  %v4078 = vld [vmem:[%s653 + $0x1f9] sm:$0xff]
  %v4079 = vld [vmem:[%s653 + $0x201] sm:$0xff]
  %v4080 = vld [vmem:[%s653 + $0x211] sm:$0xff]
  %v4081 = vld [vmem:[%s653 + $0x219] sm:$0xff]
  %v4082 = vld [vmem:[%s653 + $0x229] sm:$0xff]
  %v4083 = vld [vmem:[%s653 + $0x231] sm:$0xff]
  %v4084 = vld [vmem:[%s653 + $0x241] sm:$0xff]
  %v4085 = vld [vmem:[%s653 + $0x249] sm:$0xff]
  %v4086 = vld [vmem:[%s653 + $0x259] sm:$0xff]
  %v4087 = vld [vmem:[%s653 + $0x261] sm:$0xff]
  %v4088 = vld [vmem:[%s653 + $0x271] sm:$0xff]
  %v4089 = vld [vmem:[%s653 + $0x279] sm:$0xff]
  %v4090 = vld [vmem:[%s653 + $0x289] sm:$0xff]
  %v4091 = vld [vmem:[%s653 + $0x291] sm:$0xff]
  %v4092 = vld [vmem:[%s653 + $0x2a1] sm:$0xff]
  %v4093 = vld [vmem:[%s653 + $0x2a9] sm:$0xff]
  %v4094 = vld [vmem:[%s653 + $0x2b9] sm:$0xff]
  %v4095 = vld [vmem:[%s653 + $0x2c1] sm:$0xff]
  %v4096 = vld [vmem:[%s653 + $0x2d1] sm:$0xff]
  %v4097 = vld [vmem:[%s653 + $0x2d9] sm:$0xff]
  %v4098 = vld [vmem:[%s653 + $0x2e9] sm:$0xff]
  %v4099 = vld [vmem:[%s653 + $0x2f1] sm:$0xff]
  %v4100 = vld [vmem:[%s653 + $0x301] sm:$0xff]
  %v4101 = vld [vmem:[%s653 + $0x309] sm:$0xff]
  %v4102 = vld [vmem:[%s653 + $0x319] sm:$0xff]
  %v4103 = vld [vmem:[%s653 + $0x321] sm:$0xff]
  %v4104 = vld [vmem:[%s653 + $0x2] sm:$0xff]
  %v4105 = vld [vmem:[%s653 + $0xa] sm:$0xff]
  %v4106 = vld [vmem:[%s653 + $0x1a] sm:$0xff]
  %v4107 = vld [vmem:[%s653 + $0x22] sm:$0xff]
  %v4108 = vld [vmem:[%s653 + $0x32] sm:$0xff]
  %v4109 = vld [vmem:[%s653 + $0x3a] sm:$0xff]
  %v4110 = vld [vmem:[%s653 + $0x4a] sm:$0xff]
  %v4111 = vld [vmem:[%s653 + $0x52] sm:$0xff]
  %v4112 = vld [vmem:[%s653 + $0x62] sm:$0xff]
  %v4113 = vld [vmem:[%s653 + $0x6a] sm:$0xff]
  %v4114 = vld [vmem:[%s653 + $0x7a] sm:$0xff]
  %v4115 = vld [vmem:[%s653 + $0x82] sm:$0xff]
  %v4116 = vld [vmem:[%s653 + $0x92] sm:$0xff]
  %v4117 = vld [vmem:[%s653 + $0x9a] sm:$0xff]
  %v4118 = vld [vmem:[%s653 + $0xaa] sm:$0xff]
  %v4119 = vld [vmem:[%s653 + $0xb2] sm:$0xff]
  %v4120 = vld [vmem:[%s653 + $0xc2] sm:$0xff]
  %v4121 = vld [vmem:[%s653 + $0xca] sm:$0xff]
  %v4122 = vld [vmem:[%s653 + $0xda] sm:$0xff]
  %v4123 = vld [vmem:[%s653 + $0xe2] sm:$0xff]
  %v4124 = vld [vmem:[%s653 + $0xf2] sm:$0xff]
  %v4125 = vld [vmem:[%s653 + $0xfa] sm:$0xff]
  %v4126 = vld [vmem:[%s653 + $0x10a] sm:$0xff]
  %v4127 = vld [vmem:[%s653 + $0x112] sm:$0xff]
  %v4128 = vld [vmem:[%s653 + $0x122] sm:$0xff]
  %v4129 = vld [vmem:[%s653 + $0x12a] sm:$0xff]
  %v4130 = vld [vmem:[%s653 + $0x13a] sm:$0xff]
  %v4131 = vld [vmem:[%s653 + $0x142] sm:$0xff]
  %v4132 = vld [vmem:[%s653 + $0x152] sm:$0xff]
  %v4133 = vld [vmem:[%s653 + $0x15a] sm:$0xff]
  %v4134 = vld [vmem:[%s653 + $0x16a] sm:$0xff]
  %v4135 = vld [vmem:[%s653 + $0x172] sm:$0xff]
  %v4136 = vld [vmem:[%s653 + $0x1b2] sm:$0xff]
  %v4137 = vld [vmem:[%s653 + $0x1ba] sm:$0xff]
  %v4138 = vld [vmem:[%s653 + $0x1ca] sm:$0xff]
  %v4139 = vld [vmem:[%s653 + $0x1d2] sm:$0xff]
  %v4140 = vld [vmem:[%s653 + $0x1e2] sm:$0xff]
  %v4141 = vld [vmem:[%s653 + $0x1ea] sm:$0xff]
  %v4142 = vld [vmem:[%s653 + $0x1fa] sm:$0xff]
  %v4143 = vld [vmem:[%s653 + $0x202] sm:$0xff]
  %v4144 = vld [vmem:[%s653 + $0x212] sm:$0xff]
  %v4145 = vld [vmem:[%s653 + $0x21a] sm:$0xff]
  %v4146 = vld [vmem:[%s653 + $0x22a] sm:$0xff]
  %v4147 = vld [vmem:[%s653 + $0x232] sm:$0xff]
  %v4148 = vld [vmem:[%s653 + $0x242] sm:$0xff]
  %v4149 = vld [vmem:[%s653 + $0x24a] sm:$0xff]
  %v4150 = vld [vmem:[%s653 + $0x25a] sm:$0xff]
  %v4151 = vld [vmem:[%s653 + $0x262] sm:$0xff]
  %v4152 = vld [vmem:[%s653 + $0x272] sm:$0xff]
  %v4153 = vld [vmem:[%s653 + $0x27a] sm:$0xff]
  %v4154 = vld [vmem:[%s653 + $0x28a] sm:$0xff]
  %v4155 = vld [vmem:[%s653 + $0x292] sm:$0xff]
  %v4156 = vld [vmem:[%s653 + $0x2a2] sm:$0xff]
  %v4157 = vld [vmem:[%s653 + $0x2aa] sm:$0xff]
  %v4158 = vld [vmem:[%s653 + $0x2ba] sm:$0xff]
  %v4159 = vld [vmem:[%s653 + $0x2c2] sm:$0xff]
  %v4160 = vld [vmem:[%s653 + $0x2d2] sm:$0xff]
  %v4161 = vld [vmem:[%s653 + $0x2da] sm:$0xff]
  %v4162 = vld [vmem:[%s653 + $0x2ea] sm:$0xff]
  %v4163 = vld [vmem:[%s653 + $0x2f2] sm:$0xff]
  %v4164 = vld [vmem:[%s653 + $0x302] sm:$0xff]
  %v4165 = vld [vmem:[%s653 + $0x30a] sm:$0xff]
  %v4166 = vld [vmem:[%s653 + $0x31a] sm:$0xff]
  %v4167 = vld [vmem:[%s653 + $0x322] sm:$0xff]
  %v4168 = vld [vmem:[%s5] sm:$0xff]
  %v4169 = vld [vmem:[%s5 + $0x8] sm:$0xff]
  %v4170 = vld [vmem:[%s5 + $0x10] sm:$0xff]
  %v4171 = vld [vmem:[%s5 + $0x18] sm:$0xff]
  %v4172 = vld [vmem:[%s5 + $0x20] sm:$0xff]
  %v4173 = vld [vmem:[%s5 + $0x28] sm:$0xff]
  %v4174 = vld [vmem:[%s5 + $0x30] sm:$0xff]
  %v4175 = vld [vmem:[%s5 + $0x38] sm:$0xff]
  %v4176 = vld [vmem:[%s5 + $0x40] sm:$0xff]
  %v4177 = vld [vmem:[%s5 + $0x48] sm:$0xff]
  %v4178 = vld [vmem:[%s5 + $0x50] sm:$0xff]
  %v4179 = vld [vmem:[%s5 + $0x58] sm:$0xff]
  %v4180 = vld [vmem:[%s5 + $0x60] sm:$0xff]
  %v4181 = vld [vmem:[%s5 + $0x68] sm:$0xff]
  %v4182 = vld [vmem:[%s5 + $0x70] sm:$0xff]
  %v4183 = vld [vmem:[%s5 + $0x78] sm:$0xff]
  %v4184 = vld [vmem:[%s5 + $0x80] sm:$0xff]
  %v4185 = vld [vmem:[%s5 + $0x88] sm:$0xff]
  %v4186 = vld [vmem:[%s5 + $0x90] sm:$0xff]
  %v4187 = vld [vmem:[%s5 + $0x98] sm:$0xff]
  %v4188 = vld [vmem:[%s5 + $0xa0] sm:$0xff]
  %v4189 = vld [vmem:[%s5 + $0xa8] sm:$0xff]
  %v4190 = vld [vmem:[%s5 + $0xb0] sm:$0xff]
  %v4191 = vld [vmem:[%s5 + $0xb8] sm:$0xff]
  %v4192 = vld [vmem:[%s5 + $0xc0] sm:$0xff]
  %v4193 = vld [vmem:[%s5 + $0xc8] sm:$0xff]
  %v4194 = vld [vmem:[%s5 + $0xd0] sm:$0xff]
  %v4195 = vld [vmem:[%s5 + $0xd8] sm:$0xff]
  %v4196 = vld [vmem:[%s5 + $0xe0] sm:$0xff]
  %v4197 = vld [vmem:[%s5 + $0xe8] sm:$0xff]
  %v4198 = vld [vmem:[%s5 + $0xf0] sm:$0xff]
  %v4199 = vld [vmem:[%s5 + $0xf8] sm:$0xff]
  %v4200 = vld [vmem:[%s5 + $0x100] sm:$0xff]
  %v4201 = vld [vmem:[%s5 + $0x108] sm:$0xff]
  %v4202 = vld [vmem:[%s5 + $0x110] sm:$0xff]
  %v4203 = vld [vmem:[%s5 + $0x118] sm:$0xff]
  %v4204 = vld [vmem:[%s5 + $0x120] sm:$0xff]
  %v4205 = vld [vmem:[%s5 + $0x128] sm:$0xff]
  %v4206 = vld [vmem:[%s5 + $0x130] sm:$0xff]
  %v4207 = vld [vmem:[%s5 + $0x138] sm:$0xff]
  %v4208 = vld [vmem:[%s5 + $0x140] sm:$0xff]
  %v4209 = vld [vmem:[%s5 + $0x148] sm:$0xff]
  %v4210 = vld [vmem:[%s5 + $0x150] sm:$0xff]
  %v4211 = vld [vmem:[%s5 + $0x158] sm:$0xff]
  %v4212 = vld [vmem:[%s5 + $0x160] sm:$0xff]
  %v4213 = vld [vmem:[%s5 + $0x168] sm:$0xff]
  %v4214 = vld [vmem:[%s5 + $0x170] sm:$0xff]
  %v4215 = vld [vmem:[%s5 + $0x178] sm:$0xff]
  %v4216 = vld [vmem:[%s5 + $0x180] sm:$0xff]
  %v4217 = vld [vmem:[%s5 + $0x188] sm:$0xff]
  %v4218 = vld [vmem:[%s5 + $0x190] sm:$0xff]
  %v4219 = vld [vmem:[%s5 + $0x198] sm:$0xff]
  %v4220 = vld [vmem:[%s5 + $0x1a0] sm:$0xff]
  %v4221 = vld [vmem:[%s5 + $0x1a8] sm:$0xff]
  %v4222 = vld [vmem:[%s5 + $0x1b0] sm:$0xff]
  %v4223 = vld [vmem:[%s5 + $0x1b8] sm:$0xff]
  %v4224 = vld [vmem:[%s5 + $0x1c0] sm:$0xff]
  %v4225 = vld [vmem:[%s5 + $0x1c8] sm:$0xff]
  %v4226 = vld [vmem:[%s5 + $0x1d0] sm:$0xff]
  %v4227 = vld [vmem:[%s5 + $0x1d8] sm:$0xff]
  %v4228 = vld [vmem:[%s5 + $0x1e0] sm:$0xff]
  %v4229 = vld [vmem:[%s5 + $0x1e8] sm:$0xff]
  %v4230 = vld [vmem:[%s5 + $0x1f0] sm:$0xff]
  %v4231 = vld [vmem:[%s5 + $0x1f8] sm:$0xff]
  %v4232 = vld [vmem:[%s5 + $0x200] sm:$0xff]
  %v4233 = vld [vmem:[%s5 + $0x208] sm:$0xff]
  %v4234 = vld [vmem:[%s5 + $0x210] sm:$0xff]
  %v4235 = vld [vmem:[%s5 + $0x218] sm:$0xff]
  %v4236 = vld [vmem:[%s5 + $0x220] sm:$0xff]
  %v4237 = vld [vmem:[%s5 + $0x228] sm:$0xff]
  %v4238 = vld [vmem:[%s5 + $0x230] sm:$0xff]
  %v4239 = vld [vmem:[%s5 + $0x238] sm:$0xff]
  %v4240 = vld [vmem:[%s5 + $0x240] sm:$0xff]
  %v4241 = vld [vmem:[%s5 + $0x248] sm:$0xff]
  %v4242 = vld [vmem:[%s5 + $0x250] sm:$0xff]
  %v4243 = vld [vmem:[%s5 + $0x258] sm:$0xff]
  %v4244 = vld [vmem:[%s5 + $0x260] sm:$0xff]
  %v4245 = vld [vmem:[%s5 + $0x268] sm:$0xff]
  %v4246 = vld [vmem:[%s5 + $0x270] sm:$0xff]
  %v4247 = vld [vmem:[%s5 + $0x278] sm:$0xff]
  %v4248 = vld [vmem:[%s5 + $0x280] sm:$0xff]
  %v4249 = vld [vmem:[%s5 + $0x288] sm:$0xff]
  %v4250 = vld [vmem:[%s5 + $0x290] sm:$0xff]
  %v4251 = vld [vmem:[%s5 + $0x298] sm:$0xff]
  %v4252 = vld [vmem:[%s5 + $0x2a0] sm:$0xff]
  %v4253 = vld [vmem:[%s5 + $0x2a8] sm:$0xff]
  %v4254 = vld [vmem:[%s5 + $0x2b0] sm:$0xff]
  %v4255 = vld [vmem:[%s5 + $0x2b8] sm:$0xff]
  %v4256 = vld [vmem:[%s5 + $0x2c0] sm:$0xff]
  %v4257 = vld [vmem:[%s5 + $0x2c8] sm:$0xff]
  %v4258 = vld [vmem:[%s5 + $0x2d0] sm:$0xff]
  %v4259 = vld [vmem:[%s5 + $0x2d8] sm:$0xff]
  %v4260 = vld [vmem:[%s5 + $0x2e0] sm:$0xff]
  %v4261 = vld [vmem:[%s5 + $0x2e8] sm:$0xff]
  %v4262 = vld [vmem:[%s5 + $0x2f0] sm:$0xff]
  %v4263 = vld [vmem:[%s5 + $0x2f8] sm:$0xff]
  %v4264 = vld [vmem:[%s5 + $0x300] sm:$0xff]
  %v4265 = vld [vmem:[%s5 + $0x308] sm:$0xff]
  %v4266 = vld [vmem:[%s5 + $0x310] sm:$0xff]
  %v4267 = vld [vmem:[%s5 + $0x318] sm:$0xff]
  %v4268 = vld [vmem:[%s5 + $0x320] sm:$0xff]
  %v4269 = vld [vmem:[%s5 + $0x328] sm:$0xff]
  %v4270 = vld [vmem:[%s5 + $0x330] sm:$0xff]
  %v4271 = vld [vmem:[%s5 + $0x338] sm:$0xff]
  %v4272 = vld [vmem:[%s5 + $0x340] sm:$0xff]
  %v4273 = vld [vmem:[%s5 + $0x348] sm:$0xff]
  %v4274 = vld [vmem:[%s5 + $0x350] sm:$0xff]
  %v4275 = vld [vmem:[%s5 + $0x358] sm:$0xff]
  %v4276 = vld [vmem:[%s5 + $0x360] sm:$0xff]
  %v4277 = vld [vmem:[%s5 + $0x368] sm:$0xff]
  %v4278 = vld [vmem:[%s5 + $0x370] sm:$0xff]
  %v4279 = vld [vmem:[%s5 + $0x378] sm:$0xff]
  %v4280 = vld [vmem:[%s5 + $0x380] sm:$0xff]
  %v4281 = vld [vmem:[%s5 + $0x388] sm:$0xff]
  %v4282 = vld [vmem:[%s5 + $0x390] sm:$0xff]
  %v4283 = vld [vmem:[%s5 + $0x398] sm:$0xff]
  %v4284 = vld [vmem:[%s5 + $0x3a0] sm:$0xff]
  %v4285 = vld [vmem:[%s5 + $0x3a8] sm:$0xff]
  %v4286 = vld [vmem:[%s5 + $0x3b0] sm:$0xff]
  %v4287 = vld [vmem:[%s5 + $0x3b8] sm:$0xff]
  %v4288 = vld [vmem:[%s5 + $0x3c0] sm:$0xff]
  %v4289 = vld [vmem:[%s5 + $0x3c8] sm:$0xff]
  %v4290 = vld [vmem:[%s5 + $0x3d0] sm:$0xff]
  %v4291 = vld [vmem:[%s5 + $0x3d8] sm:$0xff]
  %v4292 = vld [vmem:[%s5 + $0x3e0] sm:$0xff]
  %v4293 = vld [vmem:[%s5 + $0x3e8] sm:$0xff]
  %v4294 = vld [vmem:[%s5 + $0x3f0] sm:$0xff]
  %v4295 = vld [vmem:[%s5 + $0x3f8] sm:$0xff]
  %v4296 = vld [vmem:[%s5 + $0x400] sm:$0xff]
  %v4297 = vld [vmem:[%s5 + $0x408] sm:$0xff]
  %v4298 = vld [vmem:[%s5 + $0x410] sm:$0xff]
  %v4299 = vld [vmem:[%s5 + $0x418] sm:$0xff]
  %v4300 = vld [vmem:[%s5 + $0x420] sm:$0xff]
  %v4301 = vld [vmem:[%s5 + $0x428] sm:$0xff]
  %v4302 = vld [vmem:[%s5 + $0x430] sm:$0xff]
  %v4303 = vld [vmem:[%s5 + $0x438] sm:$0xff]
  %v4304 = vld [vmem:[%s5 + $0x440] sm:$0xff]
  %v4305 = vld [vmem:[%s5 + $0x448] sm:$0xff]
  %v4306 = vld [vmem:[%s5 + $0x450] sm:$0xff]
  %v4307 = vld [vmem:[%s5 + $0x458] sm:$0xff]
  %v4308 = vld [vmem:[%s5 + $0x460] sm:$0xff]
  %v4309 = vld [vmem:[%s5 + $0x468] sm:$0xff]
  %v4310 = vld [vmem:[%s5 + $0x470] sm:$0xff]
  %v4311 = vld [vmem:[%s5 + $0x478] sm:$0xff]
  %v4312 = vld [vmem:[%s6] sm:$0x1]
  %v4314 = vlaneseq
  %v4315 = vshrl.u32 %v4314, 7
  %v4316 = vsub.s32 0, %v4315
  %v4317 = vrot.slane %v4312, %v4316
  %4319 = vmatprep.subr.mxu0 0.0
  %4320 = vmatpush1.msra.mxu0 %v4183
  %4321 = vmatprep.subr.mxu0 0.0
  %4322 = vmatpush1.msra.mxu0 %v4182
  %4323 = vmatprep.subr.mxu0 0.0
  %4324 = vmatpush1.msra.mxu0 %v4181
  %4325 = vmatprep.subr.mxu0 0.0
  %4326 = vmatpush1.msra.mxu0 %v4180
  %4327 = vmatprep.subr.mxu0 0.0
  %4328 = vmatpush1.msra.mxu0 %v4179
  %4329 = vmatprep.subr.mxu0 0.0
  %4330 = vmatpush1.msra.mxu0 %v4178
  %4331 = vmatprep.subr.mxu0 0.0
  %4332 = vmatpush1.msra.mxu0 %v4177
  %4333 = vmatprep.subr.mxu0 0.0
  %4334 = vmatpush1.msra.mxu0 %v4176
  %4335 = vmatprep.subr.mxu0 0.0
  %4336 = vmatpush1.msra.mxu0 %v4175
  %4337 = vmatprep.subr.mxu0 0.0
  %4338 = vmatpush1.msra.mxu0 %v4174
  %4339 = vmatprep.subr.mxu0 0.0
  %4340 = vmatpush1.msra.mxu0 %v4173
  %4341 = vmatprep.subr.mxu0 0.0
  %4342 = vmatpush1.msra.mxu0 %v4172
  %4343 = vmatprep.subr.mxu0 0.0
  %4344 = vmatpush1.msra.mxu0 %v4171
  %4345 = vmatprep.subr.mxu0 0.0
  %4346 = vmatpush1.msra.mxu0 %v4170
  %4347 = vmatprep.subr.mxu0 0.0
  %4348 = vmatpush1.msra.mxu0 %v4169
  %4349 = vmatprep.subr.mxu0 0.0
  %4350 = vmatpush1.msra.mxu0 %v4168
  %4351 = vmatprep.subr.mxu0 0.0
  %4352 = vmatpush2.msra.mxu0 %v4199
  %4353 = vmatprep.subr.mxu0 0.0
  %4354 = vmatpush2.msra.mxu0 %v4198
  %4355 = vmatprep.subr.mxu0 0.0
  %4356 = vmatpush2.msra.mxu0 %v4197
  %4357 = vmatprep.subr.mxu0 0.0
  %4358 = vmatpush2.msra.mxu0 %v4196
  %4359 = vmatprep.subr.mxu0 0.0
  %4360 = vmatpush2.msra.mxu0 %v4195
  %4361 = vmatprep.subr.mxu0 0.0
  %4362 = vmatpush2.msra.mxu0 %v4194
  %4363 = vmatprep.subr.mxu0 0.0
  %4364 = vmatpush2.msra.mxu0 %v4193
  %4365 = vmatprep.subr.mxu0 0.0
  %4366 = vmatpush2.msra.mxu0 %v4192
  %4367 = vmatprep.subr.mxu0 0.0
  %4368 = vmatpush2.msra.mxu0 %v4191
  %4369 = vmatprep.subr.mxu0 0.0
  %4370 = vmatpush2.msra.mxu0 %v4190
  %4371 = vmatprep.subr.mxu0 0.0
  %4372 = vmatpush2.msra.mxu0 %v4189
  %4373 = vmatprep.subr.mxu0 0.0
  %4374 = vmatpush2.msra.mxu0 %v4188
  %4375 = vmatprep.subr.mxu0 0.0
  %4376 = vmatpush2.msra.mxu0 %v4187
  %4377 = vmatprep.subr.mxu0 0.0
  %4378 = vmatpush2.msra.mxu0 %v4186
  %4379 = vmatprep.subr.mxu0 0.0
  %4380 = vmatpush2.msra.mxu0 %v4185
  %4381 = vmatprep.subr.mxu0 0.0
  %4382 = vmatpush2.msra.mxu0 %v4184
  %4383 = vmatprep.mubr.f32.mxu0 %v3656
  %4384 = vmatmul.mubr.f32.gmra.mxu0 %v3592
  %v4385 = vpop.f32.mrf.mxu0
  %v4386 = vadd.f32 %v4317, %v4385
  %v4387 = vpop.f32.mrf.mxu0
  %4388 = vmatprep.mubr.f32.mxu0 %v3657
  %4389 = vmatmul.mubr.f32.gmra.mxu0 %v3593
  %v4390 = vpop.f32.mrf.mxu0
  %v4391 = vadd.f32 %v4317, %v4390
  %v4392 = vpop.f32.mrf.mxu0
  %4393 = vmatprep.mubr.f32.mxu0 %v3658
  %4394 = vmatmul.mubr.f32.gmra.mxu0 %v3594
  %v4395 = vpop.f32.mrf.mxu0
  %v4396 = vadd.f32 %v4317, %v4395
  %v4397 = vpop.f32.mrf.mxu0
  %4398 = vmatprep.mubr.f32.mxu0 %v3659
  %4399 = vmatmul.mubr.f32.gmra.mxu0 %v3595
  %v4400 = vpop.f32.mrf.mxu0
  %v4401 = vadd.f32 %v4317, %v4400
  %v4402 = vpop.f32.mrf.mxu0
  %4403 = vmatprep.mubr.f32.mxu0 %v3660
  %4404 = vmatmul.mubr.f32.gmra.mxu0 %v3596
  %v4405 = vpop.f32.mrf.mxu0
  %v4406 = vadd.f32 %v4317, %v4405
  %v4407 = vpop.f32.mrf.mxu0
  %4408 = vmatprep.mubr.f32.mxu0 %v3661
  %4409 = vmatmul.mubr.f32.gmra.mxu0 %v3597
  %v4410 = vpop.f32.mrf.mxu0
  %v4411 = vadd.f32 %v4317, %v4410
  %v4412 = vpop.f32.mrf.mxu0
  %4413 = vmatprep.mubr.f32.mxu0 %v3662
  %4414 = vmatmul.mubr.f32.gmra.mxu0 %v3598
  %v4415 = vpop.f32.mrf.mxu0
  %v4416 = vadd.f32 %v4317, %v4415
  %v4417 = vpop.f32.mrf.mxu0
  %4418 = vmatprep.mubr.f32.mxu0 %v3663
  %4419 = vmatmul.mubr.f32.gmra.mxu0 %v3599
  %v4420 = vpop.f32.mrf.mxu0
  %v4421 = vadd.f32 %v4317, %v4420
  %v4422 = vpop.f32.mrf.mxu0
  %4423 = vmatprep.mubr.f32.mxu0 %v3664
  %4424 = vmatmul.mubr.f32.gmra.mxu0 %v3600
  %v4425 = vpop.f32.mrf.mxu0
  %v4426 = vadd.f32 %v4317, %v4425
  %v4427 = vpop.f32.mrf.mxu0
  %4428 = vmatprep.mubr.f32.mxu0 %v3665
  %4429 = vmatmul.mubr.f32.gmra.mxu0 %v3601
  %v4430 = vpop.f32.mrf.mxu0
  %v4431 = vadd.f32 %v4317, %v4430
  %v4432 = vpop.f32.mrf.mxu0
  %4433 = vmatprep.mubr.f32.mxu0 %v3666
  %4434 = vmatmul.mubr.f32.gmra.mxu0 %v3602
  %v4435 = vpop.f32.mrf.mxu0
  %v4436 = vadd.f32 %v4317, %v4435
  %v4437 = vpop.f32.mrf.mxu0
  %4438 = vmatprep.mubr.f32.mxu0 %v3667
  %4439 = vmatmul.mubr.f32.gmra.mxu0 %v3603
  %v4440 = vpop.f32.mrf.mxu0
  %v4441 = vadd.f32 %v4317, %v4440
  %v4442 = vpop.f32.mrf.mxu0
  %4443 = vmatprep.mubr.f32.mxu0 %v3668
  %4444 = vmatmul.mubr.f32.gmra.mxu0 %v3604
  %v4445 = vpop.f32.mrf.mxu0
  %v4446 = vadd.f32 %v4317, %v4445
  %v4447 = vpop.f32.mrf.mxu0
  %4448 = vmatprep.mubr.f32.mxu0 %v3669
  %4449 = vmatmul.mubr.f32.gmra.mxu0 %v3605
  %v4450 = vpop.f32.mrf.mxu0
  %v4451 = vadd.f32 %v4317, %v4450
  %v4452 = vpop.f32.mrf.mxu0
  %4453 = vmatprep.mubr.f32.mxu0 %v3670
  %4454 = vmatmul.mubr.f32.gmra.mxu0 %v3606
  %v4455 = vpop.f32.mrf.mxu0
  %v4456 = vadd.f32 %v4317, %v4455
  %v4457 = vpop.f32.mrf.mxu0
  %4458 = vmatprep.mubr.f32.mxu0 %v3671
  %4459 = vmatmul.mubr.f32.gmra.mxu0 %v3607
  %v4460 = vpop.f32.mrf.mxu0
  %v4461 = vadd.f32 %v4317, %v4460
  %v4462 = vpop.f32.mrf.mxu0
  %4463 = vmatprep.mubr.f32.mxu0 %v3672
  %4464 = vmatmul.mubr.f32.gmra.mxu0 %v3608
  %v4465 = vpop.f32.mrf.mxu0
  %v4466 = vadd.f32 %v4317, %v4465
  %v4467 = vpop.f32.mrf.mxu0
  %4468 = vmatprep.mubr.f32.mxu0 %v3673
  %4469 = vmatmul.mubr.f32.gmra.mxu0 %v3609
  %v4470 = vpop.f32.mrf.mxu0
  %v4471 = vadd.f32 %v4317, %v4470
  %v4472 = vpop.f32.mrf.mxu0
  %4473 = vmatprep.mubr.f32.mxu0 %v3674
  %4474 = vmatmul.mubr.f32.gmra.mxu0 %v3610
  %v4475 = vpop.f32.mrf.mxu0
  %v4476 = vadd.f32 %v4317, %v4475
  %v4477 = vpop.f32.mrf.mxu0
  %4478 = vmatprep.mubr.f32.mxu0 %v3675
  %4479 = vmatmul.mubr.f32.gmra.mxu0 %v3611
  %v4480 = vpop.f32.mrf.mxu0
  %v4481 = vadd.f32 %v4317, %v4480
  %v4482 = vpop.f32.mrf.mxu0
  %4483 = vmatprep.mubr.f32.mxu0 %v3676
  %4484 = vmatmul.mubr.f32.gmra.mxu0 %v3612
  %v4485 = vpop.f32.mrf.mxu0
  %v4486 = vadd.f32 %v4317, %v4485
  %v4487 = vpop.f32.mrf.mxu0
  %4488 = vmatprep.mubr.f32.mxu0 %v3677
  %4489 = vmatmul.mubr.f32.gmra.mxu0 %v3613
  %v4490 = vpop.f32.mrf.mxu0
  %v4491 = vadd.f32 %v4317, %v4490
  %v4492 = vpop.f32.mrf.mxu0
  %4493 = vmatprep.mubr.f32.mxu0 %v3678
  %4494 = vmatmul.mubr.f32.gmra.mxu0 %v3614
  %v4495 = vpop.f32.mrf.mxu0
  %v4496 = vadd.f32 %v4317, %v4495
  %v4497 = vpop.f32.mrf.mxu0
  %4498 = vmatprep.mubr.f32.mxu0 %v3679
  %4499 = vmatmul.mubr.f32.gmra.mxu0 %v3615
  %v4500 = vpop.f32.mrf.mxu0
  %v4501 = vadd.f32 %v4317, %v4500
  %v4502 = vpop.f32.mrf.mxu0
  %4503 = vmatprep.mubr.f32.mxu0 %v3680
  %4504 = vmatmul.mubr.f32.gmra.mxu0 %v3616
  %v4505 = vpop.f32.mrf.mxu0
  %v4506 = vadd.f32 %v4317, %v4505
  %v4507 = vpop.f32.mrf.mxu0
  %4508 = vmatprep.mubr.f32.mxu0 %v3681
  %4509 = vmatmul.mubr.f32.gmra.mxu0 %v3617
  %v4510 = vpop.f32.mrf.mxu0
  %v4511 = vadd.f32 %v4317, %v4510
  %v4512 = vpop.f32.mrf.mxu0
  %4513 = vmatprep.mubr.f32.mxu0 %v3682
  %4514 = vmatmul.mubr.f32.gmra.mxu0 %v3618
  %v4515 = vpop.f32.mrf.mxu0
  %v4516 = vadd.f32 %v4317, %v4515
  %v4517 = vpop.f32.mrf.mxu0
  %4518 = vmatprep.mubr.f32.mxu0 %v3683
  %4519 = vmatmul.mubr.f32.gmra.mxu0 %v3619
  %v4520 = vpop.f32.mrf.mxu0
  %v4521 = vadd.f32 %v4317, %v4520
  %v4522 = vpop.f32.mrf.mxu0
  %4523 = vmatprep.mubr.f32.mxu0 %v3684
  %4524 = vmatmul.mubr.f32.gmra.mxu0 %v3620
  %v4525 = vpop.f32.mrf.mxu0
  %v4526 = vadd.f32 %v4317, %v4525
  %v4527 = vpop.f32.mrf.mxu0
  %4528 = vmatprep.mubr.f32.mxu0 %v3685
  %4529 = vmatmul.mubr.f32.gmra.mxu0 %v3621
  %v4530 = vpop.f32.mrf.mxu0
  %v4531 = vadd.f32 %v4317, %v4530
  %v4532 = vpop.f32.mrf.mxu0
  %4533 = vmatprep.mubr.f32.mxu0 %v3686
  %4534 = vmatmul.mubr.f32.gmra.mxu0 %v3622
  %v4535 = vpop.f32.mrf.mxu0
  %v4536 = vadd.f32 %v4317, %v4535
  %v4537 = vpop.f32.mrf.mxu0
  %4538 = vmatprep.mubr.f32.mxu0 %v3687
  %4539 = vmatmul.mubr.f32.gmra.mxu0 %v3623
  %v4540 = vpop.f32.mrf.mxu0
  %v4541 = vadd.f32 %v4317, %v4540
  %v4542 = vpop.f32.mrf.mxu0
  %4543 = vmatprep.mubr.f32.mxu0 %v3688
  %4544 = vmatmul.mubr.f32.gmra.mxu0 %v3624
  %v4545 = vpop.f32.mrf.mxu0
  %v4546 = vadd.f32 %v4317, %v4545
  %v4547 = vpop.f32.mrf.mxu0
  %4548 = vmatprep.mubr.f32.mxu0 %v3689
  %4549 = vmatmul.mubr.f32.gmra.mxu0 %v3625
  %v4550 = vpop.f32.mrf.mxu0
  %v4551 = vadd.f32 %v4317, %v4550
  %v4552 = vpop.f32.mrf.mxu0
  %4553 = vmatprep.mubr.f32.mxu0 %v3690
  %4554 = vmatmul.mubr.f32.gmra.mxu0 %v3626
  %v4555 = vpop.f32.mrf.mxu0
  %v4556 = vadd.f32 %v4317, %v4555
  %v4557 = vpop.f32.mrf.mxu0
  %4558 = vmatprep.mubr.f32.mxu0 %v3691
  %4559 = vmatmul.mubr.f32.gmra.mxu0 %v3627
  %v4560 = vpop.f32.mrf.mxu0
  %v4561 = vadd.f32 %v4317, %v4560
  %v4562 = vpop.f32.mrf.mxu0
  %4563 = vmatprep.mubr.f32.mxu0 %v3692
  %4564 = vmatmul.mubr.f32.gmra.mxu0 %v3628
  %v4565 = vpop.f32.mrf.mxu0
  %v4566 = vadd.f32 %v4317, %v4565
  %v4567 = vpop.f32.mrf.mxu0
  %4568 = vmatprep.mubr.f32.mxu0 %v3693
  %4569 = vmatmul.mubr.f32.gmra.mxu0 %v3629
  %v4570 = vpop.f32.mrf.mxu0
  %v4571 = vadd.f32 %v4317, %v4570
  %v4572 = vpop.f32.mrf.mxu0
  %4573 = vmatprep.mubr.f32.mxu0 %v3694
  %4574 = vmatmul.mubr.f32.gmra.mxu0 %v3630
  %v4575 = vpop.f32.mrf.mxu0
  %v4576 = vadd.f32 %v4317, %v4575
  %v4577 = vpop.f32.mrf.mxu0
  %4578 = vmatprep.mubr.f32.mxu0 %v3695
  %4579 = vmatmul.mubr.f32.gmra.mxu0 %v3631
  %v4580 = vpop.f32.mrf.mxu0
  %v4581 = vadd.f32 %v4317, %v4580
  %v4582 = vpop.f32.mrf.mxu0
  %4583 = vmatprep.mubr.f32.mxu0 %v3696
  %4584 = vmatmul.mubr.f32.gmra.mxu0 %v3632
  %v4585 = vpop.f32.mrf.mxu0
  %v4586 = vadd.f32 %v4317, %v4585
  %v4587 = vpop.f32.mrf.mxu0
  %4588 = vmatprep.mubr.f32.mxu0 %v3697
  %4589 = vmatmul.mubr.f32.gmra.mxu0 %v3633
  %v4590 = vpop.f32.mrf.mxu0
  %v4591 = vadd.f32 %v4317, %v4590
  %v4592 = vpop.f32.mrf.mxu0
  %4593 = vmatprep.mubr.f32.mxu0 %v3698
  %4594 = vmatmul.mubr.f32.gmra.mxu0 %v3634
  %v4595 = vpop.f32.mrf.mxu0
  %v4596 = vadd.f32 %v4317, %v4595
  %v4597 = vpop.f32.mrf.mxu0
  %4598 = vmatprep.mubr.f32.mxu0 %v3699
  %4599 = vmatmul.mubr.f32.gmra.mxu0 %v3635
  %v4600 = vpop.f32.mrf.mxu0
  %v4601 = vadd.f32 %v4317, %v4600
  %v4602 = vpop.f32.mrf.mxu0
  %4603 = vmatprep.mubr.f32.mxu0 %v3700
  %4604 = vmatmul.mubr.f32.gmra.mxu0 %v3636
  %v4605 = vpop.f32.mrf.mxu0
  %v4606 = vadd.f32 %v4317, %v4605
  %v4607 = vpop.f32.mrf.mxu0
  %4608 = vmatprep.mubr.f32.mxu0 %v3701
  %4609 = vmatmul.mubr.f32.gmra.mxu0 %v3637
  %v4610 = vpop.f32.mrf.mxu0
  %v4611 = vadd.f32 %v4317, %v4610
  %v4612 = vpop.f32.mrf.mxu0
  %4613 = vmatprep.mubr.f32.mxu0 %v3702
  %4614 = vmatmul.mubr.f32.gmra.mxu0 %v3638
  %v4615 = vpop.f32.mrf.mxu0
  %v4616 = vadd.f32 %v4317, %v4615
  %v4617 = vpop.f32.mrf.mxu0
  %4618 = vmatprep.mubr.f32.mxu0 %v3703
  %4619 = vmatmul.mubr.f32.gmra.mxu0 %v3639
  %v4620 = vpop.f32.mrf.mxu0
  %v4621 = vadd.f32 %v4317, %v4620
  %v4622 = vpop.f32.mrf.mxu0
  %4623 = vmatprep.mubr.f32.mxu0 %v3704
  %4624 = vmatmul.mubr.f32.gmra.mxu0 %v3640
  %v4625 = vpop.f32.mrf.mxu0
  %v4626 = vadd.f32 %v4317, %v4625
  %v4627 = vpop.f32.mrf.mxu0
  %4628 = vmatprep.mubr.f32.mxu0 %v3705
  %4629 = vmatmul.mubr.f32.gmra.mxu0 %v3641
  %v4630 = vpop.f32.mrf.mxu0
  %v4631 = vadd.f32 %v4317, %v4630
  %v4632 = vpop.f32.mrf.mxu0
  %4633 = vmatprep.mubr.f32.mxu0 %v3706
  %4634 = vmatmul.mubr.f32.gmra.mxu0 %v3642
  %v4635 = vpop.f32.mrf.mxu0
  %v4636 = vadd.f32 %v4317, %v4635
  %v4637 = vpop.f32.mrf.mxu0
  %4638 = vmatprep.mubr.f32.mxu0 %v3707
  %4639 = vmatmul.mubr.f32.gmra.mxu0 %v3643
  %v4640 = vpop.f32.mrf.mxu0
  %v4641 = vadd.f32 %v4317, %v4640
  %v4642 = vpop.f32.mrf.mxu0
  %4643 = vmatprep.mubr.f32.mxu0 %v3708
  %4644 = vmatmul.mubr.f32.gmra.mxu0 %v3644
  %v4645 = vpop.f32.mrf.mxu0
  %v4646 = vadd.f32 %v4317, %v4645
  %v4647 = vpop.f32.mrf.mxu0
  %4648 = vmatprep.mubr.f32.mxu0 %v3709
  %4649 = vmatmul.mubr.f32.gmra.mxu0 %v3645
  %v4650 = vpop.f32.mrf.mxu0
  %v4651 = vadd.f32 %v4317, %v4650
  %v4652 = vpop.f32.mrf.mxu0
  %4653 = vmatprep.mubr.f32.mxu0 %v3710
  %4654 = vmatmul.mubr.f32.gmra.mxu0 %v3646
  %v4655 = vpop.f32.mrf.mxu0
  %v4656 = vadd.f32 %v4317, %v4655
  %v4657 = vpop.f32.mrf.mxu0
  %4658 = vmatprep.mubr.f32.mxu0 %v3711
  %4659 = vmatmul.mubr.f32.gmra.mxu0 %v3647
  %v4660 = vpop.f32.mrf.mxu0
  %v4661 = vadd.f32 %v4317, %v4660
  %v4662 = vpop.f32.mrf.mxu0
  %4663 = vmatprep.mubr.f32.mxu0 %v3712
  %4664 = vmatmul.mubr.f32.gmra.mxu0 %v3648
  %v4665 = vpop.f32.mrf.mxu0
  %v4666 = vadd.f32 %v4317, %v4665
  %v4667 = vpop.f32.mrf.mxu0
  %4668 = vmatprep.mubr.f32.mxu0 %v3713
  %4669 = vmatmul.mubr.f32.gmra.mxu0 %v3649
  %v4670 = vpop.f32.mrf.mxu0
  %v4671 = vadd.f32 %v4317, %v4670
  %v4672 = vpop.f32.mrf.mxu0
  %4673 = vmatprep.mubr.f32.mxu0 %v3714
  %4674 = vmatmul.mubr.f32.gmra.mxu0 %v3650
  %v4675 = vpop.f32.mrf.mxu0
  %v4676 = vadd.f32 %v4317, %v4675
  %v4677 = vpop.f32.mrf.mxu0
  %4678 = vmatprep.mubr.f32.mxu0 %v3715
  %4679 = vmatmul.mubr.f32.gmra.mxu0 %v3651
  %v4680 = vpop.f32.mrf.mxu0
  %v4681 = vadd.f32 %v4317, %v4680
  %v4682 = vpop.f32.mrf.mxu0
  %4683 = vmatprep.mubr.f32.mxu0 %v3716
  %4684 = vmatmul.mubr.f32.gmra.mxu0 %v3652
  %v4685 = vpop.f32.mrf.mxu0
  %v4686 = vadd.f32 %v4317, %v4685
  %v4687 = vpop.f32.mrf.mxu0
  %4688 = vmatprep.mubr.f32.mxu0 %v3717
  %4689 = vmatmul.mubr.f32.gmra.mxu0 %v3653
  %v4690 = vpop.f32.mrf.mxu0
  %v4691 = vadd.f32 %v4317, %v4690
  %v4692 = vpop.f32.mrf.mxu0
  %4693 = vmatprep.mubr.f32.mxu0 %v3718
  %4694 = vmatmul.mubr.f32.gmra.mxu0 %v3654
  %v4695 = vpop.f32.mrf.mxu0
  %v4696 = vadd.f32 %v4317, %v4695
  %v4697 = vpop.f32.mrf.mxu0
  %4698 = vmatprep.mubr.f32.mxu0 %v3719
  %4699 = vmatmul.mubr.f32.gmra.mxu0 %v3655
  %v4700 = vpop.f32.mrf.mxu0
  %v4701 = vadd.f32 %v4317, %v4700
  %v4702 = vpop.f32.mrf.mxu0
  %4703 = vdwg.mxu0
  %4704 = vmatprep.subr.mxu0 0.0
  %4705 = vmatpush1.msra.mxu0 %v4215
  %4706 = vmatprep.subr.mxu0 0.0
  %4707 = vmatpush1.msra.mxu0 %v4214
  %4708 = vmatprep.subr.mxu0 0.0
  %4709 = vmatpush1.msra.mxu0 %v4213
  %4710 = vmatprep.subr.mxu0 0.0
  %4711 = vmatpush1.msra.mxu0 %v4212
  %4712 = vmatprep.subr.mxu0 0.0
  %4713 = vmatpush1.msra.mxu0 %v4211
  %4714 = vmatprep.subr.mxu0 0.0
  %4715 = vmatpush1.msra.mxu0 %v4210
  %4716 = vmatprep.subr.mxu0 0.0
  %4717 = vmatpush1.msra.mxu0 %v4209
  %4718 = vmatprep.subr.mxu0 0.0
  %4719 = vmatpush1.msra.mxu0 %v4208
  %4720 = vmatprep.subr.mxu0 0.0
  %4721 = vmatpush1.msra.mxu0 %v4207
  %4722 = vmatprep.subr.mxu0 0.0
  %4723 = vmatpush1.msra.mxu0 %v4206
  %4724 = vmatprep.subr.mxu0 0.0
  %4725 = vmatpush1.msra.mxu0 %v4205
  %4726 = vmatprep.subr.mxu0 0.0
  %4727 = vmatpush1.msra.mxu0 %v4204
  %4728 = vmatprep.subr.mxu0 0.0
  %4729 = vmatpush1.msra.mxu0 %v4203
  %4730 = vmatprep.subr.mxu0 0.0
  %4731 = vmatpush1.msra.mxu0 %v4202
  %4732 = vmatprep.subr.mxu0 0.0
  %4733 = vmatpush1.msra.mxu0 %v4201
  %4734 = vmatprep.subr.mxu0 0.0
  %4735 = vmatpush1.msra.mxu0 %v4200
  %4736 = vmatprep.subr.mxu0 0.0
  %4737 = vmatpush2.msra.mxu0 %v4231
  %4738 = vmatprep.subr.mxu0 0.0
  %4739 = vmatpush2.msra.mxu0 %v4230
  %4740 = vmatprep.subr.mxu0 0.0
  %4741 = vmatpush2.msra.mxu0 %v4229
  %4742 = vmatprep.subr.mxu0 0.0
  %4743 = vmatpush2.msra.mxu0 %v4228
  %4744 = vmatprep.subr.mxu0 0.0
  %4745 = vmatpush2.msra.mxu0 %v4227
  %4746 = vmatprep.subr.mxu0 0.0
  %4747 = vmatpush2.msra.mxu0 %v4226
  %4748 = vmatprep.subr.mxu0 0.0
  %4749 = vmatpush2.msra.mxu0 %v4225
  %4750 = vmatprep.subr.mxu0 0.0
  %4751 = vmatpush2.msra.mxu0 %v4224
  %4752 = vmatprep.subr.mxu0 0.0
  %4753 = vmatpush2.msra.mxu0 %v4223
  %4754 = vmatprep.subr.mxu0 0.0
  %4755 = vmatpush2.msra.mxu0 %v4222
  %4756 = vmatprep.subr.mxu0 0.0
  %4757 = vmatpush2.msra.mxu0 %v4221
  %4758 = vmatprep.subr.mxu0 0.0
  %4759 = vmatpush2.msra.mxu0 %v4220
  %4760 = vmatprep.subr.mxu0 0.0
  %4761 = vmatpush2.msra.mxu0 %v4219
  %4762 = vmatprep.subr.mxu0 0.0
  %4763 = vmatpush2.msra.mxu0 %v4218
  %4764 = vmatprep.subr.mxu0 0.0
  %4765 = vmatpush2.msra.mxu0 %v4217
  %4766 = vmatprep.subr.mxu0 0.0
  %4767 = vmatpush2.msra.mxu0 %v4216
  %4768 = vmatprep.mubr.f32.mxu0 %v3784
  %4769 = vmatmul.mubr.f32.gmra.mxu0 %v3720
  %v4770 = vpop.f32.mrf.mxu0
  %v4771 = vadd.f32 %v4386, %v4770
  %v4772 = vpop.f32.mrf.mxu0
  %4773 = vmatprep.mubr.f32.mxu0 %v3785
  %4774 = vmatmul.mubr.f32.gmra.mxu0 %v3721
  %v4775 = vpop.f32.mrf.mxu0
  %v4776 = vadd.f32 %v4391, %v4775
  %v4777 = vpop.f32.mrf.mxu0
  %4778 = vmatprep.mubr.f32.mxu0 %v3786
  %4779 = vmatmul.mubr.f32.gmra.mxu0 %v3722
  %v4780 = vpop.f32.mrf.mxu0
  %v4781 = vadd.f32 %v4396, %v4780
  %v4782 = vpop.f32.mrf.mxu0
  %4783 = vmatprep.mubr.f32.mxu0 %v3787
  %4784 = vmatmul.mubr.f32.gmra.mxu0 %v3723
  %v4785 = vpop.f32.mrf.mxu0
  %v4786 = vadd.f32 %v4401, %v4785
  %v4787 = vpop.f32.mrf.mxu0
  %4788 = vmatprep.mubr.f32.mxu0 %v3788
  %4789 = vmatmul.mubr.f32.gmra.mxu0 %v3724
  %v4790 = vpop.f32.mrf.mxu0
  %v4791 = vadd.f32 %v4406, %v4790
  %v4792 = vpop.f32.mrf.mxu0
  %4793 = vmatprep.mubr.f32.mxu0 %v3789
  %4794 = vmatmul.mubr.f32.gmra.mxu0 %v3725
  %v4795 = vpop.f32.mrf.mxu0
  %v4796 = vadd.f32 %v4411, %v4795
  %v4797 = vpop.f32.mrf.mxu0
  %4798 = vmatprep.mubr.f32.mxu0 %v3790
  %4799 = vmatmul.mubr.f32.gmra.mxu0 %v3726
  %v4800 = vpop.f32.mrf.mxu0
  %v4801 = vadd.f32 %v4416, %v4800
  %v4802 = vpop.f32.mrf.mxu0
  %4803 = vmatprep.mubr.f32.mxu0 %v3791
  %4804 = vmatmul.mubr.f32.gmra.mxu0 %v3727
  %v4805 = vpop.f32.mrf.mxu0
  %v4806 = vadd.f32 %v4421, %v4805
  %v4807 = vpop.f32.mrf.mxu0
  %4808 = vmatprep.mubr.f32.mxu0 %v3792
  %4809 = vmatmul.mubr.f32.gmra.mxu0 %v3728
  %v4810 = vpop.f32.mrf.mxu0
  %v4811 = vadd.f32 %v4426, %v4810
  %v4812 = vpop.f32.mrf.mxu0
  %4813 = vmatprep.mubr.f32.mxu0 %v3793
  %4814 = vmatmul.mubr.f32.gmra.mxu0 %v3729
  %v4815 = vpop.f32.mrf.mxu0
  %v4816 = vadd.f32 %v4431, %v4815
  %v4817 = vpop.f32.mrf.mxu0
  %4818 = vmatprep.mubr.f32.mxu0 %v3794
  %4819 = vmatmul.mubr.f32.gmra.mxu0 %v3730
  %v4820 = vpop.f32.mrf.mxu0
  %v4821 = vadd.f32 %v4436, %v4820
  %v4822 = vpop.f32.mrf.mxu0
  %4823 = vmatprep.mubr.f32.mxu0 %v3795
  %4824 = vmatmul.mubr.f32.gmra.mxu0 %v3731
  %v4825 = vpop.f32.mrf.mxu0
  %v4826 = vadd.f32 %v4441, %v4825
  %v4827 = vpop.f32.mrf.mxu0
  %4828 = vmatprep.mubr.f32.mxu0 %v3796
  %4829 = vmatmul.mubr.f32.gmra.mxu0 %v3732
  %v4830 = vpop.f32.mrf.mxu0
  %v4831 = vadd.f32 %v4446, %v4830
  %v4832 = vpop.f32.mrf.mxu0
  %4833 = vmatprep.mubr.f32.mxu0 %v3797
  %4834 = vmatmul.mubr.f32.gmra.mxu0 %v3733
  %v4835 = vpop.f32.mrf.mxu0
  %v4836 = vadd.f32 %v4451, %v4835
  %v4837 = vpop.f32.mrf.mxu0
  %4838 = vmatprep.mubr.f32.mxu0 %v3798
  %4839 = vmatmul.mubr.f32.gmra.mxu0 %v3734
  %v4840 = vpop.f32.mrf.mxu0
  %v4841 = vadd.f32 %v4456, %v4840
  %v4842 = vpop.f32.mrf.mxu0
  %4843 = vmatprep.mubr.f32.mxu0 %v3799
  %4844 = vmatmul.mubr.f32.gmra.mxu0 %v3735
  %v4845 = vpop.f32.mrf.mxu0
  %v4846 = vadd.f32 %v4461, %v4845
  %v4847 = vpop.f32.mrf.mxu0
  %4848 = vmatprep.mubr.f32.mxu0 %v3800
  %4849 = vmatmul.mubr.f32.gmra.mxu0 %v3736
  %v4850 = vpop.f32.mrf.mxu0
  %v4851 = vadd.f32 %v4466, %v4850
  %v4852 = vpop.f32.mrf.mxu0
  %4853 = vmatprep.mubr.f32.mxu0 %v3801
  %4854 = vmatmul.mubr.f32.gmra.mxu0 %v3737
  %v4855 = vpop.f32.mrf.mxu0
  %v4856 = vadd.f32 %v4471, %v4855
  %v4857 = vpop.f32.mrf.mxu0
  %4858 = vmatprep.mubr.f32.mxu0 %v3802
  %4859 = vmatmul.mubr.f32.gmra.mxu0 %v3738
  %v4860 = vpop.f32.mrf.mxu0
  %v4861 = vadd.f32 %v4476, %v4860
  %v4862 = vpop.f32.mrf.mxu0
  %4863 = vmatprep.mubr.f32.mxu0 %v3803
  %4864 = vmatmul.mubr.f32.gmra.mxu0 %v3739
  %v4865 = vpop.f32.mrf.mxu0
  %v4866 = vadd.f32 %v4481, %v4865
  %v4867 = vpop.f32.mrf.mxu0
  %4868 = vmatprep.mubr.f32.mxu0 %v3804
  %4869 = vmatmul.mubr.f32.gmra.mxu0 %v3740
  %v4870 = vpop.f32.mrf.mxu0
  %v4871 = vadd.f32 %v4486, %v4870
  %v4872 = vpop.f32.mrf.mxu0
  %4873 = vmatprep.mubr.f32.mxu0 %v3805
  %4874 = vmatmul.mubr.f32.gmra.mxu0 %v3741
  %v4875 = vpop.f32.mrf.mxu0
  %v4876 = vadd.f32 %v4491, %v4875
  %v4877 = vpop.f32.mrf.mxu0
  %4878 = vmatprep.mubr.f32.mxu0 %v3806
  %4879 = vmatmul.mubr.f32.gmra.mxu0 %v3742
  %v4880 = vpop.f32.mrf.mxu0
  %v4881 = vadd.f32 %v4496, %v4880
  %v4882 = vpop.f32.mrf.mxu0
  %4883 = vmatprep.mubr.f32.mxu0 %v3807
  %4884 = vmatmul.mubr.f32.gmra.mxu0 %v3743
  %v4885 = vpop.f32.mrf.mxu0
  %v4886 = vadd.f32 %v4501, %v4885
  %v4887 = vpop.f32.mrf.mxu0
  %4888 = vmatprep.mubr.f32.mxu0 %v3808
  %4889 = vmatmul.mubr.f32.gmra.mxu0 %v3744
  %v4890 = vpop.f32.mrf.mxu0
  %v4891 = vadd.f32 %v4506, %v4890
  %v4892 = vpop.f32.mrf.mxu0
  %4893 = vmatprep.mubr.f32.mxu0 %v3809
  %4894 = vmatmul.mubr.f32.gmra.mxu0 %v3745
  %v4895 = vpop.f32.mrf.mxu0
  %v4896 = vadd.f32 %v4511, %v4895
  %v4897 = vpop.f32.mrf.mxu0
  %4898 = vmatprep.mubr.f32.mxu0 %v3810
  %4899 = vmatmul.mubr.f32.gmra.mxu0 %v3746
  %v4900 = vpop.f32.mrf.mxu0
  %v4901 = vadd.f32 %v4516, %v4900
  %v4902 = vpop.f32.mrf.mxu0
  %4903 = vmatprep.mubr.f32.mxu0 %v3811
  %4904 = vmatmul.mubr.f32.gmra.mxu0 %v3747
  %v4905 = vpop.f32.mrf.mxu0
  %v4906 = vadd.f32 %v4521, %v4905
  %v4907 = vpop.f32.mrf.mxu0
  %4908 = vmatprep.mubr.f32.mxu0 %v3812
  %4909 = vmatmul.mubr.f32.gmra.mxu0 %v3748
  %v4910 = vpop.f32.mrf.mxu0
  %v4911 = vadd.f32 %v4526, %v4910
  %v4912 = vpop.f32.mrf.mxu0
  %4913 = vmatprep.mubr.f32.mxu0 %v3813
  %4914 = vmatmul.mubr.f32.gmra.mxu0 %v3749
  %v4915 = vpop.f32.mrf.mxu0
  %v4916 = vadd.f32 %v4531, %v4915
  %v4917 = vpop.f32.mrf.mxu0
  %4918 = vmatprep.mubr.f32.mxu0 %v3814
  %4919 = vmatmul.mubr.f32.gmra.mxu0 %v3750
  %v4920 = vpop.f32.mrf.mxu0
  %v4921 = vadd.f32 %v4536, %v4920
  %v4922 = vpop.f32.mrf.mxu0
  %4923 = vmatprep.mubr.f32.mxu0 %v3815
  %4924 = vmatmul.mubr.f32.gmra.mxu0 %v3751
  %v4925 = vpop.f32.mrf.mxu0
  %v4926 = vadd.f32 %v4541, %v4925
  %v4927 = vpop.f32.mrf.mxu0
  %4928 = vmatprep.mubr.f32.mxu0 %v3816
  %4929 = vmatmul.mubr.f32.gmra.mxu0 %v3752
  %v4930 = vpop.f32.mrf.mxu0
  %v4931 = vadd.f32 %v4546, %v4930
  %v4932 = vpop.f32.mrf.mxu0
  %4933 = vmatprep.mubr.f32.mxu0 %v3817
  %4934 = vmatmul.mubr.f32.gmra.mxu0 %v3753
  %v4935 = vpop.f32.mrf.mxu0
  %v4936 = vadd.f32 %v4551, %v4935
  %v4937 = vpop.f32.mrf.mxu0
  %4938 = vmatprep.mubr.f32.mxu0 %v3818
  %4939 = vmatmul.mubr.f32.gmra.mxu0 %v3754
  %v4940 = vpop.f32.mrf.mxu0
  %v4941 = vadd.f32 %v4556, %v4940
  %v4942 = vpop.f32.mrf.mxu0
  %4943 = vmatprep.mubr.f32.mxu0 %v3819
  %4944 = vmatmul.mubr.f32.gmra.mxu0 %v3755
  %v4945 = vpop.f32.mrf.mxu0
  %v4946 = vadd.f32 %v4561, %v4945
  %v4947 = vpop.f32.mrf.mxu0
  %4948 = vmatprep.mubr.f32.mxu0 %v3820
  %4949 = vmatmul.mubr.f32.gmra.mxu0 %v3756
  %v4950 = vpop.f32.mrf.mxu0
  %v4951 = vadd.f32 %v4566, %v4950
  %v4952 = vpop.f32.mrf.mxu0
  %4953 = vmatprep.mubr.f32.mxu0 %v3821
  %4954 = vmatmul.mubr.f32.gmra.mxu0 %v3757
  %v4955 = vpop.f32.mrf.mxu0
  %v4956 = vadd.f32 %v4571, %v4955
  %v4957 = vpop.f32.mrf.mxu0
  %4958 = vmatprep.mubr.f32.mxu0 %v3822
  %4959 = vmatmul.mubr.f32.gmra.mxu0 %v3758
  %v4960 = vpop.f32.mrf.mxu0
  %v4961 = vadd.f32 %v4576, %v4960
  %v4962 = vpop.f32.mrf.mxu0
  %4963 = vmatprep.mubr.f32.mxu0 %v3823
  %4964 = vmatmul.mubr.f32.gmra.mxu0 %v3759
  %v4965 = vpop.f32.mrf.mxu0
  %v4966 = vadd.f32 %v4581, %v4965
  %v4967 = vpop.f32.mrf.mxu0
  %4968 = vmatprep.mubr.f32.mxu0 %v3824
  %4969 = vmatmul.mubr.f32.gmra.mxu0 %v3760
  %v4970 = vpop.f32.mrf.mxu0
  %v4971 = vadd.f32 %v4586, %v4970
  %v4972 = vpop.f32.mrf.mxu0
  %4973 = vmatprep.mubr.f32.mxu0 %v3825
  %4974 = vmatmul.mubr.f32.gmra.mxu0 %v3761
  %v4975 = vpop.f32.mrf.mxu0
  %v4976 = vadd.f32 %v4591, %v4975
  %v4977 = vpop.f32.mrf.mxu0
  %4978 = vmatprep.mubr.f32.mxu0 %v3826
  %4979 = vmatmul.mubr.f32.gmra.mxu0 %v3762
  %v4980 = vpop.f32.mrf.mxu0
  %v4981 = vadd.f32 %v4596, %v4980
  %v4982 = vpop.f32.mrf.mxu0
  %4983 = vmatprep.mubr.f32.mxu0 %v3827
  %4984 = vmatmul.mubr.f32.gmra.mxu0 %v3763
  %v4985 = vpop.f32.mrf.mxu0
  %v4986 = vadd.f32 %v4601, %v4985
  %v4987 = vpop.f32.mrf.mxu0
  %4988 = vmatprep.mubr.f32.mxu0 %v3828
  %4989 = vmatmul.mubr.f32.gmra.mxu0 %v3764
  %v4990 = vpop.f32.mrf.mxu0
  %v4991 = vadd.f32 %v4606, %v4990
  %v4992 = vpop.f32.mrf.mxu0
  %4993 = vmatprep.mubr.f32.mxu0 %v3829
  %4994 = vmatmul.mubr.f32.gmra.mxu0 %v3765
  %v4995 = vpop.f32.mrf.mxu0
  %v4996 = vadd.f32 %v4611, %v4995
  %v4997 = vpop.f32.mrf.mxu0
  %4998 = vmatprep.mubr.f32.mxu0 %v3830
  %4999 = vmatmul.mubr.f32.gmra.mxu0 %v3766
  %v5000 = vpop.f32.mrf.mxu0
  %v5001 = vadd.f32 %v4616, %v5000
  %v5002 = vpop.f32.mrf.mxu0
  %5003 = vmatprep.mubr.f32.mxu0 %v3831
  %5004 = vmatmul.mubr.f32.gmra.mxu0 %v3767
  %v5005 = vpop.f32.mrf.mxu0
  %v5006 = vadd.f32 %v4621, %v5005
  %v5007 = vpop.f32.mrf.mxu0
  %5008 = vmatprep.mubr.f32.mxu0 %v3832
  %5009 = vmatmul.mubr.f32.gmra.mxu0 %v3768
  %v5010 = vpop.f32.mrf.mxu0
  %v5011 = vadd.f32 %v4626, %v5010
  %v5012 = vpop.f32.mrf.mxu0
  %5013 = vmatprep.mubr.f32.mxu0 %v3833
  %5014 = vmatmul.mubr.f32.gmra.mxu0 %v3769
  %v5015 = vpop.f32.mrf.mxu0
  %v5016 = vadd.f32 %v4631, %v5015
  %v5017 = vpop.f32.mrf.mxu0
  %5018 = vmatprep.mubr.f32.mxu0 %v3834
  %5019 = vmatmul.mubr.f32.gmra.mxu0 %v3770
  %v5020 = vpop.f32.mrf.mxu0
  %v5021 = vadd.f32 %v4636, %v5020
  %v5022 = vpop.f32.mrf.mxu0
  %5023 = vmatprep.mubr.f32.mxu0 %v3835
  %5024 = vmatmul.mubr.f32.gmra.mxu0 %v3771
  %v5025 = vpop.f32.mrf.mxu0
  %v5026 = vadd.f32 %v4641, %v5025
  %v5027 = vpop.f32.mrf.mxu0
  %5028 = vmatprep.mubr.f32.mxu0 %v3836
  %5029 = vmatmul.mubr.f32.gmra.mxu0 %v3772
  %v5030 = vpop.f32.mrf.mxu0
  %v5031 = vadd.f32 %v4646, %v5030
  %v5032 = vpop.f32.mrf.mxu0
  %5033 = vmatprep.mubr.f32.mxu0 %v3837
  %5034 = vmatmul.mubr.f32.gmra.mxu0 %v3773
  %v5035 = vpop.f32.mrf.mxu0
  %v5036 = vadd.f32 %v4651, %v5035
  %v5037 = vpop.f32.mrf.mxu0
  %5038 = vmatprep.mubr.f32.mxu0 %v3838
  %5039 = vmatmul.mubr.f32.gmra.mxu0 %v3774
  %v5040 = vpop.f32.mrf.mxu0
  %v5041 = vadd.f32 %v4656, %v5040
  %v5042 = vpop.f32.mrf.mxu0
  %5043 = vmatprep.mubr.f32.mxu0 %v3839
  %5044 = vmatmul.mubr.f32.gmra.mxu0 %v3775
  %v5045 = vpop.f32.mrf.mxu0
  %v5046 = vadd.f32 %v4661, %v5045
  %v5047 = vpop.f32.mrf.mxu0
  %5048 = vmatprep.mubr.f32.mxu0 %v3840
  %5049 = vmatmul.mubr.f32.gmra.mxu0 %v3776
  %v5050 = vpop.f32.mrf.mxu0
  %v5051 = vadd.f32 %v4666, %v5050
  %v5052 = vpop.f32.mrf.mxu0
  %5053 = vmatprep.mubr.f32.mxu0 %v3841
  %5054 = vmatmul.mubr.f32.gmra.mxu0 %v3777
  %v5055 = vpop.f32.mrf.mxu0
  %v5056 = vadd.f32 %v4671, %v5055
  %v5057 = vpop.f32.mrf.mxu0
  %5058 = vmatprep.mubr.f32.mxu0 %v3842
  %5059 = vmatmul.mubr.f32.gmra.mxu0 %v3778
  %v5060 = vpop.f32.mrf.mxu0
  %v5061 = vadd.f32 %v4676, %v5060
  %v5062 = vpop.f32.mrf.mxu0
  %5063 = vmatprep.mubr.f32.mxu0 %v3843
  %5064 = vmatmul.mubr.f32.gmra.mxu0 %v3779
  %v5065 = vpop.f32.mrf.mxu0
  %v5066 = vadd.f32 %v4681, %v5065
  %v5067 = vpop.f32.mrf.mxu0
  %5068 = vmatprep.mubr.f32.mxu0 %v3844
  %5069 = vmatmul.mubr.f32.gmra.mxu0 %v3780
  %v5070 = vpop.f32.mrf.mxu0
  %v5071 = vadd.f32 %v4686, %v5070
  %v5072 = vpop.f32.mrf.mxu0
  %5073 = vmatprep.mubr.f32.mxu0 %v3845
  %5074 = vmatmul.mubr.f32.gmra.mxu0 %v3781
  %v5075 = vpop.f32.mrf.mxu0
  %v5076 = vadd.f32 %v4691, %v5075
  %v5077 = vpop.f32.mrf.mxu0
  %5078 = vmatprep.mubr.f32.mxu0 %v3846
  %5079 = vmatmul.mubr.f32.gmra.mxu0 %v3782
  %v5080 = vpop.f32.mrf.mxu0
  %v5081 = vadd.f32 %v4696, %v5080
  %v5082 = vpop.f32.mrf.mxu0
  %5083 = vmatprep.mubr.f32.mxu0 %v3847
  %5084 = vmatmul.mubr.f32.gmra.mxu0 %v3783
  %v5085 = vpop.f32.mrf.mxu0
  %v5086 = vadd.f32 %v4701, %v5085
  %v5087 = vpop.f32.mrf.mxu0
  %5088 = vdwg.mxu0
  %5089 = vmatprep.subr.mxu0 0.0
  %5090 = vmatpush1.msra.mxu0 %v4247
  %5091 = vmatprep.subr.mxu0 0.0
  %5092 = vmatpush1.msra.mxu0 %v4246
  %5093 = vmatprep.subr.mxu0 0.0
  %5094 = vmatpush1.msra.mxu0 %v4245
  %5095 = vmatprep.subr.mxu0 0.0
  %5096 = vmatpush1.msra.mxu0 %v4244
  %5097 = vmatprep.subr.mxu0 0.0
  %5098 = vmatpush1.msra.mxu0 %v4243
  %5099 = vmatprep.subr.mxu0 0.0
  %5100 = vmatpush1.msra.mxu0 %v4242
  %5101 = vmatprep.subr.mxu0 0.0
  %5102 = vmatpush1.msra.mxu0 %v4241
  %5103 = vmatprep.subr.mxu0 0.0
  %5104 = vmatpush1.msra.mxu0 %v4240
  %5105 = vmatprep.subr.mxu0 0.0
  %5106 = vmatpush1.msra.mxu0 %v4239
  %5107 = vmatprep.subr.mxu0 0.0
  %5108 = vmatpush1.msra.mxu0 %v4238
  %5109 = vmatprep.subr.mxu0 0.0
  %5110 = vmatpush1.msra.mxu0 %v4237
  %5111 = vmatprep.subr.mxu0 0.0
  %5112 = vmatpush1.msra.mxu0 %v4236
  %5113 = vmatprep.subr.mxu0 0.0
  %5114 = vmatpush1.msra.mxu0 %v4235
  %5115 = vmatprep.subr.mxu0 0.0
  %5116 = vmatpush1.msra.mxu0 %v4234
  %5117 = vmatprep.subr.mxu0 0.0
  %5118 = vmatpush1.msra.mxu0 %v4233
  %5119 = vmatprep.subr.mxu0 0.0
  %5120 = vmatpush1.msra.mxu0 %v4232
  %5121 = vmatprep.subr.mxu0 0.0
  %5122 = vmatpush2.msra.mxu0 %v4263
  %5123 = vmatprep.subr.mxu0 0.0
  %5124 = vmatpush2.msra.mxu0 %v4262
  %5125 = vmatprep.subr.mxu0 0.0
  %5126 = vmatpush2.msra.mxu0 %v4261
  %5127 = vmatprep.subr.mxu0 0.0
  %5128 = vmatpush2.msra.mxu0 %v4260
  %5129 = vmatprep.subr.mxu0 0.0
  %5130 = vmatpush2.msra.mxu0 %v4259
  %5131 = vmatprep.subr.mxu0 0.0
  %5132 = vmatpush2.msra.mxu0 %v4258
  %5133 = vmatprep.subr.mxu0 0.0
  %5134 = vmatpush2.msra.mxu0 %v4257
  %5135 = vmatprep.subr.mxu0 0.0
  %5136 = vmatpush2.msra.mxu0 %v4256
  %5137 = vmatprep.subr.mxu0 0.0
  %5138 = vmatpush2.msra.mxu0 %v4255
  %5139 = vmatprep.subr.mxu0 0.0
  %5140 = vmatpush2.msra.mxu0 %v4254
  %5141 = vmatprep.subr.mxu0 0.0
  %5142 = vmatpush2.msra.mxu0 %v4253
  %5143 = vmatprep.subr.mxu0 0.0
  %5144 = vmatpush2.msra.mxu0 %v4252
  %5145 = vmatprep.subr.mxu0 0.0
  %5146 = vmatpush2.msra.mxu0 %v4251
  %5147 = vmatprep.subr.mxu0 0.0
  %5148 = vmatpush2.msra.mxu0 %v4250
  %5149 = vmatprep.subr.mxu0 0.0
  %5150 = vmatpush2.msra.mxu0 %v4249
  %5151 = vmatprep.subr.mxu0 0.0
  %5152 = vmatpush2.msra.mxu0 %v4248
  %5153 = vmatprep.mubr.f32.mxu0 %v3912
  %5154 = vmatmul.mubr.f32.gmra.mxu0 %v3848
  %v5155 = vpop.f32.mrf.mxu0
  %v5156 = vadd.f32 %v4771, %v5155
  %v5157 = vpop.f32.mrf.mxu0
  %5158 = vmatprep.mubr.f32.mxu0 %v3913
  %5159 = vmatmul.mubr.f32.gmra.mxu0 %v3849
  %v5160 = vpop.f32.mrf.mxu0
  %v5161 = vadd.f32 %v4776, %v5160
  %v5162 = vpop.f32.mrf.mxu0
  %5163 = vmatprep.mubr.f32.mxu0 %v3914
  %5164 = vmatmul.mubr.f32.gmra.mxu0 %v3850
  %v5165 = vpop.f32.mrf.mxu0
  %v5166 = vadd.f32 %v4781, %v5165
  %v5167 = vpop.f32.mrf.mxu0
  %5168 = vmatprep.mubr.f32.mxu0 %v3915
  %5169 = vmatmul.mubr.f32.gmra.mxu0 %v3851
  %v5170 = vpop.f32.mrf.mxu0
  %v5171 = vadd.f32 %v4786, %v5170
  %v5172 = vpop.f32.mrf.mxu0
  %5173 = vmatprep.mubr.f32.mxu0 %v3916
  %5174 = vmatmul.mubr.f32.gmra.mxu0 %v3852
  %v5175 = vpop.f32.mrf.mxu0
  %v5176 = vadd.f32 %v4791, %v5175
  %v5177 = vpop.f32.mrf.mxu0
  %5178 = vmatprep.mubr.f32.mxu0 %v3917
  %5179 = vmatmul.mubr.f32.gmra.mxu0 %v3853
  %v5180 = vpop.f32.mrf.mxu0
  %v5181 = vadd.f32 %v4796, %v5180
  %v5182 = vpop.f32.mrf.mxu0
  %5183 = vmatprep.mubr.f32.mxu0 %v3918
  %5184 = vmatmul.mubr.f32.gmra.mxu0 %v3854
  %v5185 = vpop.f32.mrf.mxu0
  %v5186 = vadd.f32 %v4801, %v5185
  %v5187 = vpop.f32.mrf.mxu0
  %5188 = vmatprep.mubr.f32.mxu0 %v3919
  %5189 = vmatmul.mubr.f32.gmra.mxu0 %v3855
  %v5190 = vpop.f32.mrf.mxu0
  %v5191 = vadd.f32 %v4806, %v5190
  %v5192 = vpop.f32.mrf.mxu0
  %5193 = vmatprep.mubr.f32.mxu0 %v3920
  %5194 = vmatmul.mubr.f32.gmra.mxu0 %v3856
  %v5195 = vpop.f32.mrf.mxu0
  %v5196 = vadd.f32 %v4811, %v5195
  %v5197 = vpop.f32.mrf.mxu0
  %5198 = vmatprep.mubr.f32.mxu0 %v3921
  %5199 = vmatmul.mubr.f32.gmra.mxu0 %v3857
  %v5200 = vpop.f32.mrf.mxu0
  %v5201 = vadd.f32 %v4816, %v5200
  %v5202 = vpop.f32.mrf.mxu0
  %5203 = vmatprep.mubr.f32.mxu0 %v3922
  %5204 = vmatmul.mubr.f32.gmra.mxu0 %v3858
  %v5205 = vpop.f32.mrf.mxu0
  %v5206 = vadd.f32 %v4821, %v5205
  %v5207 = vpop.f32.mrf.mxu0
  %5208 = vmatprep.mubr.f32.mxu0 %v3923
  %5209 = vmatmul.mubr.f32.gmra.mxu0 %v3859
  %v5210 = vpop.f32.mrf.mxu0
  %v5211 = vadd.f32 %v4826, %v5210
  %v5212 = vpop.f32.mrf.mxu0
  %5213 = vmatprep.mubr.f32.mxu0 %v3924
  %5214 = vmatmul.mubr.f32.gmra.mxu0 %v3860
  %v5215 = vpop.f32.mrf.mxu0
  %v5216 = vadd.f32 %v4831, %v5215
  %v5217 = vpop.f32.mrf.mxu0
  %5218 = vmatprep.mubr.f32.mxu0 %v3925
  %5219 = vmatmul.mubr.f32.gmra.mxu0 %v3861
  %v5220 = vpop.f32.mrf.mxu0
  %v5221 = vadd.f32 %v4836, %v5220
  %v5222 = vpop.f32.mrf.mxu0
  %5223 = vmatprep.mubr.f32.mxu0 %v3926
  %5224 = vmatmul.mubr.f32.gmra.mxu0 %v3862
  %v5225 = vpop.f32.mrf.mxu0
  %v5226 = vadd.f32 %v4841, %v5225
  %v5227 = vpop.f32.mrf.mxu0
  %5228 = vmatprep.mubr.f32.mxu0 %v3927
  %5229 = vmatmul.mubr.f32.gmra.mxu0 %v3863
  %v5230 = vpop.f32.mrf.mxu0
  %v5231 = vadd.f32 %v4846, %v5230
  %v5232 = vpop.f32.mrf.mxu0
  %5233 = vmatprep.mubr.f32.mxu0 %v3928
  %5234 = vmatmul.mubr.f32.gmra.mxu0 %v3864
  %v5235 = vpop.f32.mrf.mxu0
  %v5236 = vadd.f32 %v4851, %v5235
  %v5237 = vpop.f32.mrf.mxu0
  %5238 = vmatprep.mubr.f32.mxu0 %v3929
  %5239 = vmatmul.mubr.f32.gmra.mxu0 %v3865
  %v5240 = vpop.f32.mrf.mxu0
  %v5241 = vadd.f32 %v4856, %v5240
  %v5242 = vpop.f32.mrf.mxu0
  %5243 = vmatprep.mubr.f32.mxu0 %v3930
  %5244 = vmatmul.mubr.f32.gmra.mxu0 %v3866
  %v5245 = vpop.f32.mrf.mxu0
  %v5246 = vadd.f32 %v4861, %v5245
  %v5247 = vpop.f32.mrf.mxu0
  %5248 = vmatprep.mubr.f32.mxu0 %v3931
  %5249 = vmatmul.mubr.f32.gmra.mxu0 %v3867
  %v5250 = vpop.f32.mrf.mxu0
  %v5251 = vadd.f32 %v4866, %v5250
  %v5252 = vpop.f32.mrf.mxu0
  %5253 = vmatprep.mubr.f32.mxu0 %v3932
  %5254 = vmatmul.mubr.f32.gmra.mxu0 %v3868
  %v5255 = vpop.f32.mrf.mxu0
  %v5256 = vadd.f32 %v4871, %v5255
  %v5257 = vpop.f32.mrf.mxu0
  %5258 = vmatprep.mubr.f32.mxu0 %v3933
  %5259 = vmatmul.mubr.f32.gmra.mxu0 %v3869
  %v5260 = vpop.f32.mrf.mxu0
  %v5261 = vadd.f32 %v4876, %v5260
  %v5262 = vpop.f32.mrf.mxu0
  %5263 = vmatprep.mubr.f32.mxu0 %v3934
  %5264 = vmatmul.mubr.f32.gmra.mxu0 %v3870
  %v5265 = vpop.f32.mrf.mxu0
  %v5266 = vadd.f32 %v4881, %v5265
  %v5267 = vpop.f32.mrf.mxu0
  %5268 = vmatprep.mubr.f32.mxu0 %v3935
  %5269 = vmatmul.mubr.f32.gmra.mxu0 %v3871
  %v5270 = vpop.f32.mrf.mxu0
  %v5271 = vadd.f32 %v4886, %v5270
  %v5272 = vpop.f32.mrf.mxu0
  %5273 = vmatprep.mubr.f32.mxu0 %v3936
  %5274 = vmatmul.mubr.f32.gmra.mxu0 %v3872
  %v5275 = vpop.f32.mrf.mxu0
  %v5276 = vadd.f32 %v4891, %v5275
  %v5277 = vpop.f32.mrf.mxu0
  %5278 = vmatprep.mubr.f32.mxu0 %v3937
  %5279 = vmatmul.mubr.f32.gmra.mxu0 %v3873
  %v5280 = vpop.f32.mrf.mxu0
  %v5281 = vadd.f32 %v4896, %v5280
  %v5282 = vpop.f32.mrf.mxu0
  %5283 = vmatprep.mubr.f32.mxu0 %v3938
  %5284 = vmatmul.mubr.f32.gmra.mxu0 %v3874
  %v5285 = vpop.f32.mrf.mxu0
  %v5286 = vadd.f32 %v4901, %v5285
  %v5287 = vpop.f32.mrf.mxu0
  %5288 = vmatprep.mubr.f32.mxu0 %v3939
  %5289 = vmatmul.mubr.f32.gmra.mxu0 %v3875
  %v5290 = vpop.f32.mrf.mxu0
  %v5291 = vadd.f32 %v4906, %v5290
  %v5292 = vpop.f32.mrf.mxu0
  %5293 = vmatprep.mubr.f32.mxu0 %v3940
  %5294 = vmatmul.mubr.f32.gmra.mxu0 %v3876
  %v5295 = vpop.f32.mrf.mxu0
  %v5296 = vadd.f32 %v4911, %v5295
  %v5297 = vpop.f32.mrf.mxu0
  %5298 = vmatprep.mubr.f32.mxu0 %v3941
  %5299 = vmatmul.mubr.f32.gmra.mxu0 %v3877
  %v5300 = vpop.f32.mrf.mxu0
  %v5301 = vadd.f32 %v4916, %v5300
  %v5302 = vpop.f32.mrf.mxu0
  %5303 = vmatprep.mubr.f32.mxu0 %v3942
  %5304 = vmatmul.mubr.f32.gmra.mxu0 %v3878
  %v5305 = vpop.f32.mrf.mxu0
  %v5306 = vadd.f32 %v4921, %v5305
  %v5307 = vpop.f32.mrf.mxu0
  %5308 = vmatprep.mubr.f32.mxu0 %v3943
  %5309 = vmatmul.mubr.f32.gmra.mxu0 %v3879
  %v5310 = vpop.f32.mrf.mxu0
  %v5311 = vadd.f32 %v4926, %v5310
  %v5312 = vpop.f32.mrf.mxu0
  %5313 = vmatprep.mubr.f32.mxu0 %v3944
  %5314 = vmatmul.mubr.f32.gmra.mxu0 %v3880
  %v5315 = vpop.f32.mrf.mxu0
  %v5316 = vadd.f32 %v4931, %v5315
  %v5317 = vpop.f32.mrf.mxu0
  %5318 = vmatprep.mubr.f32.mxu0 %v3945
  %5319 = vmatmul.mubr.f32.gmra.mxu0 %v3881
  %v5320 = vpop.f32.mrf.mxu0
  %v5321 = vadd.f32 %v4936, %v5320
  %v5322 = vpop.f32.mrf.mxu0
  %5323 = vmatprep.mubr.f32.mxu0 %v3946
  %5324 = vmatmul.mubr.f32.gmra.mxu0 %v3882
  %v5325 = vpop.f32.mrf.mxu0
  %v5326 = vadd.f32 %v4941, %v5325
  %v5327 = vpop.f32.mrf.mxu0
  %5328 = vmatprep.mubr.f32.mxu0 %v3947
  %5329 = vmatmul.mubr.f32.gmra.mxu0 %v3883
  %v5330 = vpop.f32.mrf.mxu0
  %v5331 = vadd.f32 %v4946, %v5330
  %v5332 = vpop.f32.mrf.mxu0
  %5333 = vmatprep.mubr.f32.mxu0 %v3948
  %5334 = vmatmul.mubr.f32.gmra.mxu0 %v3884
  %v5335 = vpop.f32.mrf.mxu0
  %v5336 = vadd.f32 %v4951, %v5335
  %v5337 = vpop.f32.mrf.mxu0
  %5338 = vmatprep.mubr.f32.mxu0 %v3949
  %5339 = vmatmul.mubr.f32.gmra.mxu0 %v3885
  %v5340 = vpop.f32.mrf.mxu0
  %v5341 = vadd.f32 %v4956, %v5340
  %v5342 = vpop.f32.mrf.mxu0
  %5343 = vmatprep.mubr.f32.mxu0 %v3950
  %5344 = vmatmul.mubr.f32.gmra.mxu0 %v3886
  %v5345 = vpop.f32.mrf.mxu0
  %v5346 = vadd.f32 %v4961, %v5345
  %v5347 = vpop.f32.mrf.mxu0
  %5348 = vmatprep.mubr.f32.mxu0 %v3951
  %5349 = vmatmul.mubr.f32.gmra.mxu0 %v3887
  %v5350 = vpop.f32.mrf.mxu0
  %v5351 = vadd.f32 %v4966, %v5350
  %v5352 = vpop.f32.mrf.mxu0
  %5353 = vmatprep.mubr.f32.mxu0 %v3952
  %5354 = vmatmul.mubr.f32.gmra.mxu0 %v3888
  %v5355 = vpop.f32.mrf.mxu0
  %v5356 = vadd.f32 %v4971, %v5355
  %v5357 = vpop.f32.mrf.mxu0
  %5358 = vmatprep.mubr.f32.mxu0 %v3953
  %5359 = vmatmul.mubr.f32.gmra.mxu0 %v3889
  %v5360 = vpop.f32.mrf.mxu0
  %v5361 = vadd.f32 %v4976, %v5360
  %v5362 = vpop.f32.mrf.mxu0
  %5363 = vmatprep.mubr.f32.mxu0 %v3954
  %5364 = vmatmul.mubr.f32.gmra.mxu0 %v3890
  %v5365 = vpop.f32.mrf.mxu0
  %v5366 = vadd.f32 %v4981, %v5365
  %v5367 = vpop.f32.mrf.mxu0
  %5368 = vmatprep.mubr.f32.mxu0 %v3955
  %5369 = vmatmul.mubr.f32.gmra.mxu0 %v3891
  %v5370 = vpop.f32.mrf.mxu0
  %v5371 = vadd.f32 %v4986, %v5370
  %v5372 = vpop.f32.mrf.mxu0
  %5373 = vmatprep.mubr.f32.mxu0 %v3956
  %5374 = vmatmul.mubr.f32.gmra.mxu0 %v3892
  %v5375 = vpop.f32.mrf.mxu0
  %v5376 = vadd.f32 %v4991, %v5375
  %v5377 = vpop.f32.mrf.mxu0
  %5378 = vmatprep.mubr.f32.mxu0 %v3957
  %5379 = vmatmul.mubr.f32.gmra.mxu0 %v3893
  %v5380 = vpop.f32.mrf.mxu0
  %v5381 = vadd.f32 %v4996, %v5380
  %v5382 = vpop.f32.mrf.mxu0
  %5383 = vmatprep.mubr.f32.mxu0 %v3958
  %5384 = vmatmul.mubr.f32.gmra.mxu0 %v3894
  %v5385 = vpop.f32.mrf.mxu0
  %v5386 = vadd.f32 %v5001, %v5385
  %v5387 = vpop.f32.mrf.mxu0
  %5388 = vmatprep.mubr.f32.mxu0 %v3959
  %5389 = vmatmul.mubr.f32.gmra.mxu0 %v3895
  %v5390 = vpop.f32.mrf.mxu0
  %v5391 = vadd.f32 %v5006, %v5390
  %v5392 = vpop.f32.mrf.mxu0
  %5393 = vmatprep.mubr.f32.mxu0 %v3960
  %5394 = vmatmul.mubr.f32.gmra.mxu0 %v3896
  %v5395 = vpop.f32.mrf.mxu0
  %v5396 = vadd.f32 %v5011, %v5395
  %v5397 = vpop.f32.mrf.mxu0
  %5398 = vmatprep.mubr.f32.mxu0 %v3961
  %5399 = vmatmul.mubr.f32.gmra.mxu0 %v3897
  %v5400 = vpop.f32.mrf.mxu0
  %v5401 = vadd.f32 %v5016, %v5400
  %v5402 = vpop.f32.mrf.mxu0
  %5403 = vmatprep.mubr.f32.mxu0 %v3962
  %5404 = vmatmul.mubr.f32.gmra.mxu0 %v3898
  %v5405 = vpop.f32.mrf.mxu0
  %v5406 = vadd.f32 %v5021, %v5405
  %v5407 = vpop.f32.mrf.mxu0
  %5408 = vmatprep.mubr.f32.mxu0 %v3963
  %5409 = vmatmul.mubr.f32.gmra.mxu0 %v3899
  %v5410 = vpop.f32.mrf.mxu0
  %v5411 = vadd.f32 %v5026, %v5410
  %v5412 = vpop.f32.mrf.mxu0
  %5413 = vmatprep.mubr.f32.mxu0 %v3964
  %5414 = vmatmul.mubr.f32.gmra.mxu0 %v3900
  %v5415 = vpop.f32.mrf.mxu0
  %v5416 = vadd.f32 %v5031, %v5415
  %v5417 = vpop.f32.mrf.mxu0
  %5418 = vmatprep.mubr.f32.mxu0 %v3965
  %5419 = vmatmul.mubr.f32.gmra.mxu0 %v3901
  %v5420 = vpop.f32.mrf.mxu0
  %v5421 = vadd.f32 %v5036, %v5420
  %v5422 = vpop.f32.mrf.mxu0
  %5423 = vmatprep.mubr.f32.mxu0 %v3966
  %5424 = vmatmul.mubr.f32.gmra.mxu0 %v3902
  %v5425 = vpop.f32.mrf.mxu0
  %v5426 = vadd.f32 %v5041, %v5425
  %v5427 = vpop.f32.mrf.mxu0
  %5428 = vmatprep.mubr.f32.mxu0 %v3967
  %5429 = vmatmul.mubr.f32.gmra.mxu0 %v3903
  %v5430 = vpop.f32.mrf.mxu0
  %v5431 = vadd.f32 %v5046, %v5430
  %v5432 = vpop.f32.mrf.mxu0
  %5433 = vmatprep.mubr.f32.mxu0 %v3968
  %5434 = vmatmul.mubr.f32.gmra.mxu0 %v3904
  %v5435 = vpop.f32.mrf.mxu0
  %v5436 = vadd.f32 %v5051, %v5435
  %v5437 = vpop.f32.mrf.mxu0
  %5438 = vmatprep.mubr.f32.mxu0 %v3969
  %5439 = vmatmul.mubr.f32.gmra.mxu0 %v3905
  %v5440 = vpop.f32.mrf.mxu0
  %v5441 = vadd.f32 %v5056, %v5440
  %v5442 = vpop.f32.mrf.mxu0
  %5443 = vmatprep.mubr.f32.mxu0 %v3970
  %5444 = vmatmul.mubr.f32.gmra.mxu0 %v3906
  %v5445 = vpop.f32.mrf.mxu0
  %v5446 = vadd.f32 %v5061, %v5445
  %v5447 = vpop.f32.mrf.mxu0
  %5448 = vmatprep.mubr.f32.mxu0 %v3971
  %5449 = vmatmul.mubr.f32.gmra.mxu0 %v3907
  %v5450 = vpop.f32.mrf.mxu0
  %v5451 = vadd.f32 %v5066, %v5450
  %v5452 = vpop.f32.mrf.mxu0
  %5453 = vmatprep.mubr.f32.mxu0 %v3972
  %5454 = vmatmul.mubr.f32.gmra.mxu0 %v3908
  %v5455 = vpop.f32.mrf.mxu0
  %v5456 = vadd.f32 %v5071, %v5455
  %v5457 = vpop.f32.mrf.mxu0
  %5458 = vmatprep.mubr.f32.mxu0 %v3973
  %5459 = vmatmul.mubr.f32.gmra.mxu0 %v3909
  %v5460 = vpop.f32.mrf.mxu0
  %v5461 = vadd.f32 %v5076, %v5460
  %v5462 = vpop.f32.mrf.mxu0
  %5463 = vmatprep.mubr.f32.mxu0 %v3974
  %5464 = vmatmul.mubr.f32.gmra.mxu0 %v3910
  %v5465 = vpop.f32.mrf.mxu0
  %v5466 = vadd.f32 %v5081, %v5465
  %v5467 = vpop.f32.mrf.mxu0
  %5468 = vmatprep.mubr.f32.mxu0 %v3975
  %5469 = vmatmul.mubr.f32.gmra.mxu0 %v3911
  %v5470 = vpop.f32.mrf.mxu0
  %v5471 = vadd.f32 %v5086, %v5470
  %v5472 = vpop.f32.mrf.mxu0
  %5473 = vdwg.mxu0
  %5474 = vmatprep.subr.mxu0 0.0
  %5475 = vmatpush1.msra.mxu0 %v4279
  %5476 = vmatprep.subr.mxu0 0.0
  %5477 = vmatpush1.msra.mxu0 %v4278
  %5478 = vmatprep.subr.mxu0 0.0
  %5479 = vmatpush1.msra.mxu0 %v4277
  %5480 = vmatprep.subr.mxu0 0.0
  %5481 = vmatpush1.msra.mxu0 %v4276
  %5482 = vmatprep.subr.mxu0 0.0
  %5483 = vmatpush1.msra.mxu0 %v4275
  %5484 = vmatprep.subr.mxu0 0.0
  %5485 = vmatpush1.msra.mxu0 %v4274
  %5486 = vmatprep.subr.mxu0 0.0
  %5487 = vmatpush1.msra.mxu0 %v4273
  %5488 = vmatprep.subr.mxu0 0.0
  %5489 = vmatpush1.msra.mxu0 %v4272
  %5490 = vmatprep.subr.mxu0 0.0
  %5491 = vmatpush1.msra.mxu0 %v4271
  %5492 = vmatprep.subr.mxu0 0.0
  %5493 = vmatpush1.msra.mxu0 %v4270
  %5494 = vmatprep.subr.mxu0 0.0
  %5495 = vmatpush1.msra.mxu0 %v4269
  %5496 = vmatprep.subr.mxu0 0.0
  %5497 = vmatpush1.msra.mxu0 %v4268
  %5498 = vmatprep.subr.mxu0 0.0
  %5499 = vmatpush1.msra.mxu0 %v4267
  %5500 = vmatprep.subr.mxu0 0.0
  %5501 = vmatpush1.msra.mxu0 %v4266
  %5502 = vmatprep.subr.mxu0 0.0
  %5503 = vmatpush1.msra.mxu0 %v4265
  %5504 = vmatprep.subr.mxu0 0.0
  %5505 = vmatpush1.msra.mxu0 %v4264
  %5506 = vmatprep.subr.mxu0 0.0
  %5507 = vmatpush2.msra.mxu0 %v4295
  %5508 = vmatprep.subr.mxu0 0.0
  %5509 = vmatpush2.msra.mxu0 %v4294
  %5510 = vmatprep.subr.mxu0 0.0
  %5511 = vmatpush2.msra.mxu0 %v4293
  %5512 = vmatprep.subr.mxu0 0.0
  %5513 = vmatpush2.msra.mxu0 %v4292
  %5514 = vmatprep.subr.mxu0 0.0
  %5515 = vmatpush2.msra.mxu0 %v4291
  %5516 = vmatprep.subr.mxu0 0.0
  %5517 = vmatpush2.msra.mxu0 %v4290
  %5518 = vmatprep.subr.mxu0 0.0
  %5519 = vmatpush2.msra.mxu0 %v4289
  %5520 = vmatprep.subr.mxu0 0.0
  %5521 = vmatpush2.msra.mxu0 %v4288
  %5522 = vmatprep.subr.mxu0 0.0
  %5523 = vmatpush2.msra.mxu0 %v4287
  %5524 = vmatprep.subr.mxu0 0.0
  %5525 = vmatpush2.msra.mxu0 %v4286
  %5526 = vmatprep.subr.mxu0 0.0
  %5527 = vmatpush2.msra.mxu0 %v4285
  %5528 = vmatprep.subr.mxu0 0.0
  %5529 = vmatpush2.msra.mxu0 %v4284
  %5530 = vmatprep.subr.mxu0 0.0
  %5531 = vmatpush2.msra.mxu0 %v4283
  %5532 = vmatprep.subr.mxu0 0.0
  %5533 = vmatpush2.msra.mxu0 %v4282
  %5534 = vmatprep.subr.mxu0 0.0
  %5535 = vmatpush2.msra.mxu0 %v4281
  %5536 = vmatprep.subr.mxu0 0.0
  %5537 = vmatpush2.msra.mxu0 %v4280
  %5538 = vmatprep.mubr.f32.mxu0 %v4040
  %5539 = vmatmul.mubr.f32.gmra.mxu0 %v3976
  %v5540 = vpop.f32.mrf.mxu0
  %v5541 = vadd.f32 %v5156, %v5540
  %v5542 = vpop.f32.mrf.mxu0
  %5543 = vmatprep.mubr.f32.mxu0 %v4041
  %5544 = vmatmul.mubr.f32.gmra.mxu0 %v3977
  %v5545 = vpop.f32.mrf.mxu0
  %v5546 = vadd.f32 %v5161, %v5545
  %v5547 = vpop.f32.mrf.mxu0
  %5548 = vmatprep.mubr.f32.mxu0 %v4042
  %5549 = vmatmul.mubr.f32.gmra.mxu0 %v3978
  %v5550 = vpop.f32.mrf.mxu0
  %v5551 = vadd.f32 %v5166, %v5550
  %v5552 = vpop.f32.mrf.mxu0
  %5553 = vmatprep.mubr.f32.mxu0 %v4043
  %5554 = vmatmul.mubr.f32.gmra.mxu0 %v3979
  %v5555 = vpop.f32.mrf.mxu0
  %v5556 = vadd.f32 %v5171, %v5555
  %v5557 = vpop.f32.mrf.mxu0
  %5558 = vmatprep.mubr.f32.mxu0 %v4044
  %5559 = vmatmul.mubr.f32.gmra.mxu0 %v3980
  %v5560 = vpop.f32.mrf.mxu0
  %v5561 = vadd.f32 %v5176, %v5560
  %v5562 = vpop.f32.mrf.mxu0
  %5563 = vmatprep.mubr.f32.mxu0 %v4045
  %5564 = vmatmul.mubr.f32.gmra.mxu0 %v3981
  %v5565 = vpop.f32.mrf.mxu0
  %v5566 = vadd.f32 %v5181, %v5565
  %v5567 = vpop.f32.mrf.mxu0
  %5568 = vmatprep.mubr.f32.mxu0 %v4046
  %5569 = vmatmul.mubr.f32.gmra.mxu0 %v3982
  %v5570 = vpop.f32.mrf.mxu0
  %v5571 = vadd.f32 %v5186, %v5570
  %v5572 = vpop.f32.mrf.mxu0
  %5573 = vmatprep.mubr.f32.mxu0 %v4047
  %5574 = vmatmul.mubr.f32.gmra.mxu0 %v3983
  %v5575 = vpop.f32.mrf.mxu0
  %v5576 = vadd.f32 %v5191, %v5575
  %v5577 = vpop.f32.mrf.mxu0
  %5578 = vmatprep.mubr.f32.mxu0 %v4048
  %5579 = vmatmul.mubr.f32.gmra.mxu0 %v3984
  %v5580 = vpop.f32.mrf.mxu0
  %v5581 = vadd.f32 %v5196, %v5580
  %v5582 = vpop.f32.mrf.mxu0
  %5583 = vmatprep.mubr.f32.mxu0 %v4049
  %5584 = vmatmul.mubr.f32.gmra.mxu0 %v3985
  %v5585 = vpop.f32.mrf.mxu0
  %v5586 = vadd.f32 %v5201, %v5585
  %v5587 = vpop.f32.mrf.mxu0
  %5588 = vmatprep.mubr.f32.mxu0 %v4050
  %5589 = vmatmul.mubr.f32.gmra.mxu0 %v3986
  %v5590 = vpop.f32.mrf.mxu0
  %v5591 = vadd.f32 %v5206, %v5590
  %v5592 = vpop.f32.mrf.mxu0
  %5593 = vmatprep.mubr.f32.mxu0 %v4051
  %5594 = vmatmul.mubr.f32.gmra.mxu0 %v3987
  %v5595 = vpop.f32.mrf.mxu0
  %v5596 = vadd.f32 %v5211, %v5595
  %v5597 = vpop.f32.mrf.mxu0
  %5598 = vmatprep.mubr.f32.mxu0 %v4052
  %5599 = vmatmul.mubr.f32.gmra.mxu0 %v3988
  %v5600 = vpop.f32.mrf.mxu0
  %v5601 = vadd.f32 %v5216, %v5600
  %v5602 = vpop.f32.mrf.mxu0
  %5603 = vmatprep.mubr.f32.mxu0 %v4053
  %5604 = vmatmul.mubr.f32.gmra.mxu0 %v3989
  %v5605 = vpop.f32.mrf.mxu0
  %v5606 = vadd.f32 %v5221, %v5605
  %v5607 = vpop.f32.mrf.mxu0
  %5608 = vmatprep.mubr.f32.mxu0 %v4054
  %5609 = vmatmul.mubr.f32.gmra.mxu0 %v3990
  %v5610 = vpop.f32.mrf.mxu0
  %v5611 = vadd.f32 %v5226, %v5610
  %v5612 = vpop.f32.mrf.mxu0
  %5613 = vmatprep.mubr.f32.mxu0 %v4055
  %5614 = vmatmul.mubr.f32.gmra.mxu0 %v3991
  %v5615 = vpop.f32.mrf.mxu0
  %v5616 = vadd.f32 %v5231, %v5615
  %v5617 = vpop.f32.mrf.mxu0
  %5618 = vmatprep.mubr.f32.mxu0 %v4056
  %5619 = vmatmul.mubr.f32.gmra.mxu0 %v3992
  %v5620 = vpop.f32.mrf.mxu0
  %v5621 = vadd.f32 %v5236, %v5620
  %v5622 = vpop.f32.mrf.mxu0
  %5623 = vmatprep.mubr.f32.mxu0 %v4057
  %5624 = vmatmul.mubr.f32.gmra.mxu0 %v3993
  %v5625 = vpop.f32.mrf.mxu0
  %v5626 = vadd.f32 %v5241, %v5625
  %v5627 = vpop.f32.mrf.mxu0
  %5628 = vmatprep.mubr.f32.mxu0 %v4058
  %5629 = vmatmul.mubr.f32.gmra.mxu0 %v3994
  %v5630 = vpop.f32.mrf.mxu0
  %v5631 = vadd.f32 %v5246, %v5630
  %v5632 = vpop.f32.mrf.mxu0
  %5633 = vmatprep.mubr.f32.mxu0 %v4059
  %5634 = vmatmul.mubr.f32.gmra.mxu0 %v3995
  %v5635 = vpop.f32.mrf.mxu0
  %v5636 = vadd.f32 %v5251, %v5635
  %v5637 = vpop.f32.mrf.mxu0
  %5638 = vmatprep.mubr.f32.mxu0 %v4060
  %5639 = vmatmul.mubr.f32.gmra.mxu0 %v3996
  %v5640 = vpop.f32.mrf.mxu0
  %v5641 = vadd.f32 %v5256, %v5640
  %v5642 = vpop.f32.mrf.mxu0
  %5643 = vmatprep.mubr.f32.mxu0 %v4061
  %5644 = vmatmul.mubr.f32.gmra.mxu0 %v3997
  %v5645 = vpop.f32.mrf.mxu0
  %v5646 = vadd.f32 %v5261, %v5645
  %v5647 = vpop.f32.mrf.mxu0
  %5648 = vmatprep.mubr.f32.mxu0 %v4062
  %5649 = vmatmul.mubr.f32.gmra.mxu0 %v3998
  %v5650 = vpop.f32.mrf.mxu0
  %v5651 = vadd.f32 %v5266, %v5650
  %v5652 = vpop.f32.mrf.mxu0
  %5653 = vmatprep.mubr.f32.mxu0 %v4063
  %5654 = vmatmul.mubr.f32.gmra.mxu0 %v3999
  %v5655 = vpop.f32.mrf.mxu0
  %v5656 = vadd.f32 %v5271, %v5655
  %v5657 = vpop.f32.mrf.mxu0
  %5658 = vmatprep.mubr.f32.mxu0 %v4064
  %5659 = vmatmul.mubr.f32.gmra.mxu0 %v4000
  %v5660 = vpop.f32.mrf.mxu0
  %v5661 = vadd.f32 %v5276, %v5660
  %v5662 = vpop.f32.mrf.mxu0
  %5663 = vmatprep.mubr.f32.mxu0 %v4065
  %5664 = vmatmul.mubr.f32.gmra.mxu0 %v4001
  %v5665 = vpop.f32.mrf.mxu0
  %v5666 = vadd.f32 %v5281, %v5665
  %v5667 = vpop.f32.mrf.mxu0
  %5668 = vmatprep.mubr.f32.mxu0 %v4066
  %5669 = vmatmul.mubr.f32.gmra.mxu0 %v4002
  %v5670 = vpop.f32.mrf.mxu0
  %v5671 = vadd.f32 %v5286, %v5670
  %v5672 = vpop.f32.mrf.mxu0
  %5673 = vmatprep.mubr.f32.mxu0 %v4067
  %5674 = vmatmul.mubr.f32.gmra.mxu0 %v4003
  %v5675 = vpop.f32.mrf.mxu0
  %v5676 = vadd.f32 %v5291, %v5675
  %v5677 = vpop.f32.mrf.mxu0
  %5678 = vmatprep.mubr.f32.mxu0 %v4068
  %5679 = vmatmul.mubr.f32.gmra.mxu0 %v4004
  %v5680 = vpop.f32.mrf.mxu0
  %v5681 = vadd.f32 %v5296, %v5680
  %v5682 = vpop.f32.mrf.mxu0
  %5683 = vmatprep.mubr.f32.mxu0 %v4069
  %5684 = vmatmul.mubr.f32.gmra.mxu0 %v4005
  %v5685 = vpop.f32.mrf.mxu0
  %v5686 = vadd.f32 %v5301, %v5685
  %v5687 = vpop.f32.mrf.mxu0
  %5688 = vmatprep.mubr.f32.mxu0 %v4070
  %5689 = vmatmul.mubr.f32.gmra.mxu0 %v4006
  %v5690 = vpop.f32.mrf.mxu0
  %v5691 = vadd.f32 %v5306, %v5690
  %v5692 = vpop.f32.mrf.mxu0
  %5693 = vmatprep.mubr.f32.mxu0 %v4071
  %5694 = vmatmul.mubr.f32.gmra.mxu0 %v4007
  %v5695 = vpop.f32.mrf.mxu0
  %v5696 = vadd.f32 %v5311, %v5695
  %v5697 = vpop.f32.mrf.mxu0
  %5698 = vmatprep.mubr.f32.mxu0 %v4072
  %5699 = vmatmul.mubr.f32.gmra.mxu0 %v4008
  %v5700 = vpop.f32.mrf.mxu0
  %v5701 = vadd.f32 %v5316, %v5700
  %v5702 = vpop.f32.mrf.mxu0
  %5703 = vmatprep.mubr.f32.mxu0 %v4073
  %5704 = vmatmul.mubr.f32.gmra.mxu0 %v4009
  %v5705 = vpop.f32.mrf.mxu0
  %v5706 = vadd.f32 %v5321, %v5705
  %v5707 = vpop.f32.mrf.mxu0
  %5708 = vmatprep.mubr.f32.mxu0 %v4074
  %5709 = vmatmul.mubr.f32.gmra.mxu0 %v4010
  %v5710 = vpop.f32.mrf.mxu0
  %v5711 = vadd.f32 %v5326, %v5710
  %v5712 = vpop.f32.mrf.mxu0
  %5713 = vmatprep.mubr.f32.mxu0 %v4075
  %5714 = vmatmul.mubr.f32.gmra.mxu0 %v4011
  %v5715 = vpop.f32.mrf.mxu0
  %v5716 = vadd.f32 %v5331, %v5715
  %v5717 = vpop.f32.mrf.mxu0
  %5718 = vmatprep.mubr.f32.mxu0 %v4076
  %5719 = vmatmul.mubr.f32.gmra.mxu0 %v4012
  %v5720 = vpop.f32.mrf.mxu0
  %v5721 = vadd.f32 %v5336, %v5720
  %v5722 = vpop.f32.mrf.mxu0
  %5723 = vmatprep.mubr.f32.mxu0 %v4077
  %5724 = vmatmul.mubr.f32.gmra.mxu0 %v4013
  %v5725 = vpop.f32.mrf.mxu0
  %v5726 = vadd.f32 %v5341, %v5725
  %v5727 = vpop.f32.mrf.mxu0
  %5728 = vmatprep.mubr.f32.mxu0 %v4078
  %5729 = vmatmul.mubr.f32.gmra.mxu0 %v4014
  %v5730 = vpop.f32.mrf.mxu0
  %v5731 = vadd.f32 %v5346, %v5730
  %v5732 = vpop.f32.mrf.mxu0
  %5733 = vmatprep.mubr.f32.mxu0 %v4079
  %5734 = vmatmul.mubr.f32.gmra.mxu0 %v4015
  %v5735 = vpop.f32.mrf.mxu0
  %v5736 = vadd.f32 %v5351, %v5735
  %v5737 = vpop.f32.mrf.mxu0
  %5738 = vmatprep.mubr.f32.mxu0 %v4080
  %5739 = vmatmul.mubr.f32.gmra.mxu0 %v4016
  %v5740 = vpop.f32.mrf.mxu0
  %v5741 = vadd.f32 %v5356, %v5740
  %v5742 = vpop.f32.mrf.mxu0
  %5743 = vmatprep.mubr.f32.mxu0 %v4081
  %5744 = vmatmul.mubr.f32.gmra.mxu0 %v4017
  %v5745 = vpop.f32.mrf.mxu0
  %v5746 = vadd.f32 %v5361, %v5745
  %v5747 = vpop.f32.mrf.mxu0
  %5748 = vmatprep.mubr.f32.mxu0 %v4082
  %5749 = vmatmul.mubr.f32.gmra.mxu0 %v4018
  %v5750 = vpop.f32.mrf.mxu0
  %v5751 = vadd.f32 %v5366, %v5750
  %v5752 = vpop.f32.mrf.mxu0
  %5753 = vmatprep.mubr.f32.mxu0 %v4083
  %5754 = vmatmul.mubr.f32.gmra.mxu0 %v4019
  %v5755 = vpop.f32.mrf.mxu0
  %v5756 = vadd.f32 %v5371, %v5755
  %v5757 = vpop.f32.mrf.mxu0
  %5758 = vmatprep.mubr.f32.mxu0 %v4084
  %5759 = vmatmul.mubr.f32.gmra.mxu0 %v4020
  %v5760 = vpop.f32.mrf.mxu0
  %v5761 = vadd.f32 %v5376, %v5760
  %v5762 = vpop.f32.mrf.mxu0
  %5763 = vmatprep.mubr.f32.mxu0 %v4085
  %5764 = vmatmul.mubr.f32.gmra.mxu0 %v4021
  %v5765 = vpop.f32.mrf.mxu0
  %v5766 = vadd.f32 %v5381, %v5765
  %v5767 = vpop.f32.mrf.mxu0
  %5768 = vmatprep.mubr.f32.mxu0 %v4086
  %5769 = vmatmul.mubr.f32.gmra.mxu0 %v4022
  %v5770 = vpop.f32.mrf.mxu0
  %v5771 = vadd.f32 %v5386, %v5770
  %v5772 = vpop.f32.mrf.mxu0
  %5773 = vmatprep.mubr.f32.mxu0 %v4087
  %5774 = vmatmul.mubr.f32.gmra.mxu0 %v4023
  %v5775 = vpop.f32.mrf.mxu0
  %v5776 = vadd.f32 %v5391, %v5775
  %v5777 = vpop.f32.mrf.mxu0
  %5778 = vmatprep.mubr.f32.mxu0 %v4088
  %5779 = vmatmul.mubr.f32.gmra.mxu0 %v4024
  %v5780 = vpop.f32.mrf.mxu0
  %v5781 = vadd.f32 %v5396, %v5780
  %v5782 = vpop.f32.mrf.mxu0
  %5783 = vmatprep.mubr.f32.mxu0 %v4089
  %5784 = vmatmul.mubr.f32.gmra.mxu0 %v4025
  %v5785 = vpop.f32.mrf.mxu0
  %v5786 = vadd.f32 %v5401, %v5785
  %v5787 = vpop.f32.mrf.mxu0
  %5788 = vmatprep.mubr.f32.mxu0 %v4090
  %5789 = vmatmul.mubr.f32.gmra.mxu0 %v4026
  %v5790 = vpop.f32.mrf.mxu0
  %v5791 = vadd.f32 %v5406, %v5790
  %v5792 = vpop.f32.mrf.mxu0
  %5793 = vmatprep.mubr.f32.mxu0 %v4091
  %5794 = vmatmul.mubr.f32.gmra.mxu0 %v4027
  %v5795 = vpop.f32.mrf.mxu0
  %v5796 = vadd.f32 %v5411, %v5795
  %v5797 = vpop.f32.mrf.mxu0
  %5798 = vmatprep.mubr.f32.mxu0 %v4092
  %5799 = vmatmul.mubr.f32.gmra.mxu0 %v4028
  %v5800 = vpop.f32.mrf.mxu0
  %v5801 = vadd.f32 %v5416, %v5800
  %v5802 = vpop.f32.mrf.mxu0
  %5803 = vmatprep.mubr.f32.mxu0 %v4093
  %5804 = vmatmul.mubr.f32.gmra.mxu0 %v4029
  %v5805 = vpop.f32.mrf.mxu0
  %v5806 = vadd.f32 %v5421, %v5805
  %v5807 = vpop.f32.mrf.mxu0
  %5808 = vmatprep.mubr.f32.mxu0 %v4094
  %5809 = vmatmul.mubr.f32.gmra.mxu0 %v4030
  %v5810 = vpop.f32.mrf.mxu0
  %v5811 = vadd.f32 %v5426, %v5810
  %v5812 = vpop.f32.mrf.mxu0
  %5813 = vmatprep.mubr.f32.mxu0 %v4095
  %5814 = vmatmul.mubr.f32.gmra.mxu0 %v4031
  %v5815 = vpop.f32.mrf.mxu0
  %v5816 = vadd.f32 %v5431, %v5815
  %v5817 = vpop.f32.mrf.mxu0
  %5818 = vmatprep.mubr.f32.mxu0 %v4096
  %5819 = vmatmul.mubr.f32.gmra.mxu0 %v4032
  %v5820 = vpop.f32.mrf.mxu0
  %v5821 = vadd.f32 %v5436, %v5820
  %v5822 = vpop.f32.mrf.mxu0
  %5823 = vmatprep.mubr.f32.mxu0 %v4097
  %5824 = vmatmul.mubr.f32.gmra.mxu0 %v4033
  %v5825 = vpop.f32.mrf.mxu0
  %v5826 = vadd.f32 %v5441, %v5825
  %v5827 = vpop.f32.mrf.mxu0
  %5828 = vmatprep.mubr.f32.mxu0 %v4098
  %5829 = vmatmul.mubr.f32.gmra.mxu0 %v4034
  %v5830 = vpop.f32.mrf.mxu0
  %v5831 = vadd.f32 %v5446, %v5830
  %v5832 = vpop.f32.mrf.mxu0
  %5833 = vmatprep.mubr.f32.mxu0 %v4099
  %5834 = vmatmul.mubr.f32.gmra.mxu0 %v4035
  %v5835 = vpop.f32.mrf.mxu0
  %v5836 = vadd.f32 %v5451, %v5835
  %v5837 = vpop.f32.mrf.mxu0
  %5838 = vmatprep.mubr.f32.mxu0 %v4100
  %5839 = vmatmul.mubr.f32.gmra.mxu0 %v4036
  %v5840 = vpop.f32.mrf.mxu0
  %v5841 = vadd.f32 %v5456, %v5840
  %v5842 = vpop.f32.mrf.mxu0
  %5843 = vmatprep.mubr.f32.mxu0 %v4101
  %5844 = vmatmul.mubr.f32.gmra.mxu0 %v4037
  %v5845 = vpop.f32.mrf.mxu0
  %v5846 = vadd.f32 %v5461, %v5845
  %v5847 = vpop.f32.mrf.mxu0
  %5848 = vmatprep.mubr.f32.mxu0 %v4102
  %5849 = vmatmul.mubr.f32.gmra.mxu0 %v4038
  %v5850 = vpop.f32.mrf.mxu0
  %v5851 = vadd.f32 %v5466, %v5850
  %v5852 = vpop.f32.mrf.mxu0
  %5853 = vmatprep.mubr.f32.mxu0 %v4103
  %5854 = vmatmul.mubr.f32.gmra.mxu0 %v4039
  %v5855 = vpop.f32.mrf.mxu0
  %v5856 = vadd.f32 %v5471, %v5855
  %v5857 = vpop.f32.mrf.mxu0
  %5858 = vdwg.mxu0
  %5859 = vmatprep.subr.mxu0 0.0
  %5860 = vmatpush1.msra.mxu0 %v4311
  %5861 = vmatprep.subr.mxu0 0.0
  %5862 = vmatpush1.msra.mxu0 %v4310
  %5863 = vmatprep.subr.mxu0 0.0
  %5864 = vmatpush1.msra.mxu0 %v4309
  %5865 = vmatprep.subr.mxu0 0.0
  %5866 = vmatpush1.msra.mxu0 %v4308
  %5867 = vmatprep.subr.mxu0 0.0
  %5868 = vmatpush1.msra.mxu0 %v4307
  %5869 = vmatprep.subr.mxu0 0.0
  %5870 = vmatpush1.msra.mxu0 %v4306
  %5871 = vmatprep.subr.mxu0 0.0
  %5872 = vmatpush1.msra.mxu0 %v4305
  %5873 = vmatprep.subr.mxu0 0.0
  %5874 = vmatpush1.msra.mxu0 %v4304
  %5875 = vmatprep.subr.mxu0 0.0
  %5876 = vmatpush1.msra.mxu0 %v4303
  %5877 = vmatprep.subr.mxu0 0.0
  %5878 = vmatpush1.msra.mxu0 %v4302
  %5879 = vmatprep.subr.mxu0 0.0
  %5880 = vmatpush1.msra.mxu0 %v4301
  %5881 = vmatprep.subr.mxu0 0.0
  %5882 = vmatpush1.msra.mxu0 %v4300
  %5883 = vmatprep.subr.mxu0 0.0
  %5884 = vmatpush1.msra.mxu0 %v4299
  %5885 = vmatprep.subr.mxu0 0.0
  %5886 = vmatpush1.msra.mxu0 %v4298
  %5887 = vmatprep.subr.mxu0 0.0
  %5888 = vmatpush1.msra.mxu0 %v4297
  %5889 = vmatprep.subr.mxu0 0.0
  %5890 = vmatpush1.msra.mxu0 %v4296
  %5891 = vmatprep.subr.mxu0 0.0
  %5892 = vmatpush2.msra.mxu0 0.0
  %5893 = vmatprep.subr.mxu0 0.0
  %5894 = vmatpush2.msra.mxu0 0.0
  %5895 = vmatprep.subr.mxu0 0.0
  %5896 = vmatpush2.msra.mxu0 0.0
  %5897 = vmatprep.subr.mxu0 0.0
  %5898 = vmatpush2.msra.mxu0 0.0
  %5899 = vmatprep.subr.mxu0 0.0
  %5900 = vmatpush2.msra.mxu0 0.0
  %5901 = vmatprep.subr.mxu0 0.0
  %5902 = vmatpush2.msra.mxu0 0.0
  %5903 = vmatprep.subr.mxu0 0.0
  %5904 = vmatpush2.msra.mxu0 0.0
  %5905 = vmatprep.subr.mxu0 0.0
  %5906 = vmatpush2.msra.mxu0 0.0
  %5907 = vmatprep.subr.mxu0 0.0
  %5908 = vmatpush2.msra.mxu0 0.0
  %5909 = vmatprep.subr.mxu0 0.0
  %5910 = vmatpush2.msra.mxu0 0.0
  %5911 = vmatprep.subr.mxu0 0.0
  %5912 = vmatpush2.msra.mxu0 0.0
  %5913 = vmatprep.subr.mxu0 0.0
  %5914 = vmatpush2.msra.mxu0 0.0
  %5915 = vmatprep.subr.mxu0 0.0
  %5916 = vmatpush2.msra.mxu0 0.0
  %5917 = vmatprep.subr.mxu0 0.0
  %5918 = vmatpush2.msra.mxu0 0.0
  %5919 = vmatprep.subr.mxu0 0.0
  %5920 = vmatpush2.msra.mxu0 0.0
  %5921 = vmatprep.subr.mxu0 0.0
  %5922 = vmatpush2.msra.mxu0 0.0
  %5923 = vmatprep.mubr.f32.mxu0 0.0
  %5924 = vmatmul.mubr.f32.gmra.mxu0 %v4104
  %v5925 = vpop.f32.mrf.mxu0
  %v5926 = vadd.f32 %v5541, %v5925
  %v5927 = vpop.f32.mrf.mxu0
  %5928 = vmatprep.mubr.f32.mxu0 0.0
  %5929 = vmatmul.mubr.f32.gmra.mxu0 %v4105
  %v5930 = vpop.f32.mrf.mxu0
  %v5931 = vadd.f32 %v5546, %v5930
  %v5932 = vpop.f32.mrf.mxu0
  %5933 = vmatprep.mubr.f32.mxu0 0.0
  %5934 = vmatmul.mubr.f32.gmra.mxu0 %v4106
  %v5935 = vpop.f32.mrf.mxu0
  %v5936 = vadd.f32 %v5551, %v5935
  %v5937 = vpop.f32.mrf.mxu0
  %5938 = vmatprep.mubr.f32.mxu0 0.0
  %5939 = vmatmul.mubr.f32.gmra.mxu0 %v4107
  %v5940 = vpop.f32.mrf.mxu0
  %v5941 = vadd.f32 %v5556, %v5940
  %v5942 = vpop.f32.mrf.mxu0
  %5943 = vmatprep.mubr.f32.mxu0 0.0
  %5944 = vmatmul.mubr.f32.gmra.mxu0 %v4108
  %v5945 = vpop.f32.mrf.mxu0
  %v5946 = vadd.f32 %v5561, %v5945
  %v5947 = vpop.f32.mrf.mxu0
  %5948 = vmatprep.mubr.f32.mxu0 0.0
  %5949 = vmatmul.mubr.f32.gmra.mxu0 %v4109
  %v5950 = vpop.f32.mrf.mxu0
  %v5951 = vadd.f32 %v5566, %v5950
  %v5952 = vpop.f32.mrf.mxu0
  %5953 = vmatprep.mubr.f32.mxu0 0.0
  %5954 = vmatmul.mubr.f32.gmra.mxu0 %v4110
  %v5955 = vpop.f32.mrf.mxu0
  %v5956 = vadd.f32 %v5571, %v5955
  %v5957 = vpop.f32.mrf.mxu0
  %5958 = vmatprep.mubr.f32.mxu0 0.0
  %5959 = vmatmul.mubr.f32.gmra.mxu0 %v4111
  %v5960 = vpop.f32.mrf.mxu0
  %v5961 = vadd.f32 %v5576, %v5960
  %v5962 = vpop.f32.mrf.mxu0
  %5963 = vmatprep.mubr.f32.mxu0 0.0
  %5964 = vmatmul.mubr.f32.gmra.mxu0 %v4112
  %v5965 = vpop.f32.mrf.mxu0
  %v5966 = vadd.f32 %v5581, %v5965
  %v5967 = vpop.f32.mrf.mxu0
  %5968 = vmatprep.mubr.f32.mxu0 0.0
  %5969 = vmatmul.mubr.f32.gmra.mxu0 %v4113
  %v5970 = vpop.f32.mrf.mxu0
  %v5971 = vadd.f32 %v5586, %v5970
  %v5972 = vpop.f32.mrf.mxu0
  %5973 = vmatprep.mubr.f32.mxu0 0.0
  %5974 = vmatmul.mubr.f32.gmra.mxu0 %v4114
  %v5975 = vpop.f32.mrf.mxu0
  %v5976 = vadd.f32 %v5591, %v5975
  %v5977 = vpop.f32.mrf.mxu0
  %5978 = vmatprep.mubr.f32.mxu0 0.0
  %5979 = vmatmul.mubr.f32.gmra.mxu0 %v4115
  %v5980 = vpop.f32.mrf.mxu0
  %v5981 = vadd.f32 %v5596, %v5980
  %v5982 = vpop.f32.mrf.mxu0
  %5983 = vmatprep.mubr.f32.mxu0 0.0
  %5984 = vmatmul.mubr.f32.gmra.mxu0 %v4116
  %v5985 = vpop.f32.mrf.mxu0
  %v5986 = vadd.f32 %v5601, %v5985
  %v5987 = vpop.f32.mrf.mxu0
  %5988 = vmatprep.mubr.f32.mxu0 0.0
  %5989 = vmatmul.mubr.f32.gmra.mxu0 %v4117
  %v5990 = vpop.f32.mrf.mxu0
  %v5991 = vadd.f32 %v5606, %v5990
  %v5992 = vpop.f32.mrf.mxu0
  %5993 = vmatprep.mubr.f32.mxu0 0.0
  %5994 = vmatmul.mubr.f32.gmra.mxu0 %v4118
  %v5995 = vpop.f32.mrf.mxu0
  %v5996 = vadd.f32 %v5611, %v5995
  %v5997 = vpop.f32.mrf.mxu0
  %5998 = vmatprep.mubr.f32.mxu0 0.0
  %5999 = vmatmul.mubr.f32.gmra.mxu0 %v4119
  %v6000 = vpop.f32.mrf.mxu0
  %v6001 = vadd.f32 %v5616, %v6000
  %v6002 = vpop.f32.mrf.mxu0
  %6003 = vmatprep.mubr.f32.mxu0 0.0
  %6004 = vmatmul.mubr.f32.gmra.mxu0 %v4120
  %v6005 = vpop.f32.mrf.mxu0
  %v6006 = vadd.f32 %v5621, %v6005
  %v6007 = vpop.f32.mrf.mxu0
  %6008 = vmatprep.mubr.f32.mxu0 0.0
  %6009 = vmatmul.mubr.f32.gmra.mxu0 %v4121
  %v6010 = vpop.f32.mrf.mxu0
  %v6011 = vadd.f32 %v5626, %v6010
  %v6012 = vpop.f32.mrf.mxu0
  %6013 = vmatprep.mubr.f32.mxu0 0.0
  %6014 = vmatmul.mubr.f32.gmra.mxu0 %v4122
  %v6015 = vpop.f32.mrf.mxu0
  %v6016 = vadd.f32 %v5631, %v6015
  %v6017 = vpop.f32.mrf.mxu0
  %6018 = vmatprep.mubr.f32.mxu0 0.0
  %6019 = vmatmul.mubr.f32.gmra.mxu0 %v4123
  %v6020 = vpop.f32.mrf.mxu0
  %v6021 = vadd.f32 %v5636, %v6020
  %v6022 = vpop.f32.mrf.mxu0
  %6023 = vmatprep.mubr.f32.mxu0 0.0
  %6024 = vmatmul.mubr.f32.gmra.mxu0 %v4124
  %v6025 = vpop.f32.mrf.mxu0
  %v6026 = vadd.f32 %v5641, %v6025
  %v6027 = vpop.f32.mrf.mxu0
  %6028 = vmatprep.mubr.f32.mxu0 0.0
  %6029 = vmatmul.mubr.f32.gmra.mxu0 %v4125
  %v6030 = vpop.f32.mrf.mxu0
  %v6031 = vadd.f32 %v5646, %v6030
  %v6032 = vpop.f32.mrf.mxu0
  %6033 = vmatprep.mubr.f32.mxu0 0.0
  %6034 = vmatmul.mubr.f32.gmra.mxu0 %v4126
  %v6035 = vpop.f32.mrf.mxu0
  %v6036 = vadd.f32 %v5651, %v6035
  %v6037 = vpop.f32.mrf.mxu0
  %6038 = vmatprep.mubr.f32.mxu0 0.0
  %6039 = vmatmul.mubr.f32.gmra.mxu0 %v4127
  %v6040 = vpop.f32.mrf.mxu0
  %v6041 = vadd.f32 %v5656, %v6040
  %v6042 = vpop.f32.mrf.mxu0
  %6043 = vmatprep.mubr.f32.mxu0 0.0
  %6044 = vmatmul.mubr.f32.gmra.mxu0 %v4128
  %v6045 = vpop.f32.mrf.mxu0
  %v6046 = vadd.f32 %v5661, %v6045
  %v6047 = vpop.f32.mrf.mxu0
  %6048 = vmatprep.mubr.f32.mxu0 0.0
  %6049 = vmatmul.mubr.f32.gmra.mxu0 %v4129
  %v6050 = vpop.f32.mrf.mxu0
  %v6051 = vadd.f32 %v5666, %v6050
  %v6052 = vpop.f32.mrf.mxu0
  %6053 = vmatprep.mubr.f32.mxu0 0.0
  %6054 = vmatmul.mubr.f32.gmra.mxu0 %v4130
  %v6055 = vpop.f32.mrf.mxu0
  %v6056 = vadd.f32 %v5671, %v6055
  %v6057 = vpop.f32.mrf.mxu0
  %6058 = vmatprep.mubr.f32.mxu0 0.0
  %6059 = vmatmul.mubr.f32.gmra.mxu0 %v4131
  %v6060 = vpop.f32.mrf.mxu0
  %v6061 = vadd.f32 %v5676, %v6060
  %v6062 = vpop.f32.mrf.mxu0
  %6063 = vmatprep.mubr.f32.mxu0 0.0
  %6064 = vmatmul.mubr.f32.gmra.mxu0 %v4132
  %v6065 = vpop.f32.mrf.mxu0
  %v6066 = vadd.f32 %v5681, %v6065
  %v6067 = vpop.f32.mrf.mxu0
  %6068 = vmatprep.mubr.f32.mxu0 0.0
  %6069 = vmatmul.mubr.f32.gmra.mxu0 %v4133
  %v6070 = vpop.f32.mrf.mxu0
  %v6071 = vadd.f32 %v5686, %v6070
  %v6072 = vpop.f32.mrf.mxu0
  %6073 = vmatprep.mubr.f32.mxu0 0.0
  %6074 = vmatmul.mubr.f32.gmra.mxu0 %v4134
  %v6075 = vpop.f32.mrf.mxu0
  %v6076 = vadd.f32 %v5691, %v6075
  %v6077 = vpop.f32.mrf.mxu0
  %6078 = vmatprep.mubr.f32.mxu0 0.0
  %6079 = vmatmul.mubr.f32.gmra.mxu0 %v4135
  %v6080 = vpop.f32.mrf.mxu0
  %v6081 = vadd.f32 %v5696, %v6080
  %v6082 = vpop.f32.mrf.mxu0
  %6083 = vmatprep.mubr.f32.mxu0 0.0
  %6084 = vmatmul.mubr.f32.gmra.mxu0 %v4136
  %v6085 = vpop.f32.mrf.mxu0
  %v6086 = vadd.f32 %v5701, %v6085
  %v6087 = vpop.f32.mrf.mxu0
  %6088 = vmatprep.mubr.f32.mxu0 0.0
  %6089 = vmatmul.mubr.f32.gmra.mxu0 %v4137
  %v6090 = vpop.f32.mrf.mxu0
  %v6091 = vadd.f32 %v5706, %v6090
  %v6092 = vpop.f32.mrf.mxu0
  %6093 = vmatprep.mubr.f32.mxu0 0.0
  %6094 = vmatmul.mubr.f32.gmra.mxu0 %v4138
  %v6095 = vpop.f32.mrf.mxu0
  %v6096 = vadd.f32 %v5711, %v6095
  %v6097 = vpop.f32.mrf.mxu0
  %6098 = vmatprep.mubr.f32.mxu0 0.0
  %6099 = vmatmul.mubr.f32.gmra.mxu0 %v4139
  %v6100 = vpop.f32.mrf.mxu0
  %v6101 = vadd.f32 %v5716, %v6100
  %v6102 = vpop.f32.mrf.mxu0
  %6103 = vmatprep.mubr.f32.mxu0 0.0
  %6104 = vmatmul.mubr.f32.gmra.mxu0 %v4140
  %v6105 = vpop.f32.mrf.mxu0
  %v6106 = vadd.f32 %v5721, %v6105
  %v6107 = vpop.f32.mrf.mxu0
  %6108 = vmatprep.mubr.f32.mxu0 0.0
  %6109 = vmatmul.mubr.f32.gmra.mxu0 %v4141
  %v6110 = vpop.f32.mrf.mxu0
  %v6111 = vadd.f32 %v5726, %v6110
  %v6112 = vpop.f32.mrf.mxu0
  %6113 = vmatprep.mubr.f32.mxu0 0.0
  %6114 = vmatmul.mubr.f32.gmra.mxu0 %v4142
  %v6115 = vpop.f32.mrf.mxu0
  %v6116 = vadd.f32 %v5731, %v6115
  %v6117 = vpop.f32.mrf.mxu0
  %6118 = vmatprep.mubr.f32.mxu0 0.0
  %6119 = vmatmul.mubr.f32.gmra.mxu0 %v4143
  %v6120 = vpop.f32.mrf.mxu0
  %v6121 = vadd.f32 %v5736, %v6120
  %v6122 = vpop.f32.mrf.mxu0
  %6123 = vmatprep.mubr.f32.mxu0 0.0
  %6124 = vmatmul.mubr.f32.gmra.mxu0 %v4144
  %v6125 = vpop.f32.mrf.mxu0
  %v6126 = vadd.f32 %v5741, %v6125
  %v6127 = vpop.f32.mrf.mxu0
  %6128 = vmatprep.mubr.f32.mxu0 0.0
  %6129 = vmatmul.mubr.f32.gmra.mxu0 %v4145
  %v6130 = vpop.f32.mrf.mxu0
  %v6131 = vadd.f32 %v5746, %v6130
  %v6132 = vpop.f32.mrf.mxu0
  %6133 = vmatprep.mubr.f32.mxu0 0.0
  %6134 = vmatmul.mubr.f32.gmra.mxu0 %v4146
  %v6135 = vpop.f32.mrf.mxu0
  %v6136 = vadd.f32 %v5751, %v6135
  %v6137 = vpop.f32.mrf.mxu0
  %6138 = vmatprep.mubr.f32.mxu0 0.0
  %6139 = vmatmul.mubr.f32.gmra.mxu0 %v4147
  %v6140 = vpop.f32.mrf.mxu0
  %v6141 = vadd.f32 %v5756, %v6140
  %v6142 = vpop.f32.mrf.mxu0
  %6143 = vmatprep.mubr.f32.mxu0 0.0
  %6144 = vmatmul.mubr.f32.gmra.mxu0 %v4148
  %v6145 = vpop.f32.mrf.mxu0
  %v6146 = vadd.f32 %v5761, %v6145
  %v6147 = vpop.f32.mrf.mxu0
  %6148 = vmatprep.mubr.f32.mxu0 0.0
  %6149 = vmatmul.mubr.f32.gmra.mxu0 %v4149
  %v6150 = vpop.f32.mrf.mxu0
  %v6151 = vadd.f32 %v5766, %v6150
  %v6152 = vpop.f32.mrf.mxu0
  %6153 = vmatprep.mubr.f32.mxu0 0.0
  %6154 = vmatmul.mubr.f32.gmra.mxu0 %v4150
  %v6155 = vpop.f32.mrf.mxu0
  %v6156 = vadd.f32 %v5771, %v6155
  %v6157 = vpop.f32.mrf.mxu0
  %6158 = vmatprep.mubr.f32.mxu0 0.0
  %6159 = vmatmul.mubr.f32.gmra.mxu0 %v4151
  %v6160 = vpop.f32.mrf.mxu0
  %v6161 = vadd.f32 %v5776, %v6160
  %v6162 = vpop.f32.mrf.mxu0
  %6163 = vmatprep.mubr.f32.mxu0 0.0
  %6164 = vmatmul.mubr.f32.gmra.mxu0 %v4152
  %v6165 = vpop.f32.mrf.mxu0
  %v6166 = vadd.f32 %v5781, %v6165
  %v6167 = vpop.f32.mrf.mxu0
  %6168 = vmatprep.mubr.f32.mxu0 0.0
  %6169 = vmatmul.mubr.f32.gmra.mxu0 %v4153
  %v6170 = vpop.f32.mrf.mxu0
  %v6171 = vadd.f32 %v5786, %v6170
  %v6172 = vpop.f32.mrf.mxu0
  %6173 = vmatprep.mubr.f32.mxu0 0.0
  %6174 = vmatmul.mubr.f32.gmra.mxu0 %v4154
  %v6175 = vpop.f32.mrf.mxu0
  %v6176 = vadd.f32 %v5791, %v6175
  %v6177 = vpop.f32.mrf.mxu0
  %6178 = vmatprep.mubr.f32.mxu0 0.0
  %6179 = vmatmul.mubr.f32.gmra.mxu0 %v4155
  %v6180 = vpop.f32.mrf.mxu0
  %v6181 = vadd.f32 %v5796, %v6180
  %v6182 = vpop.f32.mrf.mxu0
  %6183 = vmatprep.mubr.f32.mxu0 0.0
  %6184 = vmatmul.mubr.f32.gmra.mxu0 %v4156
  %v6185 = vpop.f32.mrf.mxu0
  %v6186 = vadd.f32 %v5801, %v6185
  %v6187 = vpop.f32.mrf.mxu0
  %6188 = vmatprep.mubr.f32.mxu0 0.0
  %6189 = vmatmul.mubr.f32.gmra.mxu0 %v4157
  %v6190 = vpop.f32.mrf.mxu0
  %v6191 = vadd.f32 %v5806, %v6190
  %v6192 = vpop.f32.mrf.mxu0
  %6193 = vmatprep.mubr.f32.mxu0 0.0
  %6194 = vmatmul.mubr.f32.gmra.mxu0 %v4158
  %v6195 = vpop.f32.mrf.mxu0
  %v6196 = vadd.f32 %v5811, %v6195
  %v6197 = vpop.f32.mrf.mxu0
  %6198 = vmatprep.mubr.f32.mxu0 0.0
  %6199 = vmatmul.mubr.f32.gmra.mxu0 %v4159
  %v6200 = vpop.f32.mrf.mxu0
  %v6201 = vadd.f32 %v5816, %v6200
  %v6202 = vpop.f32.mrf.mxu0
  %6203 = vmatprep.mubr.f32.mxu0 0.0
  %6204 = vmatmul.mubr.f32.gmra.mxu0 %v4160
  %v6205 = vpop.f32.mrf.mxu0
  %v6206 = vadd.f32 %v5821, %v6205
  %v6207 = vpop.f32.mrf.mxu0
  %6208 = vmatprep.mubr.f32.mxu0 0.0
  %6209 = vmatmul.mubr.f32.gmra.mxu0 %v4161
  %v6210 = vpop.f32.mrf.mxu0
  %v6211 = vadd.f32 %v5826, %v6210
  %v6212 = vpop.f32.mrf.mxu0
  %6213 = vmatprep.mubr.f32.mxu0 0.0
  %6214 = vmatmul.mubr.f32.gmra.mxu0 %v4162
  %v6215 = vpop.f32.mrf.mxu0
  %v6216 = vadd.f32 %v5831, %v6215
  %v6217 = vpop.f32.mrf.mxu0
  %6218 = vmatprep.mubr.f32.mxu0 0.0
  %6219 = vmatmul.mubr.f32.gmra.mxu0 %v4163
  %v6220 = vpop.f32.mrf.mxu0
  %v6221 = vadd.f32 %v5836, %v6220
  %v6222 = vpop.f32.mrf.mxu0
  %6223 = vmatprep.mubr.f32.mxu0 0.0
  %6224 = vmatmul.mubr.f32.gmra.mxu0 %v4164
  %v6225 = vpop.f32.mrf.mxu0
  %v6226 = vadd.f32 %v5841, %v6225
  %v6227 = vpop.f32.mrf.mxu0
  %6228 = vmatprep.mubr.f32.mxu0 0.0
  %6229 = vmatmul.mubr.f32.gmra.mxu0 %v4165
  %v6230 = vpop.f32.mrf.mxu0
  %v6231 = vadd.f32 %v5846, %v6230
  %v6232 = vpop.f32.mrf.mxu0
  %6233 = vmatprep.mubr.f32.mxu0 0.0
  %6234 = vmatmul.mubr.f32.gmra.mxu0 %v4166
  %v6235 = vpop.f32.mrf.mxu0
  %v6236 = vadd.f32 %v5851, %v6235
  %v6237 = vpop.f32.mrf.mxu0
  %6238 = vmatprep.mubr.f32.mxu0 0.0
  %6239 = vmatmul.mubr.f32.gmra.mxu0 %v4167
  %v6240 = vpop.f32.mrf.mxu0
  %v6241 = vadd.f32 %v5856, %v6240
  %v6242 = vpop.f32.mrf.mxu0
  %6243 = vdwg.mxu0
  %v6244 = vadd.f32 %v5926, %v5931
  %v6245 = vadd.f32 %v6244, %v5936
  %v6246 = vadd.f32 %v6245, %v5941
  %v6247 = vadd.f32 %v6246, %v5946
  %v6248 = vadd.f32 %v6247, %v5951
  %v6249 = vadd.f32 %v6248, %v5956
  %v6250 = vadd.f32 %v6249, %v5961
  %v6251 = vadd.f32 %v6250, %v5966
  %v6252 = vadd.f32 %v6251, %v5971
  %v6253 = vadd.f32 %v6252, %v5976
  %v6254 = vadd.f32 %v6253, %v5981
  %v6255 = vadd.f32 %v6254, %v5986
  %v6256 = vadd.f32 %v6255, %v5991
  %v6257 = vadd.f32 %v6256, %v5996
  %v6258 = vadd.f32 %v6257, %v6001
  %v6259 = vadd.f32 %v6258, %v6006
  %v6260 = vadd.f32 %v6259, %v6011
  %v6261 = vadd.f32 %v6260, %v6016
  %v6262 = vadd.f32 %v6261, %v6021
  %v6263 = vadd.f32 %v6262, %v6026
  %v6264 = vadd.f32 %v6263, %v6031
  %v6265 = vadd.f32 %v6264, %v6036
  %v6266 = vadd.f32 %v6265, %v6041
  %v6267 = vadd.f32 %v6266, %v6046
  %v6268 = vadd.f32 %v6267, %v6051
  %v6269 = vadd.f32 %v6268, %v6056
  %v6270 = vadd.f32 %v6269, %v6061
  %v6271 = vadd.f32 %v6270, %v6066
  %v6272 = vadd.f32 %v6271, %v6071
  %v6273 = vadd.f32 %v6272, %v6076
  %v6274 = vadd.f32 %v6273, %v6081
  %v6275 = vadd.f32 %v6274, %v6086
  %v6276 = vadd.f32 %v6275, %v6091
  %v6277 = vadd.f32 %v6276, %v6096
  %v6278 = vadd.f32 %v6277, %v6101
  %v6279 = vadd.f32 %v6278, %v6106
  %v6280 = vadd.f32 %v6279, %v6111
  %v6281 = vadd.f32 %v6280, %v6116
  %v6282 = vadd.f32 %v6281, %v6121
  %v6283 = vadd.f32 %v6282, %v6126
  %v6284 = vadd.f32 %v6283, %v6131
  %v6285 = vadd.f32 %v6284, %v6136
  %v6286 = vadd.f32 %v6285, %v6141
  %v6287 = vadd.f32 %v6286, %v6146
  %v6288 = vadd.f32 %v6287, %v6151
  %v6289 = vadd.f32 %v6288, %v6156
  %v6290 = vadd.f32 %v6289, %v6161
  %v6291 = vadd.f32 %v6290, %v6166
  %v6292 = vadd.f32 %v6291, %v6171
  %v6293 = vadd.f32 %v6292, %v6176
  %v6294 = vadd.f32 %v6293, %v6181
  %v6295 = vadd.f32 %v6294, %v6186
  %v6296 = vadd.f32 %v6295, %v6191
  %v6297 = vadd.f32 %v6296, %v6196
  %v6298 = vadd.f32 %v6297, %v6201
  %v6299 = vadd.f32 %v6298, %v6206
  %v6300 = vadd.f32 %v6299, %v6211
  %v6301 = vadd.f32 %v6300, %v6216
  %v6302 = vadd.f32 %v6301, %v6221
  %v6303 = vadd.f32 %v6302, %v6226
  %v6304 = vadd.f32 %v6303, %v6231
  %v6305 = vadd.f32 %v6304, %v6236
  %v6306 = vadd.f32 %v6305, %v6241
  %v6307 = vrot.slane %v6306, 4
  %v6308 = vadd.f32 %v6306, %v6307
  %v6309 = vrot.slane %v6308, 2
  %v6310 = vadd.f32 %v6308, %v6309
  %v6311 = vrot.slane %v6310, 1
  %v6312 = vadd.f32 %v6310, %v6311
  %v6313 = vmul.f32 %v5926, %v5926
  %v6314 = vmul.f32 %v5931, %v5931
  %v6315 = vmul.f32 %v5936, %v5936
  %v6316 = vmul.f32 %v5941, %v5941
  %v6317 = vmul.f32 %v5946, %v5946
  %v6318 = vmul.f32 %v5951, %v5951
  %v6319 = vmul.f32 %v5956, %v5956
  %v6320 = vmul.f32 %v5961, %v5961
  %v6321 = vmul.f32 %v5966, %v5966
  %v6322 = vmul.f32 %v5971, %v5971
  %v6323 = vmul.f32 %v5976, %v5976
  %v6324 = vmul.f32 %v5981, %v5981
  %v6325 = vmul.f32 %v5986, %v5986
  %v6326 = vmul.f32 %v5991, %v5991
  %v6327 = vmul.f32 %v5996, %v5996
  %v6328 = vmul.f32 %v6001, %v6001
  %v6329 = vmul.f32 %v6006, %v6006
  %v6330 = vmul.f32 %v6011, %v6011
  %v6331 = vmul.f32 %v6016, %v6016
  %v6332 = vmul.f32 %v6021, %v6021
  %v6333 = vmul.f32 %v6026, %v6026
  %v6334 = vmul.f32 %v6031, %v6031
  %v6335 = vmul.f32 %v6036, %v6036
  %v6336 = vmul.f32 %v6041, %v6041
  %v6337 = vmul.f32 %v6046, %v6046
  %v6338 = vmul.f32 %v6051, %v6051
  %v6339 = vmul.f32 %v6056, %v6056
  %v6340 = vmul.f32 %v6061, %v6061
  %v6341 = vmul.f32 %v6066, %v6066
  %v6342 = vmul.f32 %v6071, %v6071
  %v6343 = vmul.f32 %v6076, %v6076
  %v6344 = vmul.f32 %v6081, %v6081
  %v6345 = vmul.f32 %v6086, %v6086
  %v6346 = vmul.f32 %v6091, %v6091
  %v6347 = vmul.f32 %v6096, %v6096
  %v6348 = vmul.f32 %v6101, %v6101
  %v6349 = vmul.f32 %v6106, %v6106
  %v6350 = vmul.f32 %v6111, %v6111
  %v6351 = vmul.f32 %v6116, %v6116
  %v6352 = vmul.f32 %v6121, %v6121
  %v6353 = vmul.f32 %v6126, %v6126
  %v6354 = vmul.f32 %v6131, %v6131
  %v6355 = vmul.f32 %v6136, %v6136
  %v6356 = vmul.f32 %v6141, %v6141
  %v6357 = vmul.f32 %v6146, %v6146
  %v6358 = vmul.f32 %v6151, %v6151
  %v6359 = vmul.f32 %v6156, %v6156
  %v6360 = vmul.f32 %v6161, %v6161
  %v6361 = vmul.f32 %v6166, %v6166
  %v6362 = vmul.f32 %v6171, %v6171
  %v6363 = vmul.f32 %v6176, %v6176
  %v6364 = vmul.f32 %v6181, %v6181
  %v6365 = vmul.f32 %v6186, %v6186
  %v6366 = vmul.f32 %v6191, %v6191
  %v6367 = vmul.f32 %v6196, %v6196
  %v6368 = vmul.f32 %v6201, %v6201
  %v6369 = vmul.f32 %v6206, %v6206
  %v6370 = vmul.f32 %v6211, %v6211
  %v6371 = vmul.f32 %v6216, %v6216
  %v6372 = vmul.f32 %v6221, %v6221
  %v6373 = vmul.f32 %v6226, %v6226
  %v6374 = vmul.f32 %v6231, %v6231
  %v6375 = vmul.f32 %v6236, %v6236
  %v6376 = vmul.f32 %v6241, %v6241
  %v6377 = vadd.f32 %v6313, %v6314
  %v6378 = vadd.f32 %v6377, %v6315
  %v6379 = vadd.f32 %v6378, %v6316
  %v6380 = vadd.f32 %v6379, %v6317
  %v6381 = vadd.f32 %v6380, %v6318
  %v6382 = vadd.f32 %v6381, %v6319
  %v6383 = vadd.f32 %v6382, %v6320
  %v6384 = vadd.f32 %v6383, %v6321
  %v6385 = vadd.f32 %v6384, %v6322
  %v6386 = vadd.f32 %v6385, %v6323
  %v6387 = vadd.f32 %v6386, %v6324
  %v6388 = vadd.f32 %v6387, %v6325
  %v6389 = vadd.f32 %v6388, %v6326
  %v6390 = vadd.f32 %v6389, %v6327
  %v6391 = vadd.f32 %v6390, %v6328
  %v6392 = vadd.f32 %v6391, %v6329
  %v6393 = vadd.f32 %v6392, %v6330
  %v6394 = vadd.f32 %v6393, %v6331
  %v6395 = vadd.f32 %v6394, %v6332
  %v6396 = vadd.f32 %v6395, %v6333
  %v6397 = vadd.f32 %v6396, %v6334
  %v6398 = vadd.f32 %v6397, %v6335
  %v6399 = vadd.f32 %v6398, %v6336
  %v6400 = vadd.f32 %v6399, %v6337
  %v6401 = vadd.f32 %v6400, %v6338
  %v6402 = vadd.f32 %v6401, %v6339
  %v6403 = vadd.f32 %v6402, %v6340
  %v6404 = vadd.f32 %v6403, %v6341
  %v6405 = vadd.f32 %v6404, %v6342
  %v6406 = vadd.f32 %v6405, %v6343
  %v6407 = vadd.f32 %v6406, %v6344
  %v6408 = vadd.f32 %v6407, %v6345
  %v6409 = vadd.f32 %v6408, %v6346
  %v6410 = vadd.f32 %v6409, %v6347
  %v6411 = vadd.f32 %v6410, %v6348
  %v6412 = vadd.f32 %v6411, %v6349
  %v6413 = vadd.f32 %v6412, %v6350
  %v6414 = vadd.f32 %v6413, %v6351
  %v6415 = vadd.f32 %v6414, %v6352
  %v6416 = vadd.f32 %v6415, %v6353
  %v6417 = vadd.f32 %v6416, %v6354
  %v6418 = vadd.f32 %v6417, %v6355
  %v6419 = vadd.f32 %v6418, %v6356
  %v6420 = vadd.f32 %v6419, %v6357
  %v6421 = vadd.f32 %v6420, %v6358
  %v6422 = vadd.f32 %v6421, %v6359
  %v6423 = vadd.f32 %v6422, %v6360
  %v6424 = vadd.f32 %v6423, %v6361
  %v6425 = vadd.f32 %v6424, %v6362
  %v6426 = vadd.f32 %v6425, %v6363
  %v6427 = vadd.f32 %v6426, %v6364
  %v6428 = vadd.f32 %v6427, %v6365
  %v6429 = vadd.f32 %v6428, %v6366
  %v6430 = vadd.f32 %v6429, %v6367
  %v6431 = vadd.f32 %v6430, %v6368
  %v6432 = vadd.f32 %v6431, %v6369
  %v6433 = vadd.f32 %v6432, %v6370
  %v6434 = vadd.f32 %v6433, %v6371
  %v6435 = vadd.f32 %v6434, %v6372
  %v6436 = vadd.f32 %v6435, %v6373
  %v6437 = vadd.f32 %v6436, %v6374
  %v6438 = vadd.f32 %v6437, %v6375
  %v6439 = vadd.f32 %v6438, %v6376
  %v6440 = vrot.slane %v6439, 4
  %v6441 = vadd.f32 %v6439, %v6440
  %v6442 = vrot.slane %v6441, 2
  %v6443 = vadd.f32 %v6441, %v6442
  %v6444 = vrot.slane %v6443, 1
  %v6445 = vadd.f32 %v6443, %v6444
  %v6446 = vmul.f32 %v6312, 0.001953125
  %v6447 = vmul.f32 %v6445, 0.001953125
  %v6448 = vmul.f32 %v6446, %v6446
  %v6449 = vsub.f32 %v6447, %v6448
  %v6450 = vmax.f32 %v6449, 0.0
  %v6451 = vadd.f32 %v6450, 1e-05
  %v6452 = vrsqrt.pop %v6451
  %v6453 = vsub.f32 %v5926, %v6446
  %v6454 = vsub.f32 %v5931, %v6446
  %v6455 = vsub.f32 %v5936, %v6446
  %v6456 = vsub.f32 %v5941, %v6446
  %v6457 = vsub.f32 %v5946, %v6446
  %v6458 = vsub.f32 %v5951, %v6446
  %v6459 = vsub.f32 %v5956, %v6446
  %v6460 = vsub.f32 %v5961, %v6446
  %v6461 = vsub.f32 %v5966, %v6446
  %v6462 = vsub.f32 %v5971, %v6446
  %v6463 = vsub.f32 %v5976, %v6446
  %v6464 = vsub.f32 %v5981, %v6446
  %v6465 = vsub.f32 %v5986, %v6446
  %v6466 = vsub.f32 %v5991, %v6446
  %v6467 = vsub.f32 %v5996, %v6446
  %v6468 = vsub.f32 %v6001, %v6446
  %v6469 = vsub.f32 %v6006, %v6446
  %v6470 = vsub.f32 %v6011, %v6446
  %v6471 = vsub.f32 %v6016, %v6446
  %v6472 = vsub.f32 %v6021, %v6446
  %v6473 = vsub.f32 %v6026, %v6446
  %v6474 = vsub.f32 %v6031, %v6446
  %v6475 = vsub.f32 %v6036, %v6446
  %v6476 = vsub.f32 %v6041, %v6446
  %v6477 = vsub.f32 %v6046, %v6446
  %v6478 = vsub.f32 %v6051, %v6446
  %v6479 = vsub.f32 %v6056, %v6446
  %v6480 = vsub.f32 %v6061, %v6446
  %v6481 = vsub.f32 %v6066, %v6446
  %v6482 = vsub.f32 %v6071, %v6446
  %v6483 = vsub.f32 %v6076, %v6446
  %v6484 = vsub.f32 %v6081, %v6446
  %v6485 = vsub.f32 %v6086, %v6446
  %v6486 = vsub.f32 %v6091, %v6446
  %v6487 = vsub.f32 %v6096, %v6446
  %v6488 = vsub.f32 %v6101, %v6446
  %v6489 = vsub.f32 %v6106, %v6446
  %v6490 = vsub.f32 %v6111, %v6446
  %v6491 = vsub.f32 %v6116, %v6446
  %v6492 = vsub.f32 %v6121, %v6446
  %v6493 = vsub.f32 %v6126, %v6446
  %v6494 = vsub.f32 %v6131, %v6446
  %v6495 = vsub.f32 %v6136, %v6446
  %v6496 = vsub.f32 %v6141, %v6446
  %v6497 = vsub.f32 %v6146, %v6446
  %v6498 = vsub.f32 %v6151, %v6446
  %v6499 = vsub.f32 %v6156, %v6446
  %v6500 = vsub.f32 %v6161, %v6446
  %v6501 = vsub.f32 %v6166, %v6446
  %v6502 = vsub.f32 %v6171, %v6446
  %v6503 = vsub.f32 %v6176, %v6446
  %v6504 = vsub.f32 %v6181, %v6446
  %v6505 = vsub.f32 %v6186, %v6446
  %v6506 = vsub.f32 %v6191, %v6446
  %v6507 = vsub.f32 %v6196, %v6446
  %v6508 = vsub.f32 %v6201, %v6446
  %v6509 = vsub.f32 %v6206, %v6446
  %v6510 = vsub.f32 %v6211, %v6446
  %v6511 = vsub.f32 %v6216, %v6446
  %v6512 = vsub.f32 %v6221, %v6446
  %v6513 = vsub.f32 %v6226, %v6446
  %v6514 = vsub.f32 %v6231, %v6446
  %v6515 = vsub.f32 %v6236, %v6446
  %v6516 = vsub.f32 %v6241, %v6446
  %v6517 = vld [vmem:[%s7] sm:$0x1]
  %v6518 = vmul.f32 %v6452, %v6517
  %v6519 = vlaneseq
  %v6520 = vshrl.u32 %v6519, 7
  %v6521 = vsub.s32 0, %v6520
  %v6522 = vrot.slane %v6518, %v6521
  %v6523 = vmul.f32 %v6453, %v6522
  %v6524 = vmul.f32 %v6454, %v6522
  %v6525 = vmul.f32 %v6455, %v6522
  %v6526 = vmul.f32 %v6456, %v6522
  %v6527 = vmul.f32 %v6457, %v6522
  %v6528 = vmul.f32 %v6458, %v6522
  %v6529 = vmul.f32 %v6459, %v6522
  %v6530 = vmul.f32 %v6460, %v6522
  %v6531 = vmul.f32 %v6461, %v6522
  %v6532 = vmul.f32 %v6462, %v6522
  %v6533 = vmul.f32 %v6463, %v6522
  %v6534 = vmul.f32 %v6464, %v6522
  %v6535 = vmul.f32 %v6465, %v6522
  %v6536 = vmul.f32 %v6466, %v6522
  %v6537 = vmul.f32 %v6467, %v6522
  %v6538 = vmul.f32 %v6468, %v6522
  %v6539 = vmul.f32 %v6469, %v6522
  %v6540 = vmul.f32 %v6470, %v6522
  %v6541 = vmul.f32 %v6471, %v6522
  %v6542 = vmul.f32 %v6472, %v6522
  %v6543 = vmul.f32 %v6473, %v6522
  %v6544 = vmul.f32 %v6474, %v6522
  %v6545 = vmul.f32 %v6475, %v6522
  %v6546 = vmul.f32 %v6476, %v6522
  %v6547 = vmul.f32 %v6477, %v6522
  %v6548 = vmul.f32 %v6478, %v6522
  %v6549 = vmul.f32 %v6479, %v6522
  %v6550 = vmul.f32 %v6480, %v6522
  %v6551 = vmul.f32 %v6481, %v6522
  %v6552 = vmul.f32 %v6482, %v6522
  %v6553 = vmul.f32 %v6483, %v6522
  %v6554 = vmul.f32 %v6484, %v6522
  %v6555 = vmul.f32 %v6485, %v6522
  %v6556 = vmul.f32 %v6486, %v6522
  %v6557 = vmul.f32 %v6487, %v6522
  %v6558 = vmul.f32 %v6488, %v6522
  %v6559 = vmul.f32 %v6489, %v6522
  %v6560 = vmul.f32 %v6490, %v6522
  %v6561 = vmul.f32 %v6491, %v6522
  %v6562 = vmul.f32 %v6492, %v6522
  %v6563 = vmul.f32 %v6493, %v6522
  %v6564 = vmul.f32 %v6494, %v6522
  %v6565 = vmul.f32 %v6495, %v6522
  %v6566 = vmul.f32 %v6496, %v6522
  %v6567 = vmul.f32 %v6497, %v6522
  %v6568 = vmul.f32 %v6498, %v6522
  %v6569 = vmul.f32 %v6499, %v6522
  %v6570 = vmul.f32 %v6500, %v6522
  %v6571 = vmul.f32 %v6501, %v6522
  %v6572 = vmul.f32 %v6502, %v6522
  %v6573 = vmul.f32 %v6503, %v6522
  %v6574 = vmul.f32 %v6504, %v6522
  %v6575 = vmul.f32 %v6505, %v6522
  %v6576 = vmul.f32 %v6506, %v6522
  %v6577 = vmul.f32 %v6507, %v6522
  %v6578 = vmul.f32 %v6508, %v6522
  %v6579 = vmul.f32 %v6509, %v6522
  %v6580 = vmul.f32 %v6510, %v6522
  %v6581 = vmul.f32 %v6511, %v6522
  %v6582 = vmul.f32 %v6512, %v6522
  %v6583 = vmul.f32 %v6513, %v6522
  %v6584 = vmul.f32 %v6514, %v6522
  %v6585 = vmul.f32 %v6515, %v6522
  %v6586 = vmul.f32 %v6516, %v6522
  %v6587 = vld [vmem:[%s8] sm:$0x1]
  %v6589 = vlaneseq
  %v6590 = vshrl.u32 %v6589, 7
  %v6591 = vsub.s32 0, %v6590
  %v6592 = vrot.slane %v6587, %v6591
  %v6594 = vadd.f32 %v6523, %v6592
  %v6595 = vadd.f32 %v6524, %v6592
  %v6596 = vadd.f32 %v6525, %v6592
  %v6597 = vadd.f32 %v6526, %v6592
  %v6598 = vadd.f32 %v6527, %v6592
  %v6599 = vadd.f32 %v6528, %v6592
  %v6600 = vadd.f32 %v6529, %v6592
  %v6601 = vadd.f32 %v6530, %v6592
  %v6602 = vadd.f32 %v6531, %v6592
  %v6603 = vadd.f32 %v6532, %v6592
  %v6604 = vadd.f32 %v6533, %v6592
  %v6605 = vadd.f32 %v6534, %v6592
  %v6606 = vadd.f32 %v6535, %v6592
  %v6607 = vadd.f32 %v6536, %v6592
  %v6608 = vadd.f32 %v6537, %v6592
  %v6609 = vadd.f32 %v6538, %v6592
  %v6610 = vadd.f32 %v6539, %v6592
  %v6611 = vadd.f32 %v6540, %v6592
  %v6612 = vadd.f32 %v6541, %v6592
  %v6613 = vadd.f32 %v6542, %v6592
  %v6614 = vadd.f32 %v6543, %v6592
  %v6615 = vadd.f32 %v6544, %v6592
  %v6616 = vadd.f32 %v6545, %v6592
  %v6617 = vadd.f32 %v6546, %v6592
  %v6618 = vadd.f32 %v6547, %v6592
  %v6619 = vadd.f32 %v6548, %v6592
  %v6620 = vadd.f32 %v6549, %v6592
  %v6621 = vadd.f32 %v6550, %v6592
  %v6622 = vadd.f32 %v6551, %v6592
  %v6623 = vadd.f32 %v6552, %v6592
  %v6624 = vadd.f32 %v6553, %v6592
  %v6625 = vadd.f32 %v6554, %v6592
  %v6626 = vadd.f32 %v6555, %v6592
  %v6627 = vadd.f32 %v6556, %v6592
  %v6628 = vadd.f32 %v6557, %v6592
  %v6629 = vadd.f32 %v6558, %v6592
  %v6630 = vadd.f32 %v6559, %v6592
  %v6631 = vadd.f32 %v6560, %v6592
  %v6632 = vadd.f32 %v6561, %v6592
  %v6633 = vadd.f32 %v6562, %v6592
  %v6634 = vadd.f32 %v6563, %v6592
  %v6635 = vadd.f32 %v6564, %v6592
  %v6636 = vadd.f32 %v6565, %v6592
  %v6637 = vadd.f32 %v6566, %v6592
  %v6638 = vadd.f32 %v6567, %v6592
  %v6639 = vadd.f32 %v6568, %v6592
  %v6640 = vadd.f32 %v6569, %v6592
  %v6641 = vadd.f32 %v6570, %v6592
  %v6642 = vadd.f32 %v6571, %v6592
  %v6643 = vadd.f32 %v6572, %v6592
  %v6644 = vadd.f32 %v6573, %v6592
  %v6645 = vadd.f32 %v6574, %v6592
  %v6646 = vadd.f32 %v6575, %v6592
  %v6647 = vadd.f32 %v6576, %v6592
  %v6648 = vadd.f32 %v6577, %v6592
  %v6649 = vadd.f32 %v6578, %v6592
  %v6650 = vadd.f32 %v6579, %v6592
  %v6651 = vadd.f32 %v6580, %v6592
  %v6652 = vadd.f32 %v6581, %v6592
  %v6653 = vadd.f32 %v6582, %v6592
  %v6654 = vadd.f32 %v6583, %v6592
  %v6655 = vadd.f32 %v6584, %v6592
  %v6656 = vadd.f32 %v6585, %v6592
  %v6657 = vadd.f32 %v6586, %v6592
  %vm6658 = vcmp.ge.f32.partialorder %v6594, 0.0
  %vm6659 = vcmp.ge.f32.partialorder %v6595, 0.0
  %vm6660 = vcmp.ge.f32.partialorder %v6596, 0.0
  %vm6661 = vcmp.ge.f32.partialorder %v6597, 0.0
  %vm6662 = vcmp.ge.f32.partialorder %v6598, 0.0
  %vm6663 = vcmp.ge.f32.partialorder %v6599, 0.0
  %vm6664 = vcmp.ge.f32.partialorder %v6600, 0.0
  %vm6665 = vcmp.ge.f32.partialorder %v6601, 0.0
  %vm6666 = vcmp.ge.f32.partialorder %v6602, 0.0
  %vm6667 = vcmp.ge.f32.partialorder %v6603, 0.0
  %vm6668 = vcmp.ge.f32.partialorder %v6604, 0.0
  %vm6669 = vcmp.ge.f32.partialorder %v6605, 0.0
  %vm6670 = vcmp.ge.f32.partialorder %v6606, 0.0
  %vm6671 = vcmp.ge.f32.partialorder %v6607, 0.0
  %vm6672 = vcmp.ge.f32.partialorder %v6608, 0.0
  %vm6673 = vcmp.ge.f32.partialorder %v6609, 0.0
  %vm6674 = vcmp.ge.f32.partialorder %v6610, 0.0
  %vm6675 = vcmp.ge.f32.partialorder %v6611, 0.0
  %vm6676 = vcmp.ge.f32.partialorder %v6612, 0.0
  %vm6677 = vcmp.ge.f32.partialorder %v6613, 0.0
  %vm6678 = vcmp.ge.f32.partialorder %v6614, 0.0
  %vm6679 = vcmp.ge.f32.partialorder %v6615, 0.0
  %vm6680 = vcmp.ge.f32.partialorder %v6616, 0.0
  %vm6681 = vcmp.ge.f32.partialorder %v6617, 0.0
  %vm6682 = vcmp.ge.f32.partialorder %v6618, 0.0
  %vm6683 = vcmp.ge.f32.partialorder %v6619, 0.0
  %vm6684 = vcmp.ge.f32.partialorder %v6620, 0.0
  %vm6685 = vcmp.ge.f32.partialorder %v6621, 0.0
  %vm6686 = vcmp.ge.f32.partialorder %v6622, 0.0
  %vm6687 = vcmp.ge.f32.partialorder %v6623, 0.0
  %vm6688 = vcmp.ge.f32.partialorder %v6624, 0.0
  %vm6689 = vcmp.ge.f32.partialorder %v6625, 0.0
  %vm6690 = vcmp.ge.f32.partialorder %v6626, 0.0
  %vm6691 = vcmp.ge.f32.partialorder %v6627, 0.0
  %vm6692 = vcmp.ge.f32.partialorder %v6628, 0.0
  %vm6693 = vcmp.ge.f32.partialorder %v6629, 0.0
  %vm6694 = vcmp.ge.f32.partialorder %v6630, 0.0
  %vm6695 = vcmp.ge.f32.partialorder %v6631, 0.0
  %vm6696 = vcmp.ge.f32.partialorder %v6632, 0.0
  %vm6697 = vcmp.ge.f32.partialorder %v6633, 0.0
  %vm6698 = vcmp.ge.f32.partialorder %v6634, 0.0
  %vm6699 = vcmp.ge.f32.partialorder %v6635, 0.0
  %vm6700 = vcmp.ge.f32.partialorder %v6636, 0.0
  %vm6701 = vcmp.ge.f32.partialorder %v6637, 0.0
  %vm6702 = vcmp.ge.f32.partialorder %v6638, 0.0
  %vm6703 = vcmp.ge.f32.partialorder %v6639, 0.0
  %vm6704 = vcmp.ge.f32.partialorder %v6640, 0.0
  %vm6705 = vcmp.ge.f32.partialorder %v6641, 0.0
  %vm6706 = vcmp.ge.f32.partialorder %v6642, 0.0
  %vm6707 = vcmp.ge.f32.partialorder %v6643, 0.0
  %vm6708 = vcmp.ge.f32.partialorder %v6644, 0.0
  %vm6709 = vcmp.ge.f32.partialorder %v6645, 0.0
  %vm6710 = vcmp.ge.f32.partialorder %v6646, 0.0
  %vm6711 = vcmp.ge.f32.partialorder %v6647, 0.0
  %vm6712 = vcmp.ge.f32.partialorder %v6648, 0.0
  %vm6713 = vcmp.ge.f32.partialorder %v6649, 0.0
  %vm6714 = vcmp.ge.f32.partialorder %v6650, 0.0
  %vm6715 = vcmp.ge.f32.partialorder %v6651, 0.0
  %vm6716 = vcmp.ge.f32.partialorder %v6652, 0.0
  %vm6717 = vcmp.ge.f32.partialorder %v6653, 0.0
  %vm6718 = vcmp.ge.f32.partialorder %v6654, 0.0
  %vm6719 = vcmp.ge.f32.partialorder %v6655, 0.0
  %vm6720 = vcmp.ge.f32.partialorder %v6656, 0.0
  %vm6721 = vcmp.ge.f32.partialorder %v6657, 0.0
  %v6722 = vmul.f32 %v6594, 0.01
  %v6723 = vmul.f32 %v6595, 0.01
  %v6724 = vmul.f32 %v6596, 0.01
  %v6725 = vmul.f32 %v6597, 0.01
  %v6726 = vmul.f32 %v6598, 0.01
  %v6727 = vmul.f32 %v6599, 0.01
  %v6728 = vmul.f32 %v6600, 0.01
  %v6729 = vmul.f32 %v6601, 0.01
  %v6730 = vmul.f32 %v6602, 0.01
  %v6731 = vmul.f32 %v6603, 0.01
  %v6732 = vmul.f32 %v6604, 0.01
  %v6733 = vmul.f32 %v6605, 0.01
  %v6734 = vmul.f32 %v6606, 0.01
  %v6735 = vmul.f32 %v6607, 0.01
  %v6736 = vmul.f32 %v6608, 0.01
  %v6737 = vmul.f32 %v6609, 0.01
  %v6738 = vmul.f32 %v6610, 0.01
  %v6739 = vmul.f32 %v6611, 0.01
  %v6740 = vmul.f32 %v6612, 0.01
  %v6741 = vmul.f32 %v6613, 0.01
  %v6742 = vmul.f32 %v6614, 0.01
  %v6743 = vmul.f32 %v6615, 0.01
  %v6744 = vmul.f32 %v6616, 0.01
  %v6745 = vmul.f32 %v6617, 0.01
  %v6746 = vmul.f32 %v6618, 0.01
  %v6747 = vmul.f32 %v6619, 0.01
  %v6748 = vmul.f32 %v6620, 0.01
  %v6749 = vmul.f32 %v6621, 0.01
  %v6750 = vmul.f32 %v6622, 0.01
  %v6751 = vmul.f32 %v6623, 0.01
  %v6752 = vmul.f32 %v6624, 0.01
  %v6753 = vmul.f32 %v6625, 0.01
  %v6754 = vmul.f32 %v6626, 0.01
  %v6755 = vmul.f32 %v6627, 0.01
  %v6756 = vmul.f32 %v6628, 0.01
  %v6757 = vmul.f32 %v6629, 0.01
  %v6758 = vmul.f32 %v6630, 0.01
  %v6759 = vmul.f32 %v6631, 0.01
  %v6760 = vmul.f32 %v6632, 0.01
  %v6761 = vmul.f32 %v6633, 0.01
  %v6762 = vmul.f32 %v6634, 0.01
  %v6763 = vmul.f32 %v6635, 0.01
  %v6764 = vmul.f32 %v6636, 0.01
  %v6765 = vmul.f32 %v6637, 0.01
  %v6766 = vmul.f32 %v6638, 0.01
  %v6767 = vmul.f32 %v6639, 0.01
  %v6768 = vmul.f32 %v6640, 0.01
  %v6769 = vmul.f32 %v6641, 0.01
  %v6770 = vmul.f32 %v6642, 0.01
  %v6771 = vmul.f32 %v6643, 0.01
  %v6772 = vmul.f32 %v6644, 0.01
  %v6773 = vmul.f32 %v6645, 0.01
  %v6774 = vmul.f32 %v6646, 0.01
  %v6775 = vmul.f32 %v6647, 0.01
  %v6776 = vmul.f32 %v6648, 0.01
  %v6777 = vmul.f32 %v6649, 0.01
  %v6778 = vmul.f32 %v6650, 0.01
  %v6779 = vmul.f32 %v6651, 0.01
  %v6780 = vmul.f32 %v6652, 0.01
  %v6781 = vmul.f32 %v6653, 0.01
  %v6782 = vmul.f32 %v6654, 0.01
  %v6783 = vmul.f32 %v6655, 0.01
  %v6784 = vmul.f32 %v6656, 0.01
  %v6785 = vmul.f32 %v6657, 0.01
  %v6786 = vsel %vm6658, %v6594, %v6722
  %v6787 = vsel %vm6659, %v6595, %v6723
  %v6788 = vsel %vm6660, %v6596, %v6724
  %v6789 = vsel %vm6661, %v6597, %v6725
  %v6790 = vsel %vm6662, %v6598, %v6726
  %v6791 = vsel %vm6663, %v6599, %v6727
  %v6792 = vsel %vm6664, %v6600, %v6728
  %v6793 = vsel %vm6665, %v6601, %v6729
  %v6794 = vsel %vm6666, %v6602, %v6730
  %v6795 = vsel %vm6667, %v6603, %v6731
  %v6796 = vsel %vm6668, %v6604, %v6732
  %v6797 = vsel %vm6669, %v6605, %v6733
  %v6798 = vsel %vm6670, %v6606, %v6734
  %v6799 = vsel %vm6671, %v6607, %v6735
  %v6800 = vsel %vm6672, %v6608, %v6736
  %v6801 = vsel %vm6673, %v6609, %v6737
  %v6802 = vsel %vm6674, %v6610, %v6738
  %v6803 = vsel %vm6675, %v6611, %v6739
  %v6804 = vsel %vm6676, %v6612, %v6740
  %v6805 = vsel %vm6677, %v6613, %v6741
  %v6806 = vsel %vm6678, %v6614, %v6742
  %v6807 = vsel %vm6679, %v6615, %v6743
  %v6808 = vsel %vm6680, %v6616, %v6744
  %v6809 = vsel %vm6681, %v6617, %v6745
  %v6810 = vsel %vm6682, %v6618, %v6746
  %v6811 = vsel %vm6683, %v6619, %v6747
  %v6812 = vsel %vm6684, %v6620, %v6748
  %v6813 = vsel %vm6685, %v6621, %v6749
  %v6814 = vsel %vm6686, %v6622, %v6750
  %v6815 = vsel %vm6687, %v6623, %v6751
  %v6816 = vsel %vm6688, %v6624, %v6752
  %v6817 = vsel %vm6689, %v6625, %v6753
  %v6818 = vsel %vm6690, %v6626, %v6754
  %v6819 = vsel %vm6691, %v6627, %v6755
  %v6820 = vsel %vm6692, %v6628, %v6756
  %v6821 = vsel %vm6693, %v6629, %v6757
  %v6822 = vsel %vm6694, %v6630, %v6758
  %v6823 = vsel %vm6695, %v6631, %v6759
  %v6824 = vsel %vm6696, %v6632, %v6760
  %v6825 = vsel %vm6697, %v6633, %v6761
  %v6826 = vsel %vm6698, %v6634, %v6762
  %v6827 = vsel %vm6699, %v6635, %v6763
  %v6828 = vsel %vm6700, %v6636, %v6764
  %v6829 = vsel %vm6701, %v6637, %v6765
  %v6830 = vsel %vm6702, %v6638, %v6766
  %v6831 = vsel %vm6703, %v6639, %v6767
  %v6832 = vsel %vm6704, %v6640, %v6768
  %v6833 = vsel %vm6705, %v6641, %v6769
  %v6834 = vsel %vm6706, %v6642, %v6770
  %v6835 = vsel %vm6707, %v6643, %v6771
  %v6836 = vsel %vm6708, %v6644, %v6772
  %v6837 = vsel %vm6709, %v6645, %v6773
  %v6838 = vsel %vm6710, %v6646, %v6774
  %v6839 = vsel %vm6711, %v6647, %v6775
  %v6840 = vsel %vm6712, %v6648, %v6776
  %v6841 = vsel %vm6713, %v6649, %v6777
  %v6842 = vsel %vm6714, %v6650, %v6778
  %v6843 = vsel %vm6715, %v6651, %v6779
  %v6844 = vsel %vm6716, %v6652, %v6780
  %v6845 = vsel %vm6717, %v6653, %v6781
  %v6846 = vsel %vm6718, %v6654, %v6782
  %v6847 = vsel %vm6719, %v6655, %v6783
  %v6848 = vsel %vm6720, %v6656, %v6784
  %v6849 = vsel %vm6721, %v6657, %v6785
  %6850 = vst [vmem:[%s9] sm:$0xff] %v6786
  %6851 = vst [vmem:[%s9 + $0x8] sm:$0xff] %v6787
  %6852 = vst [vmem:[%s9 + $0x10] sm:$0xff] %v6788
  %6853 = vst [vmem:[%s9 + $0x18] sm:$0xff] %v6789
  %6854 = vst [vmem:[%s9 + $0x20] sm:$0xff] %v6790
  %6855 = vst [vmem:[%s9 + $0x28] sm:$0xff] %v6791
  %6856 = vst [vmem:[%s9 + $0x30] sm:$0xff] %v6792
  %6857 = vst [vmem:[%s9 + $0x38] sm:$0xff] %v6793
  %6858 = vst [vmem:[%s9 + $0x40] sm:$0xff] %v6794
  %6859 = vst [vmem:[%s9 + $0x48] sm:$0xff] %v6795
  %6860 = vst [vmem:[%s9 + $0x50] sm:$0xff] %v6796
  %6861 = vst [vmem:[%s9 + $0x58] sm:$0xff] %v6797
  %6862 = vst [vmem:[%s9 + $0x60] sm:$0xff] %v6798
  %6863 = vst [vmem:[%s9 + $0x68] sm:$0xff] %v6799
  %6864 = vst [vmem:[%s9 + $0x70] sm:$0xff] %v6800
  %6865 = vst [vmem:[%s9 + $0x78] sm:$0xff] %v6801
  %6866 = vst [vmem:[%s9 + $0x80] sm:$0xff] %v6802
  %6867 = vst [vmem:[%s9 + $0x88] sm:$0xff] %v6803
  %6868 = vst [vmem:[%s9 + $0x90] sm:$0xff] %v6804
  %6869 = vst [vmem:[%s9 + $0x98] sm:$0xff] %v6805
  %6870 = vst [vmem:[%s9 + $0xa0] sm:$0xff] %v6806
  %6871 = vst [vmem:[%s9 + $0xa8] sm:$0xff] %v6807
  %6872 = vst [vmem:[%s9 + $0xb0] sm:$0xff] %v6808
  %6873 = vst [vmem:[%s9 + $0xb8] sm:$0xff] %v6809
  %6874 = vst [vmem:[%s9 + $0xc0] sm:$0xff] %v6810
  %6875 = vst [vmem:[%s9 + $0xc8] sm:$0xff] %v6811
  %6876 = vst [vmem:[%s9 + $0xd0] sm:$0xff] %v6812
  %6877 = vst [vmem:[%s9 + $0xd8] sm:$0xff] %v6813
  %6878 = vst [vmem:[%s9 + $0xe0] sm:$0xff] %v6814
  %6879 = vst [vmem:[%s9 + $0xe8] sm:$0xff] %v6815
  %6880 = vst [vmem:[%s9 + $0xf0] sm:$0xff] %v6816
  %6881 = vst [vmem:[%s9 + $0xf8] sm:$0xff] %v6817
  %6882 = vst [vmem:[%s9 + $0x100] sm:$0xff] %v6818
  %6883 = vst [vmem:[%s9 + $0x108] sm:$0xff] %v6819
  %6884 = vst [vmem:[%s9 + $0x110] sm:$0xff] %v6820
  %6885 = vst [vmem:[%s9 + $0x118] sm:$0xff] %v6821
  %6886 = vst [vmem:[%s9 + $0x120] sm:$0xff] %v6822
  %6887 = vst [vmem:[%s9 + $0x128] sm:$0xff] %v6823
  %6888 = vst [vmem:[%s9 + $0x130] sm:$0xff] %v6824
  %6889 = vst [vmem:[%s9 + $0x138] sm:$0xff] %v6825
  %6890 = vst [vmem:[%s9 + $0x140] sm:$0xff] %v6826
  %6891 = vst [vmem:[%s9 + $0x148] sm:$0xff] %v6827
  %6892 = vst [vmem:[%s9 + $0x150] sm:$0xff] %v6828
  %6893 = vst [vmem:[%s9 + $0x158] sm:$0xff] %v6829
  %6894 = vst [vmem:[%s9 + $0x160] sm:$0xff] %v6830
  %6895 = vst [vmem:[%s9 + $0x168] sm:$0xff] %v6831
  %6896 = vst [vmem:[%s9 + $0x170] sm:$0xff] %v6832
  %6897 = vst [vmem:[%s9 + $0x178] sm:$0xff] %v6833
  %6898 = vst [vmem:[%s9 + $0x180] sm:$0xff] %v6834
  %6899 = vst [vmem:[%s9 + $0x188] sm:$0xff] %v6835
  %6900 = vst [vmem:[%s9 + $0x190] sm:$0xff] %v6836
  %6901 = vst [vmem:[%s9 + $0x198] sm:$0xff] %v6837
  %6902 = vst [vmem:[%s9 + $0x1a0] sm:$0xff] %v6838
  %6903 = vst [vmem:[%s9 + $0x1a8] sm:$0xff] %v6839
  %6904 = vst [vmem:[%s9 + $0x1b0] sm:$0xff] %v6840
  %6905 = vst [vmem:[%s9 + $0x1b8] sm:$0xff] %v6841
  %6906 = vst [vmem:[%s9 + $0x1c0] sm:$0xff] %v6842
  %6907 = vst [vmem:[%s9 + $0x1c8] sm:$0xff] %v6843
  %6908 = vst [vmem:[%s9 + $0x1d0] sm:$0xff] %v6844
  %6909 = vst [vmem:[%s9 + $0x1d8] sm:$0xff] %v6845
  %6910 = vst [vmem:[%s9 + $0x1e0] sm:$0xff] %v6846
  %6911 = vst [vmem:[%s9 + $0x1e8] sm:$0xff] %v6847
  %6912 = vst [vmem:[%s9 + $0x1f0] sm:$0xff] %v6848
  %6913 = vst [vmem:[%s9 + $0x1f8] sm:$0xff] %v6849
  // Predicated region
  $region38: #{stacked_conv_layers_forward.1} parent=0 // pred_check
    _
  $region39: #{stacked_conv_layers_forward.1} parent=0 // pred_check_branch
    %6915 = sbr.rel (0) target = $region41
  $region40: #{stacked_conv_layers_forward.1} parent=0 // pred_region
    _
  $region41: #{stacked_conv_layers_forward.1} parent=0 // pred_fallthru
    _
  // Predicated region
  $region42: #{stacked_conv_layers_forward.1} parent=0 // pred_check
    _
  $region43: #{stacked_conv_layers_forward.1} parent=0 // pred_check_branch
    %6917 = sbr.rel (0) target = $region45
  $region44: #{stacked_conv_layers_forward.1} parent=0 // pred_region
    _
  $region45: #{stacked_conv_layers_forward.1} parent=0 // pred_fallthru
    _

</llo_original>
